<compile_context>
chip_gen: v7x
topology: tpu7x:2x2x1
jax: 0.10.0
libtpu: 0.0.40
codegen_flags: <defaults>
</compile_context>

<pallas_src>
import functools
import math

import numpy as np
import jax
import jax.numpy as jnp
from jax import lax
from jax.experimental import pallas as pl
from jax.experimental.pallas import tpu as pltpu

LANE = 128         # lane width of a vreg tile; d_model / ff-hidden / vocab are padded to it
_EPS = 1e-5        # nn.LayerNorm default eps
_NEG = -1e10       # matches masked_fill(mask == 0, -1e10) in the reference


def _rup(x, m):
    return ((x + m - 1) // m) * m


# ----------------------------- packed-slab layout (shared by packer & kernel) ------------

def _narrow_layout(num_layer, heads):
    """Ordered (name -> row offset) for the 128-lane slab; every item row-padded to 8."""
    HS = heads * LANE
    items = []

    def enc_items(p):
        items.extend([(p + "wo", HS), (p + "w1", LANE), (p + "w2", LANE)])
        items.extend([(p + v, 8) for v in ("bo", "ln1g", "ln1b", "b1", "b2", "ln2g", "ln2b")])

    for i in range(num_layer):
        enc_items(f"enc{i}_")
    items.append(("dec_wo", HS))
    items.extend([(v, 8) for v in ("dec_bo", "dec_lng", "dec_lnb")])
    enc_items("cross_")
    items.extend([("fc_w", LANE), ("fc_b", 8)])

    offs, r = {}, 0
    for name, rows in items:
        offs[name] = r
        r += rows
    return offs, r


def _wide_layout(num_layer):
    """Row offsets for the head-spread QKV slab (one LANE-row block per MHA)."""
    offs = {f"enc{i}": i * LANE for i in range(num_layer)}
    offs["dec_self"] = num_layer * LANE
    offs["cross"] = (num_layer + 1) * LANE
    return offs, (num_layer + 2) * LANE


# ----------------------------- parameter init (mirrors the torch module) -----------------

def init_params(key, d_model, heads, ff_expansion, num_layer, vocab):
    keys = iter(jax.random.split(key, 4096))

    def lin_w(din, dout):
        return jax.random.normal(next(keys), (din, dout), jnp.float32) / math.sqrt(din)

    def lin_b(dout):
        return 0.01 * jax.random.normal(next(keys), (1, dout), jnp.float32)

    ones = lambda dd: jnp.ones((1, dd), jnp.float32)
    zeros = lambda dd: jnp.zeros((1, dd), jnp.float32)

    def attn_p():
        return dict(w_q=lin_w(d_model, d_model), w_k=lin_w(d_model, d_model),
                    w_v=lin_w(d_model, d_model), w_o=lin_w(d_model, d_model),
                    b_o=lin_b(d_model))

    def enc_block_p():
        h = ff_expansion * d_model
        return dict(attn=attn_p(),
                    ln1_g=ones(d_model), ln1_b=zeros(d_model),
                    w1=lin_w(d_model, h), b1=lin_b(h),
                    w2=lin_w(h, d_model), b2=lin_b(d_model),
                    ln2_g=ones(d_model), ln2_b=zeros(d_model))

    def dec_block_p():
        return dict(self_attn=attn_p(), ln_g=ones(d_model), ln_b=zeros(d_model),
                    cross=enc_block_p())

    return dict(enc_layers=[enc_block_p() for _ in range(num_layer)],
                dec_layers=[dec_block_p() for _ in range(num_layer)],
                fc_w=lin_w(d_model, vocab), fc_b=lin_b(vocab))


# ----------------------------- one-time weight packing (host-side, numpy) ----------------

def pack_params(params, *, d_model, heads, ff_expansion, num_layer, vocab):
    """Pack all live weights into two VMEM slabs (head-spread, zero-padded to 128 lanes)."""
    assert d_model % heads == 0
    dk = d_model // heads
    HS = heads * LANE
    ffh = ff_expansion * d_model
    assert d_model <= LANE and ffh <= LANE and vocab <= LANE  # TODO(synk): larger dims need lane tiling

    noffs, nrows = _narrow_layout(num_layer, heads)
    woffs, wrows = _wide_layout(num_layer)
    narrow = np.zeros((nrows, LANE), np.float32)
    wide = np.zeros((wrows, 3 * HS), np.float32)

    def put_vec(name, v):                       # (1, width) -> one slab row
        v = np.asarray(v, np.float32)
        narrow[noffs[name], :v.shape[1]] = v[0]

    def put_mat(name, m):                       # (rin, rout) -> top-left of its block
        m = np.asarray(m, np.float32)
        narrow[noffs[name]:noffs[name] + m.shape[0], :m.shape[1]] = m

    def put_wo(name, w_o):                      # head h's dk input rows -> rows [h*128, h*128+dk)
        w_o = np.asarray(w_o, np.float32)
        for h in range(heads):
            r0 = noffs[name] + h * LANE
            narrow[r0:r0 + dk, :d_model] = w_o[h * dk:(h + 1) * dk, :]

    def put_qkv(name, a):                       # spread Q,K,V: head h -> its own lane tile
        base = woffs[name]
        for gi, w in enumerate((a["w_q"], a["w_k"], a["w_v"])):
            w = np.asarray(w, np.float32)
            for h in range(heads):
                c0 = gi * HS + h * LANE
                wide[base:base + d_model, c0:c0 + dk] = w[:, h * dk:(h + 1) * dk]

    def pack_enc(prefix, wname, blk):
        put_qkv(wname, blk["attn"])
        put_wo(prefix + "wo", blk["attn"]["w_o"])
        put_vec(prefix + "bo", blk["attn"]["b_o"])
        put_vec(prefix + "ln1g", blk["ln1_g"]); put_vec(prefix + "ln1b", blk["ln1_b"])
        put_mat(prefix + "w1", blk["w1"]); put_vec(prefix + "b1", blk["b1"])
        put_mat(prefix + "w2", blk["w2"]); put_vec(prefix + "b2", blk["b2"])
        put_vec(prefix + "ln2g", blk["ln2_g"]); put_vec(prefix + "ln2b", blk["ln2_b"])

    for i, blk in enumerate(params["enc_layers"]):
        pack_enc(f"enc{i}_", f"enc{i}", blk)

    # Reference decoder loop overwrites `out` every iteration and never feeds it forward,
    # so only the LAST decoder layer influences the output -> pack (and run) only that one.
    last = params["dec_layers"][-1]
    put_qkv("dec_self", last["self_attn"])
    put_wo("dec_wo", last["self_attn"]["w_o"])
    put_vec("dec_bo", last["self_attn"]["b_o"])
    put_vec("dec_lng", last["ln_g"]); put_vec("dec_lnb", last["ln_b"])
    pack_enc("cross_", "cross", last["cross"])

    put_mat("fc_w", params["fc_w"]); put_vec("fc_b", params["fc_b"])

    return jnp.asarray(wide), jnp.asarray(narrow)


# ----------------------------- embeddings (wrapper-side, PE is a trace-time constant) ----

def _embed_padded(tokens, d_model, rows_padded):
    # TODO(synk): the reference `Embedding` class is not provided; assumed to be
    # one-hot(token -> d_model) + sinusoidal positional encoding (dropout = identity, eval).
    n, l = tokens.shape
    oh = jax.nn.one_hot(tokens, d_model, dtype=jnp.float32)           # (n, l, d)
    pos = np.arange(l, dtype=np.float32)[:, None]
    div = np.exp(np.arange(0, d_model, 2, dtype=np.float32) * (-math.log(10000.0) / d_model))
    pe = np.zeros((l, d_model), np.float32)
    pe[:, 0::2] = np.sin(pos * div)
    pe[:, 1::2] = np.cos(pos * div)
    x = (oh + jnp.asarray(pe)[None, :, :]).reshape(n * l, d_model)
    return jnp.pad(x, ((0, rows_padded - n * l), (0, LANE - d_model)))


# ----------------------------- fused forward (one pallas_call) ---------------------------

@functools.partial(jax.jit, static_argnames=("d_model", "heads", "ff_expansion",
                                             "num_layer", "vocab", "src_pad_idx"))
def transformer_forward(wide, narrow, src_seq, trg_seq, *, d_model, heads, ff_expansion,
                        num_layer, vocab, src_pad_idx):
    n, ls = src_seq.shape
    lt = trg_seq.shape[1]
    dk = d_model // heads
    HS = heads * LANE
    rs, rt = n * ls, n * lt
    assert rs <= LANE  # TODO(synk): key dimension > 128 needs a tiled keep-row / mask path
    rs_p, rt_p = _rup(rs, 8), _rup(rt, 8)
    trg_off, keep_off = rs_p, rs_p + rt_p

    noffs, nrows = _narrow_layout(num_layer, heads)
    woffs, wrows = _wide_layout(num_layer)
    assert narrow.shape == (nrows, LANE) and wide.shape == (wrows, 3 * HS)

    # Activation slab: [src embedding | trg embedding | src-keep row], 128-lane dense.
    x_src = _embed_padded(src_seq, d_model, rs_p)
    x_trg = _embed_padded(trg_seq, d_model, rt_p)
    keep = (src_seq != src_pad_idx).astype(jnp.float32).reshape(1, rs)
    keep_blk = jnp.pad(keep, ((0, 7), (0, LANE - rs)))
    acts = jnp.concatenate([x_src, x_trg, keep_blk], axis=0)          # (rs_p + rt_p + 8, 128)

    def kernel(acts_ref, wide_ref, narrow_ref, out_ref):
        lane = lax.broadcasted_iota(jnp.int32, (1, LANE), 1)
        d_valid = lane < d_model
        v_valid = lane < vocab
        inv_d = 1.0 / d_model
        scale = 1.0 / math.sqrt(dk)

        def row(name):                                   # (1, 128) packed vector
            off = noffs[name]
            return narrow_ref[off:off + 1, :]

        def mat(name, rows):                             # (rows, 128) packed matrix
            off = noffs[name]
            return narrow_ref[off:off + rows, :]

        def layernorm(x, g, b):                          # stats over the d_model valid lanes
            mu = jnp.sum(x, axis=-1, keepdims=True) * inv_d
            diff = jnp.where(d_valid, x - mu, 0.0)
            var = jnp.sum(diff * diff, axis=-1, keepdims=True) * inv_d
            return diff * lax.rsqrt(var + _EPS) * g + b

        def gelu(x):
            # TODO(synk): nn.GELU() default is exact erf; tanh form keeps the transcendental
            # on the EUP slot (max abs deviation ~3e-4).
            c = 0.7978845608028654  # sqrt(2/pi)
            return 0.5 * x * (1.0 + jnp.tanh(c * (x + 0.044715 * x * x * x)))

        keep_row = acts_ref[keep_off:keep_off + 1, :]    # (1, 128), src-keep in lanes [0:rs)

        def key_keep(lq, lk):                            # block-diag batches & src not padded
            Rq, Rk = n * lq, n * lk
            r = lax.broadcasted_iota(jnp.int32, (Rq, Rk), 0)
            c = lax.broadcasted_iota(jnp.int32, (Rq, Rk), 1)
            k = keep_row[:, :Rk] > 0.5
            for b in range(1, n):                        # same-batch via nested indicators
                k = jnp.logical_and(k, (r >= b * lq) == (c >= b * lk))
            return k

        def causal_keep(lq):                             # block-diag batches & lower triangular
            Rq = n * lq
            r = lax.broadcasted_iota(jnp.int32, (Rq, Rq), 0)
            c = lax.broadcasted_iota(jnp.int32, (Rq, Rq), 1)
            k = c <= r                                   # valid because lq == lk within a batch
            for b in range(1, n):
                k = jnp.logical_and(k, (r >= b * lq) == (c >= b * lq))
            return k

        def mha(q2, kv2, wname, wo, bo, keep_m):
            base = woffs[wname]
            wq = wide_ref[base:base + LANE, 0:HS]                     # head-spread Q proj
            wkv = wide_ref[base:base + LANE, HS:3 * HS]               # head-spread K|V proj
            qp = jnp.dot(q2, wq, preferred_element_type=jnp.float32)   # (Rq, heads*128)
            kvp = jnp.dot(kv2, wkv, preferred_element_type=jnp.float32)  # (Rk, 2*heads*128)
            outs = []
            for h in range(heads):                                     # static unroll
                q_h = qp[:, h * LANE:(h + 1) * LANE]
                k_h = kvp[:, h * LANE:(h + 1) * LANE]
                v_h = kvp[:, HS + h * LANE:HS + (h + 1) * LANE]
                s = lax.dot_general(q_h, k_h, (((1,), (1,)), ((), ())),
                                    preferred_element_type=jnp.float32)   # (Rq, Rk)
                s = jnp.where(keep_m, s, _NEG) * scale   # masked_fill BEFORE /sqrt(dk), like torch
                s = s - jnp.max(s, axis=-1, keepdims=True)
                e = jnp.exp(s)
                p = e / jnp.sum(e, axis=-1, keepdims=True)               # exact softmax
                outs.append(jnp.dot(p, v_h, preferred_element_type=jnp.float32))
            o_cat = jnp.concatenate(outs, axis=-1)                       # (Rq, heads*128)
            return jnp.dot(o_cat, wo, preferred_element_type=jnp.float32) + bo

        def enc_block(q2, kv2, keep_m, p, wname):
            attn = mha(q2, kv2, wname, mat(p + "wo", HS), row(p + "bo"), keep_m)
            s2 = layernorm(q2 + attn, row(p + "ln1g"), row(p + "ln1b"))  # dropout = identity
            hdn = gelu(jnp.dot(s2, mat(p + "w1", LANE),
                               preferred_element_type=jnp.float32) + row(p + "b1"))
            s3 = jnp.dot(hdn, mat(p + "w2", LANE),
                         preferred_element_type=jnp.float32) + row(p + "b2")
            return layernorm(s2 + s3, row(p + "ln2g"), row(p + "ln2b"))  # dropout = identity

        # --- encoder stack ---
        km_enc = key_keep(ls, ls)
        x = acts_ref[0:rs, :]
        for i in range(num_layer):                                       # static unroll
            x = enc_block(x, x, km_enc, f"enc{i}_", f"enc{i}")
        enc = x

        # --- decoder: reference semantics keep only the LAST layer's output ---
        dec_in = acts_ref[trg_off:trg_off + rt, :]
        sa = mha(dec_in, dec_in, "dec_self", mat("dec_wo", HS), row("dec_bo"),
                 causal_keep(lt))
        dq = layernorm(sa + dec_in, row("dec_lng"), row("dec_lnb"))      # dropout = identity
        dec_out = enc_block(dq, enc, key_keep(lt, ls), "cross_", "cross")

        # --- final linear + softmax over the vocab lanes ---
        logits = jnp.dot(dec_out, mat("fc_w", LANE),
                         preferred_element_type=jnp.float32) + row("fc_b")
        logits = jnp.where(v_valid, logits, -1e30)
        logits = logits - jnp.max(logits, axis=-1, keepdims=True)
        e = jnp.exp(logits)
        out_ref[...] = e / jnp.sum(e, axis=-1, keepdims=True)

    vmem = pl.BlockSpec(memory_space=pltpu.MemorySpace.VMEM)
    probs_pad = pl.pallas_call(
        kernel,
        out_shape=jax.ShapeDtypeStruct((rt, LANE), jnp.float32),
        in_specs=[vmem, vmem, vmem],
        out_specs=vmem,
    )(acts, wide, narrow)

    return probs_pad[:, :vocab].reshape(n, lt, vocab)


# ----------------------------- main -----------------------------

if __name__ == "__main__":
    D_MODEL, HEADS, FF_EXPANSION, NUM_LAYER = 32, 4, 4, 2
    SEQ_LEN, VOCAB, BATCH = 8, 32, 2
    SRC_PAD = 0

    root = jax.random.PRNGKey(0)
    kp, ks, kt = jax.random.split(root, 3)
    params = init_params(kp, D_MODEL, HEADS, FF_EXPANSION, NUM_LAYER, VOCAB)
    wide, narrow = pack_params(params, d_model=D_MODEL, heads=HEADS,
                               ff_expansion=FF_EXPANSION, num_layer=NUM_LAYER, vocab=VOCAB)

    src_seq = jax.random.randint(ks, (BATCH, SEQ_LEN), 1, VOCAB, dtype=jnp.int32)
    trg_seq = jax.random.randint(kt, (BATCH, SEQ_LEN), 1, VOCAB, dtype=jnp.int32)
    src_seq = src_seq.at[:, -2:].set(SRC_PAD)   # exercise the src padding mask

    out = transformer_forward(wide, narrow, src_seq, trg_seq,
                              d_model=D_MODEL, heads=HEADS, ff_expansion=FF_EXPANSION,
                              num_layer=NUM_LAYER, vocab=VOCAB, src_pad_idx=SRC_PAD)
    out = jax.block_until_ready(out)

    assert out.shape == (BATCH, SEQ_LEN, VOCAB)
    assert bool(jnp.all(jnp.isfinite(out)))
    assert bool(jnp.allclose(out.sum(-1), 1.0, atol=1e-4))   # final softmax rows sum to 1
    print("KERNEL_OK")
</pallas_src>

<mosaic_0001>
module attributes {stable_mosaic.version = 11 : i64} {
  func.func @kernel(%arg0: memref<40x128xf32, #tpu.memory_space<vmem>>, %arg1: memref<512x1536xf32, #tpu.memory_space<vmem>>, %arg2: memref<3144x128xf32, #tpu.memory_space<vmem>>, %arg3: memref<16x128xf32, #tpu.memory_space<vmem>>) attributes {dimension_semantics = [], scalar_prefetch = 0 : i64, scratch_operands = 0 : i64, tpu.core_type = #tpu.core_type<tc>} {
    %0 = tpu.iota {dimensions = array<i32: 1>} : vector<1x128xi32>
    %c32_i32 = arith.constant 32 : i32
    %1 = vector.broadcast %c32_i32 : i32 to vector<1x128xi32>
    %2 = arith.cmpi slt, %0, %1 : vector<1x128xi32>
    %c32_i32_0 = arith.constant 32 : i32
    %3 = vector.broadcast %c32_i32_0 : i32 to vector<1x128xi32>
    %4 = arith.cmpi slt, %0, %3 : vector<1x128xi32>
    %c32 = arith.constant 32 : index
    %c0 = arith.constant 0 : index
    %5 = vector.load %arg0[%c32, %c0] : memref<40x128xf32, #tpu.memory_space<vmem>>, vector<1x128xf32>
    %6 = tpu.iota {dimensions = array<i32: 0>} : vector<16x16xi32>
    %7 = tpu.iota {dimensions = array<i32: 1>} : vector<16x16xi32>
    %8 = vector.extract_strided_slice %5 {offsets = [0, 0], sizes = [1, 16], strides = [1, 1]} : vector<1x128xf32> to vector<1x16xf32>
    %cst = arith.constant 5.000000e-01 : f32
    %9 = vector.broadcast %cst : f32 to vector<1x16xf32>
    %10 = arith.cmpf ogt, %8, %9 : vector<1x16xf32>
    %c8_i32 = arith.constant 8 : i32
    %11 = vector.broadcast %c8_i32 : i32 to vector<16x16xi32>
    %12 = arith.cmpi sge, %6, %11 : vector<16x16xi32>
    %c8_i32_1 = arith.constant 8 : i32
    %13 = vector.broadcast %c8_i32_1 : i32 to vector<16x16xi32>
    %14 = arith.cmpi sge, %7, %13 : vector<16x16xi32>
    %15 = arith.xori %12, %14 : vector<16x16xi1>
    %cst_2 = arith.constant dense<true> : vector<16x16xi1>
    %16 = arith.xori %15, %cst_2 : vector<16x16xi1>
    %17 = vector.broadcast %10 : vector<1x16xi1> to vector<16x16xi1>
    %18 = arith.andi %17, %16 : vector<16x16xi1>
    %c0_3 = arith.constant 0 : index
    %c0_4 = arith.constant 0 : index
    %19 = vector.load %arg0[%c0_3, %c0_4] : memref<40x128xf32, #tpu.memory_space<vmem>>, vector<16x128xf32>
    %c0_5 = arith.constant 0 : index
    %c0_6 = arith.constant 0 : index
    %20 = vector.load %arg2[%c0_5, %c0_6] : memref<3144x128xf32, #tpu.memory_space<vmem>>, vector<512x128xf32>
    %c768 = arith.constant 768 : index
    %c0_7 = arith.constant 0 : index
    %21 = vector.load %arg2[%c768, %c0_7] : memref<3144x128xf32, #tpu.memory_space<vmem>>, vector<1x128xf32>
    %c0_8 = arith.constant 0 : index
    %c0_9 = arith.constant 0 : index
    %22 = vector.load %arg1[%c0_8, %c0_9] : memref<512x1536xf32, #tpu.memory_space<vmem>>, vector<128x512xf32>
    %c0_10 = arith.constant 0 : index
    %c512 = arith.constant 512 : index
    %23 = vector.load %arg1[%c0_10, %c512] : memref<512x1536xf32, #tpu.memory_space<vmem>>, vector<128x1024xf32>
    %cst_11 = arith.constant dense<0.000000e+00> : vector<16x512xf32>
    %24 = tpu.matmul %19, %22, %cst_11 {dimension_numbers = #tpu.dot_dimension_numbers<[1], [0], [0], [1], [0, 0, 1, 1], [], []>} : vector<16x128xf32>, vector<128x512xf32>, vector<16x512xf32> -> vector<16x512xf32>
    %cst_12 = arith.constant dense<0.000000e+00> : vector<16x1024xf32>
    %25 = tpu.matmul %19, %23, %cst_12 {dimension_numbers = #tpu.dot_dimension_numbers<[1], [0], [0], [1], [0, 0, 1, 1], [], []>} : vector<16x128xf32>, vector<128x1024xf32>, vector<16x1024xf32> -> vector<16x1024xf32>
    %26 = vector.extract_strided_slice %24 {offsets = [0, 0], sizes = [16, 128], strides = [1, 1]} : vector<16x512xf32> to vector<16x128xf32>
    %27 = vector.extract_strided_slice %25 {offsets = [0, 0], sizes = [16, 128], strides = [1, 1]} : vector<16x1024xf32> to vector<16x128xf32>
    %28 = vector.extract_strided_slice %25 {offsets = [0, 512], sizes = [16, 128], strides = [1, 1]} : vector<16x1024xf32> to vector<16x128xf32>
    %cst_13 = arith.constant dense<0.000000e+00> : vector<16x16xf32>
    %29 = tpu.matmul %26, %27, %cst_13 {dimension_numbers = #tpu.dot_dimension_numbers<[1], [1], [0], [0], [0, 0, 1, 0], [], []>} : vector<16x128xf32>, vector<16x128xf32>, vector<16x16xf32> -> vector<16x16xf32>
    %cst_14 = arith.constant -1.000000e+10 : f32
    %30 = vector.broadcast %cst_14 : f32 to vector<16x16xf32>
    %31 = arith.select %18, %29, %30 : vector<16x16xi1>, vector<16x16xf32>
    %cst_15 = arith.constant 0.353553385 : f32
    %32 = vector.broadcast %cst_15 : f32 to vector<16x16xf32>
    %33 = arith.mulf %31, %32 : vector<16x16xf32>
    %cst_16 = arith.constant dense<0xFF800000> : vector<16xf32>
    %34 = vector.multi_reduction <maximumf>, %33, %cst_16 [1] : vector<16x16xf32> to vector<16xf32>
    %35 = vector.shape_cast %34 : vector<16xf32> to vector<16x1xf32>
    %36 = vector.broadcast %35 : vector<16x1xf32> to vector<16x16xf32>
    %37 = arith.subf %33, %36 : vector<16x16xf32>
    %38 = math.exp %37 : vector<16x16xf32>
    %cst_17 = arith.constant dense<0.000000e+00> : vector<16xf32>
    %39 = vector.multi_reduction <add>, %38, %cst_17 [1] : vector<16x16xf32> to vector<16xf32>
    %40 = vector.shape_cast %39 : vector<16xf32> to vector<16x1xf32>
    %41 = vector.broadcast %40 : vector<16x1xf32> to vector<16x16xf32>
    %42 = arith.divf %38, %41 : vector<16x16xf32>
    %cst_18 = arith.constant dense<0.000000e+00> : vector<16x128xf32>
    %43 = tpu.matmul %42, %28, %cst_18 {dimension_numbers = #tpu.dot_dimension_numbers<[1], [0], [0], [1], [0, 0, 1, 1], [], []>} : vector<16x16xf32>, vector<16x128xf32>, vector<16x128xf32> -> vector<16x128xf32>
    %44 = vector.extract_strided_slice %24 {offsets = [0, 128], sizes = [16, 128], strides = [1, 1]} : vector<16x512xf32> to vector<16x128xf32>
    %45 = vector.extract_strided_slice %25 {offsets = [0, 128], sizes = [16, 128], strides = [1, 1]} : vector<16x1024xf32> to vector<16x128xf32>
    %46 = vector.extract_strided_slice %25 {offsets = [0, 640], sizes = [16, 128], strides = [1, 1]} : vector<16x1024xf32> to vector<16x128xf32>
    %cst_19 = arith.constant dense<0.000000e+00> : vector<16x16xf32>
    %47 = tpu.matmul %44, %45, %cst_19 {dimension_numbers = #tpu.dot_dimension_numbers<[1], [1], [0], [0], [0, 0, 1, 0], [], []>} : vector<16x128xf32>, vector<16x128xf32>, vector<16x16xf32> -> vector<16x16xf32>
    %cst_20 = arith.constant -1.000000e+10 : f32
    %48 = vector.broadcast %cst_20 : f32 to vector<16x16xf32>
    %49 = arith.select %18, %47, %48 : vector<16x16xi1>, vector<16x16xf32>
    %cst_21 = arith.constant 0.353553385 : f32
    %50 = vector.broadcast %cst_21 : f32 to vector<16x16xf32>
    %51 = arith.mulf %49, %50 : vector<16x16xf32>
    %cst_22 = arith.constant dense<0xFF800000> : vector<16xf32>
    %52 = vector.multi_reduction <maximumf>, %51, %cst_22 [1] : vector<16x16xf32> to vector<16xf32>
    %53 = vector.shape_cast %52 : vector<16xf32> to vector<16x1xf32>
    %54 = vector.broadcast %53 : vector<16x1xf32> to vector<16x16xf32>
    %55 = arith.subf %51, %54 : vector<16x16xf32>
    %56 = math.exp %55 : vector<16x16xf32>
    %cst_23 = arith.constant dense<0.000000e+00> : vector<16xf32>
    %57 = vector.multi_reduction <add>, %56, %cst_23 [1] : vector<16x16xf32> to vector<16xf32>
    %58 = vector.shape_cast %57 : vector<16xf32> to vector<16x1xf32>
    %59 = vector.broadcast %58 : vector<16x1xf32> to vector<16x16xf32>
    %60 = arith.divf %56, %59 : vector<16x16xf32>
    %cst_24 = arith.constant dense<0.000000e+00> : vector<16x128xf32>
    %61 = tpu.matmul %60, %46, %cst_24 {dimension_numbers = #tpu.dot_dimension_numbers<[1], [0], [0], [1], [0, 0, 1, 1], [], []>} : vector<16x16xf32>, vector<16x128xf32>, vector<16x128xf32> -> vector<16x128xf32>
    %62 = vector.extract_strided_slice %24 {offsets = [0, 256], sizes = [16, 128], strides = [1, 1]} : vector<16x512xf32> to vector<16x128xf32>
    %63 = vector.extract_strided_slice %25 {offsets = [0, 256], sizes = [16, 128], strides = [1, 1]} : vector<16x1024xf32> to vector<16x128xf32>
    %64 = vector.extract_strided_slice %25 {offsets = [0, 768], sizes = [16, 128], strides = [1, 1]} : vector<16x1024xf32> to vector<16x128xf32>
    %cst_25 = arith.constant dense<0.000000e+00> : vector<16x16xf32>
    %65 = tpu.matmul %62, %63, %cst_25 {dimension_numbers = #tpu.dot_dimension_numbers<[1], [1], [0], [0], [0, 0, 1, 0], [], []>} : vector<16x128xf32>, vector<16x128xf32>, vector<16x16xf32> -> vector<16x16xf32>
    %cst_26 = arith.constant -1.000000e+10 : f32
    %66 = vector.broadcast %cst_26 : f32 to vector<16x16xf32>
    %67 = arith.select %18, %65, %66 : vector<16x16xi1>, vector<16x16xf32>
    %cst_27 = arith.constant 0.353553385 : f32
    %68 = vector.broadcast %cst_27 : f32 to vector<16x16xf32>
    %69 = arith.mulf %67, %68 : vector<16x16xf32>
    %cst_28 = arith.constant dense<0xFF800000> : vector<16xf32>
    %70 = vector.multi_reduction <maximumf>, %69, %cst_28 [1] : vector<16x16xf32> to vector<16xf32>
    %71 = vector.shape_cast %70 : vector<16xf32> to vector<16x1xf32>
    %72 = vector.broadcast %71 : vector<16x1xf32> to vector<16x16xf32>
    %73 = arith.subf %69, %72 : vector<16x16xf32>
    %74 = math.exp %73 : vector<16x16xf32>
    %cst_29 = arith.constant dense<0.000000e+00> : vector<16xf32>
    %75 = vector.multi_reduction <add>, %74, %cst_29 [1] : vector<16x16xf32> to vector<16xf32>
    %76 = vector.shape_cast %75 : vector<16xf32> to vector<16x1xf32>
    %77 = vector.broadcast %76 : vector<16x1xf32> to vector<16x16xf32>
    %78 = arith.divf %74, %77 : vector<16x16xf32>
    %cst_30 = arith.constant dense<0.000000e+00> : vector<16x128xf32>
    %79 = tpu.matmul %78, %64, %cst_30 {dimension_numbers = #tpu.dot_dimension_numbers<[1], [0], [0], [1], [0, 0, 1, 1], [], []>} : vector<16x16xf32>, vector<16x128xf32>, vector<16x128xf32> -> vector<16x128xf32>
    %80 = vector.extract_strided_slice %24 {offsets = [0, 384], sizes = [16, 128], strides = [1, 1]} : vector<16x512xf32> to vector<16x128xf32>
    %81 = vector.extract_strided_slice %25 {offsets = [0, 384], sizes = [16, 128], strides = [1, 1]} : vector<16x1024xf32> to vector<16x128xf32>
    %82 = vector.extract_strided_slice %25 {offsets = [0, 896], sizes = [16, 128], strides = [1, 1]} : vector<16x1024xf32> to vector<16x128xf32>
    %cst_31 = arith.constant dense<0.000000e+00> : vector<16x16xf32>
    %83 = tpu.matmul %80, %81, %cst_31 {dimension_numbers = #tpu.dot_dimension_numbers<[1], [1], [0], [0], [0, 0, 1, 0], [], []>} : vector<16x128xf32>, vector<16x128xf32>, vector<16x16xf32> -> vector<16x16xf32>
    %cst_32 = arith.constant -1.000000e+10 : f32
    %84 = vector.broadcast %cst_32 : f32 to vector<16x16xf32>
    %85 = arith.select %18, %83, %84 : vector<16x16xi1>, vector<16x16xf32>
    %cst_33 = arith.constant 0.353553385 : f32
    %86 = vector.broadcast %cst_33 : f32 to vector<16x16xf32>
    %87 = arith.mulf %85, %86 : vector<16x16xf32>
    %cst_34 = arith.constant dense<0xFF800000> : vector<16xf32>
    %88 = vector.multi_reduction <maximumf>, %87, %cst_34 [1] : vector<16x16xf32> to vector<16xf32>
    %89 = vector.shape_cast %88 : vector<16xf32> to vector<16x1xf32>
    %90 = vector.broadcast %89 : vector<16x1xf32> to vector<16x16xf32>
    %91 = arith.subf %87, %90 : vector<16x16xf32>
    %92 = math.exp %91 : vector<16x16xf32>
    %cst_35 = arith.constant dense<0.000000e+00> : vector<16xf32>
    %93 = vector.multi_reduction <add>, %92, %cst_35 [1] : vector<16x16xf32> to vector<16xf32>
    %94 = vector.shape_cast %93 : vector<16xf32> to vector<16x1xf32>
    %95 = vector.broadcast %94 : vector<16x1xf32> to vector<16x16xf32>
    %96 = arith.divf %92, %95 : vector<16x16xf32>
    %cst_36 = arith.constant dense<0.000000e+00> : vector<16x128xf32>
    %97 = tpu.matmul %96, %82, %cst_36 {dimension_numbers = #tpu.dot_dimension_numbers<[1], [0], [0], [1], [0, 0, 1, 1], [], []>} : vector<16x16xf32>, vector<16x128xf32>, vector<16x128xf32> -> vector<16x128xf32>
    %98 = tpu.concatenate %43, %61, %79, %97 in 1 : vector<16x128xf32>, vector<16x128xf32>, vector<16x128xf32>, vector<16x128xf32> -> vector<16x512xf32>
    %cst_37 = arith.constant dense<0.000000e+00> : vector<16x128xf32>
    %99 = tpu.matmul %98, %20, %cst_37 {dimension_numbers = #tpu.dot_dimension_numbers<[1], [0], [0], [1], [0, 0, 1, 1], [], []>} : vector<16x512xf32>, vector<512x128xf32>, vector<16x128xf32> -> vector<16x128xf32>
    %100 = vector.broadcast %21 : vector<1x128xf32> to vector<16x128xf32>
    %101 = arith.addf %99, %100 : vector<16x128xf32>
    %102 = arith.addf %19, %101 : vector<16x128xf32>
    %c776 = arith.constant 776 : index
    %c0_38 = arith.constant 0 : index
    %103 = vector.load %arg2[%c776, %c0_38] : memref<3144x128xf32, #tpu.memory_space<vmem>>, vector<1x128xf32>
    %c784 = arith.constant 784 : index
    %c0_39 = arith.constant 0 : index
    %104 = vector.load %arg2[%c784, %c0_39] : memref<3144x128xf32, #tpu.memory_space<vmem>>, vector<1x128xf32>
    %cst_40 = arith.constant dense<0.000000e+00> : vector<16xf32>
    %105 = vector.multi_reduction <add>, %102, %cst_40 [1] : vector<16x128xf32> to vector<16xf32>
    %106 = vector.shape_cast %105 : vector<16xf32> to vector<16x1xf32>
    %cst_41 = arith.constant 3.125000e-02 : f32
    %107 = vector.broadcast %cst_41 : f32 to vector<16x1xf32>
    %108 = arith.mulf %106, %107 : vector<16x1xf32>
    %109 = vector.broadcast %108 : vector<16x1xf32> to vector<16x128xf32>
    %110 = arith.subf %102, %109 : vector<16x128xf32>
    %cst_42 = arith.constant 0.000000e+00 : f32
    %111 = vector.shape_cast %2 : vector<1x128xi1> to vector<1x128xi1>
    %112 = vector.broadcast %111 : vector<1x128xi1> to vector<16x128xi1>
    %113 = vector.broadcast %cst_42 : f32 to vector<16x128xf32>
    %114 = arith.select %112, %110, %113 : vector<16x128xi1>, vector<16x128xf32>
    %115 = arith.mulf %114, %114 : vector<16x128xf32>
    %cst_43 = arith.constant dense<0.000000e+00> : vector<16xf32>
    %116 = vector.multi_reduction <add>, %115, %cst_43 [1] : vector<16x128xf32> to vector<16xf32>
    %117 = vector.shape_cast %116 : vector<16xf32> to vector<16x1xf32>
    %cst_44 = arith.constant 3.125000e-02 : f32
    %118 = vector.broadcast %cst_44 : f32 to vector<16x1xf32>
    %119 = arith.mulf %117, %118 : vector<16x1xf32>
    %cst_45 = arith.constant 9.99999974E-6 : f32
    %120 = vector.broadcast %cst_45 : f32 to vector<16x1xf32>
    %121 = arith.addf %119, %120 : vector<16x1xf32>
    %122 = math.rsqrt %121 : vector<16x1xf32>
    %123 = vector.broadcast %122 : vector<16x1xf32> to vector<16x128xf32>
    %124 = arith.mulf %114, %123 : vector<16x128xf32>
    %125 = vector.broadcast %103 : vector<1x128xf32> to vector<16x128xf32>
    %126 = arith.mulf %124, %125 : vector<16x128xf32>
    %127 = vector.broadcast %104 : vector<1x128xf32> to vector<16x128xf32>
    %128 = arith.addf %126, %127 : vector<16x128xf32>
    %c512_46 = arith.constant 512 : index
    %c0_47 = arith.constant 0 : index
    %129 = vector.load %arg2[%c512_46, %c0_47] : memref<3144x128xf32, #tpu.memory_space<vmem>>, vector<128x128xf32>
    %cst_48 = arith.constant dense<0.000000e+00> : vector<16x128xf32>
    %130 = tpu.matmul %128, %129, %cst_48 {dimension_numbers = #tpu.dot_dimension_numbers<[1], [0], [0], [1], [0, 0, 1, 1], [], []>} : vector<16x128xf32>, vector<128x128xf32>, vector<16x128xf32> -> vector<16x128xf32>
    %c792 = arith.constant 792 : index
    %c0_49 = arith.constant 0 : index
    %131 = vector.load %arg2[%c792, %c0_49] : memref<3144x128xf32, #tpu.memory_space<vmem>>, vector<1x128xf32>
    %132 = vector.broadcast %131 : vector<1x128xf32> to vector<16x128xf32>
    %133 = arith.addf %130, %132 : vector<16x128xf32>
    %cst_50 = arith.constant 5.000000e-01 : f32
    %134 = vector.broadcast %cst_50 : f32 to vector<16x128xf32>
    %135 = arith.mulf %134, %133 : vector<16x128xf32>
    %cst_51 = arith.constant 4.471500e-02 : f32
    %136 = vector.broadcast %cst_51 : f32 to vector<16x128xf32>
    %137 = arith.mulf %136, %133 : vector<16x128xf32>
    %138 = arith.mulf %137, %133 : vector<16x128xf32>
    %139 = arith.mulf %138, %133 : vector<16x128xf32>
    %140 = arith.addf %133, %139 : vector<16x128xf32>
    %cst_52 = arith.constant 0.797884583 : f32
    %141 = vector.broadcast %cst_52 : f32 to vector<16x128xf32>
    %142 = arith.mulf %141, %140 : vector<16x128xf32>
    %143 = math.tanh %142 : vector<16x128xf32>
    %cst_53 = arith.constant 1.000000e+00 : f32
    %144 = vector.broadcast %cst_53 : f32 to vector<16x128xf32>
    %145 = arith.addf %144, %143 : vector<16x128xf32>
    %146 = arith.mulf %135, %145 : vector<16x128xf32>
    %c640 = arith.constant 640 : index
    %c0_54 = arith.constant 0 : index
    %147 = vector.load %arg2[%c640, %c0_54] : memref<3144x128xf32, #tpu.memory_space<vmem>>, vector<128x128xf32>
    %cst_55 = arith.constant dense<0.000000e+00> : vector<16x128xf32>
    %148 = tpu.matmul %146, %147, %cst_55 {dimension_numbers = #tpu.dot_dimension_numbers<[1], [0], [0], [1], [0, 0, 1, 1], [], []>} : vector<16x128xf32>, vector<128x128xf32>, vector<16x128xf32> -> vector<16x128xf32>
    %c800 = arith.constant 800 : index
    %c0_56 = arith.constant 0 : index
    %149 = vector.load %arg2[%c800, %c0_56] : memref<3144x128xf32, #tpu.memory_space<vmem>>, vector<1x128xf32>
    %150 = vector.broadcast %149 : vector<1x128xf32> to vector<16x128xf32>
    %151 = arith.addf %148, %150 : vector<16x128xf32>
    %152 = arith.addf %128, %151 : vector<16x128xf32>
    %c808 = arith.constant 808 : index
    %c0_57 = arith.constant 0 : index
    %153 = vector.load %arg2[%c808, %c0_57] : memref<3144x128xf32, #tpu.memory_space<vmem>>, vector<1x128xf32>
    %c816 = arith.constant 816 : index
    %c0_58 = arith.constant 0 : index
    %154 = vector.load %arg2[%c816, %c0_58] : memref<3144x128xf32, #tpu.memory_space<vmem>>, vector<1x128xf32>
    %cst_59 = arith.constant dense<0.000000e+00> : vector<16xf32>
    %155 = vector.multi_reduction <add>, %152, %cst_59 [1] : vector<16x128xf32> to vector<16xf32>
    %156 = vector.shape_cast %155 : vector<16xf32> to vector<16x1xf32>
    %cst_60 = arith.constant 3.125000e-02 : f32
    %157 = vector.broadcast %cst_60 : f32 to vector<16x1xf32>
    %158 = arith.mulf %156, %157 : vector<16x1xf32>
    %159 = vector.broadcast %158 : vector<16x1xf32> to vector<16x128xf32>
    %160 = arith.subf %152, %159 : vector<16x128xf32>
    %cst_61 = arith.constant 0.000000e+00 : f32
    %161 = vector.shape_cast %2 : vector<1x128xi1> to vector<1x128xi1>
    %162 = vector.broadcast %161 : vector<1x128xi1> to vector<16x128xi1>
    %163 = vector.broadcast %cst_61 : f32 to vector<16x128xf32>
    %164 = arith.select %162, %160, %163 : vector<16x128xi1>, vector<16x128xf32>
    %165 = arith.mulf %164, %164 : vector<16x128xf32>
    %cst_62 = arith.constant dense<0.000000e+00> : vector<16xf32>
    %166 = vector.multi_reduction <add>, %165, %cst_62 [1] : vector<16x128xf32> to vector<16xf32>
    %167 = vector.shape_cast %166 : vector<16xf32> to vector<16x1xf32>
    %cst_63 = arith.constant 3.125000e-02 : f32
    %168 = vector.broadcast %cst_63 : f32 to vector<16x1xf32>
    %169 = arith.mulf %167, %168 : vector<16x1xf32>
    %cst_64 = arith.constant 9.99999974E-6 : f32
    %170 = vector.broadcast %cst_64 : f32 to vector<16x1xf32>
    %171 = arith.addf %169, %170 : vector<16x1xf32>
    %172 = math.rsqrt %171 : vector<16x1xf32>
    %173 = vector.broadcast %172 : vector<16x1xf32> to vector<16x128xf32>
    %174 = arith.mulf %164, %173 : vector<16x128xf32>
    %175 = vector.broadcast %153 : vector<1x128xf32> to vector<16x128xf32>
    %176 = arith.mulf %174, %175 : vector<16x128xf32>
    %177 = vector.broadcast %154 : vector<1x128xf32> to vector<16x128xf32>
    %178 = arith.addf %176, %177 : vector<16x128xf32>
    %c824 = arith.constant 824 : index
    %c0_65 = arith.constant 0 : index
    %179 = vector.load %arg2[%c824, %c0_65] : memref<3144x128xf32, #tpu.memory_space<vmem>>, vector<512x128xf32>
    %c1592 = arith.constant 1592 : index
    %c0_66 = arith.constant 0 : index
    %180 = vector.load %arg2[%c1592, %c0_66] : memref<3144x128xf32, #tpu.memory_space<vmem>>, vector<1x128xf32>
    %c128 = arith.constant 128 : index
    %c0_67 = arith.constant 0 : index
    %181 = vector.load %arg1[%c128, %c0_67] : memref<512x1536xf32, #tpu.memory_space<vmem>>, vector<128x512xf32>
    %c128_68 = arith.constant 128 : index
    %c512_69 = arith.constant 512 : index
    %182 = vector.load %arg1[%c128_68, %c512_69] : memref<512x1536xf32, #tpu.memory_space<vmem>>, vector<128x1024xf32>
    %cst_70 = arith.constant dense<0.000000e+00> : vector<16x512xf32>
    %183 = tpu.matmul %178, %181, %cst_70 {dimension_numbers = #tpu.dot_dimension_numbers<[1], [0], [0], [1], [0, 0, 1, 1], [], []>} : vector<16x128xf32>, vector<128x512xf32>, vector<16x512xf32> -> vector<16x512xf32>
    %cst_71 = arith.constant dense<0.000000e+00> : vector<16x1024xf32>
    %184 = tpu.matmul %178, %182, %cst_71 {dimension_numbers = #tpu.dot_dimension_numbers<[1], [0], [0], [1], [0, 0, 1, 1], [], []>} : vector<16x128xf32>, vector<128x1024xf32>, vector<16x1024xf32> -> vector<16x1024xf32>
    %185 = vector.extract_strided_slice %183 {offsets = [0, 0], sizes = [16, 128], strides = [1, 1]} : vector<16x512xf32> to vector<16x128xf32>
    %186 = vector.extract_strided_slice %184 {offsets = [0, 0], sizes = [16, 128], strides = [1, 1]} : vector<16x1024xf32> to vector<16x128xf32>
    %187 = vector.extract_strided_slice %184 {offsets = [0, 512], sizes = [16, 128], strides = [1, 1]} : vector<16x1024xf32> to vector<16x128xf32>
    %cst_72 = arith.constant dense<0.000000e+00> : vector<16x16xf32>
    %188 = tpu.matmul %185, %186, %cst_72 {dimension_numbers = #tpu.dot_dimension_numbers<[1], [1], [0], [0], [0, 0, 1, 0], [], []>} : vector<16x128xf32>, vector<16x128xf32>, vector<16x16xf32> -> vector<16x16xf32>
    %cst_73 = arith.constant -1.000000e+10 : f32
    %189 = vector.broadcast %cst_73 : f32 to vector<16x16xf32>
    %190 = arith.select %18, %188, %189 : vector<16x16xi1>, vector<16x16xf32>
    %cst_74 = arith.constant 0.353553385 : f32
    %191 = vector.broadcast %cst_74 : f32 to vector<16x16xf32>
    %192 = arith.mulf %190, %191 : vector<16x16xf32>
    %cst_75 = arith.constant dense<0xFF800000> : vector<16xf32>
    %193 = vector.multi_reduction <maximumf>, %192, %cst_75 [1] : vector<16x16xf32> to vector<16xf32>
    %194 = vector.shape_cast %193 : vector<16xf32> to vector<16x1xf32>
    %195 = vector.broadcast %194 : vector<16x1xf32> to vector<16x16xf32>
    %196 = arith.subf %192, %195 : vector<16x16xf32>
    %197 = math.exp %196 : vector<16x16xf32>
    %cst_76 = arith.constant dense<0.000000e+00> : vector<16xf32>
    %198 = vector.multi_reduction <add>, %197, %cst_76 [1] : vector<16x16xf32> to vector<16xf32>
    %199 = vector.shape_cast %198 : vector<16xf32> to vector<16x1xf32>
    %200 = vector.broadcast %199 : vector<16x1xf32> to vector<16x16xf32>
    %201 = arith.divf %197, %200 : vector<16x16xf32>
    %cst_77 = arith.constant dense<0.000000e+00> : vector<16x128xf32>
    %202 = tpu.matmul %201, %187, %cst_77 {dimension_numbers = #tpu.dot_dimension_numbers<[1], [0], [0], [1], [0, 0, 1, 1], [], []>} : vector<16x16xf32>, vector<16x128xf32>, vector<16x128xf32> -> vector<16x128xf32>
    %203 = vector.extract_strided_slice %183 {offsets = [0, 128], sizes = [16, 128], strides = [1, 1]} : vector<16x512xf32> to vector<16x128xf32>
    %204 = vector.extract_strided_slice %184 {offsets = [0, 128], sizes = [16, 128], strides = [1, 1]} : vector<16x1024xf32> to vector<16x128xf32>
    %205 = vector.extract_strided_slice %184 {offsets = [0, 640], sizes = [16, 128], strides = [1, 1]} : vector<16x1024xf32> to vector<16x128xf32>
    %cst_78 = arith.constant dense<0.000000e+00> : vector<16x16xf32>
    %206 = tpu.matmul %203, %204, %cst_78 {dimension_numbers = #tpu.dot_dimension_numbers<[1], [1], [0], [0], [0, 0, 1, 0], [], []>} : vector<16x128xf32>, vector<16x128xf32>, vector<16x16xf32> -> vector<16x16xf32>
    %cst_79 = arith.constant -1.000000e+10 : f32
    %207 = vector.broadcast %cst_79 : f32 to vector<16x16xf32>
    %208 = arith.select %18, %206, %207 : vector<16x16xi1>, vector<16x16xf32>
    %cst_80 = arith.constant 0.353553385 : f32
    %209 = vector.broadcast %cst_80 : f32 to vector<16x16xf32>
    %210 = arith.mulf %208, %209 : vector<16x16xf32>
    %cst_81 = arith.constant dense<0xFF800000> : vector<16xf32>
    %211 = vector.multi_reduction <maximumf>, %210, %cst_81 [1] : vector<16x16xf32> to vector<16xf32>
    %212 = vector.shape_cast %211 : vector<16xf32> to vector<16x1xf32>
    %213 = vector.broadcast %212 : vector<16x1xf32> to vector<16x16xf32>
    %214 = arith.subf %210, %213 : vector<16x16xf32>
    %215 = math.exp %214 : vector<16x16xf32>
    %cst_82 = arith.constant dense<0.000000e+00> : vector<16xf32>
    %216 = vector.multi_reduction <add>, %215, %cst_82 [1] : vector<16x16xf32> to vector<16xf32>
    %217 = vector.shape_cast %216 : vector<16xf32> to vector<16x1xf32>
    %218 = vector.broadcast %217 : vector<16x1xf32> to vector<16x16xf32>
    %219 = arith.divf %215, %218 : vector<16x16xf32>
    %cst_83 = arith.constant dense<0.000000e+00> : vector<16x128xf32>
    %220 = tpu.matmul %219, %205, %cst_83 {dimension_numbers = #tpu.dot_dimension_numbers<[1], [0], [0], [1], [0, 0, 1, 1], [], []>} : vector<16x16xf32>, vector<16x128xf32>, vector<16x128xf32> -> vector<16x128xf32>
    %221 = vector.extract_strided_slice %183 {offsets = [0, 256], sizes = [16, 128], strides = [1, 1]} : vector<16x512xf32> to vector<16x128xf32>
    %222 = vector.extract_strided_slice %184 {offsets = [0, 256], sizes = [16, 128], strides = [1, 1]} : vector<16x1024xf32> to vector<16x128xf32>
    %223 = vector.extract_strided_slice %184 {offsets = [0, 768], sizes = [16, 128], strides = [1, 1]} : vector<16x1024xf32> to vector<16x128xf32>
    %cst_84 = arith.constant dense<0.000000e+00> : vector<16x16xf32>
    %224 = tpu.matmul %221, %222, %cst_84 {dimension_numbers = #tpu.dot_dimension_numbers<[1], [1], [0], [0], [0, 0, 1, 0], [], []>} : vector<16x128xf32>, vector<16x128xf32>, vector<16x16xf32> -> vector<16x16xf32>
    %cst_85 = arith.constant -1.000000e+10 : f32
    %225 = vector.broadcast %cst_85 : f32 to vector<16x16xf32>
    %226 = arith.select %18, %224, %225 : vector<16x16xi1>, vector<16x16xf32>
    %cst_86 = arith.constant 0.353553385 : f32
    %227 = vector.broadcast %cst_86 : f32 to vector<16x16xf32>
    %228 = arith.mulf %226, %227 : vector<16x16xf32>
    %cst_87 = arith.constant dense<0xFF800000> : vector<16xf32>
    %229 = vector.multi_reduction <maximumf>, %228, %cst_87 [1] : vector<16x16xf32> to vector<16xf32>
    %230 = vector.shape_cast %229 : vector<16xf32> to vector<16x1xf32>
    %231 = vector.broadcast %230 : vector<16x1xf32> to vector<16x16xf32>
    %232 = arith.subf %228, %231 : vector<16x16xf32>
    %233 = math.exp %232 : vector<16x16xf32>
    %cst_88 = arith.constant dense<0.000000e+00> : vector<16xf32>
    %234 = vector.multi_reduction <add>, %233, %cst_88 [1] : vector<16x16xf32> to vector<16xf32>
    %235 = vector.shape_cast %234 : vector<16xf32> to vector<16x1xf32>
    %236 = vector.broadcast %235 : vector<16x1xf32> to vector<16x16xf32>
    %237 = arith.divf %233, %236 : vector<16x16xf32>
    %cst_89 = arith.constant dense<0.000000e+00> : vector<16x128xf32>
    %238 = tpu.matmul %237, %223, %cst_89 {dimension_numbers = #tpu.dot_dimension_numbers<[1], [0], [0], [1], [0, 0, 1, 1], [], []>} : vector<16x16xf32>, vector<16x128xf32>, vector<16x128xf32> -> vector<16x128xf32>
    %239 = vector.extract_strided_slice %183 {offsets = [0, 384], sizes = [16, 128], strides = [1, 1]} : vector<16x512xf32> to vector<16x128xf32>
    %240 = vector.extract_strided_slice %184 {offsets = [0, 384], sizes = [16, 128], strides = [1, 1]} : vector<16x1024xf32> to vector<16x128xf32>
    %241 = vector.extract_strided_slice %184 {offsets = [0, 896], sizes = [16, 128], strides = [1, 1]} : vector<16x1024xf32> to vector<16x128xf32>
    %cst_90 = arith.constant dense<0.000000e+00> : vector<16x16xf32>
    %242 = tpu.matmul %239, %240, %cst_90 {dimension_numbers = #tpu.dot_dimension_numbers<[1], [1], [0], [0], [0, 0, 1, 0], [], []>} : vector<16x128xf32>, vector<16x128xf32>, vector<16x16xf32> -> vector<16x16xf32>
    %cst_91 = arith.constant -1.000000e+10 : f32
    %243 = vector.broadcast %cst_91 : f32 to vector<16x16xf32>
    %244 = arith.select %18, %242, %243 : vector<16x16xi1>, vector<16x16xf32>
    %cst_92 = arith.constant 0.353553385 : f32
    %245 = vector.broadcast %cst_92 : f32 to vector<16x16xf32>
    %246 = arith.mulf %244, %245 : vector<16x16xf32>
    %cst_93 = arith.constant dense<0xFF800000> : vector<16xf32>
    %247 = vector.multi_reduction <maximumf>, %246, %cst_93 [1] : vector<16x16xf32> to vector<16xf32>
    %248 = vector.shape_cast %247 : vector<16xf32> to vector<16x1xf32>
    %249 = vector.broadcast %248 : vector<16x1xf32> to vector<16x16xf32>
    %250 = arith.subf %246, %249 : vector<16x16xf32>
    %251 = math.exp %250 : vector<16x16xf32>
    %cst_94 = arith.constant dense<0.000000e+00> : vector<16xf32>
    %252 = vector.multi_reduction <add>, %251, %cst_94 [1] : vector<16x16xf32> to vector<16xf32>
    %253 = vector.shape_cast %252 : vector<16xf32> to vector<16x1xf32>
    %254 = vector.broadcast %253 : vector<16x1xf32> to vector<16x16xf32>
    %255 = arith.divf %251, %254 : vector<16x16xf32>
    %cst_95 = arith.constant dense<0.000000e+00> : vector<16x128xf32>
    %256 = tpu.matmul %255, %241, %cst_95 {dimension_numbers = #tpu.dot_dimension_numbers<[1], [0], [0], [1], [0, 0, 1, 1], [], []>} : vector<16x16xf32>, vector<16x128xf32>, vector<16x128xf32> -> vector<16x128xf32>
    %257 = tpu.concatenate %202, %220, %238, %256 in 1 : vector<16x128xf32>, vector<16x128xf32>, vector<16x128xf32>, vector<16x128xf32> -> vector<16x512xf32>
    %cst_96 = arith.constant dense<0.000000e+00> : vector<16x128xf32>
    %258 = tpu.matmul %257, %179, %cst_96 {dimension_numbers = #tpu.dot_dimension_numbers<[1], [0], [0], [1], [0, 0, 1, 1], [], []>} : vector<16x512xf32>, vector<512x128xf32>, vector<16x128xf32> -> vector<16x128xf32>
    %259 = vector.broadcast %180 : vector<1x128xf32> to vector<16x128xf32>
    %260 = arith.addf %258, %259 : vector<16x128xf32>
    %261 = arith.addf %178, %260 : vector<16x128xf32>
    %c1600 = arith.constant 1600 : index
    %c0_97 = arith.constant 0 : index
    %262 = vector.load %arg2[%c1600, %c0_97] : memref<3144x128xf32, #tpu.memory_space<vmem>>, vector<1x128xf32>
    %c1608 = arith.constant 1608 : index
    %c0_98 = arith.constant 0 : index
    %263 = vector.load %arg2[%c1608, %c0_98] : memref<3144x128xf32, #tpu.memory_space<vmem>>, vector<1x128xf32>
    %cst_99 = arith.constant dense<0.000000e+00> : vector<16xf32>
    %264 = vector.multi_reduction <add>, %261, %cst_99 [1] : vector<16x128xf32> to vector<16xf32>
    %265 = vector.shape_cast %264 : vector<16xf32> to vector<16x1xf32>
    %cst_100 = arith.constant 3.125000e-02 : f32
    %266 = vector.broadcast %cst_100 : f32 to vector<16x1xf32>
    %267 = arith.mulf %265, %266 : vector<16x1xf32>
    %268 = vector.broadcast %267 : vector<16x1xf32> to vector<16x128xf32>
    %269 = arith.subf %261, %268 : vector<16x128xf32>
    %cst_101 = arith.constant 0.000000e+00 : f32
    %270 = vector.shape_cast %2 : vector<1x128xi1> to vector<1x128xi1>
    %271 = vector.broadcast %270 : vector<1x128xi1> to vector<16x128xi1>
    %272 = vector.broadcast %cst_101 : f32 to vector<16x128xf32>
    %273 = arith.select %271, %269, %272 : vector<16x128xi1>, vector<16x128xf32>
    %274 = arith.mulf %273, %273 : vector<16x128xf32>
    %cst_102 = arith.constant dense<0.000000e+00> : vector<16xf32>
    %275 = vector.multi_reduction <add>, %274, %cst_102 [1] : vector<16x128xf32> to vector<16xf32>
    %276 = vector.shape_cast %275 : vector<16xf32> to vector<16x1xf32>
    %cst_103 = arith.constant 3.125000e-02 : f32
    %277 = vector.broadcast %cst_103 : f32 to vector<16x1xf32>
    %278 = arith.mulf %276, %277 : vector<16x1xf32>
    %cst_104 = arith.constant 9.99999974E-6 : f32
    %279 = vector.broadcast %cst_104 : f32 to vector<16x1xf32>
    %280 = arith.addf %278, %279 : vector<16x1xf32>
    %281 = math.rsqrt %280 : vector<16x1xf32>
    %282 = vector.broadcast %281 : vector<16x1xf32> to vector<16x128xf32>
    %283 = arith.mulf %273, %282 : vector<16x128xf32>
    %284 = vector.broadcast %262 : vector<1x128xf32> to vector<16x128xf32>
    %285 = arith.mulf %283, %284 : vector<16x128xf32>
    %286 = vector.broadcast %263 : vector<1x128xf32> to vector<16x128xf32>
    %287 = arith.addf %285, %286 : vector<16x128xf32>
    %c1336 = arith.constant 1336 : index
    %c0_105 = arith.constant 0 : index
    %288 = vector.load %arg2[%c1336, %c0_105] : memref<3144x128xf32, #tpu.memory_space<vmem>>, vector<128x128xf32>
    %cst_106 = arith.constant dense<0.000000e+00> : vector<16x128xf32>
    %289 = tpu.matmul %287, %288, %cst_106 {dimension_numbers = #tpu.dot_dimension_numbers<[1], [0], [0], [1], [0, 0, 1, 1], [], []>} : vector<16x128xf32>, vector<128x128xf32>, vector<16x128xf32> -> vector<16x128xf32>
    %c1616 = arith.constant 1616 : index
    %c0_107 = arith.constant 0 : index
    %290 = vector.load %arg2[%c1616, %c0_107] : memref<3144x128xf32, #tpu.memory_space<vmem>>, vector<1x128xf32>
    %291 = vector.broadcast %290 : vector<1x128xf32> to vector<16x128xf32>
    %292 = arith.addf %289, %291 : vector<16x128xf32>
    %cst_108 = arith.constant 5.000000e-01 : f32
    %293 = vector.broadcast %cst_108 : f32 to vector<16x128xf32>
    %294 = arith.mulf %293, %292 : vector<16x128xf32>
    %cst_109 = arith.constant 4.471500e-02 : f32
    %295 = vector.broadcast %cst_109 : f32 to vector<16x128xf32>
    %296 = arith.mulf %295, %292 : vector<16x128xf32>
    %297 = arith.mulf %296, %292 : vector<16x128xf32>
    %298 = arith.mulf %297, %292 : vector<16x128xf32>
    %299 = arith.addf %292, %298 : vector<16x128xf32>
    %cst_110 = arith.constant 0.797884583 : f32
    %300 = vector.broadcast %cst_110 : f32 to vector<16x128xf32>
    %301 = arith.mulf %300, %299 : vector<16x128xf32>
    %302 = math.tanh %301 : vector<16x128xf32>
    %cst_111 = arith.constant 1.000000e+00 : f32
    %303 = vector.broadcast %cst_111 : f32 to vector<16x128xf32>
    %304 = arith.addf %303, %302 : vector<16x128xf32>
    %305 = arith.mulf %294, %304 : vector<16x128xf32>
    %c1464 = arith.constant 1464 : index
    %c0_112 = arith.constant 0 : index
    %306 = vector.load %arg2[%c1464, %c0_112] : memref<3144x128xf32, #tpu.memory_space<vmem>>, vector<128x128xf32>
    %cst_113 = arith.constant dense<0.000000e+00> : vector<16x128xf32>
    %307 = tpu.matmul %305, %306, %cst_113 {dimension_numbers = #tpu.dot_dimension_numbers<[1], [0], [0], [1], [0, 0, 1, 1], [], []>} : vector<16x128xf32>, vector<128x128xf32>, vector<16x128xf32> -> vector<16x128xf32>
    %c1624 = arith.constant 1624 : index
    %c0_114 = arith.constant 0 : index
    %308 = vector.load %arg2[%c1624, %c0_114] : memref<3144x128xf32, #tpu.memory_space<vmem>>, vector<1x128xf32>
    %309 = vector.broadcast %308 : vector<1x128xf32> to vector<16x128xf32>
    %310 = arith.addf %307, %309 : vector<16x128xf32>
    %311 = arith.addf %287, %310 : vector<16x128xf32>
    %c1632 = arith.constant 1632 : index
    %c0_115 = arith.constant 0 : index
    %312 = vector.load %arg2[%c1632, %c0_115] : memref<3144x128xf32, #tpu.memory_space<vmem>>, vector<1x128xf32>
    %c1640 = arith.constant 1640 : index
    %c0_116 = arith.constant 0 : index
    %313 = vector.load %arg2[%c1640, %c0_116] : memref<3144x128xf32, #tpu.memory_space<vmem>>, vector<1x128xf32>
    %cst_117 = arith.constant dense<0.000000e+00> : vector<16xf32>
    %314 = vector.multi_reduction <add>, %311, %cst_117 [1] : vector<16x128xf32> to vector<16xf32>
    %315 = vector.shape_cast %314 : vector<16xf32> to vector<16x1xf32>
    %cst_118 = arith.constant 3.125000e-02 : f32
    %316 = vector.broadcast %cst_118 : f32 to vector<16x1xf32>
    %317 = arith.mulf %315, %316 : vector<16x1xf32>
    %318 = vector.broadcast %317 : vector<16x1xf32> to vector<16x128xf32>
    %319 = arith.subf %311, %318 : vector<16x128xf32>
    %cst_119 = arith.constant 0.000000e+00 : f32
    %320 = vector.shape_cast %2 : vector<1x128xi1> to vector<1x128xi1>
    %321 = vector.broadcast %320 : vector<1x128xi1> to vector<16x128xi1>
    %322 = vector.broadcast %cst_119 : f32 to vector<16x128xf32>
    %323 = arith.select %321, %319, %322 : vector<16x128xi1>, vector<16x128xf32>
    %324 = arith.mulf %323, %323 : vector<16x128xf32>
    %cst_120 = arith.constant dense<0.000000e+00> : vector<16xf32>
    %325 = vector.multi_reduction <add>, %324, %cst_120 [1] : vector<16x128xf32> to vector<16xf32>
    %326 = vector.shape_cast %325 : vector<16xf32> to vector<16x1xf32>
    %cst_121 = arith.constant 3.125000e-02 : f32
    %327 = vector.broadcast %cst_121 : f32 to vector<16x1xf32>
    %328 = arith.mulf %326, %327 : vector<16x1xf32>
    %cst_122 = arith.constant 9.99999974E-6 : f32
    %329 = vector.broadcast %cst_122 : f32 to vector<16x1xf32>
    %330 = arith.addf %328, %329 : vector<16x1xf32>
    %331 = math.rsqrt %330 : vector<16x1xf32>
    %332 = vector.broadcast %331 : vector<16x1xf32> to vector<16x128xf32>
    %333 = arith.mulf %323, %332 : vector<16x128xf32>
    %334 = vector.broadcast %312 : vector<1x128xf32> to vector<16x128xf32>
    %335 = arith.mulf %333, %334 : vector<16x128xf32>
    %336 = vector.broadcast %313 : vector<1x128xf32> to vector<16x128xf32>
    %337 = arith.addf %335, %336 : vector<16x128xf32>
    %c16 = arith.constant 16 : index
    %c0_123 = arith.constant 0 : index
    %338 = vector.load %arg0[%c16, %c0_123] : memref<40x128xf32, #tpu.memory_space<vmem>>, vector<16x128xf32>
    %c1648 = arith.constant 1648 : index
    %c0_124 = arith.constant 0 : index
    %339 = vector.load %arg2[%c1648, %c0_124] : memref<3144x128xf32, #tpu.memory_space<vmem>>, vector<512x128xf32>
    %c2160 = arith.constant 2160 : index
    %c0_125 = arith.constant 0 : index
    %340 = vector.load %arg2[%c2160, %c0_125] : memref<3144x128xf32, #tpu.memory_space<vmem>>, vector<1x128xf32>
    %341 = tpu.iota {dimensions = array<i32: 0>} : vector<16x16xi32>
    %342 = tpu.iota {dimensions = array<i32: 1>} : vector<16x16xi32>
    %343 = arith.cmpi sle, %342, %341 : vector<16x16xi32>
    %c8_i32_126 = arith.constant 8 : i32
    %344 = vector.broadcast %c8_i32_126 : i32 to vector<16x16xi32>
    %345 = arith.cmpi sge, %341, %344 : vector<16x16xi32>
    %c8_i32_127 = arith.constant 8 : i32
    %346 = vector.broadcast %c8_i32_127 : i32 to vector<16x16xi32>
    %347 = arith.cmpi sge, %342, %346 : vector<16x16xi32>
    %348 = arith.xori %345, %347 : vector<16x16xi1>
    %cst_128 = arith.constant dense<true> : vector<16x16xi1>
    %349 = arith.xori %348, %cst_128 : vector<16x16xi1>
    %350 = arith.andi %343, %349 : vector<16x16xi1>
    %c256 = arith.constant 256 : index
    %c0_129 = arith.constant 0 : index
    %351 = vector.load %arg1[%c256, %c0_129] : memref<512x1536xf32, #tpu.memory_space<vmem>>, vector<128x512xf32>
    %c256_130 = arith.constant 256 : index
    %c512_131 = arith.constant 512 : index
    %352 = vector.load %arg1[%c256_130, %c512_131] : memref<512x1536xf32, #tpu.memory_space<vmem>>, vector<128x1024xf32>
    %cst_132 = arith.constant dense<0.000000e+00> : vector<16x512xf32>
    %353 = tpu.matmul %338, %351, %cst_132 {dimension_numbers = #tpu.dot_dimension_numbers<[1], [0], [0], [1], [0, 0, 1, 1], [], []>} : vector<16x128xf32>, vector<128x512xf32>, vector<16x512xf32> -> vector<16x512xf32>
    %cst_133 = arith.constant dense<0.000000e+00> : vector<16x1024xf32>
    %354 = tpu.matmul %338, %352, %cst_133 {dimension_numbers = #tpu.dot_dimension_numbers<[1], [0], [0], [1], [0, 0, 1, 1], [], []>} : vector<16x128xf32>, vector<128x1024xf32>, vector<16x1024xf32> -> vector<16x1024xf32>
    %355 = vector.extract_strided_slice %353 {offsets = [0, 0], sizes = [16, 128], strides = [1, 1]} : vector<16x512xf32> to vector<16x128xf32>
    %356 = vector.extract_strided_slice %354 {offsets = [0, 0], sizes = [16, 128], strides = [1, 1]} : vector<16x1024xf32> to vector<16x128xf32>
    %357 = vector.extract_strided_slice %354 {offsets = [0, 512], sizes = [16, 128], strides = [1, 1]} : vector<16x1024xf32> to vector<16x128xf32>
    %cst_134 = arith.constant dense<0.000000e+00> : vector<16x16xf32>
    %358 = tpu.matmul %355, %356, %cst_134 {dimension_numbers = #tpu.dot_dimension_numbers<[1], [1], [0], [0], [0, 0, 1, 0], [], []>} : vector<16x128xf32>, vector<16x128xf32>, vector<16x16xf32> -> vector<16x16xf32>
    %cst_135 = arith.constant -1.000000e+10 : f32
    %359 = vector.broadcast %cst_135 : f32 to vector<16x16xf32>
    %360 = arith.select %350, %358, %359 : vector<16x16xi1>, vector<16x16xf32>
    %cst_136 = arith.constant 0.353553385 : f32
    %361 = vector.broadcast %cst_136 : f32 to vector<16x16xf32>
    %362 = arith.mulf %360, %361 : vector<16x16xf32>
    %cst_137 = arith.constant dense<0xFF800000> : vector<16xf32>
    %363 = vector.multi_reduction <maximumf>, %362, %cst_137 [1] : vector<16x16xf32> to vector<16xf32>
    %364 = vector.shape_cast %363 : vector<16xf32> to vector<16x1xf32>
    %365 = vector.broadcast %364 : vector<16x1xf32> to vector<16x16xf32>
    %366 = arith.subf %362, %365 : vector<16x16xf32>
    %367 = math.exp %366 : vector<16x16xf32>
    %cst_138 = arith.constant dense<0.000000e+00> : vector<16xf32>
    %368 = vector.multi_reduction <add>, %367, %cst_138 [1] : vector<16x16xf32> to vector<16xf32>
    %369 = vector.shape_cast %368 : vector<16xf32> to vector<16x1xf32>
    %370 = vector.broadcast %369 : vector<16x1xf32> to vector<16x16xf32>
    %371 = arith.divf %367, %370 : vector<16x16xf32>
    %cst_139 = arith.constant dense<0.000000e+00> : vector<16x128xf32>
    %372 = tpu.matmul %371, %357, %cst_139 {dimension_numbers = #tpu.dot_dimension_numbers<[1], [0], [0], [1], [0, 0, 1, 1], [], []>} : vector<16x16xf32>, vector<16x128xf32>, vector<16x128xf32> -> vector<16x128xf32>
    %373 = vector.extract_strided_slice %353 {offsets = [0, 128], sizes = [16, 128], strides = [1, 1]} : vector<16x512xf32> to vector<16x128xf32>
    %374 = vector.extract_strided_slice %354 {offsets = [0, 128], sizes = [16, 128], strides = [1, 1]} : vector<16x1024xf32> to vector<16x128xf32>
    %375 = vector.extract_strided_slice %354 {offsets = [0, 640], sizes = [16, 128], strides = [1, 1]} : vector<16x1024xf32> to vector<16x128xf32>
    %cst_140 = arith.constant dense<0.000000e+00> : vector<16x16xf32>
    %376 = tpu.matmul %373, %374, %cst_140 {dimension_numbers = #tpu.dot_dimension_numbers<[1], [1], [0], [0], [0, 0, 1, 0], [], []>} : vector<16x128xf32>, vector<16x128xf32>, vector<16x16xf32> -> vector<16x16xf32>
    %cst_141 = arith.constant -1.000000e+10 : f32
    %377 = vector.broadcast %cst_141 : f32 to vector<16x16xf32>
    %378 = arith.select %350, %376, %377 : vector<16x16xi1>, vector<16x16xf32>
    %cst_142 = arith.constant 0.353553385 : f32
    %379 = vector.broadcast %cst_142 : f32 to vector<16x16xf32>
    %380 = arith.mulf %378, %379 : vector<16x16xf32>
    %cst_143 = arith.constant dense<0xFF800000> : vector<16xf32>
    %381 = vector.multi_reduction <maximumf>, %380, %cst_143 [1] : vector<16x16xf32> to vector<16xf32>
    %382 = vector.shape_cast %381 : vector<16xf32> to vector<16x1xf32>
    %383 = vector.broadcast %382 : vector<16x1xf32> to vector<16x16xf32>
    %384 = arith.subf %380, %383 : vector<16x16xf32>
    %385 = math.exp %384 : vector<16x16xf32>
    %cst_144 = arith.constant dense<0.000000e+00> : vector<16xf32>
    %386 = vector.multi_reduction <add>, %385, %cst_144 [1] : vector<16x16xf32> to vector<16xf32>
    %387 = vector.shape_cast %386 : vector<16xf32> to vector<16x1xf32>
    %388 = vector.broadcast %387 : vector<16x1xf32> to vector<16x16xf32>
    %389 = arith.divf %385, %388 : vector<16x16xf32>
    %cst_145 = arith.constant dense<0.000000e+00> : vector<16x128xf32>
    %390 = tpu.matmul %389, %375, %cst_145 {dimension_numbers = #tpu.dot_dimension_numbers<[1], [0], [0], [1], [0, 0, 1, 1], [], []>} : vector<16x16xf32>, vector<16x128xf32>, vector<16x128xf32> -> vector<16x128xf32>
    %391 = vector.extract_strided_slice %353 {offsets = [0, 256], sizes = [16, 128], strides = [1, 1]} : vector<16x512xf32> to vector<16x128xf32>
    %392 = vector.extract_strided_slice %354 {offsets = [0, 256], sizes = [16, 128], strides = [1, 1]} : vector<16x1024xf32> to vector<16x128xf32>
    %393 = vector.extract_strided_slice %354 {offsets = [0, 768], sizes = [16, 128], strides = [1, 1]} : vector<16x1024xf32> to vector<16x128xf32>
    %cst_146 = arith.constant dense<0.000000e+00> : vector<16x16xf32>
    %394 = tpu.matmul %391, %392, %cst_146 {dimension_numbers = #tpu.dot_dimension_numbers<[1], [1], [0], [0], [0, 0, 1, 0], [], []>} : vector<16x128xf32>, vector<16x128xf32>, vector<16x16xf32> -> vector<16x16xf32>
    %cst_147 = arith.constant -1.000000e+10 : f32
    %395 = vector.broadcast %cst_147 : f32 to vector<16x16xf32>
    %396 = arith.select %350, %394, %395 : vector<16x16xi1>, vector<16x16xf32>
    %cst_148 = arith.constant 0.353553385 : f32
    %397 = vector.broadcast %cst_148 : f32 to vector<16x16xf32>
    %398 = arith.mulf %396, %397 : vector<16x16xf32>
    %cst_149 = arith.constant dense<0xFF800000> : vector<16xf32>
    %399 = vector.multi_reduction <maximumf>, %398, %cst_149 [1] : vector<16x16xf32> to vector<16xf32>
    %400 = vector.shape_cast %399 : vector<16xf32> to vector<16x1xf32>
    %401 = vector.broadcast %400 : vector<16x1xf32> to vector<16x16xf32>
    %402 = arith.subf %398, %401 : vector<16x16xf32>
    %403 = math.exp %402 : vector<16x16xf32>
    %cst_150 = arith.constant dense<0.000000e+00> : vector<16xf32>
    %404 = vector.multi_reduction <add>, %403, %cst_150 [1] : vector<16x16xf32> to vector<16xf32>
    %405 = vector.shape_cast %404 : vector<16xf32> to vector<16x1xf32>
    %406 = vector.broadcast %405 : vector<16x1xf32> to vector<16x16xf32>
    %407 = arith.divf %403, %406 : vector<16x16xf32>
    %cst_151 = arith.constant dense<0.000000e+00> : vector<16x128xf32>
    %408 = tpu.matmul %407, %393, %cst_151 {dimension_numbers = #tpu.dot_dimension_numbers<[1], [0], [0], [1], [0, 0, 1, 1], [], []>} : vector<16x16xf32>, vector<16x128xf32>, vector<16x128xf32> -> vector<16x128xf32>
    %409 = vector.extract_strided_slice %353 {offsets = [0, 384], sizes = [16, 128], strides = [1, 1]} : vector<16x512xf32> to vector<16x128xf32>
    %410 = vector.extract_strided_slice %354 {offsets = [0, 384], sizes = [16, 128], strides = [1, 1]} : vector<16x1024xf32> to vector<16x128xf32>
    %411 = vector.extract_strided_slice %354 {offsets = [0, 896], sizes = [16, 128], strides = [1, 1]} : vector<16x1024xf32> to vector<16x128xf32>
    %cst_152 = arith.constant dense<0.000000e+00> : vector<16x16xf32>
    %412 = tpu.matmul %409, %410, %cst_152 {dimension_numbers = #tpu.dot_dimension_numbers<[1], [1], [0], [0], [0, 0, 1, 0], [], []>} : vector<16x128xf32>, vector<16x128xf32>, vector<16x16xf32> -> vector<16x16xf32>
    %cst_153 = arith.constant -1.000000e+10 : f32
    %413 = vector.broadcast %cst_153 : f32 to vector<16x16xf32>
    %414 = arith.select %350, %412, %413 : vector<16x16xi1>, vector<16x16xf32>
    %cst_154 = arith.constant 0.353553385 : f32
    %415 = vector.broadcast %cst_154 : f32 to vector<16x16xf32>
    %416 = arith.mulf %414, %415 : vector<16x16xf32>
    %cst_155 = arith.constant dense<0xFF800000> : vector<16xf32>
    %417 = vector.multi_reduction <maximumf>, %416, %cst_155 [1] : vector<16x16xf32> to vector<16xf32>
    %418 = vector.shape_cast %417 : vector<16xf32> to vector<16x1xf32>
    %419 = vector.broadcast %418 : vector<16x1xf32> to vector<16x16xf32>
    %420 = arith.subf %416, %419 : vector<16x16xf32>
    %421 = math.exp %420 : vector<16x16xf32>
    %cst_156 = arith.constant dense<0.000000e+00> : vector<16xf32>
    %422 = vector.multi_reduction <add>, %421, %cst_156 [1] : vector<16x16xf32> to vector<16xf32>
    %423 = vector.shape_cast %422 : vector<16xf32> to vector<16x1xf32>
    %424 = vector.broadcast %423 : vector<16x1xf32> to vector<16x16xf32>
    %425 = arith.divf %421, %424 : vector<16x16xf32>
    %cst_157 = arith.constant dense<0.000000e+00> : vector<16x128xf32>
    %426 = tpu.matmul %425, %411, %cst_157 {dimension_numbers = #tpu.dot_dimension_numbers<[1], [0], [0], [1], [0, 0, 1, 1], [], []>} : vector<16x16xf32>, vector<16x128xf32>, vector<16x128xf32> -> vector<16x128xf32>
    %427 = tpu.concatenate %372, %390, %408, %426 in 1 : vector<16x128xf32>, vector<16x128xf32>, vector<16x128xf32>, vector<16x128xf32> -> vector<16x512xf32>
    %cst_158 = arith.constant dense<0.000000e+00> : vector<16x128xf32>
    %428 = tpu.matmul %427, %339, %cst_158 {dimension_numbers = #tpu.dot_dimension_numbers<[1], [0], [0], [1], [0, 0, 1, 1], [], []>} : vector<16x512xf32>, vector<512x128xf32>, vector<16x128xf32> -> vector<16x128xf32>
    %429 = vector.broadcast %340 : vector<1x128xf32> to vector<16x128xf32>
    %430 = arith.addf %428, %429 : vector<16x128xf32>
    %431 = arith.addf %430, %338 : vector<16x128xf32>
    %c2168 = arith.constant 2168 : index
    %c0_159 = arith.constant 0 : index
    %432 = vector.load %arg2[%c2168, %c0_159] : memref<3144x128xf32, #tpu.memory_space<vmem>>, vector<1x128xf32>
    %c2176 = arith.constant 2176 : index
    %c0_160 = arith.constant 0 : index
    %433 = vector.load %arg2[%c2176, %c0_160] : memref<3144x128xf32, #tpu.memory_space<vmem>>, vector<1x128xf32>
    %cst_161 = arith.constant dense<0.000000e+00> : vector<16xf32>
    %434 = vector.multi_reduction <add>, %431, %cst_161 [1] : vector<16x128xf32> to vector<16xf32>
    %435 = vector.shape_cast %434 : vector<16xf32> to vector<16x1xf32>
    %cst_162 = arith.constant 3.125000e-02 : f32
    %436 = vector.broadcast %cst_162 : f32 to vector<16x1xf32>
    %437 = arith.mulf %435, %436 : vector<16x1xf32>
    %438 = vector.broadcast %437 : vector<16x1xf32> to vector<16x128xf32>
    %439 = arith.subf %431, %438 : vector<16x128xf32>
    %cst_163 = arith.constant 0.000000e+00 : f32
    %440 = vector.shape_cast %2 : vector<1x128xi1> to vector<1x128xi1>
    %441 = vector.broadcast %440 : vector<1x128xi1> to vector<16x128xi1>
    %442 = vector.broadcast %cst_163 : f32 to vector<16x128xf32>
    %443 = arith.select %441, %439, %442 : vector<16x128xi1>, vector<16x128xf32>
    %444 = arith.mulf %443, %443 : vector<16x128xf32>
    %cst_164 = arith.constant dense<0.000000e+00> : vector<16xf32>
    %445 = vector.multi_reduction <add>, %444, %cst_164 [1] : vector<16x128xf32> to vector<16xf32>
    %446 = vector.shape_cast %445 : vector<16xf32> to vector<16x1xf32>
    %cst_165 = arith.constant 3.125000e-02 : f32
    %447 = vector.broadcast %cst_165 : f32 to vector<16x1xf32>
    %448 = arith.mulf %446, %447 : vector<16x1xf32>
    %cst_166 = arith.constant 9.99999974E-6 : f32
    %449 = vector.broadcast %cst_166 : f32 to vector<16x1xf32>
    %450 = arith.addf %448, %449 : vector<16x1xf32>
    %451 = math.rsqrt %450 : vector<16x1xf32>
    %452 = vector.broadcast %451 : vector<16x1xf32> to vector<16x128xf32>
    %453 = arith.mulf %443, %452 : vector<16x128xf32>
    %454 = vector.broadcast %432 : vector<1x128xf32> to vector<16x128xf32>
    %455 = arith.mulf %453, %454 : vector<16x128xf32>
    %456 = vector.broadcast %433 : vector<1x128xf32> to vector<16x128xf32>
    %457 = arith.addf %455, %456 : vector<16x128xf32>
    %458 = tpu.iota {dimensions = array<i32: 0>} : vector<16x16xi32>
    %459 = tpu.iota {dimensions = array<i32: 1>} : vector<16x16xi32>
    %460 = vector.extract_strided_slice %5 {offsets = [0, 0], sizes = [1, 16], strides = [1, 1]} : vector<1x128xf32> to vector<1x16xf32>
    %cst_167 = arith.constant 5.000000e-01 : f32
    %461 = vector.broadcast %cst_167 : f32 to vector<1x16xf32>
    %462 = arith.cmpf ogt, %460, %461 : vector<1x16xf32>
    %c8_i32_168 = arith.constant 8 : i32
    %463 = vector.broadcast %c8_i32_168 : i32 to vector<16x16xi32>
    %464 = arith.cmpi sge, %458, %463 : vector<16x16xi32>
    %c8_i32_169 = arith.constant 8 : i32
    %465 = vector.broadcast %c8_i32_169 : i32 to vector<16x16xi32>
    %466 = arith.cmpi sge, %459, %465 : vector<16x16xi32>
    %467 = arith.xori %464, %466 : vector<16x16xi1>
    %cst_170 = arith.constant dense<true> : vector<16x16xi1>
    %468 = arith.xori %467, %cst_170 : vector<16x16xi1>
    %469 = vector.broadcast %462 : vector<1x16xi1> to vector<16x16xi1>
    %470 = arith.andi %469, %468 : vector<16x16xi1>
    %c2184 = arith.constant 2184 : index
    %c0_171 = arith.constant 0 : index
    %471 = vector.load %arg2[%c2184, %c0_171] : memref<3144x128xf32, #tpu.memory_space<vmem>>, vector<512x128xf32>
    %c2952 = arith.constant 2952 : index
    %c0_172 = arith.constant 0 : index
    %472 = vector.load %arg2[%c2952, %c0_172] : memref<3144x128xf32, #tpu.memory_space<vmem>>, vector<1x128xf32>
    %c384 = arith.constant 384 : index
    %c0_173 = arith.constant 0 : index
    %473 = vector.load %arg1[%c384, %c0_173] : memref<512x1536xf32, #tpu.memory_space<vmem>>, vector<128x512xf32>
    %c384_174 = arith.constant 384 : index
    %c512_175 = arith.constant 512 : index
    %474 = vector.load %arg1[%c384_174, %c512_175] : memref<512x1536xf32, #tpu.memory_space<vmem>>, vector<128x1024xf32>
    %cst_176 = arith.constant dense<0.000000e+00> : vector<16x512xf32>
    %475 = tpu.matmul %457, %473, %cst_176 {dimension_numbers = #tpu.dot_dimension_numbers<[1], [0], [0], [1], [0, 0, 1, 1], [], []>} : vector<16x128xf32>, vector<128x512xf32>, vector<16x512xf32> -> vector<16x512xf32>
    %cst_177 = arith.constant dense<0.000000e+00> : vector<16x1024xf32>
    %476 = tpu.matmul %337, %474, %cst_177 {dimension_numbers = #tpu.dot_dimension_numbers<[1], [0], [0], [1], [0, 0, 1, 1], [], []>} : vector<16x128xf32>, vector<128x1024xf32>, vector<16x1024xf32> -> vector<16x1024xf32>
    %477 = vector.extract_strided_slice %475 {offsets = [0, 0], sizes = [16, 128], strides = [1, 1]} : vector<16x512xf32> to vector<16x128xf32>
    %478 = vector.extract_strided_slice %476 {offsets = [0, 0], sizes = [16, 128], strides = [1, 1]} : vector<16x1024xf32> to vector<16x128xf32>
    %479 = vector.extract_strided_slice %476 {offsets = [0, 512], sizes = [16, 128], strides = [1, 1]} : vector<16x1024xf32> to vector<16x128xf32>
    %cst_178 = arith.constant dense<0.000000e+00> : vector<16x16xf32>
    %480 = tpu.matmul %477, %478, %cst_178 {dimension_numbers = #tpu.dot_dimension_numbers<[1], [1], [0], [0], [0, 0, 1, 0], [], []>} : vector<16x128xf32>, vector<16x128xf32>, vector<16x16xf32> -> vector<16x16xf32>
    %cst_179 = arith.constant -1.000000e+10 : f32
    %481 = vector.broadcast %cst_179 : f32 to vector<16x16xf32>
    %482 = arith.select %470, %480, %481 : vector<16x16xi1>, vector<16x16xf32>
    %cst_180 = arith.constant 0.353553385 : f32
    %483 = vector.broadcast %cst_180 : f32 to vector<16x16xf32>
    %484 = arith.mulf %482, %483 : vector<16x16xf32>
    %cst_181 = arith.constant dense<0xFF800000> : vector<16xf32>
    %485 = vector.multi_reduction <maximumf>, %484, %cst_181 [1] : vector<16x16xf32> to vector<16xf32>
    %486 = vector.shape_cast %485 : vector<16xf32> to vector<16x1xf32>
    %487 = vector.broadcast %486 : vector<16x1xf32> to vector<16x16xf32>
    %488 = arith.subf %484, %487 : vector<16x16xf32>
    %489 = math.exp %488 : vector<16x16xf32>
    %cst_182 = arith.constant dense<0.000000e+00> : vector<16xf32>
    %490 = vector.multi_reduction <add>, %489, %cst_182 [1] : vector<16x16xf32> to vector<16xf32>
    %491 = vector.shape_cast %490 : vector<16xf32> to vector<16x1xf32>
    %492 = vector.broadcast %491 : vector<16x1xf32> to vector<16x16xf32>
    %493 = arith.divf %489, %492 : vector<16x16xf32>
    %cst_183 = arith.constant dense<0.000000e+00> : vector<16x128xf32>
    %494 = tpu.matmul %493, %479, %cst_183 {dimension_numbers = #tpu.dot_dimension_numbers<[1], [0], [0], [1], [0, 0, 1, 1], [], []>} : vector<16x16xf32>, vector<16x128xf32>, vector<16x128xf32> -> vector<16x128xf32>
    %495 = vector.extract_strided_slice %475 {offsets = [0, 128], sizes = [16, 128], strides = [1, 1]} : vector<16x512xf32> to vector<16x128xf32>
    %496 = vector.extract_strided_slice %476 {offsets = [0, 128], sizes = [16, 128], strides = [1, 1]} : vector<16x1024xf32> to vector<16x128xf32>
    %497 = vector.extract_strided_slice %476 {offsets = [0, 640], sizes = [16, 128], strides = [1, 1]} : vector<16x1024xf32> to vector<16x128xf32>
    %cst_184 = arith.constant dense<0.000000e+00> : vector<16x16xf32>
    %498 = tpu.matmul %495, %496, %cst_184 {dimension_numbers = #tpu.dot_dimension_numbers<[1], [1], [0], [0], [0, 0, 1, 0], [], []>} : vector<16x128xf32>, vector<16x128xf32>, vector<16x16xf32> -> vector<16x16xf32>
    %cst_185 = arith.constant -1.000000e+10 : f32
    %499 = vector.broadcast %cst_185 : f32 to vector<16x16xf32>
    %500 = arith.select %470, %498, %499 : vector<16x16xi1>, vector<16x16xf32>
    %cst_186 = arith.constant 0.353553385 : f32
    %501 = vector.broadcast %cst_186 : f32 to vector<16x16xf32>
    %502 = arith.mulf %500, %501 : vector<16x16xf32>
    %cst_187 = arith.constant dense<0xFF800000> : vector<16xf32>
    %503 = vector.multi_reduction <maximumf>, %502, %cst_187 [1] : vector<16x16xf32> to vector<16xf32>
    %504 = vector.shape_cast %503 : vector<16xf32> to vector<16x1xf32>
    %505 = vector.broadcast %504 : vector<16x1xf32> to vector<16x16xf32>
    %506 = arith.subf %502, %505 : vector<16x16xf32>
    %507 = math.exp %506 : vector<16x16xf32>
    %cst_188 = arith.constant dense<0.000000e+00> : vector<16xf32>
    %508 = vector.multi_reduction <add>, %507, %cst_188 [1] : vector<16x16xf32> to vector<16xf32>
    %509 = vector.shape_cast %508 : vector<16xf32> to vector<16x1xf32>
    %510 = vector.broadcast %509 : vector<16x1xf32> to vector<16x16xf32>
    %511 = arith.divf %507, %510 : vector<16x16xf32>
    %cst_189 = arith.constant dense<0.000000e+00> : vector<16x128xf32>
    %512 = tpu.matmul %511, %497, %cst_189 {dimension_numbers = #tpu.dot_dimension_numbers<[1], [0], [0], [1], [0, 0, 1, 1], [], []>} : vector<16x16xf32>, vector<16x128xf32>, vector<16x128xf32> -> vector<16x128xf32>
    %513 = vector.extract_strided_slice %475 {offsets = [0, 256], sizes = [16, 128], strides = [1, 1]} : vector<16x512xf32> to vector<16x128xf32>
    %514 = vector.extract_strided_slice %476 {offsets = [0, 256], sizes = [16, 128], strides = [1, 1]} : vector<16x1024xf32> to vector<16x128xf32>
    %515 = vector.extract_strided_slice %476 {offsets = [0, 768], sizes = [16, 128], strides = [1, 1]} : vector<16x1024xf32> to vector<16x128xf32>
    %cst_190 = arith.constant dense<0.000000e+00> : vector<16x16xf32>
    %516 = tpu.matmul %513, %514, %cst_190 {dimension_numbers = #tpu.dot_dimension_numbers<[1], [1], [0], [0], [0, 0, 1, 0], [], []>} : vector<16x128xf32>, vector<16x128xf32>, vector<16x16xf32> -> vector<16x16xf32>
    %cst_191 = arith.constant -1.000000e+10 : f32
    %517 = vector.broadcast %cst_191 : f32 to vector<16x16xf32>
    %518 = arith.select %470, %516, %517 : vector<16x16xi1>, vector<16x16xf32>
    %cst_192 = arith.constant 0.353553385 : f32
    %519 = vector.broadcast %cst_192 : f32 to vector<16x16xf32>
    %520 = arith.mulf %518, %519 : vector<16x16xf32>
    %cst_193 = arith.constant dense<0xFF800000> : vector<16xf32>
    %521 = vector.multi_reduction <maximumf>, %520, %cst_193 [1] : vector<16x16xf32> to vector<16xf32>
    %522 = vector.shape_cast %521 : vector<16xf32> to vector<16x1xf32>
    %523 = vector.broadcast %522 : vector<16x1xf32> to vector<16x16xf32>
    %524 = arith.subf %520, %523 : vector<16x16xf32>
    %525 = math.exp %524 : vector<16x16xf32>
    %cst_194 = arith.constant dense<0.000000e+00> : vector<16xf32>
    %526 = vector.multi_reduction <add>, %525, %cst_194 [1] : vector<16x16xf32> to vector<16xf32>
    %527 = vector.shape_cast %526 : vector<16xf32> to vector<16x1xf32>
    %528 = vector.broadcast %527 : vector<16x1xf32> to vector<16x16xf32>
    %529 = arith.divf %525, %528 : vector<16x16xf32>
    %cst_195 = arith.constant dense<0.000000e+00> : vector<16x128xf32>
    %530 = tpu.matmul %529, %515, %cst_195 {dimension_numbers = #tpu.dot_dimension_numbers<[1], [0], [0], [1], [0, 0, 1, 1], [], []>} : vector<16x16xf32>, vector<16x128xf32>, vector<16x128xf32> -> vector<16x128xf32>
    %531 = vector.extract_strided_slice %475 {offsets = [0, 384], sizes = [16, 128], strides = [1, 1]} : vector<16x512xf32> to vector<16x128xf32>
    %532 = vector.extract_strided_slice %476 {offsets = [0, 384], sizes = [16, 128], strides = [1, 1]} : vector<16x1024xf32> to vector<16x128xf32>
    %533 = vector.extract_strided_slice %476 {offsets = [0, 896], sizes = [16, 128], strides = [1, 1]} : vector<16x1024xf32> to vector<16x128xf32>
    %cst_196 = arith.constant dense<0.000000e+00> : vector<16x16xf32>
    %534 = tpu.matmul %531, %532, %cst_196 {dimension_numbers = #tpu.dot_dimension_numbers<[1], [1], [0], [0], [0, 0, 1, 0], [], []>} : vector<16x128xf32>, vector<16x128xf32>, vector<16x16xf32> -> vector<16x16xf32>
    %cst_197 = arith.constant -1.000000e+10 : f32
    %535 = vector.broadcast %cst_197 : f32 to vector<16x16xf32>
    %536 = arith.select %470, %534, %535 : vector<16x16xi1>, vector<16x16xf32>
    %cst_198 = arith.constant 0.353553385 : f32
    %537 = vector.broadcast %cst_198 : f32 to vector<16x16xf32>
    %538 = arith.mulf %536, %537 : vector<16x16xf32>
    %cst_199 = arith.constant dense<0xFF800000> : vector<16xf32>
    %539 = vector.multi_reduction <maximumf>, %538, %cst_199 [1] : vector<16x16xf32> to vector<16xf32>
    %540 = vector.shape_cast %539 : vector<16xf32> to vector<16x1xf32>
    %541 = vector.broadcast %540 : vector<16x1xf32> to vector<16x16xf32>
    %542 = arith.subf %538, %541 : vector<16x16xf32>
    %543 = math.exp %542 : vector<16x16xf32>
    %cst_200 = arith.constant dense<0.000000e+00> : vector<16xf32>
    %544 = vector.multi_reduction <add>, %543, %cst_200 [1] : vector<16x16xf32> to vector<16xf32>
    %545 = vector.shape_cast %544 : vector<16xf32> to vector<16x1xf32>
    %546 = vector.broadcast %545 : vector<16x1xf32> to vector<16x16xf32>
    %547 = arith.divf %543, %546 : vector<16x16xf32>
    %cst_201 = arith.constant dense<0.000000e+00> : vector<16x128xf32>
    %548 = tpu.matmul %547, %533, %cst_201 {dimension_numbers = #tpu.dot_dimension_numbers<[1], [0], [0], [1], [0, 0, 1, 1], [], []>} : vector<16x16xf32>, vector<16x128xf32>, vector<16x128xf32> -> vector<16x128xf32>
    %549 = tpu.concatenate %494, %512, %530, %548 in 1 : vector<16x128xf32>, vector<16x128xf32>, vector<16x128xf32>, vector<16x128xf32> -> vector<16x512xf32>
    %cst_202 = arith.constant dense<0.000000e+00> : vector<16x128xf32>
    %550 = tpu.matmul %549, %471, %cst_202 {dimension_numbers = #tpu.dot_dimension_numbers<[1], [0], [0], [1], [0, 0, 1, 1], [], []>} : vector<16x512xf32>, vector<512x128xf32>, vector<16x128xf32> -> vector<16x128xf32>
    %551 = vector.broadcast %472 : vector<1x128xf32> to vector<16x128xf32>
    %552 = arith.addf %550, %551 : vector<16x128xf32>
    %553 = arith.addf %457, %552 : vector<16x128xf32>
    %c2960 = arith.constant 2960 : index
    %c0_203 = arith.constant 0 : index
    %554 = vector.load %arg2[%c2960, %c0_203] : memref<3144x128xf32, #tpu.memory_space<vmem>>, vector<1x128xf32>
    %c2968 = arith.constant 2968 : index
    %c0_204 = arith.constant 0 : index
    %555 = vector.load %arg2[%c2968, %c0_204] : memref<3144x128xf32, #tpu.memory_space<vmem>>, vector<1x128xf32>
    %cst_205 = arith.constant dense<0.000000e+00> : vector<16xf32>
    %556 = vector.multi_reduction <add>, %553, %cst_205 [1] : vector<16x128xf32> to vector<16xf32>
    %557 = vector.shape_cast %556 : vector<16xf32> to vector<16x1xf32>
    %cst_206 = arith.constant 3.125000e-02 : f32
    %558 = vector.broadcast %cst_206 : f32 to vector<16x1xf32>
    %559 = arith.mulf %557, %558 : vector<16x1xf32>
    %560 = vector.broadcast %559 : vector<16x1xf32> to vector<16x128xf32>
    %561 = arith.subf %553, %560 : vector<16x128xf32>
    %cst_207 = arith.constant 0.000000e+00 : f32
    %562 = vector.shape_cast %2 : vector<1x128xi1> to vector<1x128xi1>
    %563 = vector.broadcast %562 : vector<1x128xi1> to vector<16x128xi1>
    %564 = vector.broadcast %cst_207 : f32 to vector<16x128xf32>
    %565 = arith.select %563, %561, %564 : vector<16x128xi1>, vector<16x128xf32>
    %566 = arith.mulf %565, %565 : vector<16x128xf32>
    %cst_208 = arith.constant dense<0.000000e+00> : vector<16xf32>
    %567 = vector.multi_reduction <add>, %566, %cst_208 [1] : vector<16x128xf32> to vector<16xf32>
    %568 = vector.shape_cast %567 : vector<16xf32> to vector<16x1xf32>
    %cst_209 = arith.constant 3.125000e-02 : f32
    %569 = vector.broadcast %cst_209 : f32 to vector<16x1xf32>
    %570 = arith.mulf %568, %569 : vector<16x1xf32>
    %cst_210 = arith.constant 9.99999974E-6 : f32
    %571 = vector.broadcast %cst_210 : f32 to vector<16x1xf32>
    %572 = arith.addf %570, %571 : vector<16x1xf32>
    %573 = math.rsqrt %572 : vector<16x1xf32>
    %574 = vector.broadcast %573 : vector<16x1xf32> to vector<16x128xf32>
    %575 = arith.mulf %565, %574 : vector<16x128xf32>
    %576 = vector.broadcast %554 : vector<1x128xf32> to vector<16x128xf32>
    %577 = arith.mulf %575, %576 : vector<16x128xf32>
    %578 = vector.broadcast %555 : vector<1x128xf32> to vector<16x128xf32>
    %579 = arith.addf %577, %578 : vector<16x128xf32>
    %c2696 = arith.constant 2696 : index
    %c0_211 = arith.constant 0 : index
    %580 = vector.load %arg2[%c2696, %c0_211] : memref<3144x128xf32, #tpu.memory_space<vmem>>, vector<128x128xf32>
    %cst_212 = arith.constant dense<0.000000e+00> : vector<16x128xf32>
    %581 = tpu.matmul %579, %580, %cst_212 {dimension_numbers = #tpu.dot_dimension_numbers<[1], [0], [0], [1], [0, 0, 1, 1], [], []>} : vector<16x128xf32>, vector<128x128xf32>, vector<16x128xf32> -> vector<16x128xf32>
    %c2976 = arith.constant 2976 : index
    %c0_213 = arith.constant 0 : index
    %582 = vector.load %arg2[%c2976, %c0_213] : memref<3144x128xf32, #tpu.memory_space<vmem>>, vector<1x128xf32>
    %583 = vector.broadcast %582 : vector<1x128xf32> to vector<16x128xf32>
    %584 = arith.addf %581, %583 : vector<16x128xf32>
    %cst_214 = arith.constant 5.000000e-01 : f32
    %585 = vector.broadcast %cst_214 : f32 to vector<16x128xf32>
    %586 = arith.mulf %585, %584 : vector<16x128xf32>
    %cst_215 = arith.constant 4.471500e-02 : f32
    %587 = vector.broadcast %cst_215 : f32 to vector<16x128xf32>
    %588 = arith.mulf %587, %584 : vector<16x128xf32>
    %589 = arith.mulf %588, %584 : vector<16x128xf32>
    %590 = arith.mulf %589, %584 : vector<16x128xf32>
    %591 = arith.addf %584, %590 : vector<16x128xf32>
    %cst_216 = arith.constant 0.797884583 : f32
    %592 = vector.broadcast %cst_216 : f32 to vector<16x128xf32>
    %593 = arith.mulf %592, %591 : vector<16x128xf32>
    %594 = math.tanh %593 : vector<16x128xf32>
    %cst_217 = arith.constant 1.000000e+00 : f32
    %595 = vector.broadcast %cst_217 : f32 to vector<16x128xf32>
    %596 = arith.addf %595, %594 : vector<16x128xf32>
    %597 = arith.mulf %586, %596 : vector<16x128xf32>
    %c2824 = arith.constant 2824 : index
    %c0_218 = arith.constant 0 : index
    %598 = vector.load %arg2[%c2824, %c0_218] : memref<3144x128xf32, #tpu.memory_space<vmem>>, vector<128x128xf32>
    %cst_219 = arith.constant dense<0.000000e+00> : vector<16x128xf32>
    %599 = tpu.matmul %597, %598, %cst_219 {dimension_numbers = #tpu.dot_dimension_numbers<[1], [0], [0], [1], [0, 0, 1, 1], [], []>} : vector<16x128xf32>, vector<128x128xf32>, vector<16x128xf32> -> vector<16x128xf32>
    %c2984 = arith.constant 2984 : index
    %c0_220 = arith.constant 0 : index
    %600 = vector.load %arg2[%c2984, %c0_220] : memref<3144x128xf32, #tpu.memory_space<vmem>>, vector<1x128xf32>
    %601 = vector.broadcast %600 : vector<1x128xf32> to vector<16x128xf32>
    %602 = arith.addf %599, %601 : vector<16x128xf32>
    %603 = arith.addf %579, %602 : vector<16x128xf32>
    %c2992 = arith.constant 2992 : index
    %c0_221 = arith.constant 0 : index
    %604 = vector.load %arg2[%c2992, %c0_221] : memref<3144x128xf32, #tpu.memory_space<vmem>>, vector<1x128xf32>
    %c3000 = arith.constant 3000 : index
    %c0_222 = arith.constant 0 : index
    %605 = vector.load %arg2[%c3000, %c0_222] : memref<3144x128xf32, #tpu.memory_space<vmem>>, vector<1x128xf32>
    %cst_223 = arith.constant dense<0.000000e+00> : vector<16xf32>
    %606 = vector.multi_reduction <add>, %603, %cst_223 [1] : vector<16x128xf32> to vector<16xf32>
    %607 = vector.shape_cast %606 : vector<16xf32> to vector<16x1xf32>
    %cst_224 = arith.constant 3.125000e-02 : f32
    %608 = vector.broadcast %cst_224 : f32 to vector<16x1xf32>
    %609 = arith.mulf %607, %608 : vector<16x1xf32>
    %610 = vector.broadcast %609 : vector<16x1xf32> to vector<16x128xf32>
    %611 = arith.subf %603, %610 : vector<16x128xf32>
    %cst_225 = arith.constant 0.000000e+00 : f32
    %612 = vector.shape_cast %2 : vector<1x128xi1> to vector<1x128xi1>
    %613 = vector.broadcast %612 : vector<1x128xi1> to vector<16x128xi1>
    %614 = vector.broadcast %cst_225 : f32 to vector<16x128xf32>
    %615 = arith.select %613, %611, %614 : vector<16x128xi1>, vector<16x128xf32>
    %616 = arith.mulf %615, %615 : vector<16x128xf32>
    %cst_226 = arith.constant dense<0.000000e+00> : vector<16xf32>
    %617 = vector.multi_reduction <add>, %616, %cst_226 [1] : vector<16x128xf32> to vector<16xf32>
    %618 = vector.shape_cast %617 : vector<16xf32> to vector<16x1xf32>
    %cst_227 = arith.constant 3.125000e-02 : f32
    %619 = vector.broadcast %cst_227 : f32 to vector<16x1xf32>
    %620 = arith.mulf %618, %619 : vector<16x1xf32>
    %cst_228 = arith.constant 9.99999974E-6 : f32
    %621 = vector.broadcast %cst_228 : f32 to vector<16x1xf32>
    %622 = arith.addf %620, %621 : vector<16x1xf32>
    %623 = math.rsqrt %622 : vector<16x1xf32>
    %624 = vector.broadcast %623 : vector<16x1xf32> to vector<16x128xf32>
    %625 = arith.mulf %615, %624 : vector<16x128xf32>
    %626 = vector.broadcast %604 : vector<1x128xf32> to vector<16x128xf32>
    %627 = arith.mulf %625, %626 : vector<16x128xf32>
    %628 = vector.broadcast %605 : vector<1x128xf32> to vector<16x128xf32>
    %629 = arith.addf %627, %628 : vector<16x128xf32>
    %c3008 = arith.constant 3008 : index
    %c0_229 = arith.constant 0 : index
    %630 = vector.load %arg2[%c3008, %c0_229] : memref<3144x128xf32, #tpu.memory_space<vmem>>, vector<128x128xf32>
    %cst_230 = arith.constant dense<0.000000e+00> : vector<16x128xf32>
    %631 = tpu.matmul %629, %630, %cst_230 {dimension_numbers = #tpu.dot_dimension_numbers<[1], [0], [0], [1], [0, 0, 1, 1], [], []>} : vector<16x128xf32>, vector<128x128xf32>, vector<16x128xf32> -> vector<16x128xf32>
    %c3136 = arith.constant 3136 : index
    %c0_231 = arith.constant 0 : index
    %632 = vector.load %arg2[%c3136, %c0_231] : memref<3144x128xf32, #tpu.memory_space<vmem>>, vector<1x128xf32>
    %633 = vector.broadcast %632 : vector<1x128xf32> to vector<16x128xf32>
    %634 = arith.addf %631, %633 : vector<16x128xf32>
    %cst_232 = arith.constant -1.000000e+30 : f32
    %635 = vector.shape_cast %4 : vector<1x128xi1> to vector<1x128xi1>
    %636 = vector.broadcast %635 : vector<1x128xi1> to vector<16x128xi1>
    %637 = vector.broadcast %cst_232 : f32 to vector<16x128xf32>
    %638 = arith.select %636, %634, %637 : vector<16x128xi1>, vector<16x128xf32>
    %cst_233 = arith.constant dense<0xFF800000> : vector<16xf32>
    %639 = vector.multi_reduction <maximumf>, %638, %cst_233 [1] : vector<16x128xf32> to vector<16xf32>
    %640 = vector.shape_cast %639 : vector<16xf32> to vector<16x1xf32>
    %641 = vector.broadcast %640 : vector<16x1xf32> to vector<16x128xf32>
    %642 = arith.subf %638, %641 : vector<16x128xf32>
    %643 = math.exp %642 : vector<16x128xf32>
    %cst_234 = arith.constant dense<0.000000e+00> : vector<16xf32>
    %644 = vector.multi_reduction <add>, %643, %cst_234 [1] : vector<16x128xf32> to vector<16xf32>
    %645 = vector.shape_cast %644 : vector<16xf32> to vector<16x1xf32>
    %646 = vector.broadcast %645 : vector<16x1xf32> to vector<16x128xf32>
    %647 = arith.divf %643, %646 : vector<16x128xf32>
    %c0_235 = arith.constant 0 : index
    %c0_236 = arith.constant 0 : index
    %648 = vector.load %arg3[%c0_235, %c0_236] : memref<16x128xf32, #tpu.memory_space<vmem>>, vector<16x128xf32>
    tpu.vector_store %arg3[%c0_235, %c0_236], %647 {strides = array<i32>} : memref<16x128xf32, #tpu.memory_space<vmem>>, vector<16x128xf32>,
    return
  }
}

</mosaic_0001>

<llo_original>
// kernel: transformer_forward.1
$region0: #{transformer_forward.1}
  #allocation0 [shape = 'u32[]', space=smem, size = 0x4, offset = 0x4, fixed_abs, tag = 'smem constant byte address 0x4 - core index']
  #allocation1 [shape = 'u32[144,128]{1,0:T(1,128)}', space=vmem, size = 0x12000, scoped, tag = 'internal scratch']
  %s0 = inlined_call_operand.vmem [shape: f32[40,128], index: 0, kind: input, shape index: {}]
  %s1 = inlined_call_operand.hbm [shape: f32[512,1536], index: 1, kind: input, shape index: {}]
  %s2 = inlined_call_operand.hbm [shape: f32[3144,128], index: 2, kind: input, shape index: {}]
  %s3 = inlined_call_operand.vmem [shape: f32[16,128], index: 3, kind: output, shape index: {}]
  %s4 = sld [smem:[#allocation0]]
  $region30: #{transformer_forward.1} parent=0
    _
  %s6 = ssub.s32 1, %s4
  %s7 = scalar_select 0, %s6, %s4
  $region1: #{transformer_forward.1} parent=0
    #allocation2 [shape = 'u8[3145728]{0}', space=vmem, size = 0x300000, scoped, tag = 'input window, operand 1, single buffered']
    #allocation3 [shape = 's32[1]{0}', space=sflag, size = 0x4, scoped, tag = 'scoped memory for transformer_forward.1']
    #allocation4 [shape = 'u8[1609728]{0}', space=vmem, size = 0x189000, scoped, tag = 'input window, operand 2, single buffered']
    #allocation5 [shape = 's32[1]{0}', space=sflag, size = 0x4, scoped, tag = 'scoped memory for transformer_forward.1']
    %8 = vsyncpa [#allocation3], 0
    %9 = vsyncpa [#allocation5], 0
    // Predicated region
    $region2: #{transformer_forward.1} parent=1 // pred_check
      _
    $region3: #{transformer_forward.1} parent=1 // pred_check_branch
      %11 = sbr.rel (0) target = $region5
    $region4: #{transformer_forward.1} parent=1 // pred_region
      _
    $region5: #{transformer_forward.1} parent=1 // pred_fallthru
      _
    // Predicated region
    $region6: #{transformer_forward.1} parent=1 // pred_check
      _
    $region7: #{transformer_forward.1} parent=1 // pred_check_branch
      %13 = sbr.rel (0) target = $region9
    $region8: #{transformer_forward.1} parent=1 // pred_region
      %s15 = ssub.s32 98304, 98304
      %16 = vsyncadd [#allocation3], %s15
      %s17 = sshll.u32 [#allocation2], 4
      %s18 = int_to_ptr.vmem [resolvable:$true] %s17
      %23 = dma.hbm_to_vmem [thread:$0]  %s1, 98304, %s18, [#allocation3], 1536, 1536, 96
    $region9: #{transformer_forward.1} parent=1 // pred_fallthru
      _
    // Predicated region
    $region10: #{transformer_forward.1} parent=1 // pred_check
      _
    $region11: #{transformer_forward.1} parent=1 // pred_check_branch
      %25 = sbr.rel (0) target = $region13
    $region12: #{transformer_forward.1} parent=1 // pred_region
      %s27 = ssub.s32 50304, 50304
      %28 = vsyncadd [#allocation5], %s27
      %s29 = sshll.u32 [#allocation4], 4
      %s30 = int_to_ptr.vmem [resolvable:$true] %s29
      %35 = dma.hbm_to_vmem [thread:$0]  %s2, 50304, %s30, [#allocation5], 128, 128, 8
    $region13: #{transformer_forward.1} parent=1 // pred_fallthru
      _
    // Predicated region
    $region14: #{transformer_forward.1} parent=1 // pred_check
      _
    $region15: #{transformer_forward.1} parent=1 // pred_check_branch
      %37 = sbr.rel (0) target = $region17
    $region16: #{transformer_forward.1} parent=1 // pred_region
      %38 = dma.done [#allocation3], 98304
    $region17: #{transformer_forward.1} parent=1 // pred_fallthru
      _
    // Predicated region
    $region18: #{transformer_forward.1} parent=1 // pred_check
      _
    $region19: #{transformer_forward.1} parent=1 // pred_check_branch
      %40 = sbr.rel (0) target = $region21
    $region20: #{transformer_forward.1} parent=1 // pred_region
      %41 = dma.done [#allocation5], 50304
    $region21: #{transformer_forward.1} parent=1 // pred_fallthru
      _
    %v42 = vlaneseq
    %v43 = vand.u32 %v42, 127
    %vm44 = vcmp.lt.s32.totalorder %v43, 32
    %v45 = vld [vmem:[%s0 + $0x20] sm:$0x1]
    %v46 = vlaneseq
    %v47 = vshrl.u32 %v46, 7
    %v48 = vadd.s32 %v47, 8
    %vm49 = vcmp.gt.f32.partialorder %v45, 0.5
    %vm50 = vcmp.ge.s32.totalorder %v47, 8
    %vm51 = vcmp.ge.s32.totalorder %v48, 8
    %vm52 = vcmp.ge.s32.totalorder %v43, 8
    %vm53 = vmxor %vm50, %vm52
    %vm54 = vmxor %vm51, %vm52
    %vm55 = vmxor %vm53, 1
    %vm56 = vmxor %vm54, 1
    %v57 = vsel %vm49, 1, 0
    %v58 = vlaneseq
    %v59 = vshrl.u32 %v58, 7
    %v60 = vsub.s32 0, %v59
    %v61 = vrot.slane %v57, %v60
    %vm62 = vcmp.eq.s32.totalorder %v61, 1
    %vm63 = vmand %vm62, %vm55
    %vm64 = vmand %vm62, %vm56
    %v65 = vld [vmem:[%s0] sm:$0xff]
    %v66 = vld [vmem:[%s0 + $0x8] sm:$0xff]
    %v67 = vld [vmem:[#allocation4] sm:$0xff]
    %v68 = vld [vmem:[#allocation4 + $0x8] sm:$0xff]
    %v69 = vld [vmem:[#allocation4 + $0x10] sm:$0xff]
    %v70 = vld [vmem:[#allocation4 + $0x18] sm:$0xff]
    %v71 = vld [vmem:[#allocation4 + $0x20] sm:$0xff]
    %v72 = vld [vmem:[#allocation4 + $0x28] sm:$0xff]
    %v73 = vld [vmem:[#allocation4 + $0x30] sm:$0xff]
    %v74 = vld [vmem:[#allocation4 + $0x38] sm:$0xff]
    %v75 = vld [vmem:[#allocation4 + $0x40] sm:$0xff]
    %v76 = vld [vmem:[#allocation4 + $0x48] sm:$0xff]
    %v77 = vld [vmem:[#allocation4 + $0x50] sm:$0xff]
    %v78 = vld [vmem:[#allocation4 + $0x58] sm:$0xff]
    %v79 = vld [vmem:[#allocation4 + $0x60] sm:$0xff]
    %v80 = vld [vmem:[#allocation4 + $0x68] sm:$0xff]
    %v81 = vld [vmem:[#allocation4 + $0x70] sm:$0xff]
    %v82 = vld [vmem:[#allocation4 + $0x78] sm:$0xff]
    %v83 = vld [vmem:[#allocation4 + $0x80] sm:$0xff]
    %v84 = vld [vmem:[#allocation4 + $0x88] sm:$0xff]
    %v85 = vld [vmem:[#allocation4 + $0x90] sm:$0xff]
    %v86 = vld [vmem:[#allocation4 + $0x98] sm:$0xff]
    %v87 = vld [vmem:[#allocation4 + $0xa0] sm:$0xff]
    %v88 = vld [vmem:[#allocation4 + $0xa8] sm:$0xff]
    %v89 = vld [vmem:[#allocation4 + $0xb0] sm:$0xff]
    %v90 = vld [vmem:[#allocation4 + $0xb8] sm:$0xff]
    %v91 = vld [vmem:[#allocation4 + $0xc0] sm:$0xff]
    %v92 = vld [vmem:[#allocation4 + $0xc8] sm:$0xff]
    %v93 = vld [vmem:[#allocation4 + $0xd0] sm:$0xff]
    %v94 = vld [vmem:[#allocation4 + $0xd8] sm:$0xff]
    %v95 = vld [vmem:[#allocation4 + $0xe0] sm:$0xff]
    %v96 = vld [vmem:[#allocation4 + $0xe8] sm:$0xff]
    %v97 = vld [vmem:[#allocation4 + $0xf0] sm:$0xff]
    %v98 = vld [vmem:[#allocation4 + $0xf8] sm:$0xff]
    %v99 = vld [vmem:[#allocation4 + $0x100] sm:$0xff]
    %v100 = vld [vmem:[#allocation4 + $0x108] sm:$0xff]
    %v101 = vld [vmem:[#allocation4 + $0x110] sm:$0xff]
    %v102 = vld [vmem:[#allocation4 + $0x118] sm:$0xff]
    %v103 = vld [vmem:[#allocation4 + $0x120] sm:$0xff]
    %v104 = vld [vmem:[#allocation4 + $0x128] sm:$0xff]
    %v105 = vld [vmem:[#allocation4 + $0x130] sm:$0xff]
    %v106 = vld [vmem:[#allocation4 + $0x138] sm:$0xff]
    %v107 = vld [vmem:[#allocation4 + $0x140] sm:$0xff]
    %v108 = vld [vmem:[#allocation4 + $0x148] sm:$0xff]
    %v109 = vld [vmem:[#allocation4 + $0x150] sm:$0xff]
    %v110 = vld [vmem:[#allocation4 + $0x158] sm:$0xff]
    %v111 = vld [vmem:[#allocation4 + $0x160] sm:$0xff]
    %v112 = vld [vmem:[#allocation4 + $0x168] sm:$0xff]
    %v113 = vld [vmem:[#allocation4 + $0x170] sm:$0xff]
    %v114 = vld [vmem:[#allocation4 + $0x178] sm:$0xff]
    %v115 = vld [vmem:[#allocation4 + $0x180] sm:$0xff]
    %v116 = vld [vmem:[#allocation4 + $0x188] sm:$0xff]
    %v117 = vld [vmem:[#allocation4 + $0x190] sm:$0xff]
    %v118 = vld [vmem:[#allocation4 + $0x198] sm:$0xff]
    %v119 = vld [vmem:[#allocation4 + $0x1a0] sm:$0xff]
    %v120 = vld [vmem:[#allocation4 + $0x1a8] sm:$0xff]
    %v121 = vld [vmem:[#allocation4 + $0x1b0] sm:$0xff]
    %v122 = vld [vmem:[#allocation4 + $0x1b8] sm:$0xff]
    %v123 = vld [vmem:[#allocation4 + $0x1c0] sm:$0xff]
    %v124 = vld [vmem:[#allocation4 + $0x1c8] sm:$0xff]
    %v125 = vld [vmem:[#allocation4 + $0x1d0] sm:$0xff]
    %v126 = vld [vmem:[#allocation4 + $0x1d8] sm:$0xff]
    %v127 = vld [vmem:[#allocation4 + $0x1e0] sm:$0xff]
    %v128 = vld [vmem:[#allocation4 + $0x1e8] sm:$0xff]
    %v129 = vld [vmem:[#allocation4 + $0x1f0] sm:$0xff]
    %v130 = vld [vmem:[#allocation4 + $0x1f8] sm:$0xff]
    %v131 = vld [vmem:[#allocation4 + $0x300] sm:$0x1]
    %v132 = vld [vmem:[#allocation2] sm:$0xff]
    %v133 = vld [vmem:[#allocation2 + $0x8] sm:$0xff]
    %v134 = vld [vmem:[#allocation2 + $0x10] sm:$0xff]
    %v135 = vld [vmem:[#allocation2 + $0x18] sm:$0xff]
    %v136 = vld [vmem:[#allocation2 + $0x60] sm:$0xff]
    %v137 = vld [vmem:[#allocation2 + $0x68] sm:$0xff]
    %v138 = vld [vmem:[#allocation2 + $0x70] sm:$0xff]
    %v139 = vld [vmem:[#allocation2 + $0x78] sm:$0xff]
    %v140 = vld [vmem:[#allocation2 + $0xc0] sm:$0xff]
    %v141 = vld [vmem:[#allocation2 + $0xc8] sm:$0xff]
    %v142 = vld [vmem:[#allocation2 + $0xd0] sm:$0xff]
    %v143 = vld [vmem:[#allocation2 + $0xd8] sm:$0xff]
    %v144 = vld [vmem:[#allocation2 + $0x120] sm:$0xff]
    %v145 = vld [vmem:[#allocation2 + $0x128] sm:$0xff]
    %v146 = vld [vmem:[#allocation2 + $0x130] sm:$0xff]
    %v147 = vld [vmem:[#allocation2 + $0x138] sm:$0xff]
    %v148 = vld [vmem:[#allocation2 + $0x180] sm:$0xff]
    %v149 = vld [vmem:[#allocation2 + $0x188] sm:$0xff]
    %v150 = vld [vmem:[#allocation2 + $0x190] sm:$0xff]
    %v151 = vld [vmem:[#allocation2 + $0x198] sm:$0xff]
    %v152 = vld [vmem:[#allocation2 + $0x1e0] sm:$0xff]
    %v153 = vld [vmem:[#allocation2 + $0x1e8] sm:$0xff]
    %v154 = vld [vmem:[#allocation2 + $0x1f0] sm:$0xff]
    %v155 = vld [vmem:[#allocation2 + $0x1f8] sm:$0xff]
    %v156 = vld [vmem:[#allocation2 + $0x240] sm:$0xff]
    %v157 = vld [vmem:[#allocation2 + $0x248] sm:$0xff]
    %v158 = vld [vmem:[#allocation2 + $0x250] sm:$0xff]
    %v159 = vld [vmem:[#allocation2 + $0x258] sm:$0xff]
    %v160 = vld [vmem:[#allocation2 + $0x2a0] sm:$0xff]
    %v161 = vld [vmem:[#allocation2 + $0x2a8] sm:$0xff]
    %v162 = vld [vmem:[#allocation2 + $0x2b0] sm:$0xff]
    %v163 = vld [vmem:[#allocation2 + $0x2b8] sm:$0xff]
    %v164 = vld [vmem:[#allocation2 + $0x300] sm:$0xff]
    %v165 = vld [vmem:[#allocation2 + $0x308] sm:$0xff]
    %v166 = vld [vmem:[#allocation2 + $0x310] sm:$0xff]
    %v167 = vld [vmem:[#allocation2 + $0x318] sm:$0xff]
    %v168 = vld [vmem:[#allocation2 + $0x360] sm:$0xff]
    %v169 = vld [vmem:[#allocation2 + $0x368] sm:$0xff]
    %v170 = vld [vmem:[#allocation2 + $0x370] sm:$0xff]
    %v171 = vld [vmem:[#allocation2 + $0x378] sm:$0xff]
    %v172 = vld [vmem:[#allocation2 + $0x3c0] sm:$0xff]
    %v173 = vld [vmem:[#allocation2 + $0x3c8] sm:$0xff]
    %v174 = vld [vmem:[#allocation2 + $0x3d0] sm:$0xff]
    %v175 = vld [vmem:[#allocation2 + $0x3d8] sm:$0xff]
    %v176 = vld [vmem:[#allocation2 + $0x420] sm:$0xff]
    %v177 = vld [vmem:[#allocation2 + $0x428] sm:$0xff]
    %v178 = vld [vmem:[#allocation2 + $0x430] sm:$0xff]
    %v179 = vld [vmem:[#allocation2 + $0x438] sm:$0xff]
    %v180 = vld [vmem:[#allocation2 + $0x480] sm:$0xff]
    %v181 = vld [vmem:[#allocation2 + $0x488] sm:$0xff]
    %v182 = vld [vmem:[#allocation2 + $0x490] sm:$0xff]
    %v183 = vld [vmem:[#allocation2 + $0x498] sm:$0xff]
    %v184 = vld [vmem:[#allocation2 + $0x4e0] sm:$0xff]
    %v185 = vld [vmem:[#allocation2 + $0x4e8] sm:$0xff]
    %v186 = vld [vmem:[#allocation2 + $0x4f0] sm:$0xff]
    %v187 = vld [vmem:[#allocation2 + $0x4f8] sm:$0xff]
    %v188 = vld [vmem:[#allocation2 + $0x540] sm:$0xff]
    %v189 = vld [vmem:[#allocation2 + $0x548] sm:$0xff]
    %v190 = vld [vmem:[#allocation2 + $0x550] sm:$0xff]
    %v191 = vld [vmem:[#allocation2 + $0x558] sm:$0xff]
    %v192 = vld [vmem:[#allocation2 + $0x5a0] sm:$0xff]
    %v193 = vld [vmem:[#allocation2 + $0x5a8] sm:$0xff]
    %v194 = vld [vmem:[#allocation2 + $0x5b0] sm:$0xff]
    %v195 = vld [vmem:[#allocation2 + $0x5b8] sm:$0xff]
    %v196 = vld [vmem:[#allocation2 + $0x20] sm:$0xff]
    %v197 = vld [vmem:[#allocation2 + $0x28] sm:$0xff]
    %v198 = vld [vmem:[#allocation2 + $0x30] sm:$0xff]
    %v199 = vld [vmem:[#allocation2 + $0x38] sm:$0xff]
    %v200 = vld [vmem:[#allocation2 + $0x40] sm:$0xff]
    %v201 = vld [vmem:[#allocation2 + $0x48] sm:$0xff]
    %v202 = vld [vmem:[#allocation2 + $0x50] sm:$0xff]
    %v203 = vld [vmem:[#allocation2 + $0x58] sm:$0xff]
    %v204 = vld [vmem:[#allocation2 + $0x80] sm:$0xff]
    %v205 = vld [vmem:[#allocation2 + $0x88] sm:$0xff]
    %v206 = vld [vmem:[#allocation2 + $0x90] sm:$0xff]
    %v207 = vld [vmem:[#allocation2 + $0x98] sm:$0xff]
    %v208 = vld [vmem:[#allocation2 + $0xa0] sm:$0xff]
    %v209 = vld [vmem:[#allocation2 + $0xa8] sm:$0xff]
    %v210 = vld [vmem:[#allocation2 + $0xb0] sm:$0xff]
    %v211 = vld [vmem:[#allocation2 + $0xb8] sm:$0xff]
    %v212 = vld [vmem:[#allocation2 + $0xe0] sm:$0xff]
    %v213 = vld [vmem:[#allocation2 + $0xe8] sm:$0xff]
    %v214 = vld [vmem:[#allocation2 + $0xf0] sm:$0xff]
    %v215 = vld [vmem:[#allocation2 + $0xf8] sm:$0xff]
    %v216 = vld [vmem:[#allocation2 + $0x100] sm:$0xff]
    %v217 = vld [vmem:[#allocation2 + $0x108] sm:$0xff]
    %v218 = vld [vmem:[#allocation2 + $0x110] sm:$0xff]
    %v219 = vld [vmem:[#allocation2 + $0x118] sm:$0xff]
    %v220 = vld [vmem:[#allocation2 + $0x140] sm:$0xff]
    %v221 = vld [vmem:[#allocation2 + $0x148] sm:$0xff]
    %v222 = vld [vmem:[#allocation2 + $0x150] sm:$0xff]
    %v223 = vld [vmem:[#allocation2 + $0x158] sm:$0xff]
    %v224 = vld [vmem:[#allocation2 + $0x160] sm:$0xff]
    %v225 = vld [vmem:[#allocation2 + $0x168] sm:$0xff]
    %v226 = vld [vmem:[#allocation2 + $0x170] sm:$0xff]
    %v227 = vld [vmem:[#allocation2 + $0x178] sm:$0xff]
    %v228 = vld [vmem:[#allocation2 + $0x1a0] sm:$0xff]
    %v229 = vld [vmem:[#allocation2 + $0x1a8] sm:$0xff]
    %v230 = vld [vmem:[#allocation2 + $0x1b0] sm:$0xff]
    %v231 = vld [vmem:[#allocation2 + $0x1b8] sm:$0xff]
    %v232 = vld [vmem:[#allocation2 + $0x1c0] sm:$0xff]
    %v233 = vld [vmem:[#allocation2 + $0x1c8] sm:$0xff]
    %v234 = vld [vmem:[#allocation2 + $0x1d0] sm:$0xff]
    %v235 = vld [vmem:[#allocation2 + $0x1d8] sm:$0xff]
    %v236 = vld [vmem:[#allocation2 + $0x200] sm:$0xff]
    %v237 = vld [vmem:[#allocation2 + $0x208] sm:$0xff]
    %v238 = vld [vmem:[#allocation2 + $0x210] sm:$0xff]
    %v239 = vld [vmem:[#allocation2 + $0x218] sm:$0xff]
    %v240 = vld [vmem:[#allocation2 + $0x220] sm:$0xff]
    %v241 = vld [vmem:[#allocation2 + $0x228] sm:$0xff]
    %v242 = vld [vmem:[#allocation2 + $0x230] sm:$0xff]
    %v243 = vld [vmem:[#allocation2 + $0x238] sm:$0xff]
    %v244 = vld [vmem:[#allocation2 + $0x260] sm:$0xff]
    %v245 = vld [vmem:[#allocation2 + $0x268] sm:$0xff]
    %v246 = vld [vmem:[#allocation2 + $0x270] sm:$0xff]
    %v247 = vld [vmem:[#allocation2 + $0x278] sm:$0xff]
    %v248 = vld [vmem:[#allocation2 + $0x280] sm:$0xff]
    %v249 = vld [vmem:[#allocation2 + $0x288] sm:$0xff]
    %v250 = vld [vmem:[#allocation2 + $0x290] sm:$0xff]
    %v251 = vld [vmem:[#allocation2 + $0x298] sm:$0xff]
    %v252 = vld [vmem:[#allocation2 + $0x2c0] sm:$0xff]
    %v253 = vld [vmem:[#allocation2 + $0x2c8] sm:$0xff]
    %v254 = vld [vmem:[#allocation2 + $0x2d0] sm:$0xff]
    %v255 = vld [vmem:[#allocation2 + $0x2d8] sm:$0xff]
    %v256 = vld [vmem:[#allocation2 + $0x2e0] sm:$0xff]
    %v257 = vld [vmem:[#allocation2 + $0x2e8] sm:$0xff]
    %v258 = vld [vmem:[#allocation2 + $0x2f0] sm:$0xff]
    %v259 = vld [vmem:[#allocation2 + $0x2f8] sm:$0xff]
    %v260 = vld [vmem:[#allocation2 + $0x320] sm:$0xff]
    %v261 = vld [vmem:[#allocation2 + $0x328] sm:$0xff]
    %v262 = vld [vmem:[#allocation2 + $0x330] sm:$0xff]
    %v263 = vld [vmem:[#allocation2 + $0x338] sm:$0xff]
    %v264 = vld [vmem:[#allocation2 + $0x340] sm:$0xff]
    %v265 = vld [vmem:[#allocation2 + $0x348] sm:$0xff]
    %v266 = vld [vmem:[#allocation2 + $0x350] sm:$0xff]
    %v267 = vld [vmem:[#allocation2 + $0x358] sm:$0xff]
    %v268 = vld [vmem:[#allocation2 + $0x380] sm:$0xff]
    %v269 = vld [vmem:[#allocation2 + $0x388] sm:$0xff]
    %v270 = vld [vmem:[#allocation2 + $0x390] sm:$0xff]
    %v271 = vld [vmem:[#allocation2 + $0x398] sm:$0xff]
    %v272 = vld [vmem:[#allocation2 + $0x3a0] sm:$0xff]
    %v273 = vld [vmem:[#allocation2 + $0x3a8] sm:$0xff]
    %v274 = vld [vmem:[#allocation2 + $0x3b0] sm:$0xff]
    %v275 = vld [vmem:[#allocation2 + $0x3b8] sm:$0xff]
    %v276 = vld [vmem:[#allocation2 + $0x3e0] sm:$0xff]
    %v277 = vld [vmem:[#allocation2 + $0x3e8] sm:$0xff]
    %v278 = vld [vmem:[#allocation2 + $0x3f0] sm:$0xff]
    %v279 = vld [vmem:[#allocation2 + $0x3f8] sm:$0xff]
    %v280 = vld [vmem:[#allocation2 + $0x400] sm:$0xff]
    %v281 = vld [vmem:[#allocation2 + $0x408] sm:$0xff]
    %v282 = vld [vmem:[#allocation2 + $0x410] sm:$0xff]
    %v283 = vld [vmem:[#allocation2 + $0x418] sm:$0xff]
    %v284 = vld [vmem:[#allocation2 + $0x440] sm:$0xff]
    %v285 = vld [vmem:[#allocation2 + $0x448] sm:$0xff]
    %v286 = vld [vmem:[#allocation2 + $0x450] sm:$0xff]
    %v287 = vld [vmem:[#allocation2 + $0x458] sm:$0xff]
    %v288 = vld [vmem:[#allocation2 + $0x460] sm:$0xff]
    %v289 = vld [vmem:[#allocation2 + $0x468] sm:$0xff]
    %v290 = vld [vmem:[#allocation2 + $0x470] sm:$0xff]
    %v291 = vld [vmem:[#allocation2 + $0x478] sm:$0xff]
    %v292 = vld [vmem:[#allocation2 + $0x4a0] sm:$0xff]
    %v293 = vld [vmem:[#allocation2 + $0x4a8] sm:$0xff]
    %v294 = vld [vmem:[#allocation2 + $0x4b0] sm:$0xff]
    %v295 = vld [vmem:[#allocation2 + $0x4b8] sm:$0xff]
    %v296 = vld [vmem:[#allocation2 + $0x4c0] sm:$0xff]
    %v297 = vld [vmem:[#allocation2 + $0x4c8] sm:$0xff]
    %v298 = vld [vmem:[#allocation2 + $0x4d0] sm:$0xff]
    %v299 = vld [vmem:[#allocation2 + $0x4d8] sm:$0xff]
    %v300 = vld [vmem:[#allocation2 + $0x500] sm:$0xff]
    %v301 = vld [vmem:[#allocation2 + $0x508] sm:$0xff]
    %v302 = vld [vmem:[#allocation2 + $0x510] sm:$0xff]
    %v303 = vld [vmem:[#allocation2 + $0x518] sm:$0xff]
    %v304 = vld [vmem:[#allocation2 + $0x520] sm:$0xff]
    %v305 = vld [vmem:[#allocation2 + $0x528] sm:$0xff]
    %v306 = vld [vmem:[#allocation2 + $0x530] sm:$0xff]
    %v307 = vld [vmem:[#allocation2 + $0x538] sm:$0xff]
    %v308 = vld [vmem:[#allocation2 + $0x560] sm:$0xff]
    %v309 = vld [vmem:[#allocation2 + $0x568] sm:$0xff]
    %v310 = vld [vmem:[#allocation2 + $0x570] sm:$0xff]
    %v311 = vld [vmem:[#allocation2 + $0x578] sm:$0xff]
    %v312 = vld [vmem:[#allocation2 + $0x580] sm:$0xff]
    %v313 = vld [vmem:[#allocation2 + $0x588] sm:$0xff]
    %v314 = vld [vmem:[#allocation2 + $0x590] sm:$0xff]
    %v315 = vld [vmem:[#allocation2 + $0x598] sm:$0xff]
    %v316 = vld [vmem:[#allocation2 + $0x5c0] sm:$0xff]
    %v317 = vld [vmem:[#allocation2 + $0x5c8] sm:$0xff]
    %v318 = vld [vmem:[#allocation2 + $0x5d0] sm:$0xff]
    %v319 = vld [vmem:[#allocation2 + $0x5d8] sm:$0xff]
    %v320 = vld [vmem:[#allocation2 + $0x5e0] sm:$0xff]
    %v321 = vld [vmem:[#allocation2 + $0x5e8] sm:$0xff]
    %v322 = vld [vmem:[#allocation2 + $0x5f0] sm:$0xff]
    %v323 = vld [vmem:[#allocation2 + $0x5f8] sm:$0xff]
    %324 = vmatprep.subr.mxu0 %v133
    %325 = vmatpush1.msra.mxu0 %v132
    %326 = vmatprep.subr.mxu0 %v137
    %327 = vmatpush1.msra.mxu0 %v136
    %328 = vmatprep.subr.mxu0 %v141
    %329 = vmatpush1.msra.mxu0 %v140
    %330 = vmatprep.subr.mxu0 %v145
    %331 = vmatpush1.msra.mxu0 %v144
    %332 = vmatprep.subr.mxu0 %v149
    %333 = vmatpush1.msra.mxu0 %v148
    %334 = vmatprep.subr.mxu0 %v153
    %335 = vmatpush1.msra.mxu0 %v152
    %336 = vmatprep.subr.mxu0 %v157
    %337 = vmatpush1.msra.mxu0 %v156
    %338 = vmatprep.subr.mxu0 %v161
    %339 = vmatpush1.msra.mxu0 %v160
    %340 = vmatprep.subr.mxu0 %v165
    %341 = vmatpush1.msra.mxu0 %v164
    %342 = vmatprep.subr.mxu0 %v169
    %343 = vmatpush1.msra.mxu0 %v168
    %344 = vmatprep.subr.mxu0 %v173
    %345 = vmatpush1.msra.mxu0 %v172
    %346 = vmatprep.subr.mxu0 %v177
    %347 = vmatpush1.msra.mxu0 %v176
    %348 = vmatprep.subr.mxu0 %v181
    %349 = vmatpush1.msra.mxu0 %v180
    %350 = vmatprep.subr.mxu0 %v185
    %351 = vmatpush1.msra.mxu0 %v184
    %352 = vmatprep.subr.mxu0 %v189
    %353 = vmatpush1.msra.mxu0 %v188
    %354 = vmatprep.subr.mxu0 %v193
    %355 = vmatpush1.msra.mxu0 %v192
    %356 = vmatprep.subr.mxu0 0.0
    %357 = vmatpush1.msra.mxu0 0.0
    %358 = vmatprep.subr.mxu0 0.0
    %359 = vmatpush1.msra.mxu0 0.0
    %360 = vmatprep.subr.mxu0 0.0
    %361 = vmatpush1.msra.mxu0 0.0
    %362 = vmatprep.subr.mxu0 0.0
    %363 = vmatpush1.msra.mxu0 0.0
    %364 = vmatprep.subr.mxu0 0.0
    %365 = vmatpush1.msra.mxu0 0.0
    %366 = vmatprep.subr.mxu0 0.0
    %367 = vmatpush1.msra.mxu0 0.0
    %368 = vmatprep.subr.mxu0 0.0
    %369 = vmatpush1.msra.mxu0 0.0
    %370 = vmatprep.subr.mxu0 0.0
    %371 = vmatpush1.msra.mxu0 0.0
    %372 = vmatprep.subr.mxu0 0.0
    %373 = vmatpush1.msra.mxu0 0.0
    %374 = vmatprep.subr.mxu0 0.0
    %375 = vmatpush1.msra.mxu0 0.0
    %376 = vmatprep.subr.mxu0 0.0
    %377 = vmatpush1.msra.mxu0 0.0
    %378 = vmatprep.subr.mxu0 0.0
    %379 = vmatpush1.msra.mxu0 0.0
    %380 = vmatprep.subr.mxu0 0.0
    %381 = vmatpush1.msra.mxu0 0.0
    %382 = vmatprep.subr.mxu0 0.0
    %383 = vmatpush1.msra.mxu0 0.0
    %384 = vmatprep.subr.mxu0 0.0
    %385 = vmatpush1.msra.mxu0 0.0
    %386 = vmatprep.subr.mxu0 0.0
    %387 = vmatpush1.msra.mxu0 0.0
    %388 = vmatprep.mubr.f32.mxu0 0.0
    %389 = vmatmul.mubr.f32.gmra.mrb[0].mxu0 %v65
    %v390 = vpop.f32.mrb[0].mxu0
    %v391 = vadd.f32 0.0, %v390
    %v392 = vpop.f32.mrb[0].mxu0
    %v393 = vadd.f32 0.0, %v392
    %394 = vmatprep.mubr.f32.mxu0 0.0
    %395 = vmatmul.mubr.f32.gmra.mrb[0].mxu0 %v66
    %v396 = vpop.f32.mrb[0].mxu0
    %v397 = vadd.f32 0.0, %v396
    %v398 = vpop.f32.mrb[0].mxu0
    %v399 = vadd.f32 0.0, %v398
    %400 = vdwg.mxu0
    %401 = vmatprep.subr.mxu0 %v135
    %402 = vmatpush1.msra.mxu0 %v134
    %403 = vmatprep.subr.mxu0 %v139
    %404 = vmatpush1.msra.mxu0 %v138
    %405 = vmatprep.subr.mxu0 %v143
    %406 = vmatpush1.msra.mxu0 %v142
    %407 = vmatprep.subr.mxu0 %v147
    %408 = vmatpush1.msra.mxu0 %v146
    %409 = vmatprep.subr.mxu0 %v151
    %410 = vmatpush1.msra.mxu0 %v150
    %411 = vmatprep.subr.mxu0 %v155
    %412 = vmatpush1.msra.mxu0 %v154
    %413 = vmatprep.subr.mxu0 %v159
    %414 = vmatpush1.msra.mxu0 %v158
    %415 = vmatprep.subr.mxu0 %v163
    %416 = vmatpush1.msra.mxu0 %v162
    %417 = vmatprep.subr.mxu0 %v167
    %418 = vmatpush1.msra.mxu0 %v166
    %419 = vmatprep.subr.mxu0 %v171
    %420 = vmatpush1.msra.mxu0 %v170
    %421 = vmatprep.subr.mxu0 %v175
    %422 = vmatpush1.msra.mxu0 %v174
    %423 = vmatprep.subr.mxu0 %v179
    %424 = vmatpush1.msra.mxu0 %v178
    %425 = vmatprep.subr.mxu0 %v183
    %426 = vmatpush1.msra.mxu0 %v182
    %427 = vmatprep.subr.mxu0 %v187
    %428 = vmatpush1.msra.mxu0 %v186
    %429 = vmatprep.subr.mxu0 %v191
    %430 = vmatpush1.msra.mxu0 %v190
    %431 = vmatprep.subr.mxu0 %v195
    %432 = vmatpush1.msra.mxu0 %v194
    %433 = vmatprep.subr.mxu0 0.0
    %434 = vmatpush1.msra.mxu0 0.0
    %435 = vmatprep.subr.mxu0 0.0
    %436 = vmatpush1.msra.mxu0 0.0
    %437 = vmatprep.subr.mxu0 0.0
    %438 = vmatpush1.msra.mxu0 0.0
    %439 = vmatprep.subr.mxu0 0.0
    %440 = vmatpush1.msra.mxu0 0.0
    %441 = vmatprep.subr.mxu0 0.0
    %442 = vmatpush1.msra.mxu0 0.0
    %443 = vmatprep.subr.mxu0 0.0
    %444 = vmatpush1.msra.mxu0 0.0
    %445 = vmatprep.subr.mxu0 0.0
    %446 = vmatpush1.msra.mxu0 0.0
    %447 = vmatprep.subr.mxu0 0.0
    %448 = vmatpush1.msra.mxu0 0.0
    %449 = vmatprep.subr.mxu0 0.0
    %450 = vmatpush1.msra.mxu0 0.0
    %451 = vmatprep.subr.mxu0 0.0
    %452 = vmatpush1.msra.mxu0 0.0
    %453 = vmatprep.subr.mxu0 0.0
    %454 = vmatpush1.msra.mxu0 0.0
    %455 = vmatprep.subr.mxu0 0.0
    %456 = vmatpush1.msra.mxu0 0.0
    %457 = vmatprep.subr.mxu0 0.0
    %458 = vmatpush1.msra.mxu0 0.0
    %459 = vmatprep.subr.mxu0 0.0
    %460 = vmatpush1.msra.mxu0 0.0
    %461 = vmatprep.subr.mxu0 0.0
    %462 = vmatpush1.msra.mxu0 0.0
    %463 = vmatprep.subr.mxu0 0.0
    %464 = vmatpush1.msra.mxu0 0.0
    %465 = vmatprep.mubr.f32.mxu0 0.0
    %466 = vmatmul.mubr.f32.gmra.mrb[0].mxu0 %v65
    %v467 = vpop.f32.mrb[0].mxu0
    %v468 = vadd.f32 0.0, %v467
    %v469 = vpop.f32.mrb[0].mxu0
    %v470 = vadd.f32 0.0, %v469
    %471 = vmatprep.mubr.f32.mxu0 0.0
    %472 = vmatmul.mubr.f32.gmra.mrb[0].mxu0 %v66
    %v473 = vpop.f32.mrb[0].mxu0
    %v474 = vadd.f32 0.0, %v473
    %v475 = vpop.f32.mrb[0].mxu0
    %v476 = vadd.f32 0.0, %v475
    %477 = vdwg.mxu0
    %478 = vmatprep.subr.mxu0 %v197
    %479 = vmatpush1.msra.mxu0 %v196
    %480 = vmatprep.subr.mxu0 %v205
    %481 = vmatpush1.msra.mxu0 %v204
    %482 = vmatprep.subr.mxu0 %v213
    %483 = vmatpush1.msra.mxu0 %v212
    %484 = vmatprep.subr.mxu0 %v221
    %485 = vmatpush1.msra.mxu0 %v220
    %486 = vmatprep.subr.mxu0 %v229
    %487 = vmatpush1.msra.mxu0 %v228
    %488 = vmatprep.subr.mxu0 %v237
    %489 = vmatpush1.msra.mxu0 %v236
    %490 = vmatprep.subr.mxu0 %v245
    %491 = vmatpush1.msra.mxu0 %v244
    %492 = vmatprep.subr.mxu0 %v253
    %493 = vmatpush1.msra.mxu0 %v252
    %494 = vmatprep.subr.mxu0 %v261
    %495 = vmatpush1.msra.mxu0 %v260
    %496 = vmatprep.subr.mxu0 %v269
    %497 = vmatpush1.msra.mxu0 %v268
    %498 = vmatprep.subr.mxu0 %v277
    %499 = vmatpush1.msra.mxu0 %v276
    %500 = vmatprep.subr.mxu0 %v285
    %501 = vmatpush1.msra.mxu0 %v284
    %502 = vmatprep.subr.mxu0 %v293
    %503 = vmatpush1.msra.mxu0 %v292
    %504 = vmatprep.subr.mxu0 %v301
    %505 = vmatpush1.msra.mxu0 %v300
    %506 = vmatprep.subr.mxu0 %v309
    %507 = vmatpush1.msra.mxu0 %v308
    %508 = vmatprep.subr.mxu0 %v317
    %509 = vmatpush1.msra.mxu0 %v316
    %510 = vmatprep.subr.mxu0 0.0
    %511 = vmatpush1.msra.mxu0 0.0
    %512 = vmatprep.subr.mxu0 0.0
    %513 = vmatpush1.msra.mxu0 0.0
    %514 = vmatprep.subr.mxu0 0.0
    %515 = vmatpush1.msra.mxu0 0.0
    %516 = vmatprep.subr.mxu0 0.0
    %517 = vmatpush1.msra.mxu0 0.0
    %518 = vmatprep.subr.mxu0 0.0
    %519 = vmatpush1.msra.mxu0 0.0
    %520 = vmatprep.subr.mxu0 0.0
    %521 = vmatpush1.msra.mxu0 0.0
    %522 = vmatprep.subr.mxu0 0.0
    %523 = vmatpush1.msra.mxu0 0.0
    %524 = vmatprep.subr.mxu0 0.0
    %525 = vmatpush1.msra.mxu0 0.0
    %526 = vmatprep.subr.mxu0 0.0
    %527 = vmatpush1.msra.mxu0 0.0
    %528 = vmatprep.subr.mxu0 0.0
    %529 = vmatpush1.msra.mxu0 0.0
    %530 = vmatprep.subr.mxu0 0.0
    %531 = vmatpush1.msra.mxu0 0.0
    %532 = vmatprep.subr.mxu0 0.0
    %533 = vmatpush1.msra.mxu0 0.0
    %534 = vmatprep.subr.mxu0 0.0
    %535 = vmatpush1.msra.mxu0 0.0
    %536 = vmatprep.subr.mxu0 0.0
    %537 = vmatpush1.msra.mxu0 0.0
    %538 = vmatprep.subr.mxu0 0.0
    %539 = vmatpush1.msra.mxu0 0.0
    %540 = vmatprep.subr.mxu0 0.0
    %541 = vmatpush1.msra.mxu0 0.0
    %542 = vmatprep.mubr.f32.mxu0 0.0
    %543 = vmatmul.mubr.f32.gmra.mrb[0].mxu0 %v65
    %v544 = vpop.f32.mrb[0].mxu0
    %v545 = vadd.f32 0.0, %v544
    %v546 = vpop.f32.mrb[0].mxu0
    %v547 = vadd.f32 0.0, %v546
    %548 = vmatprep.mubr.f32.mxu0 0.0
    %549 = vmatmul.mubr.f32.gmra.mrb[0].mxu0 %v66
    %v550 = vpop.f32.mrb[0].mxu0
    %v551 = vadd.f32 0.0, %v550
    %v552 = vpop.f32.mrb[0].mxu0
    %v553 = vadd.f32 0.0, %v552
    %554 = vdwg.mxu0
    %555 = vmatprep.subr.mxu0 %v199
    %556 = vmatpush1.msra.mxu0 %v198
    %557 = vmatprep.subr.mxu0 %v207
    %558 = vmatpush1.msra.mxu0 %v206
    %559 = vmatprep.subr.mxu0 %v215
    %560 = vmatpush1.msra.mxu0 %v214
    %561 = vmatprep.subr.mxu0 %v223
    %562 = vmatpush1.msra.mxu0 %v222
    %563 = vmatprep.subr.mxu0 %v231
    %564 = vmatpush1.msra.mxu0 %v230
    %565 = vmatprep.subr.mxu0 %v239
    %566 = vmatpush1.msra.mxu0 %v238
    %567 = vmatprep.subr.mxu0 %v247
    %568 = vmatpush1.msra.mxu0 %v246
    %569 = vmatprep.subr.mxu0 %v255
    %570 = vmatpush1.msra.mxu0 %v254
    %571 = vmatprep.subr.mxu0 %v263
    %572 = vmatpush1.msra.mxu0 %v262
    %573 = vmatprep.subr.mxu0 %v271
    %574 = vmatpush1.msra.mxu0 %v270
    %575 = vmatprep.subr.mxu0 %v279
    %576 = vmatpush1.msra.mxu0 %v278
    %577 = vmatprep.subr.mxu0 %v287
    %578 = vmatpush1.msra.mxu0 %v286
    %579 = vmatprep.subr.mxu0 %v295
    %580 = vmatpush1.msra.mxu0 %v294
    %581 = vmatprep.subr.mxu0 %v303
    %582 = vmatpush1.msra.mxu0 %v302
    %583 = vmatprep.subr.mxu0 %v311
    %584 = vmatpush1.msra.mxu0 %v310
    %585 = vmatprep.subr.mxu0 %v319
    %586 = vmatpush1.msra.mxu0 %v318
    %587 = vmatprep.subr.mxu0 0.0
    %588 = vmatpush1.msra.mxu0 0.0
    %589 = vmatprep.subr.mxu0 0.0
    %590 = vmatpush1.msra.mxu0 0.0
    %591 = vmatprep.subr.mxu0 0.0
    %592 = vmatpush1.msra.mxu0 0.0
    %593 = vmatprep.subr.mxu0 0.0
    %594 = vmatpush1.msra.mxu0 0.0
    %595 = vmatprep.subr.mxu0 0.0
    %596 = vmatpush1.msra.mxu0 0.0
    %597 = vmatprep.subr.mxu0 0.0
    %598 = vmatpush1.msra.mxu0 0.0
    %599 = vmatprep.subr.mxu0 0.0
    %600 = vmatpush1.msra.mxu0 0.0
    %601 = vmatprep.subr.mxu0 0.0
    %602 = vmatpush1.msra.mxu0 0.0
    %603 = vmatprep.subr.mxu0 0.0
    %604 = vmatpush1.msra.mxu0 0.0
    %605 = vmatprep.subr.mxu0 0.0
    %606 = vmatpush1.msra.mxu0 0.0
    %607 = vmatprep.subr.mxu0 0.0
    %608 = vmatpush1.msra.mxu0 0.0
    %609 = vmatprep.subr.mxu0 0.0
    %610 = vmatpush1.msra.mxu0 0.0
    %611 = vmatprep.subr.mxu0 0.0
    %612 = vmatpush1.msra.mxu0 0.0
    %613 = vmatprep.subr.mxu0 0.0
    %614 = vmatpush1.msra.mxu0 0.0
    %615 = vmatprep.subr.mxu0 0.0
    %616 = vmatpush1.msra.mxu0 0.0
    %617 = vmatprep.subr.mxu0 0.0
    %618 = vmatpush1.msra.mxu0 0.0
    %619 = vmatprep.mubr.f32.mxu0 0.0
    %620 = vmatmul.mubr.f32.gmra.mrb[0].mxu0 %v65
    %v621 = vpop.f32.mrb[0].mxu0
    %v622 = vadd.f32 0.0, %v621
    %v623 = vpop.f32.mrb[0].mxu0
    %v624 = vadd.f32 0.0, %v623
    %625 = vmatprep.mubr.f32.mxu0 0.0
    %626 = vmatmul.mubr.f32.gmra.mrb[0].mxu0 %v66
    %v627 = vpop.f32.mrb[0].mxu0
    %v628 = vadd.f32 0.0, %v627
    %v629 = vpop.f32.mrb[0].mxu0
    %v630 = vadd.f32 0.0, %v629
    %631 = vdwg.mxu0
    %632 = vmatprep.subr.mxu0 %v201
    %633 = vmatpush1.msra.mxu0 %v200
    %634 = vmatprep.subr.mxu0 %v209
    %635 = vmatpush1.msra.mxu0 %v208
    %636 = vmatprep.subr.mxu0 %v217
    %637 = vmatpush1.msra.mxu0 %v216
    %638 = vmatprep.subr.mxu0 %v225
    %639 = vmatpush1.msra.mxu0 %v224
    %640 = vmatprep.subr.mxu0 %v233
    %641 = vmatpush1.msra.mxu0 %v232
    %642 = vmatprep.subr.mxu0 %v241
    %643 = vmatpush1.msra.mxu0 %v240
    %644 = vmatprep.subr.mxu0 %v249
    %645 = vmatpush1.msra.mxu0 %v248
    %646 = vmatprep.subr.mxu0 %v257
    %647 = vmatpush1.msra.mxu0 %v256
    %648 = vmatprep.subr.mxu0 %v265
    %649 = vmatpush1.msra.mxu0 %v264
    %650 = vmatprep.subr.mxu0 %v273
    %651 = vmatpush1.msra.mxu0 %v272
    %652 = vmatprep.subr.mxu0 %v281
    %653 = vmatpush1.msra.mxu0 %v280
    %654 = vmatprep.subr.mxu0 %v289
    %655 = vmatpush1.msra.mxu0 %v288
    %656 = vmatprep.subr.mxu0 %v297
    %657 = vmatpush1.msra.mxu0 %v296
    %658 = vmatprep.subr.mxu0 %v305
    %659 = vmatpush1.msra.mxu0 %v304
    %660 = vmatprep.subr.mxu0 %v313
    %661 = vmatpush1.msra.mxu0 %v312
    %662 = vmatprep.subr.mxu0 %v321
    %663 = vmatpush1.msra.mxu0 %v320
    %664 = vmatprep.subr.mxu0 0.0
    %665 = vmatpush1.msra.mxu0 0.0
    %666 = vmatprep.subr.mxu0 0.0
    %667 = vmatpush1.msra.mxu0 0.0
    %668 = vmatprep.subr.mxu0 0.0
    %669 = vmatpush1.msra.mxu0 0.0
    %670 = vmatprep.subr.mxu0 0.0
    %671 = vmatpush1.msra.mxu0 0.0
    %672 = vmatprep.subr.mxu0 0.0
    %673 = vmatpush1.msra.mxu0 0.0
    %674 = vmatprep.subr.mxu0 0.0
    %675 = vmatpush1.msra.mxu0 0.0
    %676 = vmatprep.subr.mxu0 0.0
    %677 = vmatpush1.msra.mxu0 0.0
    %678 = vmatprep.subr.mxu0 0.0
    %679 = vmatpush1.msra.mxu0 0.0
    %680 = vmatprep.subr.mxu0 0.0
    %681 = vmatpush1.msra.mxu0 0.0
    %682 = vmatprep.subr.mxu0 0.0
    %683 = vmatpush1.msra.mxu0 0.0
    %684 = vmatprep.subr.mxu0 0.0
    %685 = vmatpush1.msra.mxu0 0.0
    %686 = vmatprep.subr.mxu0 0.0
    %687 = vmatpush1.msra.mxu0 0.0
    %688 = vmatprep.subr.mxu0 0.0
    %689 = vmatpush1.msra.mxu0 0.0
    %690 = vmatprep.subr.mxu0 0.0
    %691 = vmatpush1.msra.mxu0 0.0
    %692 = vmatprep.subr.mxu0 0.0
    %693 = vmatpush1.msra.mxu0 0.0
    %694 = vmatprep.subr.mxu0 0.0
    %695 = vmatpush1.msra.mxu0 0.0
    %696 = vmatprep.mubr.f32.mxu0 0.0
    %697 = vmatmul.mubr.f32.gmra.mrb[0].mxu0 %v65
    %v698 = vpop.f32.mrb[0].mxu0
    %v699 = vadd.f32 0.0, %v698
    %v700 = vpop.f32.mrb[0].mxu0
    %v701 = vadd.f32 0.0, %v700
    %702 = vmatprep.mubr.f32.mxu0 0.0
    %703 = vmatmul.mubr.f32.gmra.mrb[0].mxu0 %v66
    %v704 = vpop.f32.mrb[0].mxu0
    %v705 = vadd.f32 0.0, %v704
    %v706 = vpop.f32.mrb[0].mxu0
    %v707 = vadd.f32 0.0, %v706
    %708 = vdwg.mxu0
    %709 = vmatprep.subr.mxu0 %v203
    %710 = vmatpush1.msra.mxu0 %v202
    %711 = vmatprep.subr.mxu0 %v211
    %712 = vmatpush1.msra.mxu0 %v210
    %713 = vmatprep.subr.mxu0 %v219
    %714 = vmatpush1.msra.mxu0 %v218
    %715 = vmatprep.subr.mxu0 %v227
    %716 = vmatpush1.msra.mxu0 %v226
    %717 = vmatprep.subr.mxu0 %v235
    %718 = vmatpush1.msra.mxu0 %v234
    %719 = vmatprep.subr.mxu0 %v243
    %720 = vmatpush1.msra.mxu0 %v242
    %721 = vmatprep.subr.mxu0 %v251
    %722 = vmatpush1.msra.mxu0 %v250
    %723 = vmatprep.subr.mxu0 %v259
    %724 = vmatpush1.msra.mxu0 %v258
    %725 = vmatprep.subr.mxu0 %v267
    %726 = vmatpush1.msra.mxu0 %v266
    %727 = vmatprep.subr.mxu0 %v275
    %728 = vmatpush1.msra.mxu0 %v274
    %729 = vmatprep.subr.mxu0 %v283
    %730 = vmatpush1.msra.mxu0 %v282
    %731 = vmatprep.subr.mxu0 %v291
    %732 = vmatpush1.msra.mxu0 %v290
    %733 = vmatprep.subr.mxu0 %v299
    %734 = vmatpush1.msra.mxu0 %v298
    %735 = vmatprep.subr.mxu0 %v307
    %736 = vmatpush1.msra.mxu0 %v306
    %737 = vmatprep.subr.mxu0 %v315
    %738 = vmatpush1.msra.mxu0 %v314
    %739 = vmatprep.subr.mxu0 %v323
    %740 = vmatpush1.msra.mxu0 %v322
    %741 = vmatprep.subr.mxu0 0.0
    %742 = vmatpush1.msra.mxu0 0.0
    %743 = vmatprep.subr.mxu0 0.0
    %744 = vmatpush1.msra.mxu0 0.0
    %745 = vmatprep.subr.mxu0 0.0
    %746 = vmatpush1.msra.mxu0 0.0
    %747 = vmatprep.subr.mxu0 0.0
    %748 = vmatpush1.msra.mxu0 0.0
    %749 = vmatprep.subr.mxu0 0.0
    %750 = vmatpush1.msra.mxu0 0.0
    %751 = vmatprep.subr.mxu0 0.0
    %752 = vmatpush1.msra.mxu0 0.0
    %753 = vmatprep.subr.mxu0 0.0
    %754 = vmatpush1.msra.mxu0 0.0
    %755 = vmatprep.subr.mxu0 0.0
    %756 = vmatpush1.msra.mxu0 0.0
    %757 = vmatprep.subr.mxu0 0.0
    %758 = vmatpush1.msra.mxu0 0.0
    %759 = vmatprep.subr.mxu0 0.0
    %760 = vmatpush1.msra.mxu0 0.0
    %761 = vmatprep.subr.mxu0 0.0
    %762 = vmatpush1.msra.mxu0 0.0
    %763 = vmatprep.subr.mxu0 0.0
    %764 = vmatpush1.msra.mxu0 0.0
    %765 = vmatprep.subr.mxu0 0.0
    %766 = vmatpush1.msra.mxu0 0.0
    %767 = vmatprep.subr.mxu0 0.0
    %768 = vmatpush1.msra.mxu0 0.0
    %769 = vmatprep.subr.mxu0 0.0
    %770 = vmatpush1.msra.mxu0 0.0
    %771 = vmatprep.subr.mxu0 0.0
    %772 = vmatpush1.msra.mxu0 0.0
    %773 = vmatprep.mubr.f32.mxu0 0.0
    %774 = vmatmul.mubr.f32.gmra.mrb[0].mxu0 %v65
    %v775 = vpop.f32.mrb[0].mxu0
    %v776 = vadd.f32 0.0, %v775
    %v777 = vpop.f32.mrb[0].mxu0
    %v778 = vadd.f32 0.0, %v777
    %779 = vmatprep.mubr.f32.mxu0 0.0
    %780 = vmatmul.mubr.f32.gmra.mrb[0].mxu0 %v66
    %v781 = vpop.f32.mrb[0].mxu0
    %v782 = vadd.f32 0.0, %v781
    %v783 = vpop.f32.mrb[0].mxu0
    %v784 = vadd.f32 0.0, %v783
    %785 = vdwg.mxu0
    %786 = vmatprep.subr.mxu0 0.0
    %787 = vmatpush1.xpose.msra.mxu0 %v545
    %788 = vmatprep.subr.mxu0 0.0
    %789 = vmatpush1.xpose.msra.mxu0 %v551
    %790 = vmatprep.subr.mxu0 0.0
    %791 = vmatpush1.xpose.msra.mxu0 0.0
    %792 = vmatprep.subr.mxu0 0.0
    %793 = vmatpush1.xpose.msra.mxu0 0.0
    %794 = vmatprep.subr.mxu0 0.0
    %795 = vmatpush1.xpose.msra.mxu0 0.0
    %796 = vmatprep.subr.mxu0 0.0
    %797 = vmatpush1.xpose.msra.mxu0 0.0
    %798 = vmatprep.subr.mxu0 0.0
    %799 = vmatpush1.xpose.msra.mxu0 0.0
    %800 = vmatprep.subr.mxu0 0.0
    %801 = vmatpush1.xpose.msra.mxu0 0.0
    %802 = vmatprep.subr.mxu0 0.0
    %803 = vmatpush1.xpose.msra.mxu0 0.0
    %804 = vmatprep.subr.mxu0 0.0
    %805 = vmatpush1.xpose.msra.mxu0 0.0
    %806 = vmatprep.subr.mxu0 0.0
    %807 = vmatpush1.xpose.msra.mxu0 0.0
    %808 = vmatprep.subr.mxu0 0.0
    %809 = vmatpush1.xpose.msra.mxu0 0.0
    %810 = vmatprep.subr.mxu0 0.0
    %811 = vmatpush1.xpose.msra.mxu0 0.0
    %812 = vmatprep.subr.mxu0 0.0
    %813 = vmatpush1.xpose.msra.mxu0 0.0
    %814 = vmatprep.subr.mxu0 0.0
    %815 = vmatpush1.xpose.msra.mxu0 0.0
    %816 = vmatprep.subr.mxu0 0.0
    %817 = vmatpush1.xpose.msra.mxu0 0.0
    %818 = vmatprep.subr.mxu0 0.0
    %819 = vmatpush1.xpose.msra.mxu0 0.0
    %820 = vmatprep.subr.mxu0 0.0
    %821 = vmatpush1.xpose.msra.mxu0 0.0
    %822 = vmatprep.subr.mxu0 0.0
    %823 = vmatpush1.xpose.msra.mxu0 0.0
    %824 = vmatprep.subr.mxu0 0.0
    %825 = vmatpush1.xpose.msra.mxu0 0.0
    %826 = vmatprep.subr.mxu0 0.0
    %827 = vmatpush1.xpose.msra.mxu0 0.0
    %828 = vmatprep.subr.mxu0 0.0
    %829 = vmatpush1.xpose.msra.mxu0 0.0
    %830 = vmatprep.subr.mxu0 0.0
    %831 = vmatpush1.xpose.msra.mxu0 0.0
    %832 = vmatprep.subr.mxu0 0.0
    %833 = vmatpush1.xpose.msra.mxu0 0.0
    %834 = vmatprep.subr.mxu0 0.0
    %835 = vmatpush1.xpose.msra.mxu0 0.0
    %836 = vmatprep.subr.mxu0 0.0
    %837 = vmatpush1.xpose.msra.mxu0 0.0
    %838 = vmatprep.subr.mxu0 0.0
    %839 = vmatpush1.xpose.msra.mxu0 0.0
    %840 = vmatprep.subr.mxu0 0.0
    %841 = vmatpush1.xpose.msra.mxu0 0.0
    %842 = vmatprep.subr.mxu0 0.0
    %843 = vmatpush1.xpose.msra.mxu0 0.0
    %844 = vmatprep.subr.mxu0 0.0
    %845 = vmatpush1.xpose.msra.mxu0 0.0
    %846 = vmatprep.subr.mxu0 0.0
    %847 = vmatpush1.xpose.msra.mxu0 0.0
    %848 = vmatprep.subr.mxu0 0.0
    %849 = vmatpush1.xpose.msra.mxu0 0.0
    %850 = vmatprep.mubr.f32.mxu0 0.0
    %851 = vmatmul.mubr.f32.gmra.mrb[0].mxu0 %v391
    %v852 = vpop.f32.mrb[0].mxu0
    %v853 = vadd.f32 0.0, %v852
    %v854 = vpop.f32.mrb[0].mxu0
    %855 = vmatprep.mubr.f32.mxu0 0.0
    %856 = vmatmul.mubr.f32.gmra.mrb[0].mxu0 %v397
    %v857 = vpop.f32.mrb[0].mxu0
    %v858 = vadd.f32 0.0, %v857
    %v859 = vpop.f32.mrb[0].mxu0
    %860 = vdwg.mxu0
    %v861 = vsel %vm63, %v853, -1e+10
    %v862 = vsel %vm64, %v858, -1e+10
    %v863 = vmul.f32 %v861, 0.35355338
    %v864 = vmul.f32 %v862, 0.35355338
    %vm865 = vcmask 130048
    %v866 = vsel %vm865, %v863, -inf
    %867 = vmax.xlane.f32.xlu0 %v866
    %v868 = vpop.xlane.xlu0 %867
    %v869 = vsel %vm865, %v864, -inf
    %870 = vmax.xlane.f32.xlu0 %v869
    %v871 = vpop.xlane.xlu0 %870
    %v872 = vsub.f32 %v863, %v868
    %v873 = vsub.f32 %v864, %v871
    %v874 = vmul.f32 %v872, 1.442695
    %v875 = vpow.pop %v874
    %v876 = vmul.f32 %v873, 1.442695
    %v877 = vpow.pop %v876
    %v878 = vsel %vm865, %v875, 0.0
    %879 = vadd.xlane.f32.xlu0 %v878
    %v880 = vpop.xlane.xlu0 %879
    %v881 = vsel %vm865, %v877, 0.0
    %882 = vadd.xlane.f32.xlu0 %v881
    %v883 = vpop.xlane.xlu0 %882
    %v884 = vrcp.pop %v880
    %v885 = vmul.f32 %v875, %v884
    %v886 = vrcp.pop %v883
    %v887 = vmul.f32 %v877, %v886
    %v889 = vsel %vm865, %v885, 0
    %v892 = vsel %vm865, %v887, 0
    %894 = vmatprep.subr.mxu0 0.0
    %895 = vmatpush1.msra.mxu0 %v699
    %896 = vmatprep.subr.mxu0 0.0
    %897 = vmatpush1.msra.mxu0 %v705
    %898 = vmatprep.subr.mxu0 0.0
    %899 = vmatpush1.msra.mxu0 0.0
    %900 = vmatprep.subr.mxu0 0.0
    %901 = vmatpush1.msra.mxu0 0.0
    %902 = vmatprep.subr.mxu0 0.0
    %903 = vmatpush1.msra.mxu0 0.0
    %904 = vmatprep.subr.mxu0 0.0
    %905 = vmatpush1.msra.mxu0 0.0
    %906 = vmatprep.subr.mxu0 0.0
    %907 = vmatpush1.msra.mxu0 0.0
    %908 = vmatprep.subr.mxu0 0.0
    %909 = vmatpush1.msra.mxu0 0.0
    %910 = vmatprep.subr.mxu0 0.0
    %911 = vmatpush1.msra.mxu0 0.0
    %912 = vmatprep.subr.mxu0 0.0
    %913 = vmatpush1.msra.mxu0 0.0
    %914 = vmatprep.subr.mxu0 0.0
    %915 = vmatpush1.msra.mxu0 0.0
    %916 = vmatprep.subr.mxu0 0.0
    %917 = vmatpush1.msra.mxu0 0.0
    %918 = vmatprep.subr.mxu0 0.0
    %919 = vmatpush1.msra.mxu0 0.0
    %920 = vmatprep.subr.mxu0 0.0
    %921 = vmatpush1.msra.mxu0 0.0
    %922 = vmatprep.subr.mxu0 0.0
    %923 = vmatpush1.msra.mxu0 0.0
    %924 = vmatprep.subr.mxu0 0.0
    %925 = vmatpush1.msra.mxu0 0.0
    %926 = vmatprep.subr.mxu0 0.0
    %927 = vmatpush1.msra.mxu0 0.0
    %928 = vmatprep.subr.mxu0 0.0
    %929 = vmatpush1.msra.mxu0 0.0
    %930 = vmatprep.subr.mxu0 0.0
    %931 = vmatpush1.msra.mxu0 0.0
    %932 = vmatprep.subr.mxu0 0.0
    %933 = vmatpush1.msra.mxu0 0.0
    %934 = vmatprep.subr.mxu0 0.0
    %935 = vmatpush1.msra.mxu0 0.0
    %936 = vmatprep.subr.mxu0 0.0
    %937 = vmatpush1.msra.mxu0 0.0
    %938 = vmatprep.subr.mxu0 0.0
    %939 = vmatpush1.msra.mxu0 0.0
    %940 = vmatprep.subr.mxu0 0.0
    %941 = vmatpush1.msra.mxu0 0.0
    %942 = vmatprep.subr.mxu0 0.0
    %943 = vmatpush1.msra.mxu0 0.0
    %944 = vmatprep.subr.mxu0 0.0
    %945 = vmatpush1.msra.mxu0 0.0
    %946 = vmatprep.subr.mxu0 0.0
    %947 = vmatpush1.msra.mxu0 0.0
    %948 = vmatprep.subr.mxu0 0.0
    %949 = vmatpush1.msra.mxu0 0.0
    %950 = vmatprep.subr.mxu0 0.0
    %951 = vmatpush1.msra.mxu0 0.0
    %952 = vmatprep.subr.mxu0 0.0
    %953 = vmatpush1.msra.mxu0 0.0
    %954 = vmatprep.subr.mxu0 0.0
    %955 = vmatpush1.msra.mxu0 0.0
    %956 = vmatprep.subr.mxu0 0.0
    %957 = vmatpush1.msra.mxu0 0.0
    %958 = vmatprep.mubr.f32.mxu0 0.0
    %959 = vmatmul.mubr.f32.gmra.mrb[0].mxu0 %v889
    %v960 = vpop.f32.mrb[0].mxu0
    %v961 = vadd.f32 0.0, %v960
    %v962 = vpop.f32.mrb[0].mxu0
    %963 = vmatprep.mubr.f32.mxu0 0.0
    %964 = vmatmul.mubr.f32.gmra.mrb[0].mxu0 %v892
    %v965 = vpop.f32.mrb[0].mxu0
    %v966 = vadd.f32 0.0, %v965
    %v967 = vpop.f32.mrb[0].mxu0
    %968 = vdwg.mxu0
    %969 = vmatprep.subr.mxu0 0.0
    %970 = vmatpush1.xpose.msra.mxu0 %v547
    %971 = vmatprep.subr.mxu0 0.0
    %972 = vmatpush1.xpose.msra.mxu0 %v553
    %973 = vmatprep.subr.mxu0 0.0
    %974 = vmatpush1.xpose.msra.mxu0 0.0
    %975 = vmatprep.subr.mxu0 0.0
    %976 = vmatpush1.xpose.msra.mxu0 0.0
    %977 = vmatprep.subr.mxu0 0.0
    %978 = vmatpush1.xpose.msra.mxu0 0.0
    %979 = vmatprep.subr.mxu0 0.0
    %980 = vmatpush1.xpose.msra.mxu0 0.0
    %981 = vmatprep.subr.mxu0 0.0
    %982 = vmatpush1.xpose.msra.mxu0 0.0
    %983 = vmatprep.subr.mxu0 0.0
    %984 = vmatpush1.xpose.msra.mxu0 0.0
    %985 = vmatprep.subr.mxu0 0.0
    %986 = vmatpush1.xpose.msra.mxu0 0.0
    %987 = vmatprep.subr.mxu0 0.0
    %988 = vmatpush1.xpose.msra.mxu0 0.0
    %989 = vmatprep.subr.mxu0 0.0
    %990 = vmatpush1.xpose.msra.mxu0 0.0
    %991 = vmatprep.subr.mxu0 0.0
    %992 = vmatpush1.xpose.msra.mxu0 0.0
    %993 = vmatprep.subr.mxu0 0.0
    %994 = vmatpush1.xpose.msra.mxu0 0.0
    %995 = vmatprep.subr.mxu0 0.0
    %996 = vmatpush1.xpose.msra.mxu0 0.0
    %997 = vmatprep.subr.mxu0 0.0
    %998 = vmatpush1.xpose.msra.mxu0 0.0
    %999 = vmatprep.subr.mxu0 0.0
    %1000 = vmatpush1.xpose.msra.mxu0 0.0
    %1001 = vmatprep.subr.mxu0 0.0
    %1002 = vmatpush1.xpose.msra.mxu0 0.0
    %1003 = vmatprep.subr.mxu0 0.0
    %1004 = vmatpush1.xpose.msra.mxu0 0.0
    %1005 = vmatprep.subr.mxu0 0.0
    %1006 = vmatpush1.xpose.msra.mxu0 0.0
    %1007 = vmatprep.subr.mxu0 0.0
    %1008 = vmatpush1.xpose.msra.mxu0 0.0
    %1009 = vmatprep.subr.mxu0 0.0
    %1010 = vmatpush1.xpose.msra.mxu0 0.0
    %1011 = vmatprep.subr.mxu0 0.0
    %1012 = vmatpush1.xpose.msra.mxu0 0.0
    %1013 = vmatprep.subr.mxu0 0.0
    %1014 = vmatpush1.xpose.msra.mxu0 0.0
    %1015 = vmatprep.subr.mxu0 0.0
    %1016 = vmatpush1.xpose.msra.mxu0 0.0
    %1017 = vmatprep.subr.mxu0 0.0
    %1018 = vmatpush1.xpose.msra.mxu0 0.0
    %1019 = vmatprep.subr.mxu0 0.0
    %1020 = vmatpush1.xpose.msra.mxu0 0.0
    %1021 = vmatprep.subr.mxu0 0.0
    %1022 = vmatpush1.xpose.msra.mxu0 0.0
    %1023 = vmatprep.subr.mxu0 0.0
    %1024 = vmatpush1.xpose.msra.mxu0 0.0
    %1025 = vmatprep.subr.mxu0 0.0
    %1026 = vmatpush1.xpose.msra.mxu0 0.0
    %1027 = vmatprep.subr.mxu0 0.0
    %1028 = vmatpush1.xpose.msra.mxu0 0.0
    %1029 = vmatprep.subr.mxu0 0.0
    %1030 = vmatpush1.xpose.msra.mxu0 0.0
    %1031 = vmatprep.subr.mxu0 0.0
    %1032 = vmatpush1.xpose.msra.mxu0 0.0
    %1033 = vmatprep.mubr.f32.mxu0 0.0
    %1034 = vmatmul.mubr.f32.gmra.mrb[0].mxu0 %v393
    %v1035 = vpop.f32.mrb[0].mxu0
    %v1036 = vadd.f32 0.0, %v1035
    %v1037 = vpop.f32.mrb[0].mxu0
    %1038 = vmatprep.mubr.f32.mxu0 0.0
    %1039 = vmatmul.mubr.f32.gmra.mrb[0].mxu0 %v399
    %v1040 = vpop.f32.mrb[0].mxu0
    %v1041 = vadd.f32 0.0, %v1040
    %v1042 = vpop.f32.mrb[0].mxu0
    %1043 = vdwg.mxu0
    %v1044 = vsel %vm63, %v1036, -1e+10
    %v1045 = vsel %vm64, %v1041, -1e+10
    %v1046 = vmul.f32 %v1044, 0.35355338
    %v1047 = vmul.f32 %v1045, 0.35355338
    %v1048 = vsel %vm865, %v1046, -inf
    %1049 = vmax.xlane.f32.xlu0 %v1048
    %v1050 = vpop.xlane.xlu0 %1049
    %v1051 = vsel %vm865, %v1047, -inf
    %1052 = vmax.xlane.f32.xlu0 %v1051
    %v1053 = vpop.xlane.xlu0 %1052
    %v1054 = vsub.f32 %v1046, %v1050
    %v1055 = vsub.f32 %v1047, %v1053
    %v1056 = vmul.f32 %v1054, 1.442695
    %v1057 = vpow.pop %v1056
    %v1058 = vmul.f32 %v1055, 1.442695
    %v1059 = vpow.pop %v1058
    %v1060 = vsel %vm865, %v1057, 0.0
    %1061 = vadd.xlane.f32.xlu0 %v1060
    %v1062 = vpop.xlane.xlu0 %1061
    %v1063 = vsel %vm865, %v1059, 0.0
    %1064 = vadd.xlane.f32.xlu0 %v1063
    %v1065 = vpop.xlane.xlu0 %1064
    %v1066 = vrcp.pop %v1062
    %v1067 = vmul.f32 %v1057, %v1066
    %v1068 = vrcp.pop %v1065
    %v1069 = vmul.f32 %v1059, %v1068
    %v1071 = vsel %vm865, %v1067, 0
    %v1074 = vsel %vm865, %v1069, 0
    %1076 = vmatprep.subr.mxu0 0.0
    %1077 = vmatpush1.msra.mxu0 %v701
    %1078 = vmatprep.subr.mxu0 0.0
    %1079 = vmatpush1.msra.mxu0 %v707
    %1080 = vmatprep.subr.mxu0 0.0
    %1081 = vmatpush1.msra.mxu0 0.0
    %1082 = vmatprep.subr.mxu0 0.0
    %1083 = vmatpush1.msra.mxu0 0.0
    %1084 = vmatprep.subr.mxu0 0.0
    %1085 = vmatpush1.msra.mxu0 0.0
    %1086 = vmatprep.subr.mxu0 0.0
    %1087 = vmatpush1.msra.mxu0 0.0
    %1088 = vmatprep.subr.mxu0 0.0
    %1089 = vmatpush1.msra.mxu0 0.0
    %1090 = vmatprep.subr.mxu0 0.0
    %1091 = vmatpush1.msra.mxu0 0.0
    %1092 = vmatprep.subr.mxu0 0.0
    %1093 = vmatpush1.msra.mxu0 0.0
    %1094 = vmatprep.subr.mxu0 0.0
    %1095 = vmatpush1.msra.mxu0 0.0
    %1096 = vmatprep.subr.mxu0 0.0
    %1097 = vmatpush1.msra.mxu0 0.0
    %1098 = vmatprep.subr.mxu0 0.0
    %1099 = vmatpush1.msra.mxu0 0.0
    %1100 = vmatprep.subr.mxu0 0.0
    %1101 = vmatpush1.msra.mxu0 0.0
    %1102 = vmatprep.subr.mxu0 0.0
    %1103 = vmatpush1.msra.mxu0 0.0
    %1104 = vmatprep.subr.mxu0 0.0
    %1105 = vmatpush1.msra.mxu0 0.0
    %1106 = vmatprep.subr.mxu0 0.0
    %1107 = vmatpush1.msra.mxu0 0.0
    %1108 = vmatprep.subr.mxu0 0.0
    %1109 = vmatpush1.msra.mxu0 0.0
    %1110 = vmatprep.subr.mxu0 0.0
    %1111 = vmatpush1.msra.mxu0 0.0
    %1112 = vmatprep.subr.mxu0 0.0
    %1113 = vmatpush1.msra.mxu0 0.0
    %1114 = vmatprep.subr.mxu0 0.0
    %1115 = vmatpush1.msra.mxu0 0.0
    %1116 = vmatprep.subr.mxu0 0.0
    %1117 = vmatpush1.msra.mxu0 0.0
    %1118 = vmatprep.subr.mxu0 0.0
    %1119 = vmatpush1.msra.mxu0 0.0
    %1120 = vmatprep.subr.mxu0 0.0
    %1121 = vmatpush1.msra.mxu0 0.0
    %1122 = vmatprep.subr.mxu0 0.0
    %1123 = vmatpush1.msra.mxu0 0.0
    %1124 = vmatprep.subr.mxu0 0.0
    %1125 = vmatpush1.msra.mxu0 0.0
    %1126 = vmatprep.subr.mxu0 0.0
    %1127 = vmatpush1.msra.mxu0 0.0
    %1128 = vmatprep.subr.mxu0 0.0
    %1129 = vmatpush1.msra.mxu0 0.0
    %1130 = vmatprep.subr.mxu0 0.0
    %1131 = vmatpush1.msra.mxu0 0.0
    %1132 = vmatprep.subr.mxu0 0.0
    %1133 = vmatpush1.msra.mxu0 0.0
    %1134 = vmatprep.subr.mxu0 0.0
    %1135 = vmatpush1.msra.mxu0 0.0
    %1136 = vmatprep.subr.mxu0 0.0
    %1137 = vmatpush1.msra.mxu0 0.0
    %1138 = vmatprep.subr.mxu0 0.0
    %1139 = vmatpush1.msra.mxu0 0.0
    %1140 = vmatprep.mubr.f32.mxu0 0.0
    %1141 = vmatmul.mubr.f32.gmra.mrb[0].mxu0 %v1071
    %v1142 = vpop.f32.mrb[0].mxu0
    %v1143 = vadd.f32 0.0, %v1142
    %v1144 = vpop.f32.mrb[0].mxu0
    %1145 = vmatprep.mubr.f32.mxu0 0.0
    %1146 = vmatmul.mubr.f32.gmra.mrb[0].mxu0 %v1074
    %v1147 = vpop.f32.mrb[0].mxu0
    %v1148 = vadd.f32 0.0, %v1147
    %v1149 = vpop.f32.mrb[0].mxu0
    %1150 = vdwg.mxu0
    %1151 = vmatprep.subr.mxu0 0.0
    %1152 = vmatpush1.xpose.msra.mxu0 %v622
    %1153 = vmatprep.subr.mxu0 0.0
    %1154 = vmatpush1.xpose.msra.mxu0 %v628
    %1155 = vmatprep.subr.mxu0 0.0
    %1156 = vmatpush1.xpose.msra.mxu0 0.0
    %1157 = vmatprep.subr.mxu0 0.0
    %1158 = vmatpush1.xpose.msra.mxu0 0.0
    %1159 = vmatprep.subr.mxu0 0.0
    %1160 = vmatpush1.xpose.msra.mxu0 0.0
    %1161 = vmatprep.subr.mxu0 0.0
    %1162 = vmatpush1.xpose.msra.mxu0 0.0
    %1163 = vmatprep.subr.mxu0 0.0
    %1164 = vmatpush1.xpose.msra.mxu0 0.0
    %1165 = vmatprep.subr.mxu0 0.0
    %1166 = vmatpush1.xpose.msra.mxu0 0.0
    %1167 = vmatprep.subr.mxu0 0.0
    %1168 = vmatpush1.xpose.msra.mxu0 0.0
    %1169 = vmatprep.subr.mxu0 0.0
    %1170 = vmatpush1.xpose.msra.mxu0 0.0
    %1171 = vmatprep.subr.mxu0 0.0
    %1172 = vmatpush1.xpose.msra.mxu0 0.0
    %1173 = vmatprep.subr.mxu0 0.0
    %1174 = vmatpush1.xpose.msra.mxu0 0.0
    %1175 = vmatprep.subr.mxu0 0.0
    %1176 = vmatpush1.xpose.msra.mxu0 0.0
    %1177 = vmatprep.subr.mxu0 0.0
    %1178 = vmatpush1.xpose.msra.mxu0 0.0
    %1179 = vmatprep.subr.mxu0 0.0
    %1180 = vmatpush1.xpose.msra.mxu0 0.0
    %1181 = vmatprep.subr.mxu0 0.0
    %1182 = vmatpush1.xpose.msra.mxu0 0.0
    %1183 = vmatprep.subr.mxu0 0.0
    %1184 = vmatpush1.xpose.msra.mxu0 0.0
    %1185 = vmatprep.subr.mxu0 0.0
    %1186 = vmatpush1.xpose.msra.mxu0 0.0
    %1187 = vmatprep.subr.mxu0 0.0
    %1188 = vmatpush1.xpose.msra.mxu0 0.0
    %1189 = vmatprep.subr.mxu0 0.0
    %1190 = vmatpush1.xpose.msra.mxu0 0.0
    %1191 = vmatprep.subr.mxu0 0.0
    %1192 = vmatpush1.xpose.msra.mxu0 0.0
    %1193 = vmatprep.subr.mxu0 0.0
    %1194 = vmatpush1.xpose.msra.mxu0 0.0
    %1195 = vmatprep.subr.mxu0 0.0
    %1196 = vmatpush1.xpose.msra.mxu0 0.0
    %1197 = vmatprep.subr.mxu0 0.0
    %1198 = vmatpush1.xpose.msra.mxu0 0.0
    %1199 = vmatprep.subr.mxu0 0.0
    %1200 = vmatpush1.xpose.msra.mxu0 0.0
    %1201 = vmatprep.subr.mxu0 0.0
    %1202 = vmatpush1.xpose.msra.mxu0 0.0
    %1203 = vmatprep.subr.mxu0 0.0
    %1204 = vmatpush1.xpose.msra.mxu0 0.0
    %1205 = vmatprep.subr.mxu0 0.0
    %1206 = vmatpush1.xpose.msra.mxu0 0.0
    %1207 = vmatprep.subr.mxu0 0.0
    %1208 = vmatpush1.xpose.msra.mxu0 0.0
    %1209 = vmatprep.subr.mxu0 0.0
    %1210 = vmatpush1.xpose.msra.mxu0 0.0
    %1211 = vmatprep.subr.mxu0 0.0
    %1212 = vmatpush1.xpose.msra.mxu0 0.0
    %1213 = vmatprep.subr.mxu0 0.0
    %1214 = vmatpush1.xpose.msra.mxu0 0.0
    %1215 = vmatprep.mubr.f32.mxu0 0.0
    %1216 = vmatmul.mubr.f32.gmra.mrb[0].mxu0 %v468
    %v1217 = vpop.f32.mrb[0].mxu0
    %v1218 = vadd.f32 0.0, %v1217
    %v1219 = vpop.f32.mrb[0].mxu0
    %1220 = vmatprep.mubr.f32.mxu0 0.0
    %1221 = vmatmul.mubr.f32.gmra.mrb[0].mxu0 %v474
    %v1222 = vpop.f32.mrb[0].mxu0
    %v1223 = vadd.f32 0.0, %v1222
    %v1224 = vpop.f32.mrb[0].mxu0
    %1225 = vdwg.mxu0
    %v1226 = vsel %vm63, %v1218, -1e+10
    %v1227 = vsel %vm64, %v1223, -1e+10
    %v1228 = vmul.f32 %v1226, 0.35355338
    %v1229 = vmul.f32 %v1227, 0.35355338
    %v1230 = vsel %vm865, %v1228, -inf
    %1231 = vmax.xlane.f32.xlu0 %v1230
    %v1232 = vpop.xlane.xlu0 %1231
    %v1233 = vsel %vm865, %v1229, -inf
    %1234 = vmax.xlane.f32.xlu0 %v1233
    %v1235 = vpop.xlane.xlu0 %1234
    %v1236 = vsub.f32 %v1228, %v1232
    %v1237 = vsub.f32 %v1229, %v1235
    %v1238 = vmul.f32 %v1236, 1.442695
    %v1239 = vpow.pop %v1238
    %v1240 = vmul.f32 %v1237, 1.442695
    %v1241 = vpow.pop %v1240
    %v1242 = vsel %vm865, %v1239, 0.0
    %1243 = vadd.xlane.f32.xlu0 %v1242
    %v1244 = vpop.xlane.xlu0 %1243
    %v1245 = vsel %vm865, %v1241, 0.0
    %1246 = vadd.xlane.f32.xlu0 %v1245
    %v1247 = vpop.xlane.xlu0 %1246
    %v1248 = vrcp.pop %v1244
    %v1249 = vmul.f32 %v1239, %v1248
    %v1250 = vrcp.pop %v1247
    %v1251 = vmul.f32 %v1241, %v1250
    %v1253 = vsel %vm865, %v1249, 0
    %v1256 = vsel %vm865, %v1251, 0
    %1258 = vmatprep.subr.mxu0 0.0
    %1259 = vmatpush1.msra.mxu0 %v776
    %1260 = vmatprep.subr.mxu0 0.0
    %1261 = vmatpush1.msra.mxu0 %v782
    %1262 = vmatprep.subr.mxu0 0.0
    %1263 = vmatpush1.msra.mxu0 0.0
    %1264 = vmatprep.subr.mxu0 0.0
    %1265 = vmatpush1.msra.mxu0 0.0
    %1266 = vmatprep.subr.mxu0 0.0
    %1267 = vmatpush1.msra.mxu0 0.0
    %1268 = vmatprep.subr.mxu0 0.0
    %1269 = vmatpush1.msra.mxu0 0.0
    %1270 = vmatprep.subr.mxu0 0.0
    %1271 = vmatpush1.msra.mxu0 0.0
    %1272 = vmatprep.subr.mxu0 0.0
    %1273 = vmatpush1.msra.mxu0 0.0
    %1274 = vmatprep.subr.mxu0 0.0
    %1275 = vmatpush1.msra.mxu0 0.0
    %1276 = vmatprep.subr.mxu0 0.0
    %1277 = vmatpush1.msra.mxu0 0.0
    %1278 = vmatprep.subr.mxu0 0.0
    %1279 = vmatpush1.msra.mxu0 0.0
    %1280 = vmatprep.subr.mxu0 0.0
    %1281 = vmatpush1.msra.mxu0 0.0
    %1282 = vmatprep.subr.mxu0 0.0
    %1283 = vmatpush1.msra.mxu0 0.0
    %1284 = vmatprep.subr.mxu0 0.0
    %1285 = vmatpush1.msra.mxu0 0.0
    %1286 = vmatprep.subr.mxu0 0.0
    %1287 = vmatpush1.msra.mxu0 0.0
    %1288 = vmatprep.subr.mxu0 0.0
    %1289 = vmatpush1.msra.mxu0 0.0
    %1290 = vmatprep.subr.mxu0 0.0
    %1291 = vmatpush1.msra.mxu0 0.0
    %1292 = vmatprep.subr.mxu0 0.0
    %1293 = vmatpush1.msra.mxu0 0.0
    %1294 = vmatprep.subr.mxu0 0.0
    %1295 = vmatpush1.msra.mxu0 0.0
    %1296 = vmatprep.subr.mxu0 0.0
    %1297 = vmatpush1.msra.mxu0 0.0
    %1298 = vmatprep.subr.mxu0 0.0
    %1299 = vmatpush1.msra.mxu0 0.0
    %1300 = vmatprep.subr.mxu0 0.0
    %1301 = vmatpush1.msra.mxu0 0.0
    %1302 = vmatprep.subr.mxu0 0.0
    %1303 = vmatpush1.msra.mxu0 0.0
    %1304 = vmatprep.subr.mxu0 0.0
    %1305 = vmatpush1.msra.mxu0 0.0
    %1306 = vmatprep.subr.mxu0 0.0
    %1307 = vmatpush1.msra.mxu0 0.0
    %1308 = vmatprep.subr.mxu0 0.0
    %1309 = vmatpush1.msra.mxu0 0.0
    %1310 = vmatprep.subr.mxu0 0.0
    %1311 = vmatpush1.msra.mxu0 0.0
    %1312 = vmatprep.subr.mxu0 0.0
    %1313 = vmatpush1.msra.mxu0 0.0
    %1314 = vmatprep.subr.mxu0 0.0
    %1315 = vmatpush1.msra.mxu0 0.0
    %1316 = vmatprep.subr.mxu0 0.0
    %1317 = vmatpush1.msra.mxu0 0.0
    %1318 = vmatprep.subr.mxu0 0.0
    %1319 = vmatpush1.msra.mxu0 0.0
    %1320 = vmatprep.subr.mxu0 0.0
    %1321 = vmatpush1.msra.mxu0 0.0
    %1322 = vmatprep.mubr.f32.mxu0 0.0
    %1323 = vmatmul.mubr.f32.gmra.mrb[0].mxu0 %v1253
    %v1324 = vpop.f32.mrb[0].mxu0
    %v1325 = vadd.f32 0.0, %v1324
    %v1326 = vpop.f32.mrb[0].mxu0
    %1327 = vmatprep.mubr.f32.mxu0 0.0
    %1328 = vmatmul.mubr.f32.gmra.mrb[0].mxu0 %v1256
    %v1329 = vpop.f32.mrb[0].mxu0
    %v1330 = vadd.f32 0.0, %v1329
    %v1331 = vpop.f32.mrb[0].mxu0
    %1332 = vdwg.mxu0
    %1333 = vmatprep.subr.mxu0 0.0
    %1334 = vmatpush1.xpose.msra.mxu0 %v624
    %1335 = vmatprep.subr.mxu0 0.0
    %1336 = vmatpush1.xpose.msra.mxu0 %v630
    %1337 = vmatprep.subr.mxu0 0.0
    %1338 = vmatpush1.xpose.msra.mxu0 0.0
    %1339 = vmatprep.subr.mxu0 0.0
    %1340 = vmatpush1.xpose.msra.mxu0 0.0
    %1341 = vmatprep.subr.mxu0 0.0
    %1342 = vmatpush1.xpose.msra.mxu0 0.0
    %1343 = vmatprep.subr.mxu0 0.0
    %1344 = vmatpush1.xpose.msra.mxu0 0.0
    %1345 = vmatprep.subr.mxu0 0.0
    %1346 = vmatpush1.xpose.msra.mxu0 0.0
    %1347 = vmatprep.subr.mxu0 0.0
    %1348 = vmatpush1.xpose.msra.mxu0 0.0
    %1349 = vmatprep.subr.mxu0 0.0
    %1350 = vmatpush1.xpose.msra.mxu0 0.0
    %1351 = vmatprep.subr.mxu0 0.0
    %1352 = vmatpush1.xpose.msra.mxu0 0.0
    %1353 = vmatprep.subr.mxu0 0.0
    %1354 = vmatpush1.xpose.msra.mxu0 0.0
    %1355 = vmatprep.subr.mxu0 0.0
    %1356 = vmatpush1.xpose.msra.mxu0 0.0
    %1357 = vmatprep.subr.mxu0 0.0
    %1358 = vmatpush1.xpose.msra.mxu0 0.0
    %1359 = vmatprep.subr.mxu0 0.0
    %1360 = vmatpush1.xpose.msra.mxu0 0.0
    %1361 = vmatprep.subr.mxu0 0.0
    %1362 = vmatpush1.xpose.msra.mxu0 0.0
    %1363 = vmatprep.subr.mxu0 0.0
    %1364 = vmatpush1.xpose.msra.mxu0 0.0
    %1365 = vmatprep.subr.mxu0 0.0
    %1366 = vmatpush1.xpose.msra.mxu0 0.0
    %1367 = vmatprep.subr.mxu0 0.0
    %1368 = vmatpush1.xpose.msra.mxu0 0.0
    %1369 = vmatprep.subr.mxu0 0.0
    %1370 = vmatpush1.xpose.msra.mxu0 0.0
    %1371 = vmatprep.subr.mxu0 0.0
    %1372 = vmatpush1.xpose.msra.mxu0 0.0
    %1373 = vmatprep.subr.mxu0 0.0
    %1374 = vmatpush1.xpose.msra.mxu0 0.0
    %1375 = vmatprep.subr.mxu0 0.0
    %1376 = vmatpush1.xpose.msra.mxu0 0.0
    %1377 = vmatprep.subr.mxu0 0.0
    %1378 = vmatpush1.xpose.msra.mxu0 0.0
    %1379 = vmatprep.subr.mxu0 0.0
    %1380 = vmatpush1.xpose.msra.mxu0 0.0
    %1381 = vmatprep.subr.mxu0 0.0
    %1382 = vmatpush1.xpose.msra.mxu0 0.0
    %1383 = vmatprep.subr.mxu0 0.0
    %1384 = vmatpush1.xpose.msra.mxu0 0.0
    %1385 = vmatprep.subr.mxu0 0.0
    %1386 = vmatpush1.xpose.msra.mxu0 0.0
    %1387 = vmatprep.subr.mxu0 0.0
    %1388 = vmatpush1.xpose.msra.mxu0 0.0
    %1389 = vmatprep.subr.mxu0 0.0
    %1390 = vmatpush1.xpose.msra.mxu0 0.0
    %1391 = vmatprep.subr.mxu0 0.0
    %1392 = vmatpush1.xpose.msra.mxu0 0.0
    %1393 = vmatprep.subr.mxu0 0.0
    %1394 = vmatpush1.xpose.msra.mxu0 0.0
    %1395 = vmatprep.subr.mxu0 0.0
    %1396 = vmatpush1.xpose.msra.mxu0 0.0
    %1397 = vmatprep.mubr.f32.mxu0 0.0
    %1398 = vmatmul.mubr.f32.gmra.mrb[0].mxu0 %v470
    %v1399 = vpop.f32.mrb[0].mxu0
    %v1400 = vadd.f32 0.0, %v1399
    %v1401 = vpop.f32.mrb[0].mxu0
    %1402 = vmatprep.mubr.f32.mxu0 0.0
    %1403 = vmatmul.mubr.f32.gmra.mrb[0].mxu0 %v476
    %v1404 = vpop.f32.mrb[0].mxu0
    %v1405 = vadd.f32 0.0, %v1404
    %v1406 = vpop.f32.mrb[0].mxu0
    %1407 = vdwg.mxu0
    %v1408 = vsel %vm63, %v1400, -1e+10
    %v1409 = vsel %vm64, %v1405, -1e+10
    %v1410 = vmul.f32 %v1408, 0.35355338
    %v1411 = vmul.f32 %v1409, 0.35355338
    %v1412 = vsel %vm865, %v1410, -inf
    %1413 = vmax.xlane.f32.xlu0 %v1412
    %v1414 = vpop.xlane.xlu0 %1413
    %v1415 = vsel %vm865, %v1411, -inf
    %1416 = vmax.xlane.f32.xlu0 %v1415
    %v1417 = vpop.xlane.xlu0 %1416
    %v1418 = vsub.f32 %v1410, %v1414
    %v1419 = vsub.f32 %v1411, %v1417
    %v1420 = vmul.f32 %v1418, 1.442695
    %v1421 = vpow.pop %v1420
    %v1422 = vmul.f32 %v1419, 1.442695
    %v1423 = vpow.pop %v1422
    %v1424 = vsel %vm865, %v1421, 0.0
    %1425 = vadd.xlane.f32.xlu0 %v1424
    %v1426 = vpop.xlane.xlu0 %1425
    %v1427 = vsel %vm865, %v1423, 0.0
    %1428 = vadd.xlane.f32.xlu0 %v1427
    %v1429 = vpop.xlane.xlu0 %1428
    %v1430 = vrcp.pop %v1426
    %v1431 = vmul.f32 %v1421, %v1430
    %v1432 = vrcp.pop %v1429
    %v1433 = vmul.f32 %v1423, %v1432
    %v1435 = vsel %vm865, %v1431, 0
    %v1438 = vsel %vm865, %v1433, 0
    %1440 = vmatprep.subr.mxu0 0.0
    %1441 = vmatpush1.msra.mxu0 %v778
    %1442 = vmatprep.subr.mxu0 0.0
    %1443 = vmatpush1.msra.mxu0 %v784
    %1444 = vmatprep.subr.mxu0 0.0
    %1445 = vmatpush1.msra.mxu0 0.0
    %1446 = vmatprep.subr.mxu0 0.0
    %1447 = vmatpush1.msra.mxu0 0.0
    %1448 = vmatprep.subr.mxu0 0.0
    %1449 = vmatpush1.msra.mxu0 0.0
    %1450 = vmatprep.subr.mxu0 0.0
    %1451 = vmatpush1.msra.mxu0 0.0
    %1452 = vmatprep.subr.mxu0 0.0
    %1453 = vmatpush1.msra.mxu0 0.0
    %1454 = vmatprep.subr.mxu0 0.0
    %1455 = vmatpush1.msra.mxu0 0.0
    %1456 = vmatprep.subr.mxu0 0.0
    %1457 = vmatpush1.msra.mxu0 0.0
    %1458 = vmatprep.subr.mxu0 0.0
    %1459 = vmatpush1.msra.mxu0 0.0
    %1460 = vmatprep.subr.mxu0 0.0
    %1461 = vmatpush1.msra.mxu0 0.0
    %1462 = vmatprep.subr.mxu0 0.0
    %1463 = vmatpush1.msra.mxu0 0.0
    %1464 = vmatprep.subr.mxu0 0.0
    %1465 = vmatpush1.msra.mxu0 0.0
    %1466 = vmatprep.subr.mxu0 0.0
    %1467 = vmatpush1.msra.mxu0 0.0
    %1468 = vmatprep.subr.mxu0 0.0
    %1469 = vmatpush1.msra.mxu0 0.0
    %1470 = vmatprep.subr.mxu0 0.0
    %1471 = vmatpush1.msra.mxu0 0.0
    %1472 = vmatprep.subr.mxu0 0.0
    %1473 = vmatpush1.msra.mxu0 0.0
    %1474 = vmatprep.subr.mxu0 0.0
    %1475 = vmatpush1.msra.mxu0 0.0
    %1476 = vmatprep.subr.mxu0 0.0
    %1477 = vmatpush1.msra.mxu0 0.0
    %1478 = vmatprep.subr.mxu0 0.0
    %1479 = vmatpush1.msra.mxu0 0.0
    %1480 = vmatprep.subr.mxu0 0.0
    %1481 = vmatpush1.msra.mxu0 0.0
    %1482 = vmatprep.subr.mxu0 0.0
    %1483 = vmatpush1.msra.mxu0 0.0
    %1484 = vmatprep.subr.mxu0 0.0
    %1485 = vmatpush1.msra.mxu0 0.0
    %1486 = vmatprep.subr.mxu0 0.0
    %1487 = vmatpush1.msra.mxu0 0.0
    %1488 = vmatprep.subr.mxu0 0.0
    %1489 = vmatpush1.msra.mxu0 0.0
    %1490 = vmatprep.subr.mxu0 0.0
    %1491 = vmatpush1.msra.mxu0 0.0
    %1492 = vmatprep.subr.mxu0 0.0
    %1493 = vmatpush1.msra.mxu0 0.0
    %1494 = vmatprep.subr.mxu0 0.0
    %1495 = vmatpush1.msra.mxu0 0.0
    %1496 = vmatprep.subr.mxu0 0.0
    %1497 = vmatpush1.msra.mxu0 0.0
    %1498 = vmatprep.subr.mxu0 0.0
    %1499 = vmatpush1.msra.mxu0 0.0
    %1500 = vmatprep.subr.mxu0 0.0
    %1501 = vmatpush1.msra.mxu0 0.0
    %1502 = vmatprep.subr.mxu0 0.0
    %1503 = vmatpush1.msra.mxu0 0.0
    %1504 = vmatprep.mubr.f32.mxu0 0.0
    %1505 = vmatmul.mubr.f32.gmra.mrb[0].mxu0 %v1435
    %v1506 = vpop.f32.mrb[0].mxu0
    %v1507 = vadd.f32 0.0, %v1506
    %v1508 = vpop.f32.mrb[0].mxu0
    %1509 = vmatprep.mubr.f32.mxu0 0.0
    %1510 = vmatmul.mubr.f32.gmra.mrb[0].mxu0 %v1438
    %v1511 = vpop.f32.mrb[0].mxu0
    %v1512 = vadd.f32 0.0, %v1511
    %v1513 = vpop.f32.mrb[0].mxu0
    %1514 = vdwg.mxu0
    %v1515 = vlaneseq
    %v1516 = vshrl.u32 %v1515, 7
    %v1517 = vsub.s32 0, %v1516
    %v1518 = vrot.slane %v131, %v1517
    %1519 = vmatprep.subr.mxu0 0.0
    %1520 = vmatpush1.msra.mxu0 %v67
    %1521 = vmatprep.subr.mxu0 0.0
    %1522 = vmatpush1.msra.mxu0 %v68
    %1523 = vmatprep.subr.mxu0 0.0
    %1524 = vmatpush1.msra.mxu0 %v69
    %1525 = vmatprep.subr.mxu0 0.0
    %1526 = vmatpush1.msra.mxu0 %v70
    %1527 = vmatprep.subr.mxu0 0.0
    %1528 = vmatpush1.msra.mxu0 %v71
    %1529 = vmatprep.subr.mxu0 0.0
    %1530 = vmatpush1.msra.mxu0 %v72
    %1531 = vmatprep.subr.mxu0 0.0
    %1532 = vmatpush1.msra.mxu0 %v73
    %1533 = vmatprep.subr.mxu0 0.0
    %1534 = vmatpush1.msra.mxu0 %v74
    %1535 = vmatprep.subr.mxu0 0.0
    %1536 = vmatpush1.msra.mxu0 %v75
    %1537 = vmatprep.subr.mxu0 0.0
    %1538 = vmatpush1.msra.mxu0 %v76
    %1539 = vmatprep.subr.mxu0 0.0
    %1540 = vmatpush1.msra.mxu0 %v77
    %1541 = vmatprep.subr.mxu0 0.0
    %1542 = vmatpush1.msra.mxu0 %v78
    %1543 = vmatprep.subr.mxu0 0.0
    %1544 = vmatpush1.msra.mxu0 %v79
    %1545 = vmatprep.subr.mxu0 0.0
    %1546 = vmatpush1.msra.mxu0 %v80
    %1547 = vmatprep.subr.mxu0 0.0
    %1548 = vmatpush1.msra.mxu0 %v81
    %1549 = vmatprep.subr.mxu0 0.0
    %1550 = vmatpush1.msra.mxu0 %v82
    %1551 = vmatprep.subr.mxu0 0.0
    %1552 = vmatpush1.msra.mxu0 %v83
    %1553 = vmatprep.subr.mxu0 0.0
    %1554 = vmatpush1.msra.mxu0 %v84
    %1555 = vmatprep.subr.mxu0 0.0
    %1556 = vmatpush1.msra.mxu0 %v85
    %1557 = vmatprep.subr.mxu0 0.0
    %1558 = vmatpush1.msra.mxu0 %v86
    %1559 = vmatprep.subr.mxu0 0.0
    %1560 = vmatpush1.msra.mxu0 %v87
    %1561 = vmatprep.subr.mxu0 0.0
    %1562 = vmatpush1.msra.mxu0 %v88
    %1563 = vmatprep.subr.mxu0 0.0
    %1564 = vmatpush1.msra.mxu0 %v89
    %1565 = vmatprep.subr.mxu0 0.0
    %1566 = vmatpush1.msra.mxu0 %v90
    %1567 = vmatprep.subr.mxu0 0.0
    %1568 = vmatpush1.msra.mxu0 %v91
    %1569 = vmatprep.subr.mxu0 0.0
    %1570 = vmatpush1.msra.mxu0 %v92
    %1571 = vmatprep.subr.mxu0 0.0
    %1572 = vmatpush1.msra.mxu0 %v93
    %1573 = vmatprep.subr.mxu0 0.0
    %1574 = vmatpush1.msra.mxu0 %v94
    %1575 = vmatprep.subr.mxu0 0.0
    %1576 = vmatpush1.msra.mxu0 %v95
    %1577 = vmatprep.subr.mxu0 0.0
    %1578 = vmatpush1.msra.mxu0 %v96
    %1579 = vmatprep.subr.mxu0 0.0
    %1580 = vmatpush1.msra.mxu0 %v97
    %1581 = vmatprep.subr.mxu0 0.0
    %1582 = vmatpush1.msra.mxu0 %v98
    %1583 = vmatprep.mubr.f32.mxu0 %v1143
    %1584 = vmatmul.mubr.f32.gmra.mrb[0].mxu0 %v961
    %v1585 = vpop.f32.mrb[0].mxu0
    %v1586 = vadd.f32 %v1518, %v1585
    %v1587 = vpop.f32.mrb[0].mxu0
    %1588 = vmatprep.mubr.f32.mxu0 %v1148
    %1589 = vmatmul.mubr.f32.gmra.mrb[0].mxu0 %v966
    %v1590 = vpop.f32.mrb[0].mxu0
    %v1591 = vadd.f32 %v1518, %v1590
    %v1592 = vpop.f32.mrb[0].mxu0
    %1593 = vdwg.mxu0
    %1594 = vmatprep.subr.mxu0 0.0
    %1595 = vmatpush1.msra.mxu0 %v99
    %1596 = vmatprep.subr.mxu0 0.0
    %1597 = vmatpush1.msra.mxu0 %v100
    %1598 = vmatprep.subr.mxu0 0.0
    %1599 = vmatpush1.msra.mxu0 %v101
    %1600 = vmatprep.subr.mxu0 0.0
    %1601 = vmatpush1.msra.mxu0 %v102
    %1602 = vmatprep.subr.mxu0 0.0
    %1603 = vmatpush1.msra.mxu0 %v103
    %1604 = vmatprep.subr.mxu0 0.0
    %1605 = vmatpush1.msra.mxu0 %v104
    %1606 = vmatprep.subr.mxu0 0.0
    %1607 = vmatpush1.msra.mxu0 %v105
    %1608 = vmatprep.subr.mxu0 0.0
    %1609 = vmatpush1.msra.mxu0 %v106
    %1610 = vmatprep.subr.mxu0 0.0
    %1611 = vmatpush1.msra.mxu0 %v107
    %1612 = vmatprep.subr.mxu0 0.0
    %1613 = vmatpush1.msra.mxu0 %v108
    %1614 = vmatprep.subr.mxu0 0.0
    %1615 = vmatpush1.msra.mxu0 %v109
    %1616 = vmatprep.subr.mxu0 0.0
    %1617 = vmatpush1.msra.mxu0 %v110
    %1618 = vmatprep.subr.mxu0 0.0
    %1619 = vmatpush1.msra.mxu0 %v111
    %1620 = vmatprep.subr.mxu0 0.0
    %1621 = vmatpush1.msra.mxu0 %v112
    %1622 = vmatprep.subr.mxu0 0.0
    %1623 = vmatpush1.msra.mxu0 %v113
    %1624 = vmatprep.subr.mxu0 0.0
    %1625 = vmatpush1.msra.mxu0 %v114
    %1626 = vmatprep.subr.mxu0 0.0
    %1627 = vmatpush1.msra.mxu0 %v115
    %1628 = vmatprep.subr.mxu0 0.0
    %1629 = vmatpush1.msra.mxu0 %v116
    %1630 = vmatprep.subr.mxu0 0.0
    %1631 = vmatpush1.msra.mxu0 %v117
    %1632 = vmatprep.subr.mxu0 0.0
    %1633 = vmatpush1.msra.mxu0 %v118
    %1634 = vmatprep.subr.mxu0 0.0
    %1635 = vmatpush1.msra.mxu0 %v119
    %1636 = vmatprep.subr.mxu0 0.0
    %1637 = vmatpush1.msra.mxu0 %v120
    %1638 = vmatprep.subr.mxu0 0.0
    %1639 = vmatpush1.msra.mxu0 %v121
    %1640 = vmatprep.subr.mxu0 0.0
    %1641 = vmatpush1.msra.mxu0 %v122
    %1642 = vmatprep.subr.mxu0 0.0
    %1643 = vmatpush1.msra.mxu0 %v123
    %1644 = vmatprep.subr.mxu0 0.0
    %1645 = vmatpush1.msra.mxu0 %v124
    %1646 = vmatprep.subr.mxu0 0.0
    %1647 = vmatpush1.msra.mxu0 %v125
    %1648 = vmatprep.subr.mxu0 0.0
    %1649 = vmatpush1.msra.mxu0 %v126
    %1650 = vmatprep.subr.mxu0 0.0
    %1651 = vmatpush1.msra.mxu0 %v127
    %1652 = vmatprep.subr.mxu0 0.0
    %1653 = vmatpush1.msra.mxu0 %v128
    %1654 = vmatprep.subr.mxu0 0.0
    %1655 = vmatpush1.msra.mxu0 %v129
    %1656 = vmatprep.subr.mxu0 0.0
    %1657 = vmatpush1.msra.mxu0 %v130
    %1658 = vmatprep.mubr.f32.mxu0 %v1507
    %1659 = vmatmul.mubr.f32.gmra.mrb[0].mxu0 %v1325
    %v1660 = vpop.f32.mrb[0].mxu0
    %v1661 = vadd.f32 %v1586, %v1660
    %v1662 = vpop.f32.mrb[0].mxu0
    %1663 = vmatprep.mubr.f32.mxu0 %v1512
    %1664 = vmatmul.mubr.f32.gmra.mrb[0].mxu0 %v1330
    %v1665 = vpop.f32.mrb[0].mxu0
    %v1666 = vadd.f32 %v1591, %v1665
    %v1667 = vpop.f32.mrb[0].mxu0
    %1668 = vdwg.mxu0
    %v1669 = vadd.f32 %v65, %v1661
    %v1670 = vadd.f32 %v66, %v1666
    %v1671 = vld [vmem:[#allocation4 + $0x308] sm:$0x1]
    %v1672 = vld [vmem:[#allocation4 + $0x310] sm:$0x1]
    %1673 = vadd.xlane.f32.xlu0 %v1669
    %v1674 = vpop.xlane.xlu0 %1673
    %1675 = vadd.xlane.f32.xlu0 %v1670
    %v1676 = vpop.xlane.xlu0 %1675
    %v1677 = vmul.f32 %v1674, 0.03125
    %v1678 = vmul.f32 %v1676, 0.03125
    %v1679 = vsub.f32 %v1669, %v1677
    %v1680 = vsub.f32 %v1670, %v1678
    %v1681 = vsel %vm44, 1, 0
    %vm1682 = vcmp.eq.s32.totalorder %v1681, 1
    %v1683 = vsel %vm1682, %v1679, 0.0
    %v1684 = vsel %vm1682, %v1680, 0.0
    %v1685 = vmul.f32 %v1683, %v1683
    %v1686 = vmul.f32 %v1684, %v1684
    %1687 = vadd.xlane.f32.xlu0 %v1685
    %v1688 = vpop.xlane.xlu0 %1687
    %1689 = vadd.xlane.f32.xlu0 %v1686
    %v1690 = vpop.xlane.xlu0 %1689
    %v1691 = vmul.f32 %v1688, 0.03125
    %v1692 = vmul.f32 %v1690, 0.03125
    %v1693 = vadd.f32 %v1691, 1e-05
    %v1694 = vadd.f32 %v1692, 1e-05
    %v1695 = vrsqrt.pop %v1693
    %v1696 = vrsqrt.pop %v1694
    %v1697 = vmul.f32 %v1683, %v1695
    %v1698 = vmul.f32 %v1684, %v1696
    %v1699 = vlaneseq
    %v1700 = vshrl.u32 %v1699, 7
    %v1701 = vsub.s32 0, %v1700
    %v1702 = vrot.slane %v1671, %v1701
    %v1703 = vmul.f32 %v1697, %v1702
    %v1704 = vmul.f32 %v1698, %v1702
    %v1705 = vlaneseq
    %v1706 = vshrl.u32 %v1705, 7
    %v1707 = vsub.s32 0, %v1706
    %v1708 = vrot.slane %v1672, %v1707
    %v1709 = vadd.f32 %v1703, %v1708
    %v1710 = vadd.f32 %v1704, %v1708
    %v1711 = vld [vmem:[#allocation4 + $0x200] sm:$0xff]
    %v1712 = vld [vmem:[#allocation4 + $0x208] sm:$0xff]
    %v1713 = vld [vmem:[#allocation4 + $0x210] sm:$0xff]
    %v1714 = vld [vmem:[#allocation4 + $0x218] sm:$0xff]
    %v1715 = vld [vmem:[#allocation4 + $0x220] sm:$0xff]
    %v1716 = vld [vmem:[#allocation4 + $0x228] sm:$0xff]
    %v1717 = vld [vmem:[#allocation4 + $0x230] sm:$0xff]
    %v1718 = vld [vmem:[#allocation4 + $0x238] sm:$0xff]
    %v1719 = vld [vmem:[#allocation4 + $0x240] sm:$0xff]
    %v1720 = vld [vmem:[#allocation4 + $0x248] sm:$0xff]
    %v1721 = vld [vmem:[#allocation4 + $0x250] sm:$0xff]
    %v1722 = vld [vmem:[#allocation4 + $0x258] sm:$0xff]
    %v1723 = vld [vmem:[#allocation4 + $0x260] sm:$0xff]
    %v1724 = vld [vmem:[#allocation4 + $0x268] sm:$0xff]
    %v1725 = vld [vmem:[#allocation4 + $0x270] sm:$0xff]
    %v1726 = vld [vmem:[#allocation4 + $0x278] sm:$0xff]
    %v1727 = vld [vmem:[#allocation4 + $0x318] sm:$0x1]
    %v1728 = vlaneseq
    %v1729 = vshrl.u32 %v1728, 7
    %v1730 = vsub.s32 0, %v1729
    %v1731 = vrot.slane %v1727, %v1730
    %1732 = vmatprep.subr.mxu0 0.0
    %1733 = vmatpush1.msra.mxu0 %v1711
    %1734 = vmatprep.subr.mxu0 0.0
    %1735 = vmatpush1.msra.mxu0 %v1712
    %1736 = vmatprep.subr.mxu0 0.0
    %1737 = vmatpush1.msra.mxu0 %v1713
    %1738 = vmatprep.subr.mxu0 0.0
    %1739 = vmatpush1.msra.mxu0 %v1714
    %1740 = vmatprep.subr.mxu0 0.0
    %1741 = vmatpush1.msra.mxu0 %v1715
    %1742 = vmatprep.subr.mxu0 0.0
    %1743 = vmatpush1.msra.mxu0 %v1716
    %1744 = vmatprep.subr.mxu0 0.0
    %1745 = vmatpush1.msra.mxu0 %v1717
    %1746 = vmatprep.subr.mxu0 0.0
    %1747 = vmatpush1.msra.mxu0 %v1718
    %1748 = vmatprep.subr.mxu0 0.0
    %1749 = vmatpush1.msra.mxu0 %v1719
    %1750 = vmatprep.subr.mxu0 0.0
    %1751 = vmatpush1.msra.mxu0 %v1720
    %1752 = vmatprep.subr.mxu0 0.0
    %1753 = vmatpush1.msra.mxu0 %v1721
    %1754 = vmatprep.subr.mxu0 0.0
    %1755 = vmatpush1.msra.mxu0 %v1722
    %1756 = vmatprep.subr.mxu0 0.0
    %1757 = vmatpush1.msra.mxu0 %v1723
    %1758 = vmatprep.subr.mxu0 0.0
    %1759 = vmatpush1.msra.mxu0 %v1724
    %1760 = vmatprep.subr.mxu0 0.0
    %1761 = vmatpush1.msra.mxu0 %v1725
    %1762 = vmatprep.subr.mxu0 0.0
    %1763 = vmatpush1.msra.mxu0 %v1726
    %1764 = vmatprep.subr.mxu0 0.0
    %1765 = vmatpush1.msra.mxu0 0.0
    %1766 = vmatprep.subr.mxu0 0.0
    %1767 = vmatpush1.msra.mxu0 0.0
    %1768 = vmatprep.subr.mxu0 0.0
    %1769 = vmatpush1.msra.mxu0 0.0
    %1770 = vmatprep.subr.mxu0 0.0
    %1771 = vmatpush1.msra.mxu0 0.0
    %1772 = vmatprep.subr.mxu0 0.0
    %1773 = vmatpush1.msra.mxu0 0.0
    %1774 = vmatprep.subr.mxu0 0.0
    %1775 = vmatpush1.msra.mxu0 0.0
    %1776 = vmatprep.subr.mxu0 0.0
    %1777 = vmatpush1.msra.mxu0 0.0
    %1778 = vmatprep.subr.mxu0 0.0
    %1779 = vmatpush1.msra.mxu0 0.0
    %1780 = vmatprep.subr.mxu0 0.0
    %1781 = vmatpush1.msra.mxu0 0.0
    %1782 = vmatprep.subr.mxu0 0.0
    %1783 = vmatpush1.msra.mxu0 0.0
    %1784 = vmatprep.subr.mxu0 0.0
    %1785 = vmatpush1.msra.mxu0 0.0
    %1786 = vmatprep.subr.mxu0 0.0
    %1787 = vmatpush1.msra.mxu0 0.0
    %1788 = vmatprep.subr.mxu0 0.0
    %1789 = vmatpush1.msra.mxu0 0.0
    %1790 = vmatprep.subr.mxu0 0.0
    %1791 = vmatpush1.msra.mxu0 0.0
    %1792 = vmatprep.subr.mxu0 0.0
    %1793 = vmatpush1.msra.mxu0 0.0
    %1794 = vmatprep.subr.mxu0 0.0
    %1795 = vmatpush1.msra.mxu0 0.0
    %1796 = vmatprep.mubr.f32.mxu0 0.0
    %1797 = vmatmul.mubr.f32.gmra.mrb[0].mxu0 %v1709
    %v1798 = vpop.f32.mrb[0].mxu0
    %v1799 = vadd.f32 %v1731, %v1798
    %v1800 = vpop.f32.mrb[0].mxu0
    %1801 = vmatprep.mubr.f32.mxu0 0.0
    %1802 = vmatmul.mubr.f32.gmra.mrb[0].mxu0 %v1710
    %v1803 = vpop.f32.mrb[0].mxu0
    %v1804 = vadd.f32 %v1731, %v1803
    %v1805 = vpop.f32.mrb[0].mxu0
    %1806 = vdwg.mxu0
    %v1807 = vmul.f32 %v1799, 0.5
    %v1808 = vmul.f32 %v1804, 0.5
    %v1809 = vmul.f32 %v1799, 0.044715
    %v1810 = vmul.f32 %v1804, 0.044715
    %v1811 = vmul.f32 %v1809, %v1799
    %v1812 = vmul.f32 %v1810, %v1804
    %v1813 = vmul.f32 %v1811, %v1799
    %v1814 = vmul.f32 %v1812, %v1804
    %v1815 = vadd.f32 %v1799, %v1813
    %v1816 = vadd.f32 %v1804, %v1814
    %v1817 = vmul.f32 %v1815, 0.7978846
    %v1818 = vmul.f32 %v1816, 0.7978846
    %v1819 = vtanh.pop %v1817
    %v1820 = vtanh.pop %v1818
    %v1821 = vadd.f32 %v1819, 1.0
    %v1822 = vadd.f32 %v1820, 1.0
    %v1823 = vmul.f32 %v1807, %v1821
    %v1824 = vmul.f32 %v1808, %v1822
    %v1825 = vld [vmem:[#allocation4 + $0x280] sm:$0xff]
    %v1826 = vld [vmem:[#allocation4 + $0x288] sm:$0xff]
    %v1827 = vld [vmem:[#allocation4 + $0x290] sm:$0xff]
    %v1828 = vld [vmem:[#allocation4 + $0x298] sm:$0xff]
    %v1829 = vld [vmem:[#allocation4 + $0x2a0] sm:$0xff]
    %v1830 = vld [vmem:[#allocation4 + $0x2a8] sm:$0xff]
    %v1831 = vld [vmem:[#allocation4 + $0x2b0] sm:$0xff]
    %v1832 = vld [vmem:[#allocation4 + $0x2b8] sm:$0xff]
    %v1833 = vld [vmem:[#allocation4 + $0x2c0] sm:$0xff]
    %v1834 = vld [vmem:[#allocation4 + $0x2c8] sm:$0xff]
    %v1835 = vld [vmem:[#allocation4 + $0x2d0] sm:$0xff]
    %v1836 = vld [vmem:[#allocation4 + $0x2d8] sm:$0xff]
    %v1837 = vld [vmem:[#allocation4 + $0x2e0] sm:$0xff]
    %v1838 = vld [vmem:[#allocation4 + $0x2e8] sm:$0xff]
    %v1839 = vld [vmem:[#allocation4 + $0x2f0] sm:$0xff]
    %v1840 = vld [vmem:[#allocation4 + $0x2f8] sm:$0xff]
    %v1841 = vld [vmem:[#allocation4 + $0x320] sm:$0x1]
    %v1842 = vlaneseq
    %v1843 = vshrl.u32 %v1842, 7
    %v1844 = vsub.s32 0, %v1843
    %v1845 = vrot.slane %v1841, %v1844
    %1846 = vmatprep.subr.mxu0 0.0
    %1847 = vmatpush1.msra.mxu0 %v1825
    %1848 = vmatprep.subr.mxu0 0.0
    %1849 = vmatpush1.msra.mxu0 %v1826
    %1850 = vmatprep.subr.mxu0 0.0
    %1851 = vmatpush1.msra.mxu0 %v1827
    %1852 = vmatprep.subr.mxu0 0.0
    %1853 = vmatpush1.msra.mxu0 %v1828
    %1854 = vmatprep.subr.mxu0 0.0
    %1855 = vmatpush1.msra.mxu0 %v1829
    %1856 = vmatprep.subr.mxu0 0.0
    %1857 = vmatpush1.msra.mxu0 %v1830
    %1858 = vmatprep.subr.mxu0 0.0
    %1859 = vmatpush1.msra.mxu0 %v1831
    %1860 = vmatprep.subr.mxu0 0.0
    %1861 = vmatpush1.msra.mxu0 %v1832
    %1862 = vmatprep.subr.mxu0 0.0
    %1863 = vmatpush1.msra.mxu0 %v1833
    %1864 = vmatprep.subr.mxu0 0.0
    %1865 = vmatpush1.msra.mxu0 %v1834
    %1866 = vmatprep.subr.mxu0 0.0
    %1867 = vmatpush1.msra.mxu0 %v1835
    %1868 = vmatprep.subr.mxu0 0.0
    %1869 = vmatpush1.msra.mxu0 %v1836
    %1870 = vmatprep.subr.mxu0 0.0
    %1871 = vmatpush1.msra.mxu0 %v1837
    %1872 = vmatprep.subr.mxu0 0.0
    %1873 = vmatpush1.msra.mxu0 %v1838
    %1874 = vmatprep.subr.mxu0 0.0
    %1875 = vmatpush1.msra.mxu0 %v1839
    %1876 = vmatprep.subr.mxu0 0.0
    %1877 = vmatpush1.msra.mxu0 %v1840
    %1878 = vmatprep.subr.mxu0 0.0
    %1879 = vmatpush1.msra.mxu0 0.0
    %1880 = vmatprep.subr.mxu0 0.0
    %1881 = vmatpush1.msra.mxu0 0.0
    %1882 = vmatprep.subr.mxu0 0.0
    %1883 = vmatpush1.msra.mxu0 0.0
    %1884 = vmatprep.subr.mxu0 0.0
    %1885 = vmatpush1.msra.mxu0 0.0
    %1886 = vmatprep.subr.mxu0 0.0
    %1887 = vmatpush1.msra.mxu0 0.0
    %1888 = vmatprep.subr.mxu0 0.0
    %1889 = vmatpush1.msra.mxu0 0.0
    %1890 = vmatprep.subr.mxu0 0.0
    %1891 = vmatpush1.msra.mxu0 0.0
    %1892 = vmatprep.subr.mxu0 0.0
    %1893 = vmatpush1.msra.mxu0 0.0
    %1894 = vmatprep.subr.mxu0 0.0
    %1895 = vmatpush1.msra.mxu0 0.0
    %1896 = vmatprep.subr.mxu0 0.0
    %1897 = vmatpush1.msra.mxu0 0.0
    %1898 = vmatprep.subr.mxu0 0.0
    %1899 = vmatpush1.msra.mxu0 0.0
    %1900 = vmatprep.subr.mxu0 0.0
    %1901 = vmatpush1.msra.mxu0 0.0
    %1902 = vmatprep.subr.mxu0 0.0
    %1903 = vmatpush1.msra.mxu0 0.0
    %1904 = vmatprep.subr.mxu0 0.0
    %1905 = vmatpush1.msra.mxu0 0.0
    %1906 = vmatprep.subr.mxu0 0.0
    %1907 = vmatpush1.msra.mxu0 0.0
    %1908 = vmatprep.subr.mxu0 0.0
    %1909 = vmatpush1.msra.mxu0 0.0
    %1910 = vmatprep.mubr.f32.mxu0 0.0
    %1911 = vmatmul.mubr.f32.gmra.mrb[0].mxu0 %v1823
    %v1912 = vpop.f32.mrb[0].mxu0
    %v1913 = vadd.f32 %v1845, %v1912
    %v1914 = vpop.f32.mrb[0].mxu0
    %1915 = vmatprep.mubr.f32.mxu0 0.0
    %1916 = vmatmul.mubr.f32.gmra.mrb[0].mxu0 %v1824
    %v1917 = vpop.f32.mrb[0].mxu0
    %v1918 = vadd.f32 %v1845, %v1917
    %v1919 = vpop.f32.mrb[0].mxu0
    %1920 = vdwg.mxu0
    %v1921 = vadd.f32 %v1709, %v1913
    %v1922 = vadd.f32 %v1710, %v1918
    %v1923 = vld [vmem:[#allocation4 + $0x328] sm:$0x1]
    %v1924 = vld [vmem:[#allocation4 + $0x330] sm:$0x1]
    %1925 = vadd.xlane.f32.xlu0 %v1921
    %v1926 = vpop.xlane.xlu0 %1925
    %1927 = vadd.xlane.f32.xlu0 %v1922
    %v1928 = vpop.xlane.xlu0 %1927
    %v1929 = vmul.f32 %v1926, 0.03125
    %v1930 = vmul.f32 %v1928, 0.03125
    %v1931 = vsub.f32 %v1921, %v1929
    %v1932 = vsub.f32 %v1922, %v1930
    %v1933 = vsel %vm1682, %v1931, 0.0
    %v1934 = vsel %vm1682, %v1932, 0.0
    %v1935 = vmul.f32 %v1933, %v1933
    %v1936 = vmul.f32 %v1934, %v1934
    %1937 = vadd.xlane.f32.xlu0 %v1935
    %v1938 = vpop.xlane.xlu0 %1937
    %1939 = vadd.xlane.f32.xlu0 %v1936
    %v1940 = vpop.xlane.xlu0 %1939
    %v1941 = vmul.f32 %v1938, 0.03125
    %v1942 = vmul.f32 %v1940, 0.03125
    %v1943 = vadd.f32 %v1941, 1e-05
    %v1944 = vadd.f32 %v1942, 1e-05
    %v1945 = vrsqrt.pop %v1943
    %v1946 = vrsqrt.pop %v1944
    %v1947 = vmul.f32 %v1933, %v1945
    %v1948 = vmul.f32 %v1934, %v1946
    %v1949 = vlaneseq
    %v1950 = vshrl.u32 %v1949, 7
    %v1951 = vsub.s32 0, %v1950
    %v1952 = vrot.slane %v1923, %v1951
    %v1953 = vmul.f32 %v1947, %v1952
    %v1954 = vmul.f32 %v1948, %v1952
    %v1955 = vlaneseq
    %v1956 = vshrl.u32 %v1955, 7
    %v1957 = vsub.s32 0, %v1956
    %v1958 = vrot.slane %v1924, %v1957
    %v1959 = vadd.f32 %v1953, %v1958
    %v1960 = vadd.f32 %v1954, %v1958
    %v1961 = vld [vmem:[#allocation4 + $0x338] sm:$0xff]
    %v1962 = vld [vmem:[#allocation4 + $0x340] sm:$0xff]
    %v1963 = vld [vmem:[#allocation4 + $0x348] sm:$0xff]
    %v1964 = vld [vmem:[#allocation4 + $0x350] sm:$0xff]
    %v1965 = vld [vmem:[#allocation4 + $0x358] sm:$0xff]
    %v1966 = vld [vmem:[#allocation4 + $0x360] sm:$0xff]
    %v1967 = vld [vmem:[#allocation4 + $0x368] sm:$0xff]
    %v1968 = vld [vmem:[#allocation4 + $0x370] sm:$0xff]
    %v1969 = vld [vmem:[#allocation4 + $0x378] sm:$0xff]
    %v1970 = vld [vmem:[#allocation4 + $0x380] sm:$0xff]
    %v1971 = vld [vmem:[#allocation4 + $0x388] sm:$0xff]
    %v1972 = vld [vmem:[#allocation4 + $0x390] sm:$0xff]
    %v1973 = vld [vmem:[#allocation4 + $0x398] sm:$0xff]
    %v1974 = vld [vmem:[#allocation4 + $0x3a0] sm:$0xff]
    %v1975 = vld [vmem:[#allocation4 + $0x3a8] sm:$0xff]
    %v1976 = vld [vmem:[#allocation4 + $0x3b0] sm:$0xff]
    %v1977 = vld [vmem:[#allocation4 + $0x3b8] sm:$0xff]
    %v1978 = vld [vmem:[#allocation4 + $0x3c0] sm:$0xff]
    %v1979 = vld [vmem:[#allocation4 + $0x3c8] sm:$0xff]
    %v1980 = vld [vmem:[#allocation4 + $0x3d0] sm:$0xff]
    %v1981 = vld [vmem:[#allocation4 + $0x3d8] sm:$0xff]
    %v1982 = vld [vmem:[#allocation4 + $0x3e0] sm:$0xff]
    %v1983 = vld [vmem:[#allocation4 + $0x3e8] sm:$0xff]
    %v1984 = vld [vmem:[#allocation4 + $0x3f0] sm:$0xff]
    %v1985 = vld [vmem:[#allocation4 + $0x3f8] sm:$0xff]
    %v1986 = vld [vmem:[#allocation4 + $0x400] sm:$0xff]
    %v1987 = vld [vmem:[#allocation4 + $0x408] sm:$0xff]
    %v1988 = vld [vmem:[#allocation4 + $0x410] sm:$0xff]
    %v1989 = vld [vmem:[#allocation4 + $0x418] sm:$0xff]
    %v1990 = vld [vmem:[#allocation4 + $0x420] sm:$0xff]
    %v1991 = vld [vmem:[#allocation4 + $0x428] sm:$0xff]
    %v1992 = vld [vmem:[#allocation4 + $0x430] sm:$0xff]
    %v1993 = vld [vmem:[#allocation4 + $0x438] sm:$0xff]
    %v1994 = vld [vmem:[#allocation4 + $0x440] sm:$0xff]
    %v1995 = vld [vmem:[#allocation4 + $0x448] sm:$0xff]
    %v1996 = vld [vmem:[#allocation4 + $0x450] sm:$0xff]
    %v1997 = vld [vmem:[#allocation4 + $0x458] sm:$0xff]
    %v1998 = vld [vmem:[#allocation4 + $0x460] sm:$0xff]
    %v1999 = vld [vmem:[#allocation4 + $0x468] sm:$0xff]
    %v2000 = vld [vmem:[#allocation4 + $0x470] sm:$0xff]
    %v2001 = vld [vmem:[#allocation4 + $0x478] sm:$0xff]
    %v2002 = vld [vmem:[#allocation4 + $0x480] sm:$0xff]
    %v2003 = vld [vmem:[#allocation4 + $0x488] sm:$0xff]
    %v2004 = vld [vmem:[#allocation4 + $0x490] sm:$0xff]
    %v2005 = vld [vmem:[#allocation4 + $0x498] sm:$0xff]
    %v2006 = vld [vmem:[#allocation4 + $0x4a0] sm:$0xff]
    %v2007 = vld [vmem:[#allocation4 + $0x4a8] sm:$0xff]
    %v2008 = vld [vmem:[#allocation4 + $0x4b0] sm:$0xff]
    %v2009 = vld [vmem:[#allocation4 + $0x4b8] sm:$0xff]
    %v2010 = vld [vmem:[#allocation4 + $0x4c0] sm:$0xff]
    %v2011 = vld [vmem:[#allocation4 + $0x4c8] sm:$0xff]
    %v2012 = vld [vmem:[#allocation4 + $0x4d0] sm:$0xff]
    %v2013 = vld [vmem:[#allocation4 + $0x4d8] sm:$0xff]
    %v2014 = vld [vmem:[#allocation4 + $0x4e0] sm:$0xff]
    %v2015 = vld [vmem:[#allocation4 + $0x4e8] sm:$0xff]
    %v2016 = vld [vmem:[#allocation4 + $0x4f0] sm:$0xff]
    %v2017 = vld [vmem:[#allocation4 + $0x4f8] sm:$0xff]
    %v2018 = vld [vmem:[#allocation4 + $0x500] sm:$0xff]
    %v2019 = vld [vmem:[#allocation4 + $0x508] sm:$0xff]
    %v2020 = vld [vmem:[#allocation4 + $0x510] sm:$0xff]
    %v2021 = vld [vmem:[#allocation4 + $0x518] sm:$0xff]
    %v2022 = vld [vmem:[#allocation4 + $0x520] sm:$0xff]
    %v2023 = vld [vmem:[#allocation4 + $0x528] sm:$0xff]
    %v2024 = vld [vmem:[#allocation4 + $0x530] sm:$0xff]
    %v2025 = vld [vmem:[#allocation4 + $0x638] sm:$0x1]
    %v2026 = vld [vmem:[#allocation2 + $0x600] sm:$0xff]
    %v2027 = vld [vmem:[#allocation2 + $0x608] sm:$0xff]
    %v2028 = vld [vmem:[#allocation2 + $0x610] sm:$0xff]
    %v2029 = vld [vmem:[#allocation2 + $0x618] sm:$0xff]
    %v2030 = vld [vmem:[#allocation2 + $0x660] sm:$0xff]
    %v2031 = vld [vmem:[#allocation2 + $0x668] sm:$0xff]
    %v2032 = vld [vmem:[#allocation2 + $0x670] sm:$0xff]
    %v2033 = vld [vmem:[#allocation2 + $0x678] sm:$0xff]
    %v2034 = vld [vmem:[#allocation2 + $0x6c0] sm:$0xff]
    %v2035 = vld [vmem:[#allocation2 + $0x6c8] sm:$0xff]
    %v2036 = vld [vmem:[#allocation2 + $0x6d0] sm:$0xff]
    %v2037 = vld [vmem:[#allocation2 + $0x6d8] sm:$0xff]
    %v2038 = vld [vmem:[#allocation2 + $0x720] sm:$0xff]
    %v2039 = vld [vmem:[#allocation2 + $0x728] sm:$0xff]
    %v2040 = vld [vmem:[#allocation2 + $0x730] sm:$0xff]
    %v2041 = vld [vmem:[#allocation2 + $0x738] sm:$0xff]
    %v2042 = vld [vmem:[#allocation2 + $0x780] sm:$0xff]
    %v2043 = vld [vmem:[#allocation2 + $0x788] sm:$0xff]
    %v2044 = vld [vmem:[#allocation2 + $0x790] sm:$0xff]
    %v2045 = vld [vmem:[#allocation2 + $0x798] sm:$0xff]
    %v2046 = vld [vmem:[#allocation2 + $0x7e0] sm:$0xff]
    %v2047 = vld [vmem:[#allocation2 + $0x7e8] sm:$0xff]
    %v2048 = vld [vmem:[#allocation2 + $0x7f0] sm:$0xff]
    %v2049 = vld [vmem:[#allocation2 + $0x7f8] sm:$0xff]
    %v2050 = vld [vmem:[#allocation2 + $0x840] sm:$0xff]
    %v2051 = vld [vmem:[#allocation2 + $0x848] sm:$0xff]
    %v2052 = vld [vmem:[#allocation2 + $0x850] sm:$0xff]
    %v2053 = vld [vmem:[#allocation2 + $0x858] sm:$0xff]
    %v2054 = vld [vmem:[#allocation2 + $0x8a0] sm:$0xff]
    %v2055 = vld [vmem:[#allocation2 + $0x8a8] sm:$0xff]
    %v2056 = vld [vmem:[#allocation2 + $0x8b0] sm:$0xff]
    %v2057 = vld [vmem:[#allocation2 + $0x8b8] sm:$0xff]
    %v2058 = vld [vmem:[#allocation2 + $0x900] sm:$0xff]
    %v2059 = vld [vmem:[#allocation2 + $0x908] sm:$0xff]
    %v2060 = vld [vmem:[#allocation2 + $0x910] sm:$0xff]
    %v2061 = vld [vmem:[#allocation2 + $0x918] sm:$0xff]
    %v2062 = vld [vmem:[#allocation2 + $0x960] sm:$0xff]
    %v2063 = vld [vmem:[#allocation2 + $0x968] sm:$0xff]
    %v2064 = vld [vmem:[#allocation2 + $0x970] sm:$0xff]
    %v2065 = vld [vmem:[#allocation2 + $0x978] sm:$0xff]
    %v2066 = vld [vmem:[#allocation2 + $0x9c0] sm:$0xff]
    %v2067 = vld [vmem:[#allocation2 + $0x9c8] sm:$0xff]
    %v2068 = vld [vmem:[#allocation2 + $0x9d0] sm:$0xff]
    %v2069 = vld [vmem:[#allocation2 + $0x9d8] sm:$0xff]
    %v2070 = vld [vmem:[#allocation2 + $0xa20] sm:$0xff]
    %v2071 = vld [vmem:[#allocation2 + $0xa28] sm:$0xff]
    %v2072 = vld [vmem:[#allocation2 + $0xa30] sm:$0xff]
    %v2073 = vld [vmem:[#allocation2 + $0xa38] sm:$0xff]
    %v2074 = vld [vmem:[#allocation2 + $0xa80] sm:$0xff]
    %v2075 = vld [vmem:[#allocation2 + $0xa88] sm:$0xff]
    %v2076 = vld [vmem:[#allocation2 + $0xa90] sm:$0xff]
    %v2077 = vld [vmem:[#allocation2 + $0xa98] sm:$0xff]
    %v2078 = vld [vmem:[#allocation2 + $0xae0] sm:$0xff]
    %v2079 = vld [vmem:[#allocation2 + $0xae8] sm:$0xff]
    %v2080 = vld [vmem:[#allocation2 + $0xaf0] sm:$0xff]
    %v2081 = vld [vmem:[#allocation2 + $0xaf8] sm:$0xff]
    %v2082 = vld [vmem:[#allocation2 + $0xb40] sm:$0xff]
    %v2083 = vld [vmem:[#allocation2 + $0xb48] sm:$0xff]
    %v2084 = vld [vmem:[#allocation2 + $0xb50] sm:$0xff]
    %v2085 = vld [vmem:[#allocation2 + $0xb58] sm:$0xff]
    %v2086 = vld [vmem:[#allocation2 + $0xba0] sm:$0xff]
    %v2087 = vld [vmem:[#allocation2 + $0xba8] sm:$0xff]
    %v2088 = vld [vmem:[#allocation2 + $0xbb0] sm:$0xff]
    %v2089 = vld [vmem:[#allocation2 + $0xbb8] sm:$0xff]
    %v2090 = vld [vmem:[#allocation2 + $0x620] sm:$0xff]
    %v2091 = vld [vmem:[#allocation2 + $0x628] sm:$0xff]
    %v2092 = vld [vmem:[#allocation2 + $0x630] sm:$0xff]
    %v2093 = vld [vmem:[#allocation2 + $0x638] sm:$0xff]
    %v2094 = vld [vmem:[#allocation2 + $0x640] sm:$0xff]
    %v2095 = vld [vmem:[#allocation2 + $0x648] sm:$0xff]
    %v2096 = vld [vmem:[#allocation2 + $0x650] sm:$0xff]
    %v2097 = vld [vmem:[#allocation2 + $0x658] sm:$0xff]
    %v2098 = vld [vmem:[#allocation2 + $0x680] sm:$0xff]
    %v2099 = vld [vmem:[#allocation2 + $0x688] sm:$0xff]
    %v2100 = vld [vmem:[#allocation2 + $0x690] sm:$0xff]
    %v2101 = vld [vmem:[#allocation2 + $0x698] sm:$0xff]
    %v2102 = vld [vmem:[#allocation2 + $0x6a0] sm:$0xff]
    %v2103 = vld [vmem:[#allocation2 + $0x6a8] sm:$0xff]
    %v2104 = vld [vmem:[#allocation2 + $0x6b0] sm:$0xff]
    %v2105 = vld [vmem:[#allocation2 + $0x6b8] sm:$0xff]
    %v2106 = vld [vmem:[#allocation2 + $0x6e0] sm:$0xff]
    %v2107 = vld [vmem:[#allocation2 + $0x6e8] sm:$0xff]
    %v2108 = vld [vmem:[#allocation2 + $0x6f0] sm:$0xff]
    %v2109 = vld [vmem:[#allocation2 + $0x6f8] sm:$0xff]
    %v2110 = vld [vmem:[#allocation2 + $0x700] sm:$0xff]
    %v2111 = vld [vmem:[#allocation2 + $0x708] sm:$0xff]
    %v2112 = vld [vmem:[#allocation2 + $0x710] sm:$0xff]
    %v2113 = vld [vmem:[#allocation2 + $0x718] sm:$0xff]
    %v2114 = vld [vmem:[#allocation2 + $0x740] sm:$0xff]
    %v2115 = vld [vmem:[#allocation2 + $0x748] sm:$0xff]
    %v2116 = vld [vmem:[#allocation2 + $0x750] sm:$0xff]
    %v2117 = vld [vmem:[#allocation2 + $0x758] sm:$0xff]
    %v2118 = vld [vmem:[#allocation2 + $0x760] sm:$0xff]
    %v2119 = vld [vmem:[#allocation2 + $0x768] sm:$0xff]
    %v2120 = vld [vmem:[#allocation2 + $0x770] sm:$0xff]
    %v2121 = vld [vmem:[#allocation2 + $0x778] sm:$0xff]
    %v2122 = vld [vmem:[#allocation2 + $0x7a0] sm:$0xff]
    %v2123 = vld [vmem:[#allocation2 + $0x7a8] sm:$0xff]
    %v2124 = vld [vmem:[#allocation2 + $0x7b0] sm:$0xff]
    %v2125 = vld [vmem:[#allocation2 + $0x7b8] sm:$0xff]
    %v2126 = vld [vmem:[#allocation2 + $0x7c0] sm:$0xff]
    %v2127 = vld [vmem:[#allocation2 + $0x7c8] sm:$0xff]
    %v2128 = vld [vmem:[#allocation2 + $0x7d0] sm:$0xff]
    %v2129 = vld [vmem:[#allocation2 + $0x7d8] sm:$0xff]
    %v2130 = vld [vmem:[#allocation2 + $0x800] sm:$0xff]
    %v2131 = vld [vmem:[#allocation2 + $0x808] sm:$0xff]
    %v2132 = vld [vmem:[#allocation2 + $0x810] sm:$0xff]
    %v2133 = vld [vmem:[#allocation2 + $0x818] sm:$0xff]
    %v2134 = vld [vmem:[#allocation2 + $0x820] sm:$0xff]
    %v2135 = vld [vmem:[#allocation2 + $0x828] sm:$0xff]
    %v2136 = vld [vmem:[#allocation2 + $0x830] sm:$0xff]
    %v2137 = vld [vmem:[#allocation2 + $0x838] sm:$0xff]
    %v2138 = vld [vmem:[#allocation2 + $0x860] sm:$0xff]
    %v2139 = vld [vmem:[#allocation2 + $0x868] sm:$0xff]
    %v2140 = vld [vmem:[#allocation2 + $0x870] sm:$0xff]
    %v2141 = vld [vmem:[#allocation2 + $0x878] sm:$0xff]
    %v2142 = vld [vmem:[#allocation2 + $0x880] sm:$0xff]
    %v2143 = vld [vmem:[#allocation2 + $0x888] sm:$0xff]
    %v2144 = vld [vmem:[#allocation2 + $0x890] sm:$0xff]
    %v2145 = vld [vmem:[#allocation2 + $0x898] sm:$0xff]
    %v2146 = vld [vmem:[#allocation2 + $0x8c0] sm:$0xff]
    %v2147 = vld [vmem:[#allocation2 + $0x8c8] sm:$0xff]
    %v2148 = vld [vmem:[#allocation2 + $0x8d0] sm:$0xff]
    %v2149 = vld [vmem:[#allocation2 + $0x8d8] sm:$0xff]
    %v2150 = vld [vmem:[#allocation2 + $0x8e0] sm:$0xff]
    %v2151 = vld [vmem:[#allocation2 + $0x8e8] sm:$0xff]
    %v2152 = vld [vmem:[#allocation2 + $0x8f0] sm:$0xff]
    %v2153 = vld [vmem:[#allocation2 + $0x8f8] sm:$0xff]
    %v2154 = vld [vmem:[#allocation2 + $0x920] sm:$0xff]
    %v2155 = vld [vmem:[#allocation2 + $0x928] sm:$0xff]
    %v2156 = vld [vmem:[#allocation2 + $0x930] sm:$0xff]
    %v2157 = vld [vmem:[#allocation2 + $0x938] sm:$0xff]
    %v2158 = vld [vmem:[#allocation2 + $0x940] sm:$0xff]
    %v2159 = vld [vmem:[#allocation2 + $0x948] sm:$0xff]
    %v2160 = vld [vmem:[#allocation2 + $0x950] sm:$0xff]
    %v2161 = vld [vmem:[#allocation2 + $0x958] sm:$0xff]
    %v2162 = vld [vmem:[#allocation2 + $0x980] sm:$0xff]
    %v2163 = vld [vmem:[#allocation2 + $0x988] sm:$0xff]
    %v2164 = vld [vmem:[#allocation2 + $0x990] sm:$0xff]
    %v2165 = vld [vmem:[#allocation2 + $0x998] sm:$0xff]
    %v2166 = vld [vmem:[#allocation2 + $0x9a0] sm:$0xff]
    %v2167 = vld [vmem:[#allocation2 + $0x9a8] sm:$0xff]
    %v2168 = vld [vmem:[#allocation2 + $0x9b0] sm:$0xff]
    %v2169 = vld [vmem:[#allocation2 + $0x9b8] sm:$0xff]
    %v2170 = vld [vmem:[#allocation2 + $0x9e0] sm:$0xff]
    %v2171 = vld [vmem:[#allocation2 + $0x9e8] sm:$0xff]
    %v2172 = vld [vmem:[#allocation2 + $0x9f0] sm:$0xff]
    %v2173 = vld [vmem:[#allocation2 + $0x9f8] sm:$0xff]
    %v2174 = vld [vmem:[#allocation2 + $0xa00] sm:$0xff]
    %v2175 = vld [vmem:[#allocation2 + $0xa08] sm:$0xff]
    %v2176 = vld [vmem:[#allocation2 + $0xa10] sm:$0xff]
    %v2177 = vld [vmem:[#allocation2 + $0xa18] sm:$0xff]
    %v2178 = vld [vmem:[#allocation2 + $0xa40] sm:$0xff]
    %v2179 = vld [vmem:[#allocation2 + $0xa48] sm:$0xff]
    %v2180 = vld [vmem:[#allocation2 + $0xa50] sm:$0xff]
    %v2181 = vld [vmem:[#allocation2 + $0xa58] sm:$0xff]
    %v2182 = vld [vmem:[#allocation2 + $0xa60] sm:$0xff]
    %v2183 = vld [vmem:[#allocation2 + $0xa68] sm:$0xff]
    %v2184 = vld [vmem:[#allocation2 + $0xa70] sm:$0xff]
    %v2185 = vld [vmem:[#allocation2 + $0xa78] sm:$0xff]
    %v2186 = vld [vmem:[#allocation2 + $0xaa0] sm:$0xff]
    %v2187 = vld [vmem:[#allocation2 + $0xaa8] sm:$0xff]
    %v2188 = vld [vmem:[#allocation2 + $0xab0] sm:$0xff]
    %v2189 = vld [vmem:[#allocation2 + $0xab8] sm:$0xff]
    %v2190 = vld [vmem:[#allocation2 + $0xac0] sm:$0xff]
    %v2191 = vld [vmem:[#allocation2 + $0xac8] sm:$0xff]
    %v2192 = vld [vmem:[#allocation2 + $0xad0] sm:$0xff]
    %v2193 = vld [vmem:[#allocation2 + $0xad8] sm:$0xff]
    %v2194 = vld [vmem:[#allocation2 + $0xb00] sm:$0xff]
    %v2195 = vld [vmem:[#allocation2 + $0xb08] sm:$0xff]
    %v2196 = vld [vmem:[#allocation2 + $0xb10] sm:$0xff]
    %v2197 = vld [vmem:[#allocation2 + $0xb18] sm:$0xff]
    %v2198 = vld [vmem:[#allocation2 + $0xb20] sm:$0xff]
    %v2199 = vld [vmem:[#allocation2 + $0xb28] sm:$0xff]
    %v2200 = vld [vmem:[#allocation2 + $0xb30] sm:$0xff]
    %v2201 = vld [vmem:[#allocation2 + $0xb38] sm:$0xff]
    %v2202 = vld [vmem:[#allocation2 + $0xb60] sm:$0xff]
    %v2203 = vld [vmem:[#allocation2 + $0xb68] sm:$0xff]
    %v2204 = vld [vmem:[#allocation2 + $0xb70] sm:$0xff]
    %v2205 = vld [vmem:[#allocation2 + $0xb78] sm:$0xff]
    %v2206 = vld [vmem:[#allocation2 + $0xb80] sm:$0xff]
    %v2207 = vld [vmem:[#allocation2 + $0xb88] sm:$0xff]
    %v2208 = vld [vmem:[#allocation2 + $0xb90] sm:$0xff]
    %v2209 = vld [vmem:[#allocation2 + $0xb98] sm:$0xff]
    %v2210 = vld [vmem:[#allocation2 + $0xbc0] sm:$0xff]
    %v2211 = vld [vmem:[#allocation2 + $0xbc8] sm:$0xff]
    %v2212 = vld [vmem:[#allocation2 + $0xbd0] sm:$0xff]
    %v2213 = vld [vmem:[#allocation2 + $0xbd8] sm:$0xff]
    %v2214 = vld [vmem:[#allocation2 + $0xbe0] sm:$0xff]
    %v2215 = vld [vmem:[#allocation2 + $0xbe8] sm:$0xff]
    %v2216 = vld [vmem:[#allocation2 + $0xbf0] sm:$0xff]
    %v2217 = vld [vmem:[#allocation2 + $0xbf8] sm:$0xff]
    %2218 = vmatprep.subr.mxu0 %v2027
    %2219 = vmatpush1.msra.mxu0 %v2026
    %2220 = vmatprep.subr.mxu0 %v2031
    %2221 = vmatpush1.msra.mxu0 %v2030
    %2222 = vmatprep.subr.mxu0 %v2035
    %2223 = vmatpush1.msra.mxu0 %v2034
    %2224 = vmatprep.subr.mxu0 %v2039
    %2225 = vmatpush1.msra.mxu0 %v2038
    %2226 = vmatprep.subr.mxu0 %v2043
    %2227 = vmatpush1.msra.mxu0 %v2042
    %2228 = vmatprep.subr.mxu0 %v2047
    %2229 = vmatpush1.msra.mxu0 %v2046
    %2230 = vmatprep.subr.mxu0 %v2051
    %2231 = vmatpush1.msra.mxu0 %v2050
    %2232 = vmatprep.subr.mxu0 %v2055
    %2233 = vmatpush1.msra.mxu0 %v2054
    %2234 = vmatprep.subr.mxu0 %v2059
    %2235 = vmatpush1.msra.mxu0 %v2058
    %2236 = vmatprep.subr.mxu0 %v2063
    %2237 = vmatpush1.msra.mxu0 %v2062
    %2238 = vmatprep.subr.mxu0 %v2067
    %2239 = vmatpush1.msra.mxu0 %v2066
    %2240 = vmatprep.subr.mxu0 %v2071
    %2241 = vmatpush1.msra.mxu0 %v2070
    %2242 = vmatprep.subr.mxu0 %v2075
    %2243 = vmatpush1.msra.mxu0 %v2074
    %2244 = vmatprep.subr.mxu0 %v2079
    %2245 = vmatpush1.msra.mxu0 %v2078
    %2246 = vmatprep.subr.mxu0 %v2083
    %2247 = vmatpush1.msra.mxu0 %v2082
    %2248 = vmatprep.subr.mxu0 %v2087
    %2249 = vmatpush1.msra.mxu0 %v2086
    %2250 = vmatprep.subr.mxu0 0.0
    %2251 = vmatpush1.msra.mxu0 0.0
    %2252 = vmatprep.subr.mxu0 0.0
    %2253 = vmatpush1.msra.mxu0 0.0
    %2254 = vmatprep.subr.mxu0 0.0
    %2255 = vmatpush1.msra.mxu0 0.0
    %2256 = vmatprep.subr.mxu0 0.0
    %2257 = vmatpush1.msra.mxu0 0.0
    %2258 = vmatprep.subr.mxu0 0.0
    %2259 = vmatpush1.msra.mxu0 0.0
    %2260 = vmatprep.subr.mxu0 0.0
    %2261 = vmatpush1.msra.mxu0 0.0
    %2262 = vmatprep.subr.mxu0 0.0
    %2263 = vmatpush1.msra.mxu0 0.0
    %2264 = vmatprep.subr.mxu0 0.0
    %2265 = vmatpush1.msra.mxu0 0.0
    %2266 = vmatprep.subr.mxu0 0.0
    %2267 = vmatpush1.msra.mxu0 0.0
    %2268 = vmatprep.subr.mxu0 0.0
    %2269 = vmatpush1.msra.mxu0 0.0
    %2270 = vmatprep.subr.mxu0 0.0
    %2271 = vmatpush1.msra.mxu0 0.0
    %2272 = vmatprep.subr.mxu0 0.0
    %2273 = vmatpush1.msra.mxu0 0.0
    %2274 = vmatprep.subr.mxu0 0.0
    %2275 = vmatpush1.msra.mxu0 0.0
    %2276 = vmatprep.subr.mxu0 0.0
    %2277 = vmatpush1.msra.mxu0 0.0
    %2278 = vmatprep.subr.mxu0 0.0
    %2279 = vmatpush1.msra.mxu0 0.0
    %2280 = vmatprep.subr.mxu0 0.0
    %2281 = vmatpush1.msra.mxu0 0.0
    %2282 = vmatprep.mubr.f32.mxu0 0.0
    %2283 = vmatmul.mubr.f32.gmra.mrb[0].mxu0 %v1959
    %v2284 = vpop.f32.mrb[0].mxu0
    %v2285 = vadd.f32 0.0, %v2284
    %v2286 = vpop.f32.mrb[0].mxu0
    %v2287 = vadd.f32 0.0, %v2286
    %2288 = vmatprep.mubr.f32.mxu0 0.0
    %2289 = vmatmul.mubr.f32.gmra.mrb[0].mxu0 %v1960
    %v2290 = vpop.f32.mrb[0].mxu0
    %v2291 = vadd.f32 0.0, %v2290
    %v2292 = vpop.f32.mrb[0].mxu0
    %v2293 = vadd.f32 0.0, %v2292
    %2294 = vdwg.mxu0
    %2295 = vmatprep.subr.mxu0 %v2029
    %2296 = vmatpush1.msra.mxu0 %v2028
    %2297 = vmatprep.subr.mxu0 %v2033
    %2298 = vmatpush1.msra.mxu0 %v2032
    %2299 = vmatprep.subr.mxu0 %v2037
    %2300 = vmatpush1.msra.mxu0 %v2036
    %2301 = vmatprep.subr.mxu0 %v2041
    %2302 = vmatpush1.msra.mxu0 %v2040
    %2303 = vmatprep.subr.mxu0 %v2045
    %2304 = vmatpush1.msra.mxu0 %v2044
    %2305 = vmatprep.subr.mxu0 %v2049
    %2306 = vmatpush1.msra.mxu0 %v2048
    %2307 = vmatprep.subr.mxu0 %v2053
    %2308 = vmatpush1.msra.mxu0 %v2052
    %2309 = vmatprep.subr.mxu0 %v2057
    %2310 = vmatpush1.msra.mxu0 %v2056
    %2311 = vmatprep.subr.mxu0 %v2061
    %2312 = vmatpush1.msra.mxu0 %v2060
    %2313 = vmatprep.subr.mxu0 %v2065
    %2314 = vmatpush1.msra.mxu0 %v2064
    %2315 = vmatprep.subr.mxu0 %v2069
    %2316 = vmatpush1.msra.mxu0 %v2068
    %2317 = vmatprep.subr.mxu0 %v2073
    %2318 = vmatpush1.msra.mxu0 %v2072
    %2319 = vmatprep.subr.mxu0 %v2077
    %2320 = vmatpush1.msra.mxu0 %v2076
    %2321 = vmatprep.subr.mxu0 %v2081
    %2322 = vmatpush1.msra.mxu0 %v2080
    %2323 = vmatprep.subr.mxu0 %v2085
    %2324 = vmatpush1.msra.mxu0 %v2084
    %2325 = vmatprep.subr.mxu0 %v2089
    %2326 = vmatpush1.msra.mxu0 %v2088
    %2327 = vmatprep.subr.mxu0 0.0
    %2328 = vmatpush1.msra.mxu0 0.0
    %2329 = vmatprep.subr.mxu0 0.0
    %2330 = vmatpush1.msra.mxu0 0.0
    %2331 = vmatprep.subr.mxu0 0.0
    %2332 = vmatpush1.msra.mxu0 0.0
    %2333 = vmatprep.subr.mxu0 0.0
    %2334 = vmatpush1.msra.mxu0 0.0
    %2335 = vmatprep.subr.mxu0 0.0
    %2336 = vmatpush1.msra.mxu0 0.0
    %2337 = vmatprep.subr.mxu0 0.0
    %2338 = vmatpush1.msra.mxu0 0.0
    %2339 = vmatprep.subr.mxu0 0.0
    %2340 = vmatpush1.msra.mxu0 0.0
    %2341 = vmatprep.subr.mxu0 0.0
    %2342 = vmatpush1.msra.mxu0 0.0
    %2343 = vmatprep.subr.mxu0 0.0
    %2344 = vmatpush1.msra.mxu0 0.0
    %2345 = vmatprep.subr.mxu0 0.0
    %2346 = vmatpush1.msra.mxu0 0.0
    %2347 = vmatprep.subr.mxu0 0.0
    %2348 = vmatpush1.msra.mxu0 0.0
    %2349 = vmatprep.subr.mxu0 0.0
    %2350 = vmatpush1.msra.mxu0 0.0
    %2351 = vmatprep.subr.mxu0 0.0
    %2352 = vmatpush1.msra.mxu0 0.0
    %2353 = vmatprep.subr.mxu0 0.0
    %2354 = vmatpush1.msra.mxu0 0.0
    %2355 = vmatprep.subr.mxu0 0.0
    %2356 = vmatpush1.msra.mxu0 0.0
    %2357 = vmatprep.subr.mxu0 0.0
    %2358 = vmatpush1.msra.mxu0 0.0
    %2359 = vmatprep.mubr.f32.mxu0 0.0
    %2360 = vmatmul.mubr.f32.gmra.mrb[0].mxu0 %v1959
    %v2361 = vpop.f32.mrb[0].mxu0
    %v2362 = vadd.f32 0.0, %v2361
    %v2363 = vpop.f32.mrb[0].mxu0
    %v2364 = vadd.f32 0.0, %v2363
    %2365 = vmatprep.mubr.f32.mxu0 0.0
    %2366 = vmatmul.mubr.f32.gmra.mrb[0].mxu0 %v1960
    %v2367 = vpop.f32.mrb[0].mxu0
    %v2368 = vadd.f32 0.0, %v2367
    %v2369 = vpop.f32.mrb[0].mxu0
    %v2370 = vadd.f32 0.0, %v2369
    %2371 = vdwg.mxu0
    %2372 = vmatprep.subr.mxu0 %v2091
    %2373 = vmatpush1.msra.mxu0 %v2090
    %2374 = vmatprep.subr.mxu0 %v2099
    %2375 = vmatpush1.msra.mxu0 %v2098
    %2376 = vmatprep.subr.mxu0 %v2107
    %2377 = vmatpush1.msra.mxu0 %v2106
    %2378 = vmatprep.subr.mxu0 %v2115
    %2379 = vmatpush1.msra.mxu0 %v2114
    %2380 = vmatprep.subr.mxu0 %v2123
    %2381 = vmatpush1.msra.mxu0 %v2122
    %2382 = vmatprep.subr.mxu0 %v2131
    %2383 = vmatpush1.msra.mxu0 %v2130
    %2384 = vmatprep.subr.mxu0 %v2139
    %2385 = vmatpush1.msra.mxu0 %v2138
    %2386 = vmatprep.subr.mxu0 %v2147
    %2387 = vmatpush1.msra.mxu0 %v2146
    %2388 = vmatprep.subr.mxu0 %v2155
    %2389 = vmatpush1.msra.mxu0 %v2154
    %2390 = vmatprep.subr.mxu0 %v2163
    %2391 = vmatpush1.msra.mxu0 %v2162
    %2392 = vmatprep.subr.mxu0 %v2171
    %2393 = vmatpush1.msra.mxu0 %v2170
    %2394 = vmatprep.subr.mxu0 %v2179
    %2395 = vmatpush1.msra.mxu0 %v2178
    %2396 = vmatprep.subr.mxu0 %v2187
    %2397 = vmatpush1.msra.mxu0 %v2186
    %2398 = vmatprep.subr.mxu0 %v2195
    %2399 = vmatpush1.msra.mxu0 %v2194
    %2400 = vmatprep.subr.mxu0 %v2203
    %2401 = vmatpush1.msra.mxu0 %v2202
    %2402 = vmatprep.subr.mxu0 %v2211
    %2403 = vmatpush1.msra.mxu0 %v2210
    %2404 = vmatprep.subr.mxu0 0.0
    %2405 = vmatpush1.msra.mxu0 0.0
    %2406 = vmatprep.subr.mxu0 0.0
    %2407 = vmatpush1.msra.mxu0 0.0
    %2408 = vmatprep.subr.mxu0 0.0
    %2409 = vmatpush1.msra.mxu0 0.0
    %2410 = vmatprep.subr.mxu0 0.0
    %2411 = vmatpush1.msra.mxu0 0.0
    %2412 = vmatprep.subr.mxu0 0.0
    %2413 = vmatpush1.msra.mxu0 0.0
    %2414 = vmatprep.subr.mxu0 0.0
    %2415 = vmatpush1.msra.mxu0 0.0
    %2416 = vmatprep.subr.mxu0 0.0
    %2417 = vmatpush1.msra.mxu0 0.0
    %2418 = vmatprep.subr.mxu0 0.0
    %2419 = vmatpush1.msra.mxu0 0.0
    %2420 = vmatprep.subr.mxu0 0.0
    %2421 = vmatpush1.msra.mxu0 0.0
    %2422 = vmatprep.subr.mxu0 0.0
    %2423 = vmatpush1.msra.mxu0 0.0
    %2424 = vmatprep.subr.mxu0 0.0
    %2425 = vmatpush1.msra.mxu0 0.0
    %2426 = vmatprep.subr.mxu0 0.0
    %2427 = vmatpush1.msra.mxu0 0.0
    %2428 = vmatprep.subr.mxu0 0.0
    %2429 = vmatpush1.msra.mxu0 0.0
    %2430 = vmatprep.subr.mxu0 0.0
    %2431 = vmatpush1.msra.mxu0 0.0
    %2432 = vmatprep.subr.mxu0 0.0
    %2433 = vmatpush1.msra.mxu0 0.0
    %2434 = vmatprep.subr.mxu0 0.0
    %2435 = vmatpush1.msra.mxu0 0.0
    %2436 = vmatprep.mubr.f32.mxu0 0.0
    %2437 = vmatmul.mubr.f32.gmra.mrb[0].mxu0 %v1959
    %v2438 = vpop.f32.mrb[0].mxu0
    %v2439 = vadd.f32 0.0, %v2438
    %v2440 = vpop.f32.mrb[0].mxu0
    %v2441 = vadd.f32 0.0, %v2440
    %2442 = vmatprep.mubr.f32.mxu0 0.0
    %2443 = vmatmul.mubr.f32.gmra.mrb[0].mxu0 %v1960
    %v2444 = vpop.f32.mrb[0].mxu0
    %v2445 = vadd.f32 0.0, %v2444
    %v2446 = vpop.f32.mrb[0].mxu0
    %v2447 = vadd.f32 0.0, %v2446
    %2448 = vdwg.mxu0
    %2449 = vmatprep.subr.mxu0 %v2093
    %2450 = vmatpush1.msra.mxu0 %v2092
    %2451 = vmatprep.subr.mxu0 %v2101
    %2452 = vmatpush1.msra.mxu0 %v2100
    %2453 = vmatprep.subr.mxu0 %v2109
    %2454 = vmatpush1.msra.mxu0 %v2108
    %2455 = vmatprep.subr.mxu0 %v2117
    %2456 = vmatpush1.msra.mxu0 %v2116
    %2457 = vmatprep.subr.mxu0 %v2125
    %2458 = vmatpush1.msra.mxu0 %v2124
    %2459 = vmatprep.subr.mxu0 %v2133
    %2460 = vmatpush1.msra.mxu0 %v2132
    %2461 = vmatprep.subr.mxu0 %v2141
    %2462 = vmatpush1.msra.mxu0 %v2140
    %2463 = vmatprep.subr.mxu0 %v2149
    %2464 = vmatpush1.msra.mxu0 %v2148
    %2465 = vmatprep.subr.mxu0 %v2157
    %2466 = vmatpush1.msra.mxu0 %v2156
    %2467 = vmatprep.subr.mxu0 %v2165
    %2468 = vmatpush1.msra.mxu0 %v2164
    %2469 = vmatprep.subr.mxu0 %v2173
    %2470 = vmatpush1.msra.mxu0 %v2172
    %2471 = vmatprep.subr.mxu0 %v2181
    %2472 = vmatpush1.msra.mxu0 %v2180
    %2473 = vmatprep.subr.mxu0 %v2189
    %2474 = vmatpush1.msra.mxu0 %v2188
    %2475 = vmatprep.subr.mxu0 %v2197
    %2476 = vmatpush1.msra.mxu0 %v2196
    %2477 = vmatprep.subr.mxu0 %v2205
    %2478 = vmatpush1.msra.mxu0 %v2204
    %2479 = vmatprep.subr.mxu0 %v2213
    %2480 = vmatpush1.msra.mxu0 %v2212
    %2481 = vmatprep.subr.mxu0 0.0
    %2482 = vmatpush1.msra.mxu0 0.0
    %2483 = vmatprep.subr.mxu0 0.0
    %2484 = vmatpush1.msra.mxu0 0.0
    %2485 = vmatprep.subr.mxu0 0.0
    %2486 = vmatpush1.msra.mxu0 0.0
    %2487 = vmatprep.subr.mxu0 0.0
    %2488 = vmatpush1.msra.mxu0 0.0
    %2489 = vmatprep.subr.mxu0 0.0
    %2490 = vmatpush1.msra.mxu0 0.0
    %2491 = vmatprep.subr.mxu0 0.0
    %2492 = vmatpush1.msra.mxu0 0.0
    %2493 = vmatprep.subr.mxu0 0.0
    %2494 = vmatpush1.msra.mxu0 0.0
    %2495 = vmatprep.subr.mxu0 0.0
    %2496 = vmatpush1.msra.mxu0 0.0
    %2497 = vmatprep.subr.mxu0 0.0
    %2498 = vmatpush1.msra.mxu0 0.0
    %2499 = vmatprep.subr.mxu0 0.0
    %2500 = vmatpush1.msra.mxu0 0.0
    %2501 = vmatprep.subr.mxu0 0.0
    %2502 = vmatpush1.msra.mxu0 0.0
    %2503 = vmatprep.subr.mxu0 0.0
    %2504 = vmatpush1.msra.mxu0 0.0
    %2505 = vmatprep.subr.mxu0 0.0
    %2506 = vmatpush1.msra.mxu0 0.0
    %2507 = vmatprep.subr.mxu0 0.0
    %2508 = vmatpush1.msra.mxu0 0.0
    %2509 = vmatprep.subr.mxu0 0.0
    %2510 = vmatpush1.msra.mxu0 0.0
    %2511 = vmatprep.subr.mxu0 0.0
    %2512 = vmatpush1.msra.mxu0 0.0
    %2513 = vmatprep.mubr.f32.mxu0 0.0
    %2514 = vmatmul.mubr.f32.gmra.mrb[0].mxu0 %v1959
    %v2515 = vpop.f32.mrb[0].mxu0
    %v2516 = vadd.f32 0.0, %v2515
    %v2517 = vpop.f32.mrb[0].mxu0
    %v2518 = vadd.f32 0.0, %v2517
    %2519 = vmatprep.mubr.f32.mxu0 0.0
    %2520 = vmatmul.mubr.f32.gmra.mrb[0].mxu0 %v1960
    %v2521 = vpop.f32.mrb[0].mxu0
    %v2522 = vadd.f32 0.0, %v2521
    %v2523 = vpop.f32.mrb[0].mxu0
    %v2524 = vadd.f32 0.0, %v2523
    %2525 = vdwg.mxu0
    %2526 = vmatprep.subr.mxu0 %v2095
    %2527 = vmatpush1.msra.mxu0 %v2094
    %2528 = vmatprep.subr.mxu0 %v2103
    %2529 = vmatpush1.msra.mxu0 %v2102
    %2530 = vmatprep.subr.mxu0 %v2111
    %2531 = vmatpush1.msra.mxu0 %v2110
    %2532 = vmatprep.subr.mxu0 %v2119
    %2533 = vmatpush1.msra.mxu0 %v2118
    %2534 = vmatprep.subr.mxu0 %v2127
    %2535 = vmatpush1.msra.mxu0 %v2126
    %2536 = vmatprep.subr.mxu0 %v2135
    %2537 = vmatpush1.msra.mxu0 %v2134
    %2538 = vmatprep.subr.mxu0 %v2143
    %2539 = vmatpush1.msra.mxu0 %v2142
    %2540 = vmatprep.subr.mxu0 %v2151
    %2541 = vmatpush1.msra.mxu0 %v2150
    %2542 = vmatprep.subr.mxu0 %v2159
    %2543 = vmatpush1.msra.mxu0 %v2158
    %2544 = vmatprep.subr.mxu0 %v2167
    %2545 = vmatpush1.msra.mxu0 %v2166
    %2546 = vmatprep.subr.mxu0 %v2175
    %2547 = vmatpush1.msra.mxu0 %v2174
    %2548 = vmatprep.subr.mxu0 %v2183
    %2549 = vmatpush1.msra.mxu0 %v2182
    %2550 = vmatprep.subr.mxu0 %v2191
    %2551 = vmatpush1.msra.mxu0 %v2190
    %2552 = vmatprep.subr.mxu0 %v2199
    %2553 = vmatpush1.msra.mxu0 %v2198
    %2554 = vmatprep.subr.mxu0 %v2207
    %2555 = vmatpush1.msra.mxu0 %v2206
    %2556 = vmatprep.subr.mxu0 %v2215
    %2557 = vmatpush1.msra.mxu0 %v2214
    %2558 = vmatprep.subr.mxu0 0.0
    %2559 = vmatpush1.msra.mxu0 0.0
    %2560 = vmatprep.subr.mxu0 0.0
    %2561 = vmatpush1.msra.mxu0 0.0
    %2562 = vmatprep.subr.mxu0 0.0
    %2563 = vmatpush1.msra.mxu0 0.0
    %2564 = vmatprep.subr.mxu0 0.0
    %2565 = vmatpush1.msra.mxu0 0.0
    %2566 = vmatprep.subr.mxu0 0.0
    %2567 = vmatpush1.msra.mxu0 0.0
    %2568 = vmatprep.subr.mxu0 0.0
    %2569 = vmatpush1.msra.mxu0 0.0
    %2570 = vmatprep.subr.mxu0 0.0
    %2571 = vmatpush1.msra.mxu0 0.0
    %2572 = vmatprep.subr.mxu0 0.0
    %2573 = vmatpush1.msra.mxu0 0.0
    %2574 = vmatprep.subr.mxu0 0.0
    %2575 = vmatpush1.msra.mxu0 0.0
    %2576 = vmatprep.subr.mxu0 0.0
    %2577 = vmatpush1.msra.mxu0 0.0
    %2578 = vmatprep.subr.mxu0 0.0
    %2579 = vmatpush1.msra.mxu0 0.0
    %2580 = vmatprep.subr.mxu0 0.0
    %2581 = vmatpush1.msra.mxu0 0.0
    %2582 = vmatprep.subr.mxu0 0.0
    %2583 = vmatpush1.msra.mxu0 0.0
    %2584 = vmatprep.subr.mxu0 0.0
    %2585 = vmatpush1.msra.mxu0 0.0
    %2586 = vmatprep.subr.mxu0 0.0
    %2587 = vmatpush1.msra.mxu0 0.0
    %2588 = vmatprep.subr.mxu0 0.0
    %2589 = vmatpush1.msra.mxu0 0.0
    %2590 = vmatprep.mubr.f32.mxu0 0.0
    %2591 = vmatmul.mubr.f32.gmra.mrb[0].mxu0 %v1959
    %v2592 = vpop.f32.mrb[0].mxu0
    %v2593 = vadd.f32 0.0, %v2592
    %v2594 = vpop.f32.mrb[0].mxu0
    %v2595 = vadd.f32 0.0, %v2594
    %2596 = vmatprep.mubr.f32.mxu0 0.0
    %2597 = vmatmul.mubr.f32.gmra.mrb[0].mxu0 %v1960
    %v2598 = vpop.f32.mrb[0].mxu0
    %v2599 = vadd.f32 0.0, %v2598
    %v2600 = vpop.f32.mrb[0].mxu0
    %v2601 = vadd.f32 0.0, %v2600
    %2602 = vdwg.mxu0
    %2603 = vmatprep.subr.mxu0 %v2097
    %2604 = vmatpush1.msra.mxu0 %v2096
    %2605 = vmatprep.subr.mxu0 %v2105
    %2606 = vmatpush1.msra.mxu0 %v2104
    %2607 = vmatprep.subr.mxu0 %v2113
    %2608 = vmatpush1.msra.mxu0 %v2112
    %2609 = vmatprep.subr.mxu0 %v2121
    %2610 = vmatpush1.msra.mxu0 %v2120
    %2611 = vmatprep.subr.mxu0 %v2129
    %2612 = vmatpush1.msra.mxu0 %v2128
    %2613 = vmatprep.subr.mxu0 %v2137
    %2614 = vmatpush1.msra.mxu0 %v2136
    %2615 = vmatprep.subr.mxu0 %v2145
    %2616 = vmatpush1.msra.mxu0 %v2144
    %2617 = vmatprep.subr.mxu0 %v2153
    %2618 = vmatpush1.msra.mxu0 %v2152
    %2619 = vmatprep.subr.mxu0 %v2161
    %2620 = vmatpush1.msra.mxu0 %v2160
    %2621 = vmatprep.subr.mxu0 %v2169
    %2622 = vmatpush1.msra.mxu0 %v2168
    %2623 = vmatprep.subr.mxu0 %v2177
    %2624 = vmatpush1.msra.mxu0 %v2176
    %2625 = vmatprep.subr.mxu0 %v2185
    %2626 = vmatpush1.msra.mxu0 %v2184
    %2627 = vmatprep.subr.mxu0 %v2193
    %2628 = vmatpush1.msra.mxu0 %v2192
    %2629 = vmatprep.subr.mxu0 %v2201
    %2630 = vmatpush1.msra.mxu0 %v2200
    %2631 = vmatprep.subr.mxu0 %v2209
    %2632 = vmatpush1.msra.mxu0 %v2208
    %2633 = vmatprep.subr.mxu0 %v2217
    %2634 = vmatpush1.msra.mxu0 %v2216
    %2635 = vmatprep.subr.mxu0 0.0
    %2636 = vmatpush1.msra.mxu0 0.0
    %2637 = vmatprep.subr.mxu0 0.0
    %2638 = vmatpush1.msra.mxu0 0.0
    %2639 = vmatprep.subr.mxu0 0.0
    %2640 = vmatpush1.msra.mxu0 0.0
    %2641 = vmatprep.subr.mxu0 0.0
    %2642 = vmatpush1.msra.mxu0 0.0
    %2643 = vmatprep.subr.mxu0 0.0
    %2644 = vmatpush1.msra.mxu0 0.0
    %2645 = vmatprep.subr.mxu0 0.0
    %2646 = vmatpush1.msra.mxu0 0.0
    %2647 = vmatprep.subr.mxu0 0.0
    %2648 = vmatpush1.msra.mxu0 0.0
    %2649 = vmatprep.subr.mxu0 0.0
    %2650 = vmatpush1.msra.mxu0 0.0
    %2651 = vmatprep.subr.mxu0 0.0
    %2652 = vmatpush1.msra.mxu0 0.0
    %2653 = vmatprep.subr.mxu0 0.0
    %2654 = vmatpush1.msra.mxu0 0.0
    %2655 = vmatprep.subr.mxu0 0.0
    %2656 = vmatpush1.msra.mxu0 0.0
    %2657 = vmatprep.subr.mxu0 0.0
    %2658 = vmatpush1.msra.mxu0 0.0
    %2659 = vmatprep.subr.mxu0 0.0
    %2660 = vmatpush1.msra.mxu0 0.0
    %2661 = vmatprep.subr.mxu0 0.0
    %2662 = vmatpush1.msra.mxu0 0.0
    %2663 = vmatprep.subr.mxu0 0.0
    %2664 = vmatpush1.msra.mxu0 0.0
    %2665 = vmatprep.subr.mxu0 0.0
    %2666 = vmatpush1.msra.mxu0 0.0
    %2667 = vmatprep.mubr.f32.mxu0 0.0
    %2668 = vmatmul.mubr.f32.gmra.mrb[0].mxu0 %v1959
    %v2669 = vpop.f32.mrb[0].mxu0
    %v2670 = vadd.f32 0.0, %v2669
    %v2671 = vpop.f32.mrb[0].mxu0
    %v2672 = vadd.f32 0.0, %v2671
    %2673 = vmatprep.mubr.f32.mxu0 0.0
    %2674 = vmatmul.mubr.f32.gmra.mrb[0].mxu0 %v1960
    %v2675 = vpop.f32.mrb[0].mxu0
    %v2676 = vadd.f32 0.0, %v2675
    %v2677 = vpop.f32.mrb[0].mxu0
    %v2678 = vadd.f32 0.0, %v2677
    %2679 = vdwg.mxu0
    %2680 = vmatprep.subr.mxu0 0.0
    %2681 = vmatpush1.xpose.msra.mxu0 %v2439
    %2682 = vmatprep.subr.mxu0 0.0
    %2683 = vmatpush1.xpose.msra.mxu0 %v2445
    %2684 = vmatprep.subr.mxu0 0.0
    %2685 = vmatpush1.xpose.msra.mxu0 0.0
    %2686 = vmatprep.subr.mxu0 0.0
    %2687 = vmatpush1.xpose.msra.mxu0 0.0
    %2688 = vmatprep.subr.mxu0 0.0
    %2689 = vmatpush1.xpose.msra.mxu0 0.0
    %2690 = vmatprep.subr.mxu0 0.0
    %2691 = vmatpush1.xpose.msra.mxu0 0.0
    %2692 = vmatprep.subr.mxu0 0.0
    %2693 = vmatpush1.xpose.msra.mxu0 0.0
    %2694 = vmatprep.subr.mxu0 0.0
    %2695 = vmatpush1.xpose.msra.mxu0 0.0
    %2696 = vmatprep.subr.mxu0 0.0
    %2697 = vmatpush1.xpose.msra.mxu0 0.0
    %2698 = vmatprep.subr.mxu0 0.0
    %2699 = vmatpush1.xpose.msra.mxu0 0.0
    %2700 = vmatprep.subr.mxu0 0.0
    %2701 = vmatpush1.xpose.msra.mxu0 0.0
    %2702 = vmatprep.subr.mxu0 0.0
    %2703 = vmatpush1.xpose.msra.mxu0 0.0
    %2704 = vmatprep.subr.mxu0 0.0
    %2705 = vmatpush1.xpose.msra.mxu0 0.0
    %2706 = vmatprep.subr.mxu0 0.0
    %2707 = vmatpush1.xpose.msra.mxu0 0.0
    %2708 = vmatprep.subr.mxu0 0.0
    %2709 = vmatpush1.xpose.msra.mxu0 0.0
    %2710 = vmatprep.subr.mxu0 0.0
    %2711 = vmatpush1.xpose.msra.mxu0 0.0
    %2712 = vmatprep.subr.mxu0 0.0
    %2713 = vmatpush1.xpose.msra.mxu0 0.0
    %2714 = vmatprep.subr.mxu0 0.0
    %2715 = vmatpush1.xpose.msra.mxu0 0.0
    %2716 = vmatprep.subr.mxu0 0.0
    %2717 = vmatpush1.xpose.msra.mxu0 0.0
    %2718 = vmatprep.subr.mxu0 0.0
    %2719 = vmatpush1.xpose.msra.mxu0 0.0
    %2720 = vmatprep.subr.mxu0 0.0
    %2721 = vmatpush1.xpose.msra.mxu0 0.0
    %2722 = vmatprep.subr.mxu0 0.0
    %2723 = vmatpush1.xpose.msra.mxu0 0.0
    %2724 = vmatprep.subr.mxu0 0.0
    %2725 = vmatpush1.xpose.msra.mxu0 0.0
    %2726 = vmatprep.subr.mxu0 0.0
    %2727 = vmatpush1.xpose.msra.mxu0 0.0
    %2728 = vmatprep.subr.mxu0 0.0
    %2729 = vmatpush1.xpose.msra.mxu0 0.0
    %2730 = vmatprep.subr.mxu0 0.0
    %2731 = vmatpush1.xpose.msra.mxu0 0.0
    %2732 = vmatprep.subr.mxu0 0.0
    %2733 = vmatpush1.xpose.msra.mxu0 0.0
    %2734 = vmatprep.subr.mxu0 0.0
    %2735 = vmatpush1.xpose.msra.mxu0 0.0
    %2736 = vmatprep.subr.mxu0 0.0
    %2737 = vmatpush1.xpose.msra.mxu0 0.0
    %2738 = vmatprep.subr.mxu0 0.0
    %2739 = vmatpush1.xpose.msra.mxu0 0.0
    %2740 = vmatprep.subr.mxu0 0.0
    %2741 = vmatpush1.xpose.msra.mxu0 0.0
    %2742 = vmatprep.subr.mxu0 0.0
    %2743 = vmatpush1.xpose.msra.mxu0 0.0
    %2744 = vmatprep.mubr.f32.mxu0 0.0
    %2745 = vmatmul.mubr.f32.gmra.mrb[0].mxu0 %v2285
    %v2746 = vpop.f32.mrb[0].mxu0
    %v2747 = vadd.f32 0.0, %v2746
    %v2748 = vpop.f32.mrb[0].mxu0
    %2749 = vmatprep.mubr.f32.mxu0 0.0
    %2750 = vmatmul.mubr.f32.gmra.mrb[0].mxu0 %v2291
    %v2751 = vpop.f32.mrb[0].mxu0
    %v2752 = vadd.f32 0.0, %v2751
    %v2753 = vpop.f32.mrb[0].mxu0
    %2754 = vdwg.mxu0
    %v2755 = vsel %vm63, %v2747, -1e+10
    %v2756 = vsel %vm64, %v2752, -1e+10
    %v2757 = vmul.f32 %v2755, 0.35355338
    %v2758 = vmul.f32 %v2756, 0.35355338
    %v2759 = vsel %vm865, %v2757, -inf
    %2760 = vmax.xlane.f32.xlu0 %v2759
    %v2761 = vpop.xlane.xlu0 %2760
    %v2762 = vsel %vm865, %v2758, -inf
    %2763 = vmax.xlane.f32.xlu0 %v2762
    %v2764 = vpop.xlane.xlu0 %2763
    %v2765 = vsub.f32 %v2757, %v2761
    %v2766 = vsub.f32 %v2758, %v2764
    %v2767 = vmul.f32 %v2765, 1.442695
    %v2768 = vpow.pop %v2767
    %v2769 = vmul.f32 %v2766, 1.442695
    %v2770 = vpow.pop %v2769
    %v2771 = vsel %vm865, %v2768, 0.0
    %2772 = vadd.xlane.f32.xlu0 %v2771
    %v2773 = vpop.xlane.xlu0 %2772
    %v2774 = vsel %vm865, %v2770, 0.0
    %2775 = vadd.xlane.f32.xlu0 %v2774
    %v2776 = vpop.xlane.xlu0 %2775
    %v2777 = vrcp.pop %v2773
    %v2778 = vmul.f32 %v2768, %v2777
    %v2779 = vrcp.pop %v2776
    %v2780 = vmul.f32 %v2770, %v2779
    %v2782 = vsel %vm865, %v2778, 0
    %v2785 = vsel %vm865, %v2780, 0
    %2787 = vmatprep.subr.mxu0 0.0
    %2788 = vmatpush1.msra.mxu0 %v2593
    %2789 = vmatprep.subr.mxu0 0.0
    %2790 = vmatpush1.msra.mxu0 %v2599
    %2791 = vmatprep.subr.mxu0 0.0
    %2792 = vmatpush1.msra.mxu0 0.0
    %2793 = vmatprep.subr.mxu0 0.0
    %2794 = vmatpush1.msra.mxu0 0.0
    %2795 = vmatprep.subr.mxu0 0.0
    %2796 = vmatpush1.msra.mxu0 0.0
    %2797 = vmatprep.subr.mxu0 0.0
    %2798 = vmatpush1.msra.mxu0 0.0
    %2799 = vmatprep.subr.mxu0 0.0
    %2800 = vmatpush1.msra.mxu0 0.0
    %2801 = vmatprep.subr.mxu0 0.0
    %2802 = vmatpush1.msra.mxu0 0.0
    %2803 = vmatprep.subr.mxu0 0.0
    %2804 = vmatpush1.msra.mxu0 0.0
    %2805 = vmatprep.subr.mxu0 0.0
    %2806 = vmatpush1.msra.mxu0 0.0
    %2807 = vmatprep.subr.mxu0 0.0
    %2808 = vmatpush1.msra.mxu0 0.0
    %2809 = vmatprep.subr.mxu0 0.0
    %2810 = vmatpush1.msra.mxu0 0.0
    %2811 = vmatprep.subr.mxu0 0.0
    %2812 = vmatpush1.msra.mxu0 0.0
    %2813 = vmatprep.subr.mxu0 0.0
    %2814 = vmatpush1.msra.mxu0 0.0
    %2815 = vmatprep.subr.mxu0 0.0
    %2816 = vmatpush1.msra.mxu0 0.0
    %2817 = vmatprep.subr.mxu0 0.0
    %2818 = vmatpush1.msra.mxu0 0.0
    %2819 = vmatprep.subr.mxu0 0.0
    %2820 = vmatpush1.msra.mxu0 0.0
    %2821 = vmatprep.subr.mxu0 0.0
    %2822 = vmatpush1.msra.mxu0 0.0
    %2823 = vmatprep.subr.mxu0 0.0
    %2824 = vmatpush1.msra.mxu0 0.0
    %2825 = vmatprep.subr.mxu0 0.0
    %2826 = vmatpush1.msra.mxu0 0.0
    %2827 = vmatprep.subr.mxu0 0.0
    %2828 = vmatpush1.msra.mxu0 0.0
    %2829 = vmatprep.subr.mxu0 0.0
    %2830 = vmatpush1.msra.mxu0 0.0
    %2831 = vmatprep.subr.mxu0 0.0
    %2832 = vmatpush1.msra.mxu0 0.0
    %2833 = vmatprep.subr.mxu0 0.0
    %2834 = vmatpush1.msra.mxu0 0.0
    %2835 = vmatprep.subr.mxu0 0.0
    %2836 = vmatpush1.msra.mxu0 0.0
    %2837 = vmatprep.subr.mxu0 0.0
    %2838 = vmatpush1.msra.mxu0 0.0
    %2839 = vmatprep.subr.mxu0 0.0
    %2840 = vmatpush1.msra.mxu0 0.0
    %2841 = vmatprep.subr.mxu0 0.0
    %2842 = vmatpush1.msra.mxu0 0.0
    %2843 = vmatprep.subr.mxu0 0.0
    %2844 = vmatpush1.msra.mxu0 0.0
    %2845 = vmatprep.subr.mxu0 0.0
    %2846 = vmatpush1.msra.mxu0 0.0
    %2847 = vmatprep.subr.mxu0 0.0
    %2848 = vmatpush1.msra.mxu0 0.0
    %2849 = vmatprep.subr.mxu0 0.0
    %2850 = vmatpush1.msra.mxu0 0.0
    %2851 = vmatprep.mubr.f32.mxu0 0.0
    %2852 = vmatmul.mubr.f32.gmra.mrb[0].mxu0 %v2782
    %v2853 = vpop.f32.mrb[0].mxu0
    %v2854 = vadd.f32 0.0, %v2853
    %v2855 = vpop.f32.mrb[0].mxu0
    %2856 = vmatprep.mubr.f32.mxu0 0.0
    %2857 = vmatmul.mubr.f32.gmra.mrb[0].mxu0 %v2785
    %v2858 = vpop.f32.mrb[0].mxu0
    %v2859 = vadd.f32 0.0, %v2858
    %v2860 = vpop.f32.mrb[0].mxu0
    %2861 = vdwg.mxu0
    %2862 = vmatprep.subr.mxu0 0.0
    %2863 = vmatpush1.xpose.msra.mxu0 %v2441
    %2864 = vmatprep.subr.mxu0 0.0
    %2865 = vmatpush1.xpose.msra.mxu0 %v2447
    %2866 = vmatprep.subr.mxu0 0.0
    %2867 = vmatpush1.xpose.msra.mxu0 0.0
    %2868 = vmatprep.subr.mxu0 0.0
    %2869 = vmatpush1.xpose.msra.mxu0 0.0
    %2870 = vmatprep.subr.mxu0 0.0
    %2871 = vmatpush1.xpose.msra.mxu0 0.0
    %2872 = vmatprep.subr.mxu0 0.0
    %2873 = vmatpush1.xpose.msra.mxu0 0.0
    %2874 = vmatprep.subr.mxu0 0.0
    %2875 = vmatpush1.xpose.msra.mxu0 0.0
    %2876 = vmatprep.subr.mxu0 0.0
    %2877 = vmatpush1.xpose.msra.mxu0 0.0
    %2878 = vmatprep.subr.mxu0 0.0
    %2879 = vmatpush1.xpose.msra.mxu0 0.0
    %2880 = vmatprep.subr.mxu0 0.0
    %2881 = vmatpush1.xpose.msra.mxu0 0.0
    %2882 = vmatprep.subr.mxu0 0.0
    %2883 = vmatpush1.xpose.msra.mxu0 0.0
    %2884 = vmatprep.subr.mxu0 0.0
    %2885 = vmatpush1.xpose.msra.mxu0 0.0
    %2886 = vmatprep.subr.mxu0 0.0
    %2887 = vmatpush1.xpose.msra.mxu0 0.0
    %2888 = vmatprep.subr.mxu0 0.0
    %2889 = vmatpush1.xpose.msra.mxu0 0.0
    %2890 = vmatprep.subr.mxu0 0.0
    %2891 = vmatpush1.xpose.msra.mxu0 0.0
    %2892 = vmatprep.subr.mxu0 0.0
    %2893 = vmatpush1.xpose.msra.mxu0 0.0
    %2894 = vmatprep.subr.mxu0 0.0
    %2895 = vmatpush1.xpose.msra.mxu0 0.0
    %2896 = vmatprep.subr.mxu0 0.0
    %2897 = vmatpush1.xpose.msra.mxu0 0.0
    %2898 = vmatprep.subr.mxu0 0.0
    %2899 = vmatpush1.xpose.msra.mxu0 0.0
    %2900 = vmatprep.subr.mxu0 0.0
    %2901 = vmatpush1.xpose.msra.mxu0 0.0
    %2902 = vmatprep.subr.mxu0 0.0
    %2903 = vmatpush1.xpose.msra.mxu0 0.0
    %2904 = vmatprep.subr.mxu0 0.0
    %2905 = vmatpush1.xpose.msra.mxu0 0.0
    %2906 = vmatprep.subr.mxu0 0.0
    %2907 = vmatpush1.xpose.msra.mxu0 0.0
    %2908 = vmatprep.subr.mxu0 0.0
    %2909 = vmatpush1.xpose.msra.mxu0 0.0
    %2910 = vmatprep.subr.mxu0 0.0
    %2911 = vmatpush1.xpose.msra.mxu0 0.0
    %2912 = vmatprep.subr.mxu0 0.0
    %2913 = vmatpush1.xpose.msra.mxu0 0.0
    %2914 = vmatprep.subr.mxu0 0.0
    %2915 = vmatpush1.xpose.msra.mxu0 0.0
    %2916 = vmatprep.subr.mxu0 0.0
    %2917 = vmatpush1.xpose.msra.mxu0 0.0
    %2918 = vmatprep.subr.mxu0 0.0
    %2919 = vmatpush1.xpose.msra.mxu0 0.0
    %2920 = vmatprep.subr.mxu0 0.0
    %2921 = vmatpush1.xpose.msra.mxu0 0.0
    %2922 = vmatprep.subr.mxu0 0.0
    %2923 = vmatpush1.xpose.msra.mxu0 0.0
    %2924 = vmatprep.subr.mxu0 0.0
    %2925 = vmatpush1.xpose.msra.mxu0 0.0
    %2926 = vmatprep.mubr.f32.mxu0 0.0
    %2927 = vmatmul.mubr.f32.gmra.mrb[0].mxu0 %v2287
    %v2928 = vpop.f32.mrb[0].mxu0
    %v2929 = vadd.f32 0.0, %v2928
    %v2930 = vpop.f32.mrb[0].mxu0
    %2931 = vmatprep.mubr.f32.mxu0 0.0
    %2932 = vmatmul.mubr.f32.gmra.mrb[0].mxu0 %v2293
    %v2933 = vpop.f32.mrb[0].mxu0
    %v2934 = vadd.f32 0.0, %v2933
    %v2935 = vpop.f32.mrb[0].mxu0
    %2936 = vdwg.mxu0
    %v2937 = vsel %vm63, %v2929, -1e+10
    %v2938 = vsel %vm64, %v2934, -1e+10
    %v2939 = vmul.f32 %v2937, 0.35355338
    %v2940 = vmul.f32 %v2938, 0.35355338
    %v2941 = vsel %vm865, %v2939, -inf
    %2942 = vmax.xlane.f32.xlu0 %v2941
    %v2943 = vpop.xlane.xlu0 %2942
    %v2944 = vsel %vm865, %v2940, -inf
    %2945 = vmax.xlane.f32.xlu0 %v2944
    %v2946 = vpop.xlane.xlu0 %2945
    %v2947 = vsub.f32 %v2939, %v2943
    %v2948 = vsub.f32 %v2940, %v2946
    %v2949 = vmul.f32 %v2947, 1.442695
    %v2950 = vpow.pop %v2949
    %v2951 = vmul.f32 %v2948, 1.442695
    %v2952 = vpow.pop %v2951
    %v2953 = vsel %vm865, %v2950, 0.0
    %2954 = vadd.xlane.f32.xlu0 %v2953
    %v2955 = vpop.xlane.xlu0 %2954
    %v2956 = vsel %vm865, %v2952, 0.0
    %2957 = vadd.xlane.f32.xlu0 %v2956
    %v2958 = vpop.xlane.xlu0 %2957
    %v2959 = vrcp.pop %v2955
    %v2960 = vmul.f32 %v2950, %v2959
    %v2961 = vrcp.pop %v2958
    %v2962 = vmul.f32 %v2952, %v2961
    %v2964 = vsel %vm865, %v2960, 0
    %v2967 = vsel %vm865, %v2962, 0
    %2969 = vmatprep.subr.mxu0 0.0
    %2970 = vmatpush1.msra.mxu0 %v2595
    %2971 = vmatprep.subr.mxu0 0.0
    %2972 = vmatpush1.msra.mxu0 %v2601
    %2973 = vmatprep.subr.mxu0 0.0
    %2974 = vmatpush1.msra.mxu0 0.0
    %2975 = vmatprep.subr.mxu0 0.0
    %2976 = vmatpush1.msra.mxu0 0.0
    %2977 = vmatprep.subr.mxu0 0.0
    %2978 = vmatpush1.msra.mxu0 0.0
    %2979 = vmatprep.subr.mxu0 0.0
    %2980 = vmatpush1.msra.mxu0 0.0
    %2981 = vmatprep.subr.mxu0 0.0
    %2982 = vmatpush1.msra.mxu0 0.0
    %2983 = vmatprep.subr.mxu0 0.0
    %2984 = vmatpush1.msra.mxu0 0.0
    %2985 = vmatprep.subr.mxu0 0.0
    %2986 = vmatpush1.msra.mxu0 0.0
    %2987 = vmatprep.subr.mxu0 0.0
    %2988 = vmatpush1.msra.mxu0 0.0
    %2989 = vmatprep.subr.mxu0 0.0
    %2990 = vmatpush1.msra.mxu0 0.0
    %2991 = vmatprep.subr.mxu0 0.0
    %2992 = vmatpush1.msra.mxu0 0.0
    %2993 = vmatprep.subr.mxu0 0.0
    %2994 = vmatpush1.msra.mxu0 0.0
    %2995 = vmatprep.subr.mxu0 0.0
    %2996 = vmatpush1.msra.mxu0 0.0
    %2997 = vmatprep.subr.mxu0 0.0
    %2998 = vmatpush1.msra.mxu0 0.0
    %2999 = vmatprep.subr.mxu0 0.0
    %3000 = vmatpush1.msra.mxu0 0.0
    %3001 = vmatprep.subr.mxu0 0.0
    %3002 = vmatpush1.msra.mxu0 0.0
    %3003 = vmatprep.subr.mxu0 0.0
    %3004 = vmatpush1.msra.mxu0 0.0
    %3005 = vmatprep.subr.mxu0 0.0
    %3006 = vmatpush1.msra.mxu0 0.0
    %3007 = vmatprep.subr.mxu0 0.0
    %3008 = vmatpush1.msra.mxu0 0.0
    %3009 = vmatprep.subr.mxu0 0.0
    %3010 = vmatpush1.msra.mxu0 0.0
    %3011 = vmatprep.subr.mxu0 0.0
    %3012 = vmatpush1.msra.mxu0 0.0
    %3013 = vmatprep.subr.mxu0 0.0
    %3014 = vmatpush1.msra.mxu0 0.0
    %3015 = vmatprep.subr.mxu0 0.0
    %3016 = vmatpush1.msra.mxu0 0.0
    %3017 = vmatprep.subr.mxu0 0.0
    %3018 = vmatpush1.msra.mxu0 0.0
    %3019 = vmatprep.subr.mxu0 0.0
    %3020 = vmatpush1.msra.mxu0 0.0
    %3021 = vmatprep.subr.mxu0 0.0
    %3022 = vmatpush1.msra.mxu0 0.0
    %3023 = vmatprep.subr.mxu0 0.0
    %3024 = vmatpush1.msra.mxu0 0.0
    %3025 = vmatprep.subr.mxu0 0.0
    %3026 = vmatpush1.msra.mxu0 0.0
    %3027 = vmatprep.subr.mxu0 0.0
    %3028 = vmatpush1.msra.mxu0 0.0
    %3029 = vmatprep.subr.mxu0 0.0
    %3030 = vmatpush1.msra.mxu0 0.0
    %3031 = vmatprep.subr.mxu0 0.0
    %3032 = vmatpush1.msra.mxu0 0.0
    %3033 = vmatprep.mubr.f32.mxu0 0.0
    %3034 = vmatmul.mubr.f32.gmra.mrb[0].mxu0 %v2964
    %v3035 = vpop.f32.mrb[0].mxu0
    %v3036 = vadd.f32 0.0, %v3035
    %v3037 = vpop.f32.mrb[0].mxu0
    %3038 = vmatprep.mubr.f32.mxu0 0.0
    %3039 = vmatmul.mubr.f32.gmra.mrb[0].mxu0 %v2967
    %v3040 = vpop.f32.mrb[0].mxu0
    %v3041 = vadd.f32 0.0, %v3040
    %v3042 = vpop.f32.mrb[0].mxu0
    %3043 = vdwg.mxu0
    %3044 = vmatprep.subr.mxu0 0.0
    %3045 = vmatpush1.xpose.msra.mxu0 %v2516
    %3046 = vmatprep.subr.mxu0 0.0
    %3047 = vmatpush1.xpose.msra.mxu0 %v2522
    %3048 = vmatprep.subr.mxu0 0.0
    %3049 = vmatpush1.xpose.msra.mxu0 0.0
    %3050 = vmatprep.subr.mxu0 0.0
    %3051 = vmatpush1.xpose.msra.mxu0 0.0
    %3052 = vmatprep.subr.mxu0 0.0
    %3053 = vmatpush1.xpose.msra.mxu0 0.0
    %3054 = vmatprep.subr.mxu0 0.0
    %3055 = vmatpush1.xpose.msra.mxu0 0.0
    %3056 = vmatprep.subr.mxu0 0.0
    %3057 = vmatpush1.xpose.msra.mxu0 0.0
    %3058 = vmatprep.subr.mxu0 0.0
    %3059 = vmatpush1.xpose.msra.mxu0 0.0
    %3060 = vmatprep.subr.mxu0 0.0
    %3061 = vmatpush1.xpose.msra.mxu0 0.0
    %3062 = vmatprep.subr.mxu0 0.0
    %3063 = vmatpush1.xpose.msra.mxu0 0.0
    %3064 = vmatprep.subr.mxu0 0.0
    %3065 = vmatpush1.xpose.msra.mxu0 0.0
    %3066 = vmatprep.subr.mxu0 0.0
    %3067 = vmatpush1.xpose.msra.mxu0 0.0
    %3068 = vmatprep.subr.mxu0 0.0
    %3069 = vmatpush1.xpose.msra.mxu0 0.0
    %3070 = vmatprep.subr.mxu0 0.0
    %3071 = vmatpush1.xpose.msra.mxu0 0.0
    %3072 = vmatprep.subr.mxu0 0.0
    %3073 = vmatpush1.xpose.msra.mxu0 0.0
    %3074 = vmatprep.subr.mxu0 0.0
    %3075 = vmatpush1.xpose.msra.mxu0 0.0
    %3076 = vmatprep.subr.mxu0 0.0
    %3077 = vmatpush1.xpose.msra.mxu0 0.0
    %3078 = vmatprep.subr.mxu0 0.0
    %3079 = vmatpush1.xpose.msra.mxu0 0.0
    %3080 = vmatprep.subr.mxu0 0.0
    %3081 = vmatpush1.xpose.msra.mxu0 0.0
    %3082 = vmatprep.subr.mxu0 0.0
    %3083 = vmatpush1.xpose.msra.mxu0 0.0
    %3084 = vmatprep.subr.mxu0 0.0
    %3085 = vmatpush1.xpose.msra.mxu0 0.0
    %3086 = vmatprep.subr.mxu0 0.0
    %3087 = vmatpush1.xpose.msra.mxu0 0.0
    %3088 = vmatprep.subr.mxu0 0.0
    %3089 = vmatpush1.xpose.msra.mxu0 0.0
    %3090 = vmatprep.subr.mxu0 0.0
    %3091 = vmatpush1.xpose.msra.mxu0 0.0
    %3092 = vmatprep.subr.mxu0 0.0
    %3093 = vmatpush1.xpose.msra.mxu0 0.0
    %3094 = vmatprep.subr.mxu0 0.0
    %3095 = vmatpush1.xpose.msra.mxu0 0.0
    %3096 = vmatprep.subr.mxu0 0.0
    %3097 = vmatpush1.xpose.msra.mxu0 0.0
    %3098 = vmatprep.subr.mxu0 0.0
    %3099 = vmatpush1.xpose.msra.mxu0 0.0
    %3100 = vmatprep.subr.mxu0 0.0
    %3101 = vmatpush1.xpose.msra.mxu0 0.0
    %3102 = vmatprep.subr.mxu0 0.0
    %3103 = vmatpush1.xpose.msra.mxu0 0.0
    %3104 = vmatprep.subr.mxu0 0.0
    %3105 = vmatpush1.xpose.msra.mxu0 0.0
    %3106 = vmatprep.subr.mxu0 0.0
    %3107 = vmatpush1.xpose.msra.mxu0 0.0
    %3108 = vmatprep.mubr.f32.mxu0 0.0
    %3109 = vmatmul.mubr.f32.gmra.mrb[0].mxu0 %v2362
    %v3110 = vpop.f32.mrb[0].mxu0
    %v3111 = vadd.f32 0.0, %v3110
    %v3112 = vpop.f32.mrb[0].mxu0
    %3113 = vmatprep.mubr.f32.mxu0 0.0
    %3114 = vmatmul.mubr.f32.gmra.mrb[0].mxu0 %v2368
    %v3115 = vpop.f32.mrb[0].mxu0
    %v3116 = vadd.f32 0.0, %v3115
    %v3117 = vpop.f32.mrb[0].mxu0
    %3118 = vdwg.mxu0
    %v3119 = vsel %vm63, %v3111, -1e+10
    %v3120 = vsel %vm64, %v3116, -1e+10
    %v3121 = vmul.f32 %v3119, 0.35355338
    %v3122 = vmul.f32 %v3120, 0.35355338
    %v3123 = vsel %vm865, %v3121, -inf
    %3124 = vmax.xlane.f32.xlu0 %v3123
    %v3125 = vpop.xlane.xlu0 %3124
    %v3126 = vsel %vm865, %v3122, -inf
    %3127 = vmax.xlane.f32.xlu0 %v3126
    %v3128 = vpop.xlane.xlu0 %3127
    %v3129 = vsub.f32 %v3121, %v3125
    %v3130 = vsub.f32 %v3122, %v3128
    %v3131 = vmul.f32 %v3129, 1.442695
    %v3132 = vpow.pop %v3131
    %v3133 = vmul.f32 %v3130, 1.442695
    %v3134 = vpow.pop %v3133
    %v3135 = vsel %vm865, %v3132, 0.0
    %3136 = vadd.xlane.f32.xlu0 %v3135
    %v3137 = vpop.xlane.xlu0 %3136
    %v3138 = vsel %vm865, %v3134, 0.0
    %3139 = vadd.xlane.f32.xlu0 %v3138
    %v3140 = vpop.xlane.xlu0 %3139
    %v3141 = vrcp.pop %v3137
    %v3142 = vmul.f32 %v3132, %v3141
    %v3143 = vrcp.pop %v3140
    %v3144 = vmul.f32 %v3134, %v3143
    %v3146 = vsel %vm865, %v3142, 0
    %v3149 = vsel %vm865, %v3144, 0
    %3151 = vmatprep.subr.mxu0 0.0
    %3152 = vmatpush1.msra.mxu0 %v2670
    %3153 = vmatprep.subr.mxu0 0.0
    %3154 = vmatpush1.msra.mxu0 %v2676
    %3155 = vmatprep.subr.mxu0 0.0
    %3156 = vmatpush1.msra.mxu0 0.0
    %3157 = vmatprep.subr.mxu0 0.0
    %3158 = vmatpush1.msra.mxu0 0.0
    %3159 = vmatprep.subr.mxu0 0.0
    %3160 = vmatpush1.msra.mxu0 0.0
    %3161 = vmatprep.subr.mxu0 0.0
    %3162 = vmatpush1.msra.mxu0 0.0
    %3163 = vmatprep.subr.mxu0 0.0
    %3164 = vmatpush1.msra.mxu0 0.0
    %3165 = vmatprep.subr.mxu0 0.0
    %3166 = vmatpush1.msra.mxu0 0.0
    %3167 = vmatprep.subr.mxu0 0.0
    %3168 = vmatpush1.msra.mxu0 0.0
    %3169 = vmatprep.subr.mxu0 0.0
    %3170 = vmatpush1.msra.mxu0 0.0
    %3171 = vmatprep.subr.mxu0 0.0
    %3172 = vmatpush1.msra.mxu0 0.0
    %3173 = vmatprep.subr.mxu0 0.0
    %3174 = vmatpush1.msra.mxu0 0.0
    %3175 = vmatprep.subr.mxu0 0.0
    %3176 = vmatpush1.msra.mxu0 0.0
    %3177 = vmatprep.subr.mxu0 0.0
    %3178 = vmatpush1.msra.mxu0 0.0
    %3179 = vmatprep.subr.mxu0 0.0
    %3180 = vmatpush1.msra.mxu0 0.0
    %3181 = vmatprep.subr.mxu0 0.0
    %3182 = vmatpush1.msra.mxu0 0.0
    %3183 = vmatprep.subr.mxu0 0.0
    %3184 = vmatpush1.msra.mxu0 0.0
    %3185 = vmatprep.subr.mxu0 0.0
    %3186 = vmatpush1.msra.mxu0 0.0
    %3187 = vmatprep.subr.mxu0 0.0
    %3188 = vmatpush1.msra.mxu0 0.0
    %3189 = vmatprep.subr.mxu0 0.0
    %3190 = vmatpush1.msra.mxu0 0.0
    %3191 = vmatprep.subr.mxu0 0.0
    %3192 = vmatpush1.msra.mxu0 0.0
    %3193 = vmatprep.subr.mxu0 0.0
    %3194 = vmatpush1.msra.mxu0 0.0
    %3195 = vmatprep.subr.mxu0 0.0
    %3196 = vmatpush1.msra.mxu0 0.0
    %3197 = vmatprep.subr.mxu0 0.0
    %3198 = vmatpush1.msra.mxu0 0.0
    %3199 = vmatprep.subr.mxu0 0.0
    %3200 = vmatpush1.msra.mxu0 0.0
    %3201 = vmatprep.subr.mxu0 0.0
    %3202 = vmatpush1.msra.mxu0 0.0
    %3203 = vmatprep.subr.mxu0 0.0
    %3204 = vmatpush1.msra.mxu0 0.0
    %3205 = vmatprep.subr.mxu0 0.0
    %3206 = vmatpush1.msra.mxu0 0.0
    %3207 = vmatprep.subr.mxu0 0.0
    %3208 = vmatpush1.msra.mxu0 0.0
    %3209 = vmatprep.subr.mxu0 0.0
    %3210 = vmatpush1.msra.mxu0 0.0
    %3211 = vmatprep.subr.mxu0 0.0
    %3212 = vmatpush1.msra.mxu0 0.0
    %3213 = vmatprep.subr.mxu0 0.0
    %3214 = vmatpush1.msra.mxu0 0.0
    %3215 = vmatprep.mubr.f32.mxu0 0.0
    %3216 = vmatmul.mubr.f32.gmra.mrb[0].mxu0 %v3146
    %v3217 = vpop.f32.mrb[0].mxu0
    %v3218 = vadd.f32 0.0, %v3217
    %v3219 = vpop.f32.mrb[0].mxu0
    %3220 = vmatprep.mubr.f32.mxu0 0.0
    %3221 = vmatmul.mubr.f32.gmra.mrb[0].mxu0 %v3149
    %v3222 = vpop.f32.mrb[0].mxu0
    %v3223 = vadd.f32 0.0, %v3222
    %v3224 = vpop.f32.mrb[0].mxu0
    %3225 = vdwg.mxu0
    %3226 = vmatprep.subr.mxu0 0.0
    %3227 = vmatpush1.xpose.msra.mxu0 %v2518
    %3228 = vmatprep.subr.mxu0 0.0
    %3229 = vmatpush1.xpose.msra.mxu0 %v2524
    %3230 = vmatprep.subr.mxu0 0.0
    %3231 = vmatpush1.xpose.msra.mxu0 0.0
    %3232 = vmatprep.subr.mxu0 0.0
    %3233 = vmatpush1.xpose.msra.mxu0 0.0
    %3234 = vmatprep.subr.mxu0 0.0
    %3235 = vmatpush1.xpose.msra.mxu0 0.0
    %3236 = vmatprep.subr.mxu0 0.0
    %3237 = vmatpush1.xpose.msra.mxu0 0.0
    %3238 = vmatprep.subr.mxu0 0.0
    %3239 = vmatpush1.xpose.msra.mxu0 0.0
    %3240 = vmatprep.subr.mxu0 0.0
    %3241 = vmatpush1.xpose.msra.mxu0 0.0
    %3242 = vmatprep.subr.mxu0 0.0
    %3243 = vmatpush1.xpose.msra.mxu0 0.0
    %3244 = vmatprep.subr.mxu0 0.0
    %3245 = vmatpush1.xpose.msra.mxu0 0.0
    %3246 = vmatprep.subr.mxu0 0.0
    %3247 = vmatpush1.xpose.msra.mxu0 0.0
    %3248 = vmatprep.subr.mxu0 0.0
    %3249 = vmatpush1.xpose.msra.mxu0 0.0
    %3250 = vmatprep.subr.mxu0 0.0
    %3251 = vmatpush1.xpose.msra.mxu0 0.0
    %3252 = vmatprep.subr.mxu0 0.0
    %3253 = vmatpush1.xpose.msra.mxu0 0.0
    %3254 = vmatprep.subr.mxu0 0.0
    %3255 = vmatpush1.xpose.msra.mxu0 0.0
    %3256 = vmatprep.subr.mxu0 0.0
    %3257 = vmatpush1.xpose.msra.mxu0 0.0
    %3258 = vmatprep.subr.mxu0 0.0
    %3259 = vmatpush1.xpose.msra.mxu0 0.0
    %3260 = vmatprep.subr.mxu0 0.0
    %3261 = vmatpush1.xpose.msra.mxu0 0.0
    %3262 = vmatprep.subr.mxu0 0.0
    %3263 = vmatpush1.xpose.msra.mxu0 0.0
    %3264 = vmatprep.subr.mxu0 0.0
    %3265 = vmatpush1.xpose.msra.mxu0 0.0
    %3266 = vmatprep.subr.mxu0 0.0
    %3267 = vmatpush1.xpose.msra.mxu0 0.0
    %3268 = vmatprep.subr.mxu0 0.0
    %3269 = vmatpush1.xpose.msra.mxu0 0.0
    %3270 = vmatprep.subr.mxu0 0.0
    %3271 = vmatpush1.xpose.msra.mxu0 0.0
    %3272 = vmatprep.subr.mxu0 0.0
    %3273 = vmatpush1.xpose.msra.mxu0 0.0
    %3274 = vmatprep.subr.mxu0 0.0
    %3275 = vmatpush1.xpose.msra.mxu0 0.0
    %3276 = vmatprep.subr.mxu0 0.0
    %3277 = vmatpush1.xpose.msra.mxu0 0.0
    %3278 = vmatprep.subr.mxu0 0.0
    %3279 = vmatpush1.xpose.msra.mxu0 0.0
    %3280 = vmatprep.subr.mxu0 0.0
    %3281 = vmatpush1.xpose.msra.mxu0 0.0
    %3282 = vmatprep.subr.mxu0 0.0
    %3283 = vmatpush1.xpose.msra.mxu0 0.0
    %3284 = vmatprep.subr.mxu0 0.0
    %3285 = vmatpush1.xpose.msra.mxu0 0.0
    %3286 = vmatprep.subr.mxu0 0.0
    %3287 = vmatpush1.xpose.msra.mxu0 0.0
    %3288 = vmatprep.subr.mxu0 0.0
    %3289 = vmatpush1.xpose.msra.mxu0 0.0
    %3290 = vmatprep.mubr.f32.mxu0 0.0
    %3291 = vmatmul.mubr.f32.gmra.mrb[0].mxu0 %v2364
    %v3292 = vpop.f32.mrb[0].mxu0
    %v3293 = vadd.f32 0.0, %v3292
    %v3294 = vpop.f32.mrb[0].mxu0
    %3295 = vmatprep.mubr.f32.mxu0 0.0
    %3296 = vmatmul.mubr.f32.gmra.mrb[0].mxu0 %v2370
    %v3297 = vpop.f32.mrb[0].mxu0
    %v3298 = vadd.f32 0.0, %v3297
    %v3299 = vpop.f32.mrb[0].mxu0
    %3300 = vdwg.mxu0
    %v3301 = vsel %vm63, %v3293, -1e+10
    %v3302 = vsel %vm64, %v3298, -1e+10
    %v3303 = vmul.f32 %v3301, 0.35355338
    %v3304 = vmul.f32 %v3302, 0.35355338
    %v3305 = vsel %vm865, %v3303, -inf
    %3306 = vmax.xlane.f32.xlu0 %v3305
    %v3307 = vpop.xlane.xlu0 %3306
    %v3308 = vsel %vm865, %v3304, -inf
    %3309 = vmax.xlane.f32.xlu0 %v3308
    %v3310 = vpop.xlane.xlu0 %3309
    %v3311 = vsub.f32 %v3303, %v3307
    %v3312 = vsub.f32 %v3304, %v3310
    %v3313 = vmul.f32 %v3311, 1.442695
    %v3314 = vpow.pop %v3313
    %v3315 = vmul.f32 %v3312, 1.442695
    %v3316 = vpow.pop %v3315
    %v3317 = vsel %vm865, %v3314, 0.0
    %3318 = vadd.xlane.f32.xlu0 %v3317
    %v3319 = vpop.xlane.xlu0 %3318
    %v3320 = vsel %vm865, %v3316, 0.0
    %3321 = vadd.xlane.f32.xlu0 %v3320
    %v3322 = vpop.xlane.xlu0 %3321
    %v3323 = vrcp.pop %v3319
    %v3324 = vmul.f32 %v3314, %v3323
    %v3325 = vrcp.pop %v3322
    %v3326 = vmul.f32 %v3316, %v3325
    %v3328 = vsel %vm865, %v3324, 0
    %v3331 = vsel %vm865, %v3326, 0
    %3333 = vmatprep.subr.mxu0 0.0
    %3334 = vmatpush1.msra.mxu0 %v2672
    %3335 = vmatprep.subr.mxu0 0.0
    %3336 = vmatpush1.msra.mxu0 %v2678
    %3337 = vmatprep.subr.mxu0 0.0
    %3338 = vmatpush1.msra.mxu0 0.0
    %3339 = vmatprep.subr.mxu0 0.0
    %3340 = vmatpush1.msra.mxu0 0.0
    %3341 = vmatprep.subr.mxu0 0.0
    %3342 = vmatpush1.msra.mxu0 0.0
    %3343 = vmatprep.subr.mxu0 0.0
    %3344 = vmatpush1.msra.mxu0 0.0
    %3345 = vmatprep.subr.mxu0 0.0
    %3346 = vmatpush1.msra.mxu0 0.0
    %3347 = vmatprep.subr.mxu0 0.0
    %3348 = vmatpush1.msra.mxu0 0.0
    %3349 = vmatprep.subr.mxu0 0.0
    %3350 = vmatpush1.msra.mxu0 0.0
    %3351 = vmatprep.subr.mxu0 0.0
    %3352 = vmatpush1.msra.mxu0 0.0
    %3353 = vmatprep.subr.mxu0 0.0
    %3354 = vmatpush1.msra.mxu0 0.0
    %3355 = vmatprep.subr.mxu0 0.0
    %3356 = vmatpush1.msra.mxu0 0.0
    %3357 = vmatprep.subr.mxu0 0.0
    %3358 = vmatpush1.msra.mxu0 0.0
    %3359 = vmatprep.subr.mxu0 0.0
    %3360 = vmatpush1.msra.mxu0 0.0
    %3361 = vmatprep.subr.mxu0 0.0
    %3362 = vmatpush1.msra.mxu0 0.0
    %3363 = vmatprep.subr.mxu0 0.0
    %3364 = vmatpush1.msra.mxu0 0.0
    %3365 = vmatprep.subr.mxu0 0.0
    %3366 = vmatpush1.msra.mxu0 0.0
    %3367 = vmatprep.subr.mxu0 0.0
    %3368 = vmatpush1.msra.mxu0 0.0
    %3369 = vmatprep.subr.mxu0 0.0
    %3370 = vmatpush1.msra.mxu0 0.0
    %3371 = vmatprep.subr.mxu0 0.0
    %3372 = vmatpush1.msra.mxu0 0.0
    %3373 = vmatprep.subr.mxu0 0.0
    %3374 = vmatpush1.msra.mxu0 0.0
    %3375 = vmatprep.subr.mxu0 0.0
    %3376 = vmatpush1.msra.mxu0 0.0
    %3377 = vmatprep.subr.mxu0 0.0
    %3378 = vmatpush1.msra.mxu0 0.0
    %3379 = vmatprep.subr.mxu0 0.0
    %3380 = vmatpush1.msra.mxu0 0.0
    %3381 = vmatprep.subr.mxu0 0.0
    %3382 = vmatpush1.msra.mxu0 0.0
    %3383 = vmatprep.subr.mxu0 0.0
    %3384 = vmatpush1.msra.mxu0 0.0
    %3385 = vmatprep.subr.mxu0 0.0
    %3386 = vmatpush1.msra.mxu0 0.0
    %3387 = vmatprep.subr.mxu0 0.0
    %3388 = vmatpush1.msra.mxu0 0.0
    %3389 = vmatprep.subr.mxu0 0.0
    %3390 = vmatpush1.msra.mxu0 0.0
    %3391 = vmatprep.subr.mxu0 0.0
    %3392 = vmatpush1.msra.mxu0 0.0
    %3393 = vmatprep.subr.mxu0 0.0
    %3394 = vmatpush1.msra.mxu0 0.0
    %3395 = vmatprep.subr.mxu0 0.0
    %3396 = vmatpush1.msra.mxu0 0.0
    %3397 = vmatprep.mubr.f32.mxu0 0.0
    %3398 = vmatmul.mubr.f32.gmra.mrb[0].mxu0 %v3328
    %v3399 = vpop.f32.mrb[0].mxu0
    %v3400 = vadd.f32 0.0, %v3399
    %v3401 = vpop.f32.mrb[0].mxu0
    %3402 = vmatprep.mubr.f32.mxu0 0.0
    %3403 = vmatmul.mubr.f32.gmra.mrb[0].mxu0 %v3331
    %v3404 = vpop.f32.mrb[0].mxu0
    %v3405 = vadd.f32 0.0, %v3404
    %v3406 = vpop.f32.mrb[0].mxu0
    %3407 = vdwg.mxu0
    %v3408 = vlaneseq
    %v3409 = vshrl.u32 %v3408, 7
    %v3410 = vsub.s32 0, %v3409
    %v3411 = vrot.slane %v2025, %v3410
    %3412 = vmatprep.subr.mxu0 0.0
    %3413 = vmatpush1.msra.mxu0 %v1961
    %3414 = vmatprep.subr.mxu0 0.0
    %3415 = vmatpush1.msra.mxu0 %v1962
    %3416 = vmatprep.subr.mxu0 0.0
    %3417 = vmatpush1.msra.mxu0 %v1963
    %3418 = vmatprep.subr.mxu0 0.0
    %3419 = vmatpush1.msra.mxu0 %v1964
    %3420 = vmatprep.subr.mxu0 0.0
    %3421 = vmatpush1.msra.mxu0 %v1965
    %3422 = vmatprep.subr.mxu0 0.0
    %3423 = vmatpush1.msra.mxu0 %v1966
    %3424 = vmatprep.subr.mxu0 0.0
    %3425 = vmatpush1.msra.mxu0 %v1967
    %3426 = vmatprep.subr.mxu0 0.0
    %3427 = vmatpush1.msra.mxu0 %v1968
    %3428 = vmatprep.subr.mxu0 0.0
    %3429 = vmatpush1.msra.mxu0 %v1969
    %3430 = vmatprep.subr.mxu0 0.0
    %3431 = vmatpush1.msra.mxu0 %v1970
    %3432 = vmatprep.subr.mxu0 0.0
    %3433 = vmatpush1.msra.mxu0 %v1971
    %3434 = vmatprep.subr.mxu0 0.0
    %3435 = vmatpush1.msra.mxu0 %v1972
    %3436 = vmatprep.subr.mxu0 0.0
    %3437 = vmatpush1.msra.mxu0 %v1973
    %3438 = vmatprep.subr.mxu0 0.0
    %3439 = vmatpush1.msra.mxu0 %v1974
    %3440 = vmatprep.subr.mxu0 0.0
    %3441 = vmatpush1.msra.mxu0 %v1975
    %3442 = vmatprep.subr.mxu0 0.0
    %3443 = vmatpush1.msra.mxu0 %v1976
    %3444 = vmatprep.subr.mxu0 0.0
    %3445 = vmatpush1.msra.mxu0 %v1977
    %3446 = vmatprep.subr.mxu0 0.0
    %3447 = vmatpush1.msra.mxu0 %v1978
    %3448 = vmatprep.subr.mxu0 0.0
    %3449 = vmatpush1.msra.mxu0 %v1979
    %3450 = vmatprep.subr.mxu0 0.0
    %3451 = vmatpush1.msra.mxu0 %v1980
    %3452 = vmatprep.subr.mxu0 0.0
    %3453 = vmatpush1.msra.mxu0 %v1981
    %3454 = vmatprep.subr.mxu0 0.0
    %3455 = vmatpush1.msra.mxu0 %v1982
    %3456 = vmatprep.subr.mxu0 0.0
    %3457 = vmatpush1.msra.mxu0 %v1983
    %3458 = vmatprep.subr.mxu0 0.0
    %3459 = vmatpush1.msra.mxu0 %v1984
    %3460 = vmatprep.subr.mxu0 0.0
    %3461 = vmatpush1.msra.mxu0 %v1985
    %3462 = vmatprep.subr.mxu0 0.0
    %3463 = vmatpush1.msra.mxu0 %v1986
    %3464 = vmatprep.subr.mxu0 0.0
    %3465 = vmatpush1.msra.mxu0 %v1987
    %3466 = vmatprep.subr.mxu0 0.0
    %3467 = vmatpush1.msra.mxu0 %v1988
    %3468 = vmatprep.subr.mxu0 0.0
    %3469 = vmatpush1.msra.mxu0 %v1989
    %3470 = vmatprep.subr.mxu0 0.0
    %3471 = vmatpush1.msra.mxu0 %v1990
    %3472 = vmatprep.subr.mxu0 0.0
    %3473 = vmatpush1.msra.mxu0 %v1991
    %3474 = vmatprep.subr.mxu0 0.0
    %3475 = vmatpush1.msra.mxu0 %v1992
    %3476 = vmatprep.mubr.f32.mxu0 %v3036
    %3477 = vmatmul.mubr.f32.gmra.mrb[0].mxu0 %v2854
    %v3478 = vpop.f32.mrb[0].mxu0
    %v3479 = vadd.f32 %v3411, %v3478
    %v3480 = vpop.f32.mrb[0].mxu0
    %3481 = vmatprep.mubr.f32.mxu0 %v3041
    %3482 = vmatmul.mubr.f32.gmra.mrb[0].mxu0 %v2859
    %v3483 = vpop.f32.mrb[0].mxu0
    %v3484 = vadd.f32 %v3411, %v3483
    %v3485 = vpop.f32.mrb[0].mxu0
    %3486 = vdwg.mxu0
    %3487 = vmatprep.subr.mxu0 0.0
    %3488 = vmatpush1.msra.mxu0 %v1993
    %3489 = vmatprep.subr.mxu0 0.0
    %3490 = vmatpush1.msra.mxu0 %v1994
    %3491 = vmatprep.subr.mxu0 0.0
    %3492 = vmatpush1.msra.mxu0 %v1995
    %3493 = vmatprep.subr.mxu0 0.0
    %3494 = vmatpush1.msra.mxu0 %v1996
    %3495 = vmatprep.subr.mxu0 0.0
    %3496 = vmatpush1.msra.mxu0 %v1997
    %3497 = vmatprep.subr.mxu0 0.0
    %3498 = vmatpush1.msra.mxu0 %v1998
    %3499 = vmatprep.subr.mxu0 0.0
    %3500 = vmatpush1.msra.mxu0 %v1999
    %3501 = vmatprep.subr.mxu0 0.0
    %3502 = vmatpush1.msra.mxu0 %v2000
    %3503 = vmatprep.subr.mxu0 0.0
    %3504 = vmatpush1.msra.mxu0 %v2001
    %3505 = vmatprep.subr.mxu0 0.0
    %3506 = vmatpush1.msra.mxu0 %v2002
    %3507 = vmatprep.subr.mxu0 0.0
    %3508 = vmatpush1.msra.mxu0 %v2003
    %3509 = vmatprep.subr.mxu0 0.0
    %3510 = vmatpush1.msra.mxu0 %v2004
    %3511 = vmatprep.subr.mxu0 0.0
    %3512 = vmatpush1.msra.mxu0 %v2005
    %3513 = vmatprep.subr.mxu0 0.0
    %3514 = vmatpush1.msra.mxu0 %v2006
    %3515 = vmatprep.subr.mxu0 0.0
    %3516 = vmatpush1.msra.mxu0 %v2007
    %3517 = vmatprep.subr.mxu0 0.0
    %3518 = vmatpush1.msra.mxu0 %v2008
    %3519 = vmatprep.subr.mxu0 0.0
    %3520 = vmatpush1.msra.mxu0 %v2009
    %3521 = vmatprep.subr.mxu0 0.0
    %3522 = vmatpush1.msra.mxu0 %v2010
    %3523 = vmatprep.subr.mxu0 0.0
    %3524 = vmatpush1.msra.mxu0 %v2011
    %3525 = vmatprep.subr.mxu0 0.0
    %3526 = vmatpush1.msra.mxu0 %v2012
    %3527 = vmatprep.subr.mxu0 0.0
    %3528 = vmatpush1.msra.mxu0 %v2013
    %3529 = vmatprep.subr.mxu0 0.0
    %3530 = vmatpush1.msra.mxu0 %v2014
    %3531 = vmatprep.subr.mxu0 0.0
    %3532 = vmatpush1.msra.mxu0 %v2015
    %3533 = vmatprep.subr.mxu0 0.0
    %3534 = vmatpush1.msra.mxu0 %v2016
    %3535 = vmatprep.subr.mxu0 0.0
    %3536 = vmatpush1.msra.mxu0 %v2017
    %3537 = vmatprep.subr.mxu0 0.0
    %3538 = vmatpush1.msra.mxu0 %v2018
    %3539 = vmatprep.subr.mxu0 0.0
    %3540 = vmatpush1.msra.mxu0 %v2019
    %3541 = vmatprep.subr.mxu0 0.0
    %3542 = vmatpush1.msra.mxu0 %v2020
    %3543 = vmatprep.subr.mxu0 0.0
    %3544 = vmatpush1.msra.mxu0 %v2021
    %3545 = vmatprep.subr.mxu0 0.0
    %3546 = vmatpush1.msra.mxu0 %v2022
    %3547 = vmatprep.subr.mxu0 0.0
    %3548 = vmatpush1.msra.mxu0 %v2023
    %3549 = vmatprep.subr.mxu0 0.0
    %3550 = vmatpush1.msra.mxu0 %v2024
    %3551 = vmatprep.mubr.f32.mxu0 %v3400
    %3552 = vmatmul.mubr.f32.gmra.mrb[0].mxu0 %v3218
    %v3553 = vpop.f32.mrb[0].mxu0
    %v3554 = vadd.f32 %v3479, %v3553
    %v3555 = vpop.f32.mrb[0].mxu0
    %3556 = vmatprep.mubr.f32.mxu0 %v3405
    %3557 = vmatmul.mubr.f32.gmra.mrb[0].mxu0 %v3223
    %v3558 = vpop.f32.mrb[0].mxu0
    %v3559 = vadd.f32 %v3484, %v3558
    %v3560 = vpop.f32.mrb[0].mxu0
    %3561 = vdwg.mxu0
    %v3562 = vadd.f32 %v1959, %v3554
    %v3563 = vadd.f32 %v1960, %v3559
    %v3564 = vld [vmem:[#allocation4 + $0x640] sm:$0x1]
    %v3565 = vld [vmem:[#allocation4 + $0x648] sm:$0x1]
    %3566 = vadd.xlane.f32.xlu0 %v3562
    %v3567 = vpop.xlane.xlu0 %3566
    %3568 = vadd.xlane.f32.xlu0 %v3563
    %v3569 = vpop.xlane.xlu0 %3568
    %v3570 = vmul.f32 %v3567, 0.03125
    %v3571 = vmul.f32 %v3569, 0.03125
    %v3572 = vsub.f32 %v3562, %v3570
    %v3573 = vsub.f32 %v3563, %v3571
    %v3574 = vsel %vm1682, %v3572, 0.0
    %v3575 = vsel %vm1682, %v3573, 0.0
    %v3576 = vmul.f32 %v3574, %v3574
    %v3577 = vmul.f32 %v3575, %v3575
    %3578 = vadd.xlane.f32.xlu0 %v3576
    %v3579 = vpop.xlane.xlu0 %3578
    %3580 = vadd.xlane.f32.xlu0 %v3577
    %v3581 = vpop.xlane.xlu0 %3580
    %v3582 = vmul.f32 %v3579, 0.03125
    %v3583 = vmul.f32 %v3581, 0.03125
    %v3584 = vadd.f32 %v3582, 1e-05
    %v3585 = vadd.f32 %v3583, 1e-05
    %v3586 = vrsqrt.pop %v3584
    %v3587 = vrsqrt.pop %v3585
    %v3588 = vmul.f32 %v3574, %v3586
    %v3589 = vmul.f32 %v3575, %v3587
    %v3590 = vlaneseq
    %v3591 = vshrl.u32 %v3590, 7
    %v3592 = vsub.s32 0, %v3591
    %v3593 = vrot.slane %v3564, %v3592
    %v3594 = vmul.f32 %v3588, %v3593
    %v3595 = vmul.f32 %v3589, %v3593
    %v3596 = vlaneseq
    %v3597 = vshrl.u32 %v3596, 7
    %v3598 = vsub.s32 0, %v3597
    %v3599 = vrot.slane %v3565, %v3598
    %v3600 = vadd.f32 %v3594, %v3599
    %v3601 = vadd.f32 %v3595, %v3599
    %v3602 = vld [vmem:[#allocation4 + $0x538] sm:$0xff]
    %v3603 = vld [vmem:[#allocation4 + $0x540] sm:$0xff]
    %v3604 = vld [vmem:[#allocation4 + $0x548] sm:$0xff]
    %v3605 = vld [vmem:[#allocation4 + $0x550] sm:$0xff]
    %v3606 = vld [vmem:[#allocation4 + $0x558] sm:$0xff]
    %v3607 = vld [vmem:[#allocation4 + $0x560] sm:$0xff]
    %v3608 = vld [vmem:[#allocation4 + $0x568] sm:$0xff]
    %v3609 = vld [vmem:[#allocation4 + $0x570] sm:$0xff]
    %v3610 = vld [vmem:[#allocation4 + $0x578] sm:$0xff]
    %v3611 = vld [vmem:[#allocation4 + $0x580] sm:$0xff]
    %v3612 = vld [vmem:[#allocation4 + $0x588] sm:$0xff]
    %v3613 = vld [vmem:[#allocation4 + $0x590] sm:$0xff]
    %v3614 = vld [vmem:[#allocation4 + $0x598] sm:$0xff]
    %v3615 = vld [vmem:[#allocation4 + $0x5a0] sm:$0xff]
    %v3616 = vld [vmem:[#allocation4 + $0x5a8] sm:$0xff]
    %v3617 = vld [vmem:[#allocation4 + $0x5b0] sm:$0xff]
    %v3618 = vld [vmem:[#allocation4 + $0x650] sm:$0x1]
    %v3619 = vlaneseq
    %v3620 = vshrl.u32 %v3619, 7
    %v3621 = vsub.s32 0, %v3620
    %v3622 = vrot.slane %v3618, %v3621
    %3623 = vmatprep.subr.mxu0 0.0
    %3624 = vmatpush1.msra.mxu0 %v3602
    %3625 = vmatprep.subr.mxu0 0.0
    %3626 = vmatpush1.msra.mxu0 %v3603
    %3627 = vmatprep.subr.mxu0 0.0
    %3628 = vmatpush1.msra.mxu0 %v3604
    %3629 = vmatprep.subr.mxu0 0.0
    %3630 = vmatpush1.msra.mxu0 %v3605
    %3631 = vmatprep.subr.mxu0 0.0
    %3632 = vmatpush1.msra.mxu0 %v3606
    %3633 = vmatprep.subr.mxu0 0.0
    %3634 = vmatpush1.msra.mxu0 %v3607
    %3635 = vmatprep.subr.mxu0 0.0
    %3636 = vmatpush1.msra.mxu0 %v3608
    %3637 = vmatprep.subr.mxu0 0.0
    %3638 = vmatpush1.msra.mxu0 %v3609
    %3639 = vmatprep.subr.mxu0 0.0
    %3640 = vmatpush1.msra.mxu0 %v3610
    %3641 = vmatprep.subr.mxu0 0.0
    %3642 = vmatpush1.msra.mxu0 %v3611
    %3643 = vmatprep.subr.mxu0 0.0
    %3644 = vmatpush1.msra.mxu0 %v3612
    %3645 = vmatprep.subr.mxu0 0.0
    %3646 = vmatpush1.msra.mxu0 %v3613
    %3647 = vmatprep.subr.mxu0 0.0
    %3648 = vmatpush1.msra.mxu0 %v3614
    %3649 = vmatprep.subr.mxu0 0.0
    %3650 = vmatpush1.msra.mxu0 %v3615
    %3651 = vmatprep.subr.mxu0 0.0
    %3652 = vmatpush1.msra.mxu0 %v3616
    %3653 = vmatprep.subr.mxu0 0.0
    %3654 = vmatpush1.msra.mxu0 %v3617
    %3655 = vmatprep.subr.mxu0 0.0
    %3656 = vmatpush1.msra.mxu0 0.0
    %3657 = vmatprep.subr.mxu0 0.0
    %3658 = vmatpush1.msra.mxu0 0.0
    %3659 = vmatprep.subr.mxu0 0.0
    %3660 = vmatpush1.msra.mxu0 0.0
    %3661 = vmatprep.subr.mxu0 0.0
    %3662 = vmatpush1.msra.mxu0 0.0
    %3663 = vmatprep.subr.mxu0 0.0
    %3664 = vmatpush1.msra.mxu0 0.0
    %3665 = vmatprep.subr.mxu0 0.0
    %3666 = vmatpush1.msra.mxu0 0.0
    %3667 = vmatprep.subr.mxu0 0.0
    %3668 = vmatpush1.msra.mxu0 0.0
    %3669 = vmatprep.subr.mxu0 0.0
    %3670 = vmatpush1.msra.mxu0 0.0
    %3671 = vmatprep.subr.mxu0 0.0
    %3672 = vmatpush1.msra.mxu0 0.0
    %3673 = vmatprep.subr.mxu0 0.0
    %3674 = vmatpush1.msra.mxu0 0.0
    %3675 = vmatprep.subr.mxu0 0.0
    %3676 = vmatpush1.msra.mxu0 0.0
    %3677 = vmatprep.subr.mxu0 0.0
    %3678 = vmatpush1.msra.mxu0 0.0
    %3679 = vmatprep.subr.mxu0 0.0
    %3680 = vmatpush1.msra.mxu0 0.0
    %3681 = vmatprep.subr.mxu0 0.0
    %3682 = vmatpush1.msra.mxu0 0.0
    %3683 = vmatprep.subr.mxu0 0.0
    %3684 = vmatpush1.msra.mxu0 0.0
    %3685 = vmatprep.subr.mxu0 0.0
    %3686 = vmatpush1.msra.mxu0 0.0
    %3687 = vmatprep.mubr.f32.mxu0 0.0
    %3688 = vmatmul.mubr.f32.gmra.mrb[0].mxu0 %v3600
    %v3689 = vpop.f32.mrb[0].mxu0
    %v3690 = vadd.f32 %v3622, %v3689
    %v3691 = vpop.f32.mrb[0].mxu0
    %3692 = vmatprep.mubr.f32.mxu0 0.0
    %3693 = vmatmul.mubr.f32.gmra.mrb[0].mxu0 %v3601
    %v3694 = vpop.f32.mrb[0].mxu0
    %v3695 = vadd.f32 %v3622, %v3694
    %v3696 = vpop.f32.mrb[0].mxu0
    %3697 = vdwg.mxu0
    %v3698 = vmul.f32 %v3690, 0.5
    %v3699 = vmul.f32 %v3695, 0.5
    %v3700 = vmul.f32 %v3690, 0.044715
    %v3701 = vmul.f32 %v3695, 0.044715
    %v3702 = vmul.f32 %v3700, %v3690
    %v3703 = vmul.f32 %v3701, %v3695
    %v3704 = vmul.f32 %v3702, %v3690
    %v3705 = vmul.f32 %v3703, %v3695
    %v3706 = vadd.f32 %v3690, %v3704
    %v3707 = vadd.f32 %v3695, %v3705
    %v3708 = vmul.f32 %v3706, 0.7978846
    %v3709 = vmul.f32 %v3707, 0.7978846
    %v3710 = vtanh.pop %v3708
    %v3711 = vtanh.pop %v3709
    %v3712 = vadd.f32 %v3710, 1.0
    %v3713 = vadd.f32 %v3711, 1.0
    %v3714 = vmul.f32 %v3698, %v3712
    %v3715 = vmul.f32 %v3699, %v3713
    %v3716 = vld [vmem:[#allocation4 + $0x5b8] sm:$0xff]
    %v3717 = vld [vmem:[#allocation4 + $0x5c0] sm:$0xff]
    %v3718 = vld [vmem:[#allocation4 + $0x5c8] sm:$0xff]
    %v3719 = vld [vmem:[#allocation4 + $0x5d0] sm:$0xff]
    %v3720 = vld [vmem:[#allocation4 + $0x5d8] sm:$0xff]
    %v3721 = vld [vmem:[#allocation4 + $0x5e0] sm:$0xff]
    %v3722 = vld [vmem:[#allocation4 + $0x5e8] sm:$0xff]
    %v3723 = vld [vmem:[#allocation4 + $0x5f0] sm:$0xff]
    %v3724 = vld [vmem:[#allocation4 + $0x5f8] sm:$0xff]
    %v3725 = vld [vmem:[#allocation4 + $0x600] sm:$0xff]
    %v3726 = vld [vmem:[#allocation4 + $0x608] sm:$0xff]
    %v3727 = vld [vmem:[#allocation4 + $0x610] sm:$0xff]
    %v3728 = vld [vmem:[#allocation4 + $0x618] sm:$0xff]
    %v3729 = vld [vmem:[#allocation4 + $0x620] sm:$0xff]
    %v3730 = vld [vmem:[#allocation4 + $0x628] sm:$0xff]
    %v3731 = vld [vmem:[#allocation4 + $0x630] sm:$0xff]
    %v3732 = vld [vmem:[#allocation4 + $0x658] sm:$0x1]
    %v3733 = vlaneseq
    %v3734 = vshrl.u32 %v3733, 7
    %v3735 = vsub.s32 0, %v3734
    %v3736 = vrot.slane %v3732, %v3735
    %3737 = vmatprep.subr.mxu0 0.0
    %3738 = vmatpush1.msra.mxu0 %v3716
    %3739 = vmatprep.subr.mxu0 0.0
    %3740 = vmatpush1.msra.mxu0 %v3717
    %3741 = vmatprep.subr.mxu0 0.0
    %3742 = vmatpush1.msra.mxu0 %v3718
    %3743 = vmatprep.subr.mxu0 0.0
    %3744 = vmatpush1.msra.mxu0 %v3719
    %3745 = vmatprep.subr.mxu0 0.0
    %3746 = vmatpush1.msra.mxu0 %v3720
    %3747 = vmatprep.subr.mxu0 0.0
    %3748 = vmatpush1.msra.mxu0 %v3721
    %3749 = vmatprep.subr.mxu0 0.0
    %3750 = vmatpush1.msra.mxu0 %v3722
    %3751 = vmatprep.subr.mxu0 0.0
    %3752 = vmatpush1.msra.mxu0 %v3723
    %3753 = vmatprep.subr.mxu0 0.0
    %3754 = vmatpush1.msra.mxu0 %v3724
    %3755 = vmatprep.subr.mxu0 0.0
    %3756 = vmatpush1.msra.mxu0 %v3725
    %3757 = vmatprep.subr.mxu0 0.0
    %3758 = vmatpush1.msra.mxu0 %v3726
    %3759 = vmatprep.subr.mxu0 0.0
    %3760 = vmatpush1.msra.mxu0 %v3727
    %3761 = vmatprep.subr.mxu0 0.0
    %3762 = vmatpush1.msra.mxu0 %v3728
    %3763 = vmatprep.subr.mxu0 0.0
    %3764 = vmatpush1.msra.mxu0 %v3729
    %3765 = vmatprep.subr.mxu0 0.0
    %3766 = vmatpush1.msra.mxu0 %v3730
    %3767 = vmatprep.subr.mxu0 0.0
    %3768 = vmatpush1.msra.mxu0 %v3731
    %3769 = vmatprep.subr.mxu0 0.0
    %3770 = vmatpush1.msra.mxu0 0.0
    %3771 = vmatprep.subr.mxu0 0.0
    %3772 = vmatpush1.msra.mxu0 0.0
    %3773 = vmatprep.subr.mxu0 0.0
    %3774 = vmatpush1.msra.mxu0 0.0
    %3775 = vmatprep.subr.mxu0 0.0
    %3776 = vmatpush1.msra.mxu0 0.0
    %3777 = vmatprep.subr.mxu0 0.0
    %3778 = vmatpush1.msra.mxu0 0.0
    %3779 = vmatprep.subr.mxu0 0.0
    %3780 = vmatpush1.msra.mxu0 0.0
    %3781 = vmatprep.subr.mxu0 0.0
    %3782 = vmatpush1.msra.mxu0 0.0
    %3783 = vmatprep.subr.mxu0 0.0
    %3784 = vmatpush1.msra.mxu0 0.0
    %3785 = vmatprep.subr.mxu0 0.0
    %3786 = vmatpush1.msra.mxu0 0.0
    %3787 = vmatprep.subr.mxu0 0.0
    %3788 = vmatpush1.msra.mxu0 0.0
    %3789 = vmatprep.subr.mxu0 0.0
    %3790 = vmatpush1.msra.mxu0 0.0
    %3791 = vmatprep.subr.mxu0 0.0
    %3792 = vmatpush1.msra.mxu0 0.0
    %3793 = vmatprep.subr.mxu0 0.0
    %3794 = vmatpush1.msra.mxu0 0.0
    %3795 = vmatprep.subr.mxu0 0.0
    %3796 = vmatpush1.msra.mxu0 0.0
    %3797 = vmatprep.subr.mxu0 0.0
    %3798 = vmatpush1.msra.mxu0 0.0
    %3799 = vmatprep.subr.mxu0 0.0
    %3800 = vmatpush1.msra.mxu0 0.0
    %3801 = vmatprep.mubr.f32.mxu0 0.0
    %3802 = vmatmul.mubr.f32.gmra.mrb[0].mxu0 %v3714
    %v3803 = vpop.f32.mrb[0].mxu0
    %v3804 = vadd.f32 %v3736, %v3803
    %v3805 = vpop.f32.mrb[0].mxu0
    %3806 = vmatprep.mubr.f32.mxu0 0.0
    %3807 = vmatmul.mubr.f32.gmra.mrb[0].mxu0 %v3715
    %v3808 = vpop.f32.mrb[0].mxu0
    %v3809 = vadd.f32 %v3736, %v3808
    %v3810 = vpop.f32.mrb[0].mxu0
    %3811 = vdwg.mxu0
    %v3812 = vadd.f32 %v3600, %v3804
    %v3813 = vadd.f32 %v3601, %v3809
    %v3814 = vld [vmem:[#allocation4 + $0x660] sm:$0x1]
    %v3815 = vld [vmem:[#allocation4 + $0x668] sm:$0x1]
    %3816 = vadd.xlane.f32.xlu0 %v3812
    %v3817 = vpop.xlane.xlu0 %3816
    %3818 = vadd.xlane.f32.xlu0 %v3813
    %v3819 = vpop.xlane.xlu0 %3818
    %v3820 = vmul.f32 %v3817, 0.03125
    %v3821 = vmul.f32 %v3819, 0.03125
    %v3822 = vsub.f32 %v3812, %v3820
    %v3823 = vsub.f32 %v3813, %v3821
    %v3824 = vsel %vm1682, %v3822, 0.0
    %v3825 = vsel %vm1682, %v3823, 0.0
    %v3826 = vmul.f32 %v3824, %v3824
    %v3827 = vmul.f32 %v3825, %v3825
    %3828 = vadd.xlane.f32.xlu0 %v3826
    %v3829 = vpop.xlane.xlu0 %3828
    %3830 = vadd.xlane.f32.xlu0 %v3827
    %v3831 = vpop.xlane.xlu0 %3830
    %v3832 = vmul.f32 %v3829, 0.03125
    %v3833 = vmul.f32 %v3831, 0.03125
    %v3834 = vadd.f32 %v3832, 1e-05
    %v3835 = vadd.f32 %v3833, 1e-05
    %v3836 = vrsqrt.pop %v3834
    %v3837 = vrsqrt.pop %v3835
    %v3838 = vmul.f32 %v3824, %v3836
    %v3839 = vmul.f32 %v3825, %v3837
    %v3840 = vlaneseq
    %v3841 = vshrl.u32 %v3840, 7
    %v3842 = vsub.s32 0, %v3841
    %v3843 = vrot.slane %v3814, %v3842
    %v3844 = vmul.f32 %v3838, %v3843
    %v3845 = vmul.f32 %v3839, %v3843
    %v3846 = vlaneseq
    %v3847 = vshrl.u32 %v3846, 7
    %v3848 = vsub.s32 0, %v3847
    %v3849 = vrot.slane %v3815, %v3848
    %v3850 = vadd.f32 %v3844, %v3849
    %v3851 = vadd.f32 %v3845, %v3849
    %v3852 = vld [vmem:[%s0 + $0x10] sm:$0xff]
    %v3853 = vld [vmem:[%s0 + $0x18] sm:$0xff]
    %v3854 = vld [vmem:[#allocation4 + $0x670] sm:$0xff]
    %v3855 = vld [vmem:[#allocation4 + $0x678] sm:$0xff]
    %v3856 = vld [vmem:[#allocation4 + $0x680] sm:$0xff]
    %v3857 = vld [vmem:[#allocation4 + $0x688] sm:$0xff]
    %v3858 = vld [vmem:[#allocation4 + $0x690] sm:$0xff]
    %v3859 = vld [vmem:[#allocation4 + $0x698] sm:$0xff]
    %v3860 = vld [vmem:[#allocation4 + $0x6a0] sm:$0xff]
    %v3861 = vld [vmem:[#allocation4 + $0x6a8] sm:$0xff]
    %v3862 = vld [vmem:[#allocation4 + $0x6b0] sm:$0xff]
    %v3863 = vld [vmem:[#allocation4 + $0x6b8] sm:$0xff]
    %v3864 = vld [vmem:[#allocation4 + $0x6c0] sm:$0xff]
    %v3865 = vld [vmem:[#allocation4 + $0x6c8] sm:$0xff]
    %v3866 = vld [vmem:[#allocation4 + $0x6d0] sm:$0xff]
    %v3867 = vld [vmem:[#allocation4 + $0x6d8] sm:$0xff]
    %v3868 = vld [vmem:[#allocation4 + $0x6e0] sm:$0xff]
    %v3869 = vld [vmem:[#allocation4 + $0x6e8] sm:$0xff]
    %v3870 = vld [vmem:[#allocation4 + $0x6f0] sm:$0xff]
    %v3871 = vld [vmem:[#allocation4 + $0x6f8] sm:$0xff]
    %v3872 = vld [vmem:[#allocation4 + $0x700] sm:$0xff]
    %v3873 = vld [vmem:[#allocation4 + $0x708] sm:$0xff]
    %v3874 = vld [vmem:[#allocation4 + $0x710] sm:$0xff]
    %v3875 = vld [vmem:[#allocation4 + $0x718] sm:$0xff]
    %v3876 = vld [vmem:[#allocation4 + $0x720] sm:$0xff]
    %v3877 = vld [vmem:[#allocation4 + $0x728] sm:$0xff]
    %v3878 = vld [vmem:[#allocation4 + $0x730] sm:$0xff]
    %v3879 = vld [vmem:[#allocation4 + $0x738] sm:$0xff]
    %v3880 = vld [vmem:[#allocation4 + $0x740] sm:$0xff]
    %v3881 = vld [vmem:[#allocation4 + $0x748] sm:$0xff]
    %v3882 = vld [vmem:[#allocation4 + $0x750] sm:$0xff]
    %v3883 = vld [vmem:[#allocation4 + $0x758] sm:$0xff]
    %v3884 = vld [vmem:[#allocation4 + $0x760] sm:$0xff]
    %v3885 = vld [vmem:[#allocation4 + $0x768] sm:$0xff]
    %v3886 = vld [vmem:[#allocation4 + $0x770] sm:$0xff]
    %v3887 = vld [vmem:[#allocation4 + $0x778] sm:$0xff]
    %v3888 = vld [vmem:[#allocation4 + $0x780] sm:$0xff]
    %v3889 = vld [vmem:[#allocation4 + $0x788] sm:$0xff]
    %v3890 = vld [vmem:[#allocation4 + $0x790] sm:$0xff]
    %v3891 = vld [vmem:[#allocation4 + $0x798] sm:$0xff]
    %v3892 = vld [vmem:[#allocation4 + $0x7a0] sm:$0xff]
    %v3893 = vld [vmem:[#allocation4 + $0x7a8] sm:$0xff]
    %v3894 = vld [vmem:[#allocation4 + $0x7b0] sm:$0xff]
    %v3895 = vld [vmem:[#allocation4 + $0x7b8] sm:$0xff]
    %v3896 = vld [vmem:[#allocation4 + $0x7c0] sm:$0xff]
    %v3897 = vld [vmem:[#allocation4 + $0x7c8] sm:$0xff]
    %v3898 = vld [vmem:[#allocation4 + $0x7d0] sm:$0xff]
    %v3899 = vld [vmem:[#allocation4 + $0x7d8] sm:$0xff]
    %v3900 = vld [vmem:[#allocation4 + $0x7e0] sm:$0xff]
    %v3901 = vld [vmem:[#allocation4 + $0x7e8] sm:$0xff]
    %v3902 = vld [vmem:[#allocation4 + $0x7f0] sm:$0xff]
    %v3903 = vld [vmem:[#allocation4 + $0x7f8] sm:$0xff]
    %v3904 = vld [vmem:[#allocation4 + $0x800] sm:$0xff]
    %v3905 = vld [vmem:[#allocation4 + $0x808] sm:$0xff]
    %v3906 = vld [vmem:[#allocation4 + $0x810] sm:$0xff]
    %v3907 = vld [vmem:[#allocation4 + $0x818] sm:$0xff]
    %v3908 = vld [vmem:[#allocation4 + $0x820] sm:$0xff]
    %v3909 = vld [vmem:[#allocation4 + $0x828] sm:$0xff]
    %v3910 = vld [vmem:[#allocation4 + $0x830] sm:$0xff]
    %v3911 = vld [vmem:[#allocation4 + $0x838] sm:$0xff]
    %v3912 = vld [vmem:[#allocation4 + $0x840] sm:$0xff]
    %v3913 = vld [vmem:[#allocation4 + $0x848] sm:$0xff]
    %v3914 = vld [vmem:[#allocation4 + $0x850] sm:$0xff]
    %v3915 = vld [vmem:[#allocation4 + $0x858] sm:$0xff]
    %v3916 = vld [vmem:[#allocation4 + $0x860] sm:$0xff]
    %v3917 = vld [vmem:[#allocation4 + $0x868] sm:$0xff]
    %v3918 = vld [vmem:[#allocation4 + $0x870] sm:$0x1]
    %vm3919 = vcmp.le.s32.totalorder %v43, %v47
    %vm3920 = vcmp.le.s32.totalorder %v43, %v48
    %vm3921 = vmand %vm3919, %vm55
    %vm3922 = vmand %vm3920, %vm56
    %v3923 = vld [vmem:[#allocation2 + $0xc00] sm:$0xff]
    %v3924 = vld [vmem:[#allocation2 + $0xc08] sm:$0xff]
    %v3925 = vld [vmem:[#allocation2 + $0xc10] sm:$0xff]
    %v3926 = vld [vmem:[#allocation2 + $0xc18] sm:$0xff]
    %v3927 = vld [vmem:[#allocation2 + $0xc60] sm:$0xff]
    %v3928 = vld [vmem:[#allocation2 + $0xc68] sm:$0xff]
    %v3929 = vld [vmem:[#allocation2 + $0xc70] sm:$0xff]
    %v3930 = vld [vmem:[#allocation2 + $0xc78] sm:$0xff]
    %v3931 = vld [vmem:[#allocation2 + $0xcc0] sm:$0xff]
    %v3932 = vld [vmem:[#allocation2 + $0xcc8] sm:$0xff]
    %v3933 = vld [vmem:[#allocation2 + $0xcd0] sm:$0xff]
    %v3934 = vld [vmem:[#allocation2 + $0xcd8] sm:$0xff]
    %v3935 = vld [vmem:[#allocation2 + $0xd20] sm:$0xff]
    %v3936 = vld [vmem:[#allocation2 + $0xd28] sm:$0xff]
    %v3937 = vld [vmem:[#allocation2 + $0xd30] sm:$0xff]
    %v3938 = vld [vmem:[#allocation2 + $0xd38] sm:$0xff]
    %v3939 = vld [vmem:[#allocation2 + $0xd80] sm:$0xff]
    %v3940 = vld [vmem:[#allocation2 + $0xd88] sm:$0xff]
    %v3941 = vld [vmem:[#allocation2 + $0xd90] sm:$0xff]
    %v3942 = vld [vmem:[#allocation2 + $0xd98] sm:$0xff]
    %v3943 = vld [vmem:[#allocation2 + $0xde0] sm:$0xff]
    %v3944 = vld [vmem:[#allocation2 + $0xde8] sm:$0xff]
    %v3945 = vld [vmem:[#allocation2 + $0xdf0] sm:$0xff]
    %v3946 = vld [vmem:[#allocation2 + $0xdf8] sm:$0xff]
    %v3947 = vld [vmem:[#allocation2 + $0xe40] sm:$0xff]
    %v3948 = vld [vmem:[#allocation2 + $0xe48] sm:$0xff]
    %v3949 = vld [vmem:[#allocation2 + $0xe50] sm:$0xff]
    %v3950 = vld [vmem:[#allocation2 + $0xe58] sm:$0xff]
    %v3951 = vld [vmem:[#allocation2 + $0xea0] sm:$0xff]
    %v3952 = vld [vmem:[#allocation2 + $0xea8] sm:$0xff]
    %v3953 = vld [vmem:[#allocation2 + $0xeb0] sm:$0xff]
    %v3954 = vld [vmem:[#allocation2 + $0xeb8] sm:$0xff]
    %v3955 = vld [vmem:[#allocation2 + $0xf00] sm:$0xff]
    %v3956 = vld [vmem:[#allocation2 + $0xf08] sm:$0xff]
    %v3957 = vld [vmem:[#allocation2 + $0xf10] sm:$0xff]
    %v3958 = vld [vmem:[#allocation2 + $0xf18] sm:$0xff]
    %v3959 = vld [vmem:[#allocation2 + $0xf60] sm:$0xff]
    %v3960 = vld [vmem:[#allocation2 + $0xf68] sm:$0xff]
    %v3961 = vld [vmem:[#allocation2 + $0xf70] sm:$0xff]
    %v3962 = vld [vmem:[#allocation2 + $0xf78] sm:$0xff]
    %v3963 = vld [vmem:[#allocation2 + $0xfc0] sm:$0xff]
    %v3964 = vld [vmem:[#allocation2 + $0xfc8] sm:$0xff]
    %v3965 = vld [vmem:[#allocation2 + $0xfd0] sm:$0xff]
    %v3966 = vld [vmem:[#allocation2 + $0xfd8] sm:$0xff]
    %v3967 = vld [vmem:[#allocation2 + $0x1020] sm:$0xff]
    %v3968 = vld [vmem:[#allocation2 + $0x1028] sm:$0xff]
    %v3969 = vld [vmem:[#allocation2 + $0x1030] sm:$0xff]
    %v3970 = vld [vmem:[#allocation2 + $0x1038] sm:$0xff]
    %v3971 = vld [vmem:[#allocation2 + $0x1080] sm:$0xff]
    %v3972 = vld [vmem:[#allocation2 + $0x1088] sm:$0xff]
    %v3973 = vld [vmem:[#allocation2 + $0x1090] sm:$0xff]
    %v3974 = vld [vmem:[#allocation2 + $0x1098] sm:$0xff]
    %v3975 = vld [vmem:[#allocation2 + $0x10e0] sm:$0xff]
    %v3976 = vld [vmem:[#allocation2 + $0x10e8] sm:$0xff]
    %v3977 = vld [vmem:[#allocation2 + $0x10f0] sm:$0xff]
    %v3978 = vld [vmem:[#allocation2 + $0x10f8] sm:$0xff]
    %v3979 = vld [vmem:[#allocation2 + $0x1140] sm:$0xff]
    %v3980 = vld [vmem:[#allocation2 + $0x1148] sm:$0xff]
    %v3981 = vld [vmem:[#allocation2 + $0x1150] sm:$0xff]
    %v3982 = vld [vmem:[#allocation2 + $0x1158] sm:$0xff]
    %v3983 = vld [vmem:[#allocation2 + $0x11a0] sm:$0xff]
    %v3984 = vld [vmem:[#allocation2 + $0x11a8] sm:$0xff]
    %v3985 = vld [vmem:[#allocation2 + $0x11b0] sm:$0xff]
    %v3986 = vld [vmem:[#allocation2 + $0x11b8] sm:$0xff]
    %v3987 = vld [vmem:[#allocation2 + $0xc20] sm:$0xff]
    %v3988 = vld [vmem:[#allocation2 + $0xc28] sm:$0xff]
    %v3989 = vld [vmem:[#allocation2 + $0xc30] sm:$0xff]
    %v3990 = vld [vmem:[#allocation2 + $0xc38] sm:$0xff]
    %v3991 = vld [vmem:[#allocation2 + $0xc40] sm:$0xff]
    %v3992 = vld [vmem:[#allocation2 + $0xc48] sm:$0xff]
    %v3993 = vld [vmem:[#allocation2 + $0xc50] sm:$0xff]
    %v3994 = vld [vmem:[#allocation2 + $0xc58] sm:$0xff]
    %v3995 = vld [vmem:[#allocation2 + $0xc80] sm:$0xff]
    %v3996 = vld [vmem:[#allocation2 + $0xc88] sm:$0xff]
    %v3997 = vld [vmem:[#allocation2 + $0xc90] sm:$0xff]
    %v3998 = vld [vmem:[#allocation2 + $0xc98] sm:$0xff]
    %v3999 = vld [vmem:[#allocation2 + $0xca0] sm:$0xff]
    %v4000 = vld [vmem:[#allocation2 + $0xca8] sm:$0xff]
    %v4001 = vld [vmem:[#allocation2 + $0xcb0] sm:$0xff]
    %v4002 = vld [vmem:[#allocation2 + $0xcb8] sm:$0xff]
    %v4003 = vld [vmem:[#allocation2 + $0xce0] sm:$0xff]
    %v4004 = vld [vmem:[#allocation2 + $0xce8] sm:$0xff]
    %v4005 = vld [vmem:[#allocation2 + $0xcf0] sm:$0xff]
    %v4006 = vld [vmem:[#allocation2 + $0xcf8] sm:$0xff]
    %v4007 = vld [vmem:[#allocation2 + $0xd00] sm:$0xff]
    %v4008 = vld [vmem:[#allocation2 + $0xd08] sm:$0xff]
    %v4009 = vld [vmem:[#allocation2 + $0xd10] sm:$0xff]
    %v4010 = vld [vmem:[#allocation2 + $0xd18] sm:$0xff]
    %v4011 = vld [vmem:[#allocation2 + $0xd40] sm:$0xff]
    %v4012 = vld [vmem:[#allocation2 + $0xd48] sm:$0xff]
    %v4013 = vld [vmem:[#allocation2 + $0xd50] sm:$0xff]
    %v4014 = vld [vmem:[#allocation2 + $0xd58] sm:$0xff]
    %v4015 = vld [vmem:[#allocation2 + $0xd60] sm:$0xff]
    %v4016 = vld [vmem:[#allocation2 + $0xd68] sm:$0xff]
    %v4017 = vld [vmem:[#allocation2 + $0xd70] sm:$0xff]
    %v4018 = vld [vmem:[#allocation2 + $0xd78] sm:$0xff]
    %v4019 = vld [vmem:[#allocation2 + $0xda0] sm:$0xff]
    %v4020 = vld [vmem:[#allocation2 + $0xda8] sm:$0xff]
    %v4021 = vld [vmem:[#allocation2 + $0xdb0] sm:$0xff]
    %v4022 = vld [vmem:[#allocation2 + $0xdb8] sm:$0xff]
    %v4023 = vld [vmem:[#allocation2 + $0xdc0] sm:$0xff]
    %v4024 = vld [vmem:[#allocation2 + $0xdc8] sm:$0xff]
    %v4025 = vld [vmem:[#allocation2 + $0xdd0] sm:$0xff]
    %v4026 = vld [vmem:[#allocation2 + $0xdd8] sm:$0xff]
    %v4027 = vld [vmem:[#allocation2 + $0xe00] sm:$0xff]
    %v4028 = vld [vmem:[#allocation2 + $0xe08] sm:$0xff]
    %v4029 = vld [vmem:[#allocation2 + $0xe10] sm:$0xff]
    %v4030 = vld [vmem:[#allocation2 + $0xe18] sm:$0xff]
    %v4031 = vld [vmem:[#allocation2 + $0xe20] sm:$0xff]
    %v4032 = vld [vmem:[#allocation2 + $0xe28] sm:$0xff]
    %v4033 = vld [vmem:[#allocation2 + $0xe30] sm:$0xff]
    %v4034 = vld [vmem:[#allocation2 + $0xe38] sm:$0xff]
    %v4035 = vld [vmem:[#allocation2 + $0xe60] sm:$0xff]
    %v4036 = vld [vmem:[#allocation2 + $0xe68] sm:$0xff]
    %v4037 = vld [vmem:[#allocation2 + $0xe70] sm:$0xff]
    %v4038 = vld [vmem:[#allocation2 + $0xe78] sm:$0xff]
    %v4039 = vld [vmem:[#allocation2 + $0xe80] sm:$0xff]
    %v4040 = vld [vmem:[#allocation2 + $0xe88] sm:$0xff]
    %v4041 = vld [vmem:[#allocation2 + $0xe90] sm:$0xff]
    %v4042 = vld [vmem:[#allocation2 + $0xe98] sm:$0xff]
    %v4043 = vld [vmem:[#allocation2 + $0xec0] sm:$0xff]
    %v4044 = vld [vmem:[#allocation2 + $0xec8] sm:$0xff]
    %v4045 = vld [vmem:[#allocation2 + $0xed0] sm:$0xff]
    %v4046 = vld [vmem:[#allocation2 + $0xed8] sm:$0xff]
    %v4047 = vld [vmem:[#allocation2 + $0xee0] sm:$0xff]
    %v4048 = vld [vmem:[#allocation2 + $0xee8] sm:$0xff]
    %v4049 = vld [vmem:[#allocation2 + $0xef0] sm:$0xff]
    %v4050 = vld [vmem:[#allocation2 + $0xef8] sm:$0xff]
    %v4051 = vld [vmem:[#allocation2 + $0xf20] sm:$0xff]
    %v4052 = vld [vmem:[#allocation2 + $0xf28] sm:$0xff]
    %v4053 = vld [vmem:[#allocation2 + $0xf30] sm:$0xff]
    %v4054 = vld [vmem:[#allocation2 + $0xf38] sm:$0xff]
    %v4055 = vld [vmem:[#allocation2 + $0xf40] sm:$0xff]
    %v4056 = vld [vmem:[#allocation2 + $0xf48] sm:$0xff]
    %v4057 = vld [vmem:[#allocation2 + $0xf50] sm:$0xff]
    %v4058 = vld [vmem:[#allocation2 + $0xf58] sm:$0xff]
    %v4059 = vld [vmem:[#allocation2 + $0xf80] sm:$0xff]
    %v4060 = vld [vmem:[#allocation2 + $0xf88] sm:$0xff]
    %v4061 = vld [vmem:[#allocation2 + $0xf90] sm:$0xff]
    %v4062 = vld [vmem:[#allocation2 + $0xf98] sm:$0xff]
    %v4063 = vld [vmem:[#allocation2 + $0xfa0] sm:$0xff]
    %v4064 = vld [vmem:[#allocation2 + $0xfa8] sm:$0xff]
    %v4065 = vld [vmem:[#allocation2 + $0xfb0] sm:$0xff]
    %v4066 = vld [vmem:[#allocation2 + $0xfb8] sm:$0xff]
    %v4067 = vld [vmem:[#allocation2 + $0xfe0] sm:$0xff]
    %v4068 = vld [vmem:[#allocation2 + $0xfe8] sm:$0xff]
    %v4069 = vld [vmem:[#allocation2 + $0xff0] sm:$0xff]
    %v4070 = vld [vmem:[#allocation2 + $0xff8] sm:$0xff]
    %v4071 = vld [vmem:[#allocation2 + $0x1000] sm:$0xff]
    %v4072 = vld [vmem:[#allocation2 + $0x1008] sm:$0xff]
    %v4073 = vld [vmem:[#allocation2 + $0x1010] sm:$0xff]
    %v4074 = vld [vmem:[#allocation2 + $0x1018] sm:$0xff]
    %v4075 = vld [vmem:[#allocation2 + $0x1040] sm:$0xff]
    %v4076 = vld [vmem:[#allocation2 + $0x1048] sm:$0xff]
    %v4077 = vld [vmem:[#allocation2 + $0x1050] sm:$0xff]
    %v4078 = vld [vmem:[#allocation2 + $0x1058] sm:$0xff]
    %v4079 = vld [vmem:[#allocation2 + $0x1060] sm:$0xff]
    %v4080 = vld [vmem:[#allocation2 + $0x1068] sm:$0xff]
    %v4081 = vld [vmem:[#allocation2 + $0x1070] sm:$0xff]
    %v4082 = vld [vmem:[#allocation2 + $0x1078] sm:$0xff]
    %v4083 = vld [vmem:[#allocation2 + $0x10a0] sm:$0xff]
    %v4084 = vld [vmem:[#allocation2 + $0x10a8] sm:$0xff]
    %v4085 = vld [vmem:[#allocation2 + $0x10b0] sm:$0xff]
    %v4086 = vld [vmem:[#allocation2 + $0x10b8] sm:$0xff]
    %v4087 = vld [vmem:[#allocation2 + $0x10c0] sm:$0xff]
    %v4088 = vld [vmem:[#allocation2 + $0x10c8] sm:$0xff]
    %v4089 = vld [vmem:[#allocation2 + $0x10d0] sm:$0xff]
    %v4090 = vld [vmem:[#allocation2 + $0x10d8] sm:$0xff]
    %v4091 = vld [vmem:[#allocation2 + $0x1100] sm:$0xff]
    %v4092 = vld [vmem:[#allocation2 + $0x1108] sm:$0xff]
    %v4093 = vld [vmem:[#allocation2 + $0x1110] sm:$0xff]
    %v4094 = vld [vmem:[#allocation2 + $0x1118] sm:$0xff]
    %v4095 = vld [vmem:[#allocation2 + $0x1120] sm:$0xff]
    %v4096 = vld [vmem:[#allocation2 + $0x1128] sm:$0xff]
    %v4097 = vld [vmem:[#allocation2 + $0x1130] sm:$0xff]
    %v4098 = vld [vmem:[#allocation2 + $0x1138] sm:$0xff]
    %v4099 = vld [vmem:[#allocation2 + $0x1160] sm:$0xff]
    %v4100 = vld [vmem:[#allocation2 + $0x1168] sm:$0xff]
    %v4101 = vld [vmem:[#allocation2 + $0x1170] sm:$0xff]
    %v4102 = vld [vmem:[#allocation2 + $0x1178] sm:$0xff]
    %v4103 = vld [vmem:[#allocation2 + $0x1180] sm:$0xff]
    %v4104 = vld [vmem:[#allocation2 + $0x1188] sm:$0xff]
    %v4105 = vld [vmem:[#allocation2 + $0x1190] sm:$0xff]
    %v4106 = vld [vmem:[#allocation2 + $0x1198] sm:$0xff]
    %v4107 = vld [vmem:[#allocation2 + $0x11c0] sm:$0xff]
    %v4108 = vld [vmem:[#allocation2 + $0x11c8] sm:$0xff]
    %v4109 = vld [vmem:[#allocation2 + $0x11d0] sm:$0xff]
    %v4110 = vld [vmem:[#allocation2 + $0x11d8] sm:$0xff]
    %v4111 = vld [vmem:[#allocation2 + $0x11e0] sm:$0xff]
    %v4112 = vld [vmem:[#allocation2 + $0x11e8] sm:$0xff]
    %v4113 = vld [vmem:[#allocation2 + $0x11f0] sm:$0xff]
    %v4114 = vld [vmem:[#allocation2 + $0x11f8] sm:$0xff]
    %4115 = vmatprep.subr.mxu0 %v3924
    %4116 = vmatpush1.msra.mxu0 %v3923
    %4117 = vmatprep.subr.mxu0 %v3928
    %4118 = vmatpush1.msra.mxu0 %v3927
    %4119 = vmatprep.subr.mxu0 %v3932
    %4120 = vmatpush1.msra.mxu0 %v3931
    %4121 = vmatprep.subr.mxu0 %v3936
    %4122 = vmatpush1.msra.mxu0 %v3935
    %4123 = vmatprep.subr.mxu0 %v3940
    %4124 = vmatpush1.msra.mxu0 %v3939
    %4125 = vmatprep.subr.mxu0 %v3944
    %4126 = vmatpush1.msra.mxu0 %v3943
    %4127 = vmatprep.subr.mxu0 %v3948
    %4128 = vmatpush1.msra.mxu0 %v3947
    %4129 = vmatprep.subr.mxu0 %v3952
    %4130 = vmatpush1.msra.mxu0 %v3951
    %4131 = vmatprep.subr.mxu0 %v3956
    %4132 = vmatpush1.msra.mxu0 %v3955
    %4133 = vmatprep.subr.mxu0 %v3960
    %4134 = vmatpush1.msra.mxu0 %v3959
    %4135 = vmatprep.subr.mxu0 %v3964
    %4136 = vmatpush1.msra.mxu0 %v3963
    %4137 = vmatprep.subr.mxu0 %v3968
    %4138 = vmatpush1.msra.mxu0 %v3967
    %4139 = vmatprep.subr.mxu0 %v3972
    %4140 = vmatpush1.msra.mxu0 %v3971
    %4141 = vmatprep.subr.mxu0 %v3976
    %4142 = vmatpush1.msra.mxu0 %v3975
    %4143 = vmatprep.subr.mxu0 %v3980
    %4144 = vmatpush1.msra.mxu0 %v3979
    %4145 = vmatprep.subr.mxu0 %v3984
    %4146 = vmatpush1.msra.mxu0 %v3983
    %4147 = vmatprep.subr.mxu0 0.0
    %4148 = vmatpush1.msra.mxu0 0.0
    %4149 = vmatprep.subr.mxu0 0.0
    %4150 = vmatpush1.msra.mxu0 0.0
    %4151 = vmatprep.subr.mxu0 0.0
    %4152 = vmatpush1.msra.mxu0 0.0
    %4153 = vmatprep.subr.mxu0 0.0
    %4154 = vmatpush1.msra.mxu0 0.0
    %4155 = vmatprep.subr.mxu0 0.0
    %4156 = vmatpush1.msra.mxu0 0.0
    %4157 = vmatprep.subr.mxu0 0.0
    %4158 = vmatpush1.msra.mxu0 0.0
    %4159 = vmatprep.subr.mxu0 0.0
    %4160 = vmatpush1.msra.mxu0 0.0
    %4161 = vmatprep.subr.mxu0 0.0
    %4162 = vmatpush1.msra.mxu0 0.0
    %4163 = vmatprep.subr.mxu0 0.0
    %4164 = vmatpush1.msra.mxu0 0.0
    %4165 = vmatprep.subr.mxu0 0.0
    %4166 = vmatpush1.msra.mxu0 0.0
    %4167 = vmatprep.subr.mxu0 0.0
    %4168 = vmatpush1.msra.mxu0 0.0
    %4169 = vmatprep.subr.mxu0 0.0
    %4170 = vmatpush1.msra.mxu0 0.0
    %4171 = vmatprep.subr.mxu0 0.0
    %4172 = vmatpush1.msra.mxu0 0.0
    %4173 = vmatprep.subr.mxu0 0.0
    %4174 = vmatpush1.msra.mxu0 0.0
    %4175 = vmatprep.subr.mxu0 0.0
    %4176 = vmatpush1.msra.mxu0 0.0
    %4177 = vmatprep.subr.mxu0 0.0
    %4178 = vmatpush1.msra.mxu0 0.0
    %4179 = vmatprep.mubr.f32.mxu0 0.0
    %4180 = vmatmul.mubr.f32.gmra.mrb[0].mxu0 %v3852
    %v4181 = vpop.f32.mrb[0].mxu0
    %v4182 = vadd.f32 0.0, %v4181
    %v4183 = vpop.f32.mrb[0].mxu0
    %v4184 = vadd.f32 0.0, %v4183
    %4185 = vmatprep.mubr.f32.mxu0 0.0
    %4186 = vmatmul.mubr.f32.gmra.mrb[0].mxu0 %v3853
    %v4187 = vpop.f32.mrb[0].mxu0
    %v4188 = vadd.f32 0.0, %v4187
    %v4189 = vpop.f32.mrb[0].mxu0
    %v4190 = vadd.f32 0.0, %v4189
    %4191 = vdwg.mxu0
    %4192 = vmatprep.subr.mxu0 %v3926
    %4193 = vmatpush1.msra.mxu0 %v3925
    %4194 = vmatprep.subr.mxu0 %v3930
    %4195 = vmatpush1.msra.mxu0 %v3929
    %4196 = vmatprep.subr.mxu0 %v3934
    %4197 = vmatpush1.msra.mxu0 %v3933
    %4198 = vmatprep.subr.mxu0 %v3938
    %4199 = vmatpush1.msra.mxu0 %v3937
    %4200 = vmatprep.subr.mxu0 %v3942
    %4201 = vmatpush1.msra.mxu0 %v3941
    %4202 = vmatprep.subr.mxu0 %v3946
    %4203 = vmatpush1.msra.mxu0 %v3945
    %4204 = vmatprep.subr.mxu0 %v3950
    %4205 = vmatpush1.msra.mxu0 %v3949
    %4206 = vmatprep.subr.mxu0 %v3954
    %4207 = vmatpush1.msra.mxu0 %v3953
    %4208 = vmatprep.subr.mxu0 %v3958
    %4209 = vmatpush1.msra.mxu0 %v3957
    %4210 = vmatprep.subr.mxu0 %v3962
    %4211 = vmatpush1.msra.mxu0 %v3961
    %4212 = vmatprep.subr.mxu0 %v3966
    %4213 = vmatpush1.msra.mxu0 %v3965
    %4214 = vmatprep.subr.mxu0 %v3970
    %4215 = vmatpush1.msra.mxu0 %v3969
    %4216 = vmatprep.subr.mxu0 %v3974
    %4217 = vmatpush1.msra.mxu0 %v3973
    %4218 = vmatprep.subr.mxu0 %v3978
    %4219 = vmatpush1.msra.mxu0 %v3977
    %4220 = vmatprep.subr.mxu0 %v3982
    %4221 = vmatpush1.msra.mxu0 %v3981
    %4222 = vmatprep.subr.mxu0 %v3986
    %4223 = vmatpush1.msra.mxu0 %v3985
    %4224 = vmatprep.subr.mxu0 0.0
    %4225 = vmatpush1.msra.mxu0 0.0
    %4226 = vmatprep.subr.mxu0 0.0
    %4227 = vmatpush1.msra.mxu0 0.0
    %4228 = vmatprep.subr.mxu0 0.0
    %4229 = vmatpush1.msra.mxu0 0.0
    %4230 = vmatprep.subr.mxu0 0.0
    %4231 = vmatpush1.msra.mxu0 0.0
    %4232 = vmatprep.subr.mxu0 0.0
    %4233 = vmatpush1.msra.mxu0 0.0
    %4234 = vmatprep.subr.mxu0 0.0
    %4235 = vmatpush1.msra.mxu0 0.0
    %4236 = vmatprep.subr.mxu0 0.0
    %4237 = vmatpush1.msra.mxu0 0.0
    %4238 = vmatprep.subr.mxu0 0.0
    %4239 = vmatpush1.msra.mxu0 0.0
    %4240 = vmatprep.subr.mxu0 0.0
    %4241 = vmatpush1.msra.mxu0 0.0
    %4242 = vmatprep.subr.mxu0 0.0
    %4243 = vmatpush1.msra.mxu0 0.0
    %4244 = vmatprep.subr.mxu0 0.0
    %4245 = vmatpush1.msra.mxu0 0.0
    %4246 = vmatprep.subr.mxu0 0.0
    %4247 = vmatpush1.msra.mxu0 0.0
    %4248 = vmatprep.subr.mxu0 0.0
    %4249 = vmatpush1.msra.mxu0 0.0
    %4250 = vmatprep.subr.mxu0 0.0
    %4251 = vmatpush1.msra.mxu0 0.0
    %4252 = vmatprep.subr.mxu0 0.0
    %4253 = vmatpush1.msra.mxu0 0.0
    %4254 = vmatprep.subr.mxu0 0.0
    %4255 = vmatpush1.msra.mxu0 0.0
    %4256 = vmatprep.mubr.f32.mxu0 0.0
    %4257 = vmatmul.mubr.f32.gmra.mrb[0].mxu0 %v3852
    %v4258 = vpop.f32.mrb[0].mxu0
    %v4259 = vadd.f32 0.0, %v4258
    %v4260 = vpop.f32.mrb[0].mxu0
    %v4261 = vadd.f32 0.0, %v4260
    %4262 = vmatprep.mubr.f32.mxu0 0.0
    %4263 = vmatmul.mubr.f32.gmra.mrb[0].mxu0 %v3853
    %v4264 = vpop.f32.mrb[0].mxu0
    %v4265 = vadd.f32 0.0, %v4264
    %v4266 = vpop.f32.mrb[0].mxu0
    %v4267 = vadd.f32 0.0, %v4266
    %4268 = vdwg.mxu0
    %4269 = vmatprep.subr.mxu0 %v3988
    %4270 = vmatpush1.msra.mxu0 %v3987
    %4271 = vmatprep.subr.mxu0 %v3996
    %4272 = vmatpush1.msra.mxu0 %v3995
    %4273 = vmatprep.subr.mxu0 %v4004
    %4274 = vmatpush1.msra.mxu0 %v4003
    %4275 = vmatprep.subr.mxu0 %v4012
    %4276 = vmatpush1.msra.mxu0 %v4011
    %4277 = vmatprep.subr.mxu0 %v4020
    %4278 = vmatpush1.msra.mxu0 %v4019
    %4279 = vmatprep.subr.mxu0 %v4028
    %4280 = vmatpush1.msra.mxu0 %v4027
    %4281 = vmatprep.subr.mxu0 %v4036
    %4282 = vmatpush1.msra.mxu0 %v4035
    %4283 = vmatprep.subr.mxu0 %v4044
    %4284 = vmatpush1.msra.mxu0 %v4043
    %4285 = vmatprep.subr.mxu0 %v4052
    %4286 = vmatpush1.msra.mxu0 %v4051
    %4287 = vmatprep.subr.mxu0 %v4060
    %4288 = vmatpush1.msra.mxu0 %v4059
    %4289 = vmatprep.subr.mxu0 %v4068
    %4290 = vmatpush1.msra.mxu0 %v4067
    %4291 = vmatprep.subr.mxu0 %v4076
    %4292 = vmatpush1.msra.mxu0 %v4075
    %4293 = vmatprep.subr.mxu0 %v4084
    %4294 = vmatpush1.msra.mxu0 %v4083
    %4295 = vmatprep.subr.mxu0 %v4092
    %4296 = vmatpush1.msra.mxu0 %v4091
    %4297 = vmatprep.subr.mxu0 %v4100
    %4298 = vmatpush1.msra.mxu0 %v4099
    %4299 = vmatprep.subr.mxu0 %v4108
    %4300 = vmatpush1.msra.mxu0 %v4107
    %4301 = vmatprep.subr.mxu0 0.0
    %4302 = vmatpush1.msra.mxu0 0.0
    %4303 = vmatprep.subr.mxu0 0.0
    %4304 = vmatpush1.msra.mxu0 0.0
    %4305 = vmatprep.subr.mxu0 0.0
    %4306 = vmatpush1.msra.mxu0 0.0
    %4307 = vmatprep.subr.mxu0 0.0
    %4308 = vmatpush1.msra.mxu0 0.0
    %4309 = vmatprep.subr.mxu0 0.0
    %4310 = vmatpush1.msra.mxu0 0.0
    %4311 = vmatprep.subr.mxu0 0.0
    %4312 = vmatpush1.msra.mxu0 0.0
    %4313 = vmatprep.subr.mxu0 0.0
    %4314 = vmatpush1.msra.mxu0 0.0
    %4315 = vmatprep.subr.mxu0 0.0
    %4316 = vmatpush1.msra.mxu0 0.0
    %4317 = vmatprep.subr.mxu0 0.0
    %4318 = vmatpush1.msra.mxu0 0.0
    %4319 = vmatprep.subr.mxu0 0.0
    %4320 = vmatpush1.msra.mxu0 0.0
    %4321 = vmatprep.subr.mxu0 0.0
    %4322 = vmatpush1.msra.mxu0 0.0
    %4323 = vmatprep.subr.mxu0 0.0
    %4324 = vmatpush1.msra.mxu0 0.0
    %4325 = vmatprep.subr.mxu0 0.0
    %4326 = vmatpush1.msra.mxu0 0.0
    %4327 = vmatprep.subr.mxu0 0.0
    %4328 = vmatpush1.msra.mxu0 0.0
    %4329 = vmatprep.subr.mxu0 0.0
    %4330 = vmatpush1.msra.mxu0 0.0
    %4331 = vmatprep.subr.mxu0 0.0
    %4332 = vmatpush1.msra.mxu0 0.0
    %4333 = vmatprep.mubr.f32.mxu0 0.0
    %4334 = vmatmul.mubr.f32.gmra.mrb[0].mxu0 %v3852
    %v4335 = vpop.f32.mrb[0].mxu0
    %v4336 = vadd.f32 0.0, %v4335
    %v4337 = vpop.f32.mrb[0].mxu0
    %v4338 = vadd.f32 0.0, %v4337
    %4339 = vmatprep.mubr.f32.mxu0 0.0
    %4340 = vmatmul.mubr.f32.gmra.mrb[0].mxu0 %v3853
    %v4341 = vpop.f32.mrb[0].mxu0
    %v4342 = vadd.f32 0.0, %v4341
    %v4343 = vpop.f32.mrb[0].mxu0
    %v4344 = vadd.f32 0.0, %v4343
    %4345 = vdwg.mxu0
    %4346 = vmatprep.subr.mxu0 %v3990
    %4347 = vmatpush1.msra.mxu0 %v3989
    %4348 = vmatprep.subr.mxu0 %v3998
    %4349 = vmatpush1.msra.mxu0 %v3997
    %4350 = vmatprep.subr.mxu0 %v4006
    %4351 = vmatpush1.msra.mxu0 %v4005
    %4352 = vmatprep.subr.mxu0 %v4014
    %4353 = vmatpush1.msra.mxu0 %v4013
    %4354 = vmatprep.subr.mxu0 %v4022
    %4355 = vmatpush1.msra.mxu0 %v4021
    %4356 = vmatprep.subr.mxu0 %v4030
    %4357 = vmatpush1.msra.mxu0 %v4029
    %4358 = vmatprep.subr.mxu0 %v4038
    %4359 = vmatpush1.msra.mxu0 %v4037
    %4360 = vmatprep.subr.mxu0 %v4046
    %4361 = vmatpush1.msra.mxu0 %v4045
    %4362 = vmatprep.subr.mxu0 %v4054
    %4363 = vmatpush1.msra.mxu0 %v4053
    %4364 = vmatprep.subr.mxu0 %v4062
    %4365 = vmatpush1.msra.mxu0 %v4061
    %4366 = vmatprep.subr.mxu0 %v4070
    %4367 = vmatpush1.msra.mxu0 %v4069
    %4368 = vmatprep.subr.mxu0 %v4078
    %4369 = vmatpush1.msra.mxu0 %v4077
    %4370 = vmatprep.subr.mxu0 %v4086
    %4371 = vmatpush1.msra.mxu0 %v4085
    %4372 = vmatprep.subr.mxu0 %v4094
    %4373 = vmatpush1.msra.mxu0 %v4093
    %4374 = vmatprep.subr.mxu0 %v4102
    %4375 = vmatpush1.msra.mxu0 %v4101
    %4376 = vmatprep.subr.mxu0 %v4110
    %4377 = vmatpush1.msra.mxu0 %v4109
    %4378 = vmatprep.subr.mxu0 0.0
    %4379 = vmatpush1.msra.mxu0 0.0
    %4380 = vmatprep.subr.mxu0 0.0
    %4381 = vmatpush1.msra.mxu0 0.0
    %4382 = vmatprep.subr.mxu0 0.0
    %4383 = vmatpush1.msra.mxu0 0.0
    %4384 = vmatprep.subr.mxu0 0.0
    %4385 = vmatpush1.msra.mxu0 0.0
    %4386 = vmatprep.subr.mxu0 0.0
    %4387 = vmatpush1.msra.mxu0 0.0
    %4388 = vmatprep.subr.mxu0 0.0
    %4389 = vmatpush1.msra.mxu0 0.0
    %4390 = vmatprep.subr.mxu0 0.0
    %4391 = vmatpush1.msra.mxu0 0.0
    %4392 = vmatprep.subr.mxu0 0.0
    %4393 = vmatpush1.msra.mxu0 0.0
    %4394 = vmatprep.subr.mxu0 0.0
    %4395 = vmatpush1.msra.mxu0 0.0
    %4396 = vmatprep.subr.mxu0 0.0
    %4397 = vmatpush1.msra.mxu0 0.0
    %4398 = vmatprep.subr.mxu0 0.0
    %4399 = vmatpush1.msra.mxu0 0.0
    %4400 = vmatprep.subr.mxu0 0.0
    %4401 = vmatpush1.msra.mxu0 0.0
    %4402 = vmatprep.subr.mxu0 0.0
    %4403 = vmatpush1.msra.mxu0 0.0
    %4404 = vmatprep.subr.mxu0 0.0
    %4405 = vmatpush1.msra.mxu0 0.0
    %4406 = vmatprep.subr.mxu0 0.0
    %4407 = vmatpush1.msra.mxu0 0.0
    %4408 = vmatprep.subr.mxu0 0.0
    %4409 = vmatpush1.msra.mxu0 0.0
    %4410 = vmatprep.mubr.f32.mxu0 0.0
    %4411 = vmatmul.mubr.f32.gmra.mrb[0].mxu0 %v3852
    %v4412 = vpop.f32.mrb[0].mxu0
    %v4413 = vadd.f32 0.0, %v4412
    %v4414 = vpop.f32.mrb[0].mxu0
    %v4415 = vadd.f32 0.0, %v4414
    %4416 = vmatprep.mubr.f32.mxu0 0.0
    %4417 = vmatmul.mubr.f32.gmra.mrb[0].mxu0 %v3853
    %v4418 = vpop.f32.mrb[0].mxu0
    %v4419 = vadd.f32 0.0, %v4418
    %v4420 = vpop.f32.mrb[0].mxu0
    %v4421 = vadd.f32 0.0, %v4420
    %4422 = vdwg.mxu0
    %4423 = vmatprep.subr.mxu0 %v3992
    %4424 = vmatpush1.msra.mxu0 %v3991
    %4425 = vmatprep.subr.mxu0 %v4000
    %4426 = vmatpush1.msra.mxu0 %v3999
    %4427 = vmatprep.subr.mxu0 %v4008
    %4428 = vmatpush1.msra.mxu0 %v4007
    %4429 = vmatprep.subr.mxu0 %v4016
    %4430 = vmatpush1.msra.mxu0 %v4015
    %4431 = vmatprep.subr.mxu0 %v4024
    %4432 = vmatpush1.msra.mxu0 %v4023
    %4433 = vmatprep.subr.mxu0 %v4032
    %4434 = vmatpush1.msra.mxu0 %v4031
    %4435 = vmatprep.subr.mxu0 %v4040
    %4436 = vmatpush1.msra.mxu0 %v4039
    %4437 = vmatprep.subr.mxu0 %v4048
    %4438 = vmatpush1.msra.mxu0 %v4047
    %4439 = vmatprep.subr.mxu0 %v4056
    %4440 = vmatpush1.msra.mxu0 %v4055
    %4441 = vmatprep.subr.mxu0 %v4064
    %4442 = vmatpush1.msra.mxu0 %v4063
    %4443 = vmatprep.subr.mxu0 %v4072
    %4444 = vmatpush1.msra.mxu0 %v4071
    %4445 = vmatprep.subr.mxu0 %v4080
    %4446 = vmatpush1.msra.mxu0 %v4079
    %4447 = vmatprep.subr.mxu0 %v4088
    %4448 = vmatpush1.msra.mxu0 %v4087
    %4449 = vmatprep.subr.mxu0 %v4096
    %4450 = vmatpush1.msra.mxu0 %v4095
    %4451 = vmatprep.subr.mxu0 %v4104
    %4452 = vmatpush1.msra.mxu0 %v4103
    %4453 = vmatprep.subr.mxu0 %v4112
    %4454 = vmatpush1.msra.mxu0 %v4111
    %4455 = vmatprep.subr.mxu0 0.0
    %4456 = vmatpush1.msra.mxu0 0.0
    %4457 = vmatprep.subr.mxu0 0.0
    %4458 = vmatpush1.msra.mxu0 0.0
    %4459 = vmatprep.subr.mxu0 0.0
    %4460 = vmatpush1.msra.mxu0 0.0
    %4461 = vmatprep.subr.mxu0 0.0
    %4462 = vmatpush1.msra.mxu0 0.0
    %4463 = vmatprep.subr.mxu0 0.0
    %4464 = vmatpush1.msra.mxu0 0.0
    %4465 = vmatprep.subr.mxu0 0.0
    %4466 = vmatpush1.msra.mxu0 0.0
    %4467 = vmatprep.subr.mxu0 0.0
    %4468 = vmatpush1.msra.mxu0 0.0
    %4469 = vmatprep.subr.mxu0 0.0
    %4470 = vmatpush1.msra.mxu0 0.0
    %4471 = vmatprep.subr.mxu0 0.0
    %4472 = vmatpush1.msra.mxu0 0.0
    %4473 = vmatprep.subr.mxu0 0.0
    %4474 = vmatpush1.msra.mxu0 0.0
    %4475 = vmatprep.subr.mxu0 0.0
    %4476 = vmatpush1.msra.mxu0 0.0
    %4477 = vmatprep.subr.mxu0 0.0
    %4478 = vmatpush1.msra.mxu0 0.0
    %4479 = vmatprep.subr.mxu0 0.0
    %4480 = vmatpush1.msra.mxu0 0.0
    %4481 = vmatprep.subr.mxu0 0.0
    %4482 = vmatpush1.msra.mxu0 0.0
    %4483 = vmatprep.subr.mxu0 0.0
    %4484 = vmatpush1.msra.mxu0 0.0
    %4485 = vmatprep.subr.mxu0 0.0
    %4486 = vmatpush1.msra.mxu0 0.0
    %4487 = vmatprep.mubr.f32.mxu0 0.0
    %4488 = vmatmul.mubr.f32.gmra.mrb[0].mxu0 %v3852
    %v4489 = vpop.f32.mrb[0].mxu0
    %v4490 = vadd.f32 0.0, %v4489
    %v4491 = vpop.f32.mrb[0].mxu0
    %v4492 = vadd.f32 0.0, %v4491
    %4493 = vmatprep.mubr.f32.mxu0 0.0
    %4494 = vmatmul.mubr.f32.gmra.mrb[0].mxu0 %v3853
    %v4495 = vpop.f32.mrb[0].mxu0
    %v4496 = vadd.f32 0.0, %v4495
    %v4497 = vpop.f32.mrb[0].mxu0
    %v4498 = vadd.f32 0.0, %v4497
    %4499 = vdwg.mxu0
    %4500 = vmatprep.subr.mxu0 %v3994
    %4501 = vmatpush1.msra.mxu0 %v3993
    %4502 = vmatprep.subr.mxu0 %v4002
    %4503 = vmatpush1.msra.mxu0 %v4001
    %4504 = vmatprep.subr.mxu0 %v4010
    %4505 = vmatpush1.msra.mxu0 %v4009
    %4506 = vmatprep.subr.mxu0 %v4018
    %4507 = vmatpush1.msra.mxu0 %v4017
    %4508 = vmatprep.subr.mxu0 %v4026
    %4509 = vmatpush1.msra.mxu0 %v4025
    %4510 = vmatprep.subr.mxu0 %v4034
    %4511 = vmatpush1.msra.mxu0 %v4033
    %4512 = vmatprep.subr.mxu0 %v4042
    %4513 = vmatpush1.msra.mxu0 %v4041
    %4514 = vmatprep.subr.mxu0 %v4050
    %4515 = vmatpush1.msra.mxu0 %v4049
    %4516 = vmatprep.subr.mxu0 %v4058
    %4517 = vmatpush1.msra.mxu0 %v4057
    %4518 = vmatprep.subr.mxu0 %v4066
    %4519 = vmatpush1.msra.mxu0 %v4065
    %4520 = vmatprep.subr.mxu0 %v4074
    %4521 = vmatpush1.msra.mxu0 %v4073
    %4522 = vmatprep.subr.mxu0 %v4082
    %4523 = vmatpush1.msra.mxu0 %v4081
    %4524 = vmatprep.subr.mxu0 %v4090
    %4525 = vmatpush1.msra.mxu0 %v4089
    %4526 = vmatprep.subr.mxu0 %v4098
    %4527 = vmatpush1.msra.mxu0 %v4097
    %4528 = vmatprep.subr.mxu0 %v4106
    %4529 = vmatpush1.msra.mxu0 %v4105
    %4530 = vmatprep.subr.mxu0 %v4114
    %4531 = vmatpush1.msra.mxu0 %v4113
    %4532 = vmatprep.subr.mxu0 0.0
    %4533 = vmatpush1.msra.mxu0 0.0
    %4534 = vmatprep.subr.mxu0 0.0
    %4535 = vmatpush1.msra.mxu0 0.0
    %4536 = vmatprep.subr.mxu0 0.0
    %4537 = vmatpush1.msra.mxu0 0.0
    %4538 = vmatprep.subr.mxu0 0.0
    %4539 = vmatpush1.msra.mxu0 0.0
    %4540 = vmatprep.subr.mxu0 0.0
    %4541 = vmatpush1.msra.mxu0 0.0
    %4542 = vmatprep.subr.mxu0 0.0
    %4543 = vmatpush1.msra.mxu0 0.0
    %4544 = vmatprep.subr.mxu0 0.0
    %4545 = vmatpush1.msra.mxu0 0.0
    %4546 = vmatprep.subr.mxu0 0.0
    %4547 = vmatpush1.msra.mxu0 0.0
    %4548 = vmatprep.subr.mxu0 0.0
    %4549 = vmatpush1.msra.mxu0 0.0
    %4550 = vmatprep.subr.mxu0 0.0
    %4551 = vmatpush1.msra.mxu0 0.0
    %4552 = vmatprep.subr.mxu0 0.0
    %4553 = vmatpush1.msra.mxu0 0.0
    %4554 = vmatprep.subr.mxu0 0.0
    %4555 = vmatpush1.msra.mxu0 0.0
    %4556 = vmatprep.subr.mxu0 0.0
    %4557 = vmatpush1.msra.mxu0 0.0
    %4558 = vmatprep.subr.mxu0 0.0
    %4559 = vmatpush1.msra.mxu0 0.0
    %4560 = vmatprep.subr.mxu0 0.0
    %4561 = vmatpush1.msra.mxu0 0.0
    %4562 = vmatprep.subr.mxu0 0.0
    %4563 = vmatpush1.msra.mxu0 0.0
    %4564 = vmatprep.mubr.f32.mxu0 0.0
    %4565 = vmatmul.mubr.f32.gmra.mrb[0].mxu0 %v3852
    %v4566 = vpop.f32.mrb[0].mxu0
    %v4567 = vadd.f32 0.0, %v4566
    %v4568 = vpop.f32.mrb[0].mxu0
    %v4569 = vadd.f32 0.0, %v4568
    %4570 = vmatprep.mubr.f32.mxu0 0.0
    %4571 = vmatmul.mubr.f32.gmra.mrb[0].mxu0 %v3853
    %v4572 = vpop.f32.mrb[0].mxu0
    %v4573 = vadd.f32 0.0, %v4572
    %v4574 = vpop.f32.mrb[0].mxu0
    %v4575 = vadd.f32 0.0, %v4574
    %4576 = vdwg.mxu0
    %4577 = vmatprep.subr.mxu0 0.0
    %4578 = vmatpush1.xpose.msra.mxu0 %v4336
    %4579 = vmatprep.subr.mxu0 0.0
    %4580 = vmatpush1.xpose.msra.mxu0 %v4342
    %4581 = vmatprep.subr.mxu0 0.0
    %4582 = vmatpush1.xpose.msra.mxu0 0.0
    %4583 = vmatprep.subr.mxu0 0.0
    %4584 = vmatpush1.xpose.msra.mxu0 0.0
    %4585 = vmatprep.subr.mxu0 0.0
    %4586 = vmatpush1.xpose.msra.mxu0 0.0
    %4587 = vmatprep.subr.mxu0 0.0
    %4588 = vmatpush1.xpose.msra.mxu0 0.0
    %4589 = vmatprep.subr.mxu0 0.0
    %4590 = vmatpush1.xpose.msra.mxu0 0.0
    %4591 = vmatprep.subr.mxu0 0.0
    %4592 = vmatpush1.xpose.msra.mxu0 0.0
    %4593 = vmatprep.subr.mxu0 0.0
    %4594 = vmatpush1.xpose.msra.mxu0 0.0
    %4595 = vmatprep.subr.mxu0 0.0
    %4596 = vmatpush1.xpose.msra.mxu0 0.0
    %4597 = vmatprep.subr.mxu0 0.0
    %4598 = vmatpush1.xpose.msra.mxu0 0.0
    %4599 = vmatprep.subr.mxu0 0.0
    %4600 = vmatpush1.xpose.msra.mxu0 0.0
    %4601 = vmatprep.subr.mxu0 0.0
    %4602 = vmatpush1.xpose.msra.mxu0 0.0
    %4603 = vmatprep.subr.mxu0 0.0
    %4604 = vmatpush1.xpose.msra.mxu0 0.0
    %4605 = vmatprep.subr.mxu0 0.0
    %4606 = vmatpush1.xpose.msra.mxu0 0.0
    %4607 = vmatprep.subr.mxu0 0.0
    %4608 = vmatpush1.xpose.msra.mxu0 0.0
    %4609 = vmatprep.subr.mxu0 0.0
    %4610 = vmatpush1.xpose.msra.mxu0 0.0
    %4611 = vmatprep.subr.mxu0 0.0
    %4612 = vmatpush1.xpose.msra.mxu0 0.0
    %4613 = vmatprep.subr.mxu0 0.0
    %4614 = vmatpush1.xpose.msra.mxu0 0.0
    %4615 = vmatprep.subr.mxu0 0.0
    %4616 = vmatpush1.xpose.msra.mxu0 0.0
    %4617 = vmatprep.subr.mxu0 0.0
    %4618 = vmatpush1.xpose.msra.mxu0 0.0
    %4619 = vmatprep.subr.mxu0 0.0
    %4620 = vmatpush1.xpose.msra.mxu0 0.0
    %4621 = vmatprep.subr.mxu0 0.0
    %4622 = vmatpush1.xpose.msra.mxu0 0.0
    %4623 = vmatprep.subr.mxu0 0.0
    %4624 = vmatpush1.xpose.msra.mxu0 0.0
    %4625 = vmatprep.subr.mxu0 0.0
    %4626 = vmatpush1.xpose.msra.mxu0 0.0
    %4627 = vmatprep.subr.mxu0 0.0
    %4628 = vmatpush1.xpose.msra.mxu0 0.0
    %4629 = vmatprep.subr.mxu0 0.0
    %4630 = vmatpush1.xpose.msra.mxu0 0.0
    %4631 = vmatprep.subr.mxu0 0.0
    %4632 = vmatpush1.xpose.msra.mxu0 0.0
    %4633 = vmatprep.subr.mxu0 0.0
    %4634 = vmatpush1.xpose.msra.mxu0 0.0
    %4635 = vmatprep.subr.mxu0 0.0
    %4636 = vmatpush1.xpose.msra.mxu0 0.0
    %4637 = vmatprep.subr.mxu0 0.0
    %4638 = vmatpush1.xpose.msra.mxu0 0.0
    %4639 = vmatprep.subr.mxu0 0.0
    %4640 = vmatpush1.xpose.msra.mxu0 0.0
    %4641 = vmatprep.mubr.f32.mxu0 0.0
    %4642 = vmatmul.mubr.f32.gmra.mrb[0].mxu0 %v4182
    %v4643 = vpop.f32.mrb[0].mxu0
    %v4644 = vadd.f32 0.0, %v4643
    %v4645 = vpop.f32.mrb[0].mxu0
    %4646 = vmatprep.mubr.f32.mxu0 0.0
    %4647 = vmatmul.mubr.f32.gmra.mrb[0].mxu0 %v4188
    %v4648 = vpop.f32.mrb[0].mxu0
    %v4649 = vadd.f32 0.0, %v4648
    %v4650 = vpop.f32.mrb[0].mxu0
    %4651 = vdwg.mxu0
    %v4652 = vsel %vm3921, %v4644, -1e+10
    %v4653 = vsel %vm3922, %v4649, -1e+10
    %v4654 = vmul.f32 %v4652, 0.35355338
    %v4655 = vmul.f32 %v4653, 0.35355338
    %v4656 = vsel %vm865, %v4654, -inf
    %4657 = vmax.xlane.f32.xlu0 %v4656
    %v4658 = vpop.xlane.xlu0 %4657
    %v4659 = vsel %vm865, %v4655, -inf
    %4660 = vmax.xlane.f32.xlu0 %v4659
    %v4661 = vpop.xlane.xlu0 %4660
    %v4662 = vsub.f32 %v4654, %v4658
    %v4663 = vsub.f32 %v4655, %v4661
    %v4664 = vmul.f32 %v4662, 1.442695
    %v4665 = vpow.pop %v4664
    %v4666 = vmul.f32 %v4663, 1.442695
    %v4667 = vpow.pop %v4666
    %v4668 = vsel %vm865, %v4665, 0.0
    %4669 = vadd.xlane.f32.xlu0 %v4668
    %v4670 = vpop.xlane.xlu0 %4669
    %v4671 = vsel %vm865, %v4667, 0.0
    %4672 = vadd.xlane.f32.xlu0 %v4671
    %v4673 = vpop.xlane.xlu0 %4672
    %v4674 = vrcp.pop %v4670
    %v4675 = vmul.f32 %v4665, %v4674
    %v4676 = vrcp.pop %v4673
    %v4677 = vmul.f32 %v4667, %v4676
    %v4679 = vsel %vm865, %v4675, 0
    %v4682 = vsel %vm865, %v4677, 0
    %4684 = vmatprep.subr.mxu0 0.0
    %4685 = vmatpush1.msra.mxu0 %v4490
    %4686 = vmatprep.subr.mxu0 0.0
    %4687 = vmatpush1.msra.mxu0 %v4496
    %4688 = vmatprep.subr.mxu0 0.0
    %4689 = vmatpush1.msra.mxu0 0.0
    %4690 = vmatprep.subr.mxu0 0.0
    %4691 = vmatpush1.msra.mxu0 0.0
    %4692 = vmatprep.subr.mxu0 0.0
    %4693 = vmatpush1.msra.mxu0 0.0
    %4694 = vmatprep.subr.mxu0 0.0
    %4695 = vmatpush1.msra.mxu0 0.0
    %4696 = vmatprep.subr.mxu0 0.0
    %4697 = vmatpush1.msra.mxu0 0.0
    %4698 = vmatprep.subr.mxu0 0.0
    %4699 = vmatpush1.msra.mxu0 0.0
    %4700 = vmatprep.subr.mxu0 0.0
    %4701 = vmatpush1.msra.mxu0 0.0
    %4702 = vmatprep.subr.mxu0 0.0
    %4703 = vmatpush1.msra.mxu0 0.0
    %4704 = vmatprep.subr.mxu0 0.0
    %4705 = vmatpush1.msra.mxu0 0.0
    %4706 = vmatprep.subr.mxu0 0.0
    %4707 = vmatpush1.msra.mxu0 0.0
    %4708 = vmatprep.subr.mxu0 0.0
    %4709 = vmatpush1.msra.mxu0 0.0
    %4710 = vmatprep.subr.mxu0 0.0
    %4711 = vmatpush1.msra.mxu0 0.0
    %4712 = vmatprep.subr.mxu0 0.0
    %4713 = vmatpush1.msra.mxu0 0.0
    %4714 = vmatprep.subr.mxu0 0.0
    %4715 = vmatpush1.msra.mxu0 0.0
    %4716 = vmatprep.subr.mxu0 0.0
    %4717 = vmatpush1.msra.mxu0 0.0
    %4718 = vmatprep.subr.mxu0 0.0
    %4719 = vmatpush1.msra.mxu0 0.0
    %4720 = vmatprep.subr.mxu0 0.0
    %4721 = vmatpush1.msra.mxu0 0.0
    %4722 = vmatprep.subr.mxu0 0.0
    %4723 = vmatpush1.msra.mxu0 0.0
    %4724 = vmatprep.subr.mxu0 0.0
    %4725 = vmatpush1.msra.mxu0 0.0
    %4726 = vmatprep.subr.mxu0 0.0
    %4727 = vmatpush1.msra.mxu0 0.0
    %4728 = vmatprep.subr.mxu0 0.0
    %4729 = vmatpush1.msra.mxu0 0.0
    %4730 = vmatprep.subr.mxu0 0.0
    %4731 = vmatpush1.msra.mxu0 0.0
    %4732 = vmatprep.subr.mxu0 0.0
    %4733 = vmatpush1.msra.mxu0 0.0
    %4734 = vmatprep.subr.mxu0 0.0
    %4735 = vmatpush1.msra.mxu0 0.0
    %4736 = vmatprep.subr.mxu0 0.0
    %4737 = vmatpush1.msra.mxu0 0.0
    %4738 = vmatprep.subr.mxu0 0.0
    %4739 = vmatpush1.msra.mxu0 0.0
    %4740 = vmatprep.subr.mxu0 0.0
    %4741 = vmatpush1.msra.mxu0 0.0
    %4742 = vmatprep.subr.mxu0 0.0
    %4743 = vmatpush1.msra.mxu0 0.0
    %4744 = vmatprep.subr.mxu0 0.0
    %4745 = vmatpush1.msra.mxu0 0.0
    %4746 = vmatprep.subr.mxu0 0.0
    %4747 = vmatpush1.msra.mxu0 0.0
    %4748 = vmatprep.mubr.f32.mxu0 0.0
    %4749 = vmatmul.mubr.f32.gmra.mrb[0].mxu0 %v4679
    %v4750 = vpop.f32.mrb[0].mxu0
    %v4751 = vadd.f32 0.0, %v4750
    %v4752 = vpop.f32.mrb[0].mxu0
    %4753 = vmatprep.mubr.f32.mxu0 0.0
    %4754 = vmatmul.mubr.f32.gmra.mrb[0].mxu0 %v4682
    %v4755 = vpop.f32.mrb[0].mxu0
    %v4756 = vadd.f32 0.0, %v4755
    %v4757 = vpop.f32.mrb[0].mxu0
    %4758 = vdwg.mxu0
    %4759 = vmatprep.subr.mxu0 0.0
    %4760 = vmatpush1.xpose.msra.mxu0 %v4338
    %4761 = vmatprep.subr.mxu0 0.0
    %4762 = vmatpush1.xpose.msra.mxu0 %v4344
    %4763 = vmatprep.subr.mxu0 0.0
    %4764 = vmatpush1.xpose.msra.mxu0 0.0
    %4765 = vmatprep.subr.mxu0 0.0
    %4766 = vmatpush1.xpose.msra.mxu0 0.0
    %4767 = vmatprep.subr.mxu0 0.0
    %4768 = vmatpush1.xpose.msra.mxu0 0.0
    %4769 = vmatprep.subr.mxu0 0.0
    %4770 = vmatpush1.xpose.msra.mxu0 0.0
    %4771 = vmatprep.subr.mxu0 0.0
    %4772 = vmatpush1.xpose.msra.mxu0 0.0
    %4773 = vmatprep.subr.mxu0 0.0
    %4774 = vmatpush1.xpose.msra.mxu0 0.0
    %4775 = vmatprep.subr.mxu0 0.0
    %4776 = vmatpush1.xpose.msra.mxu0 0.0
    %4777 = vmatprep.subr.mxu0 0.0
    %4778 = vmatpush1.xpose.msra.mxu0 0.0
    %4779 = vmatprep.subr.mxu0 0.0
    %4780 = vmatpush1.xpose.msra.mxu0 0.0
    %4781 = vmatprep.subr.mxu0 0.0
    %4782 = vmatpush1.xpose.msra.mxu0 0.0
    %4783 = vmatprep.subr.mxu0 0.0
    %4784 = vmatpush1.xpose.msra.mxu0 0.0
    %4785 = vmatprep.subr.mxu0 0.0
    %4786 = vmatpush1.xpose.msra.mxu0 0.0
    %4787 = vmatprep.subr.mxu0 0.0
    %4788 = vmatpush1.xpose.msra.mxu0 0.0
    %4789 = vmatprep.subr.mxu0 0.0
    %4790 = vmatpush1.xpose.msra.mxu0 0.0
    %4791 = vmatprep.subr.mxu0 0.0
    %4792 = vmatpush1.xpose.msra.mxu0 0.0
    %4793 = vmatprep.subr.mxu0 0.0
    %4794 = vmatpush1.xpose.msra.mxu0 0.0
    %4795 = vmatprep.subr.mxu0 0.0
    %4796 = vmatpush1.xpose.msra.mxu0 0.0
    %4797 = vmatprep.subr.mxu0 0.0
    %4798 = vmatpush1.xpose.msra.mxu0 0.0
    %4799 = vmatprep.subr.mxu0 0.0
    %4800 = vmatpush1.xpose.msra.mxu0 0.0
    %4801 = vmatprep.subr.mxu0 0.0
    %4802 = vmatpush1.xpose.msra.mxu0 0.0
    %4803 = vmatprep.subr.mxu0 0.0
    %4804 = vmatpush1.xpose.msra.mxu0 0.0
    %4805 = vmatprep.subr.mxu0 0.0
    %4806 = vmatpush1.xpose.msra.mxu0 0.0
    %4807 = vmatprep.subr.mxu0 0.0
    %4808 = vmatpush1.xpose.msra.mxu0 0.0
    %4809 = vmatprep.subr.mxu0 0.0
    %4810 = vmatpush1.xpose.msra.mxu0 0.0
    %4811 = vmatprep.subr.mxu0 0.0
    %4812 = vmatpush1.xpose.msra.mxu0 0.0
    %4813 = vmatprep.subr.mxu0 0.0
    %4814 = vmatpush1.xpose.msra.mxu0 0.0
    %4815 = vmatprep.subr.mxu0 0.0
    %4816 = vmatpush1.xpose.msra.mxu0 0.0
    %4817 = vmatprep.subr.mxu0 0.0
    %4818 = vmatpush1.xpose.msra.mxu0 0.0
    %4819 = vmatprep.subr.mxu0 0.0
    %4820 = vmatpush1.xpose.msra.mxu0 0.0
    %4821 = vmatprep.subr.mxu0 0.0
    %4822 = vmatpush1.xpose.msra.mxu0 0.0
    %4823 = vmatprep.mubr.f32.mxu0 0.0
    %4824 = vmatmul.mubr.f32.gmra.mrb[0].mxu0 %v4184
    %v4825 = vpop.f32.mrb[0].mxu0
    %v4826 = vadd.f32 0.0, %v4825
    %v4827 = vpop.f32.mrb[0].mxu0
    %4828 = vmatprep.mubr.f32.mxu0 0.0
    %4829 = vmatmul.mubr.f32.gmra.mrb[0].mxu0 %v4190
    %v4830 = vpop.f32.mrb[0].mxu0
    %v4831 = vadd.f32 0.0, %v4830
    %v4832 = vpop.f32.mrb[0].mxu0
    %4833 = vdwg.mxu0
    %v4834 = vsel %vm3921, %v4826, -1e+10
    %v4835 = vsel %vm3922, %v4831, -1e+10
    %v4836 = vmul.f32 %v4834, 0.35355338
    %v4837 = vmul.f32 %v4835, 0.35355338
    %v4838 = vsel %vm865, %v4836, -inf
    %4839 = vmax.xlane.f32.xlu0 %v4838
    %v4840 = vpop.xlane.xlu0 %4839
    %v4841 = vsel %vm865, %v4837, -inf
    %4842 = vmax.xlane.f32.xlu0 %v4841
    %v4843 = vpop.xlane.xlu0 %4842
    %v4844 = vsub.f32 %v4836, %v4840
    %v4845 = vsub.f32 %v4837, %v4843
    %v4846 = vmul.f32 %v4844, 1.442695
    %v4847 = vpow.pop %v4846
    %v4848 = vmul.f32 %v4845, 1.442695
    %v4849 = vpow.pop %v4848
    %v4850 = vsel %vm865, %v4847, 0.0
    %4851 = vadd.xlane.f32.xlu0 %v4850
    %v4852 = vpop.xlane.xlu0 %4851
    %v4853 = vsel %vm865, %v4849, 0.0
    %4854 = vadd.xlane.f32.xlu0 %v4853
    %v4855 = vpop.xlane.xlu0 %4854
    %v4856 = vrcp.pop %v4852
    %v4857 = vmul.f32 %v4847, %v4856
    %v4858 = vrcp.pop %v4855
    %v4859 = vmul.f32 %v4849, %v4858
    %v4861 = vsel %vm865, %v4857, 0
    %v4864 = vsel %vm865, %v4859, 0
    %4866 = vmatprep.subr.mxu0 0.0
    %4867 = vmatpush1.msra.mxu0 %v4492
    %4868 = vmatprep.subr.mxu0 0.0
    %4869 = vmatpush1.msra.mxu0 %v4498
    %4870 = vmatprep.subr.mxu0 0.0
    %4871 = vmatpush1.msra.mxu0 0.0
    %4872 = vmatprep.subr.mxu0 0.0
    %4873 = vmatpush1.msra.mxu0 0.0
    %4874 = vmatprep.subr.mxu0 0.0
    %4875 = vmatpush1.msra.mxu0 0.0
    %4876 = vmatprep.subr.mxu0 0.0
    %4877 = vmatpush1.msra.mxu0 0.0
    %4878 = vmatprep.subr.mxu0 0.0
    %4879 = vmatpush1.msra.mxu0 0.0
    %4880 = vmatprep.subr.mxu0 0.0
    %4881 = vmatpush1.msra.mxu0 0.0
    %4882 = vmatprep.subr.mxu0 0.0
    %4883 = vmatpush1.msra.mxu0 0.0
    %4884 = vmatprep.subr.mxu0 0.0
    %4885 = vmatpush1.msra.mxu0 0.0
    %4886 = vmatprep.subr.mxu0 0.0
    %4887 = vmatpush1.msra.mxu0 0.0
    %4888 = vmatprep.subr.mxu0 0.0
    %4889 = vmatpush1.msra.mxu0 0.0
    %4890 = vmatprep.subr.mxu0 0.0
    %4891 = vmatpush1.msra.mxu0 0.0
    %4892 = vmatprep.subr.mxu0 0.0
    %4893 = vmatpush1.msra.mxu0 0.0
    %4894 = vmatprep.subr.mxu0 0.0
    %4895 = vmatpush1.msra.mxu0 0.0
    %4896 = vmatprep.subr.mxu0 0.0
    %4897 = vmatpush1.msra.mxu0 0.0
    %4898 = vmatprep.subr.mxu0 0.0
    %4899 = vmatpush1.msra.mxu0 0.0
    %4900 = vmatprep.subr.mxu0 0.0
    %4901 = vmatpush1.msra.mxu0 0.0
    %4902 = vmatprep.subr.mxu0 0.0
    %4903 = vmatpush1.msra.mxu0 0.0
    %4904 = vmatprep.subr.mxu0 0.0
    %4905 = vmatpush1.msra.mxu0 0.0
    %4906 = vmatprep.subr.mxu0 0.0
    %4907 = vmatpush1.msra.mxu0 0.0
    %4908 = vmatprep.subr.mxu0 0.0
    %4909 = vmatpush1.msra.mxu0 0.0
    %4910 = vmatprep.subr.mxu0 0.0
    %4911 = vmatpush1.msra.mxu0 0.0
    %4912 = vmatprep.subr.mxu0 0.0
    %4913 = vmatpush1.msra.mxu0 0.0
    %4914 = vmatprep.subr.mxu0 0.0
    %4915 = vmatpush1.msra.mxu0 0.0
    %4916 = vmatprep.subr.mxu0 0.0
    %4917 = vmatpush1.msra.mxu0 0.0
    %4918 = vmatprep.subr.mxu0 0.0
    %4919 = vmatpush1.msra.mxu0 0.0
    %4920 = vmatprep.subr.mxu0 0.0
    %4921 = vmatpush1.msra.mxu0 0.0
    %4922 = vmatprep.subr.mxu0 0.0
    %4923 = vmatpush1.msra.mxu0 0.0
    %4924 = vmatprep.subr.mxu0 0.0
    %4925 = vmatpush1.msra.mxu0 0.0
    %4926 = vmatprep.subr.mxu0 0.0
    %4927 = vmatpush1.msra.mxu0 0.0
    %4928 = vmatprep.subr.mxu0 0.0
    %4929 = vmatpush1.msra.mxu0 0.0
    %4930 = vmatprep.mubr.f32.mxu0 0.0
    %4931 = vmatmul.mubr.f32.gmra.mrb[0].mxu0 %v4861
    %v4932 = vpop.f32.mrb[0].mxu0
    %v4933 = vadd.f32 0.0, %v4932
    %v4934 = vpop.f32.mrb[0].mxu0
    %4935 = vmatprep.mubr.f32.mxu0 0.0
    %4936 = vmatmul.mubr.f32.gmra.mrb[0].mxu0 %v4864
    %v4937 = vpop.f32.mrb[0].mxu0
    %v4938 = vadd.f32 0.0, %v4937
    %v4939 = vpop.f32.mrb[0].mxu0
    %4940 = vdwg.mxu0
    %4941 = vmatprep.subr.mxu0 0.0
    %4942 = vmatpush1.xpose.msra.mxu0 %v4413
    %4943 = vmatprep.subr.mxu0 0.0
    %4944 = vmatpush1.xpose.msra.mxu0 %v4419
    %4945 = vmatprep.subr.mxu0 0.0
    %4946 = vmatpush1.xpose.msra.mxu0 0.0
    %4947 = vmatprep.subr.mxu0 0.0
    %4948 = vmatpush1.xpose.msra.mxu0 0.0
    %4949 = vmatprep.subr.mxu0 0.0
    %4950 = vmatpush1.xpose.msra.mxu0 0.0
    %4951 = vmatprep.subr.mxu0 0.0
    %4952 = vmatpush1.xpose.msra.mxu0 0.0
    %4953 = vmatprep.subr.mxu0 0.0
    %4954 = vmatpush1.xpose.msra.mxu0 0.0
    %4955 = vmatprep.subr.mxu0 0.0
    %4956 = vmatpush1.xpose.msra.mxu0 0.0
    %4957 = vmatprep.subr.mxu0 0.0
    %4958 = vmatpush1.xpose.msra.mxu0 0.0
    %4959 = vmatprep.subr.mxu0 0.0
    %4960 = vmatpush1.xpose.msra.mxu0 0.0
    %4961 = vmatprep.subr.mxu0 0.0
    %4962 = vmatpush1.xpose.msra.mxu0 0.0
    %4963 = vmatprep.subr.mxu0 0.0
    %4964 = vmatpush1.xpose.msra.mxu0 0.0
    %4965 = vmatprep.subr.mxu0 0.0
    %4966 = vmatpush1.xpose.msra.mxu0 0.0
    %4967 = vmatprep.subr.mxu0 0.0
    %4968 = vmatpush1.xpose.msra.mxu0 0.0
    %4969 = vmatprep.subr.mxu0 0.0
    %4970 = vmatpush1.xpose.msra.mxu0 0.0
    %4971 = vmatprep.subr.mxu0 0.0
    %4972 = vmatpush1.xpose.msra.mxu0 0.0
    %4973 = vmatprep.subr.mxu0 0.0
    %4974 = vmatpush1.xpose.msra.mxu0 0.0
    %4975 = vmatprep.subr.mxu0 0.0
    %4976 = vmatpush1.xpose.msra.mxu0 0.0
    %4977 = vmatprep.subr.mxu0 0.0
    %4978 = vmatpush1.xpose.msra.mxu0 0.0
    %4979 = vmatprep.subr.mxu0 0.0
    %4980 = vmatpush1.xpose.msra.mxu0 0.0
    %4981 = vmatprep.subr.mxu0 0.0
    %4982 = vmatpush1.xpose.msra.mxu0 0.0
    %4983 = vmatprep.subr.mxu0 0.0
    %4984 = vmatpush1.xpose.msra.mxu0 0.0
    %4985 = vmatprep.subr.mxu0 0.0
    %4986 = vmatpush1.xpose.msra.mxu0 0.0
    %4987 = vmatprep.subr.mxu0 0.0
    %4988 = vmatpush1.xpose.msra.mxu0 0.0
    %4989 = vmatprep.subr.mxu0 0.0
    %4990 = vmatpush1.xpose.msra.mxu0 0.0
    %4991 = vmatprep.subr.mxu0 0.0
    %4992 = vmatpush1.xpose.msra.mxu0 0.0
    %4993 = vmatprep.subr.mxu0 0.0
    %4994 = vmatpush1.xpose.msra.mxu0 0.0
    %4995 = vmatprep.subr.mxu0 0.0
    %4996 = vmatpush1.xpose.msra.mxu0 0.0
    %4997 = vmatprep.subr.mxu0 0.0
    %4998 = vmatpush1.xpose.msra.mxu0 0.0
    %4999 = vmatprep.subr.mxu0 0.0
    %5000 = vmatpush1.xpose.msra.mxu0 0.0
    %5001 = vmatprep.subr.mxu0 0.0
    %5002 = vmatpush1.xpose.msra.mxu0 0.0
    %5003 = vmatprep.subr.mxu0 0.0
    %5004 = vmatpush1.xpose.msra.mxu0 0.0
    %5005 = vmatprep.mubr.f32.mxu0 0.0
    %5006 = vmatmul.mubr.f32.gmra.mrb[0].mxu0 %v4259
    %v5007 = vpop.f32.mrb[0].mxu0
    %v5008 = vadd.f32 0.0, %v5007
    %v5009 = vpop.f32.mrb[0].mxu0
    %5010 = vmatprep.mubr.f32.mxu0 0.0
    %5011 = vmatmul.mubr.f32.gmra.mrb[0].mxu0 %v4265
    %v5012 = vpop.f32.mrb[0].mxu0
    %v5013 = vadd.f32 0.0, %v5012
    %v5014 = vpop.f32.mrb[0].mxu0
    %5015 = vdwg.mxu0
    %v5016 = vsel %vm3921, %v5008, -1e+10
    %v5017 = vsel %vm3922, %v5013, -1e+10
    %v5018 = vmul.f32 %v5016, 0.35355338
    %v5019 = vmul.f32 %v5017, 0.35355338
    %v5020 = vsel %vm865, %v5018, -inf
    %5021 = vmax.xlane.f32.xlu0 %v5020
    %v5022 = vpop.xlane.xlu0 %5021
    %v5023 = vsel %vm865, %v5019, -inf
    %5024 = vmax.xlane.f32.xlu0 %v5023
    %v5025 = vpop.xlane.xlu0 %5024
    %v5026 = vsub.f32 %v5018, %v5022
    %v5027 = vsub.f32 %v5019, %v5025
    %v5028 = vmul.f32 %v5026, 1.442695
    %v5029 = vpow.pop %v5028
    %v5030 = vmul.f32 %v5027, 1.442695
    %v5031 = vpow.pop %v5030
    %v5032 = vsel %vm865, %v5029, 0.0
    %5033 = vadd.xlane.f32.xlu0 %v5032
    %v5034 = vpop.xlane.xlu0 %5033
    %v5035 = vsel %vm865, %v5031, 0.0
    %5036 = vadd.xlane.f32.xlu0 %v5035
    %v5037 = vpop.xlane.xlu0 %5036
    %v5038 = vrcp.pop %v5034
    %v5039 = vmul.f32 %v5029, %v5038
    %v5040 = vrcp.pop %v5037
    %v5041 = vmul.f32 %v5031, %v5040
    %v5043 = vsel %vm865, %v5039, 0
    %v5046 = vsel %vm865, %v5041, 0
    %5048 = vmatprep.subr.mxu0 0.0
    %5049 = vmatpush1.msra.mxu0 %v4567
    %5050 = vmatprep.subr.mxu0 0.0
    %5051 = vmatpush1.msra.mxu0 %v4573
    %5052 = vmatprep.subr.mxu0 0.0
    %5053 = vmatpush1.msra.mxu0 0.0
    %5054 = vmatprep.subr.mxu0 0.0
    %5055 = vmatpush1.msra.mxu0 0.0
    %5056 = vmatprep.subr.mxu0 0.0
    %5057 = vmatpush1.msra.mxu0 0.0
    %5058 = vmatprep.subr.mxu0 0.0
    %5059 = vmatpush1.msra.mxu0 0.0
    %5060 = vmatprep.subr.mxu0 0.0
    %5061 = vmatpush1.msra.mxu0 0.0
    %5062 = vmatprep.subr.mxu0 0.0
    %5063 = vmatpush1.msra.mxu0 0.0
    %5064 = vmatprep.subr.mxu0 0.0
    %5065 = vmatpush1.msra.mxu0 0.0
    %5066 = vmatprep.subr.mxu0 0.0
    %5067 = vmatpush1.msra.mxu0 0.0
    %5068 = vmatprep.subr.mxu0 0.0
    %5069 = vmatpush1.msra.mxu0 0.0
    %5070 = vmatprep.subr.mxu0 0.0
    %5071 = vmatpush1.msra.mxu0 0.0
    %5072 = vmatprep.subr.mxu0 0.0
    %5073 = vmatpush1.msra.mxu0 0.0
    %5074 = vmatprep.subr.mxu0 0.0
    %5075 = vmatpush1.msra.mxu0 0.0
    %5076 = vmatprep.subr.mxu0 0.0
    %5077 = vmatpush1.msra.mxu0 0.0
    %5078 = vmatprep.subr.mxu0 0.0
    %5079 = vmatpush1.msra.mxu0 0.0
    %5080 = vmatprep.subr.mxu0 0.0
    %5081 = vmatpush1.msra.mxu0 0.0
    %5082 = vmatprep.subr.mxu0 0.0
    %5083 = vmatpush1.msra.mxu0 0.0
    %5084 = vmatprep.subr.mxu0 0.0
    %5085 = vmatpush1.msra.mxu0 0.0
    %5086 = vmatprep.subr.mxu0 0.0
    %5087 = vmatpush1.msra.mxu0 0.0
    %5088 = vmatprep.subr.mxu0 0.0
    %5089 = vmatpush1.msra.mxu0 0.0
    %5090 = vmatprep.subr.mxu0 0.0
    %5091 = vmatpush1.msra.mxu0 0.0
    %5092 = vmatprep.subr.mxu0 0.0
    %5093 = vmatpush1.msra.mxu0 0.0
    %5094 = vmatprep.subr.mxu0 0.0
    %5095 = vmatpush1.msra.mxu0 0.0
    %5096 = vmatprep.subr.mxu0 0.0
    %5097 = vmatpush1.msra.mxu0 0.0
    %5098 = vmatprep.subr.mxu0 0.0
    %5099 = vmatpush1.msra.mxu0 0.0
    %5100 = vmatprep.subr.mxu0 0.0
    %5101 = vmatpush1.msra.mxu0 0.0
    %5102 = vmatprep.subr.mxu0 0.0
    %5103 = vmatpush1.msra.mxu0 0.0
    %5104 = vmatprep.subr.mxu0 0.0
    %5105 = vmatpush1.msra.mxu0 0.0
    %5106 = vmatprep.subr.mxu0 0.0
    %5107 = vmatpush1.msra.mxu0 0.0
    %5108 = vmatprep.subr.mxu0 0.0
    %5109 = vmatpush1.msra.mxu0 0.0
    %5110 = vmatprep.subr.mxu0 0.0
    %5111 = vmatpush1.msra.mxu0 0.0
    %5112 = vmatprep.mubr.f32.mxu0 0.0
    %5113 = vmatmul.mubr.f32.gmra.mrb[0].mxu0 %v5043
    %v5114 = vpop.f32.mrb[0].mxu0
    %v5115 = vadd.f32 0.0, %v5114
    %v5116 = vpop.f32.mrb[0].mxu0
    %5117 = vmatprep.mubr.f32.mxu0 0.0
    %5118 = vmatmul.mubr.f32.gmra.mrb[0].mxu0 %v5046
    %v5119 = vpop.f32.mrb[0].mxu0
    %v5120 = vadd.f32 0.0, %v5119
    %v5121 = vpop.f32.mrb[0].mxu0
    %5122 = vdwg.mxu0
    %5123 = vmatprep.subr.mxu0 0.0
    %5124 = vmatpush1.xpose.msra.mxu0 %v4415
    %5125 = vmatprep.subr.mxu0 0.0
    %5126 = vmatpush1.xpose.msra.mxu0 %v4421
    %5127 = vmatprep.subr.mxu0 0.0
    %5128 = vmatpush1.xpose.msra.mxu0 0.0
    %5129 = vmatprep.subr.mxu0 0.0
    %5130 = vmatpush1.xpose.msra.mxu0 0.0
    %5131 = vmatprep.subr.mxu0 0.0
    %5132 = vmatpush1.xpose.msra.mxu0 0.0
    %5133 = vmatprep.subr.mxu0 0.0
    %5134 = vmatpush1.xpose.msra.mxu0 0.0
    %5135 = vmatprep.subr.mxu0 0.0
    %5136 = vmatpush1.xpose.msra.mxu0 0.0
    %5137 = vmatprep.subr.mxu0 0.0
    %5138 = vmatpush1.xpose.msra.mxu0 0.0
    %5139 = vmatprep.subr.mxu0 0.0
    %5140 = vmatpush1.xpose.msra.mxu0 0.0
    %5141 = vmatprep.subr.mxu0 0.0
    %5142 = vmatpush1.xpose.msra.mxu0 0.0
    %5143 = vmatprep.subr.mxu0 0.0
    %5144 = vmatpush1.xpose.msra.mxu0 0.0
    %5145 = vmatprep.subr.mxu0 0.0
    %5146 = vmatpush1.xpose.msra.mxu0 0.0
    %5147 = vmatprep.subr.mxu0 0.0
    %5148 = vmatpush1.xpose.msra.mxu0 0.0
    %5149 = vmatprep.subr.mxu0 0.0
    %5150 = vmatpush1.xpose.msra.mxu0 0.0
    %5151 = vmatprep.subr.mxu0 0.0
    %5152 = vmatpush1.xpose.msra.mxu0 0.0
    %5153 = vmatprep.subr.mxu0 0.0
    %5154 = vmatpush1.xpose.msra.mxu0 0.0
    %5155 = vmatprep.subr.mxu0 0.0
    %5156 = vmatpush1.xpose.msra.mxu0 0.0
    %5157 = vmatprep.subr.mxu0 0.0
    %5158 = vmatpush1.xpose.msra.mxu0 0.0
    %5159 = vmatprep.subr.mxu0 0.0
    %5160 = vmatpush1.xpose.msra.mxu0 0.0
    %5161 = vmatprep.subr.mxu0 0.0
    %5162 = vmatpush1.xpose.msra.mxu0 0.0
    %5163 = vmatprep.subr.mxu0 0.0
    %5164 = vmatpush1.xpose.msra.mxu0 0.0
    %5165 = vmatprep.subr.mxu0 0.0
    %5166 = vmatpush1.xpose.msra.mxu0 0.0
    %5167 = vmatprep.subr.mxu0 0.0
    %5168 = vmatpush1.xpose.msra.mxu0 0.0
    %5169 = vmatprep.subr.mxu0 0.0
    %5170 = vmatpush1.xpose.msra.mxu0 0.0
    %5171 = vmatprep.subr.mxu0 0.0
    %5172 = vmatpush1.xpose.msra.mxu0 0.0
    %5173 = vmatprep.subr.mxu0 0.0
    %5174 = vmatpush1.xpose.msra.mxu0 0.0
    %5175 = vmatprep.subr.mxu0 0.0
    %5176 = vmatpush1.xpose.msra.mxu0 0.0
    %5177 = vmatprep.subr.mxu0 0.0
    %5178 = vmatpush1.xpose.msra.mxu0 0.0
    %5179 = vmatprep.subr.mxu0 0.0
    %5180 = vmatpush1.xpose.msra.mxu0 0.0
    %5181 = vmatprep.subr.mxu0 0.0
    %5182 = vmatpush1.xpose.msra.mxu0 0.0
    %5183 = vmatprep.subr.mxu0 0.0
    %5184 = vmatpush1.xpose.msra.mxu0 0.0
    %5185 = vmatprep.subr.mxu0 0.0
    %5186 = vmatpush1.xpose.msra.mxu0 0.0
    %5187 = vmatprep.mubr.f32.mxu0 0.0
    %5188 = vmatmul.mubr.f32.gmra.mrb[0].mxu0 %v4261
    %v5189 = vpop.f32.mrb[0].mxu0
    %v5190 = vadd.f32 0.0, %v5189
    %v5191 = vpop.f32.mrb[0].mxu0
    %5192 = vmatprep.mubr.f32.mxu0 0.0
    %5193 = vmatmul.mubr.f32.gmra.mrb[0].mxu0 %v4267
    %v5194 = vpop.f32.mrb[0].mxu0
    %v5195 = vadd.f32 0.0, %v5194
    %v5196 = vpop.f32.mrb[0].mxu0
    %5197 = vdwg.mxu0
    %v5198 = vsel %vm3921, %v5190, -1e+10
    %v5199 = vsel %vm3922, %v5195, -1e+10
    %v5200 = vmul.f32 %v5198, 0.35355338
    %v5201 = vmul.f32 %v5199, 0.35355338
    %v5202 = vsel %vm865, %v5200, -inf
    %5203 = vmax.xlane.f32.xlu0 %v5202
    %v5204 = vpop.xlane.xlu0 %5203
    %v5205 = vsel %vm865, %v5201, -inf
    %5206 = vmax.xlane.f32.xlu0 %v5205
    %v5207 = vpop.xlane.xlu0 %5206
    %v5208 = vsub.f32 %v5200, %v5204
    %v5209 = vsub.f32 %v5201, %v5207
    %v5210 = vmul.f32 %v5208, 1.442695
    %v5211 = vpow.pop %v5210
    %v5212 = vmul.f32 %v5209, 1.442695
    %v5213 = vpow.pop %v5212
    %v5214 = vsel %vm865, %v5211, 0.0
    %5215 = vadd.xlane.f32.xlu0 %v5214
    %v5216 = vpop.xlane.xlu0 %5215
    %v5217 = vsel %vm865, %v5213, 0.0
    %5218 = vadd.xlane.f32.xlu0 %v5217
    %v5219 = vpop.xlane.xlu0 %5218
    %v5220 = vrcp.pop %v5216
    %v5221 = vmul.f32 %v5211, %v5220
    %v5222 = vrcp.pop %v5219
    %v5223 = vmul.f32 %v5213, %v5222
    %v5225 = vsel %vm865, %v5221, 0
    %v5228 = vsel %vm865, %v5223, 0
    %5230 = vmatprep.subr.mxu0 0.0
    %5231 = vmatpush1.msra.mxu0 %v4569
    %5232 = vmatprep.subr.mxu0 0.0
    %5233 = vmatpush1.msra.mxu0 %v4575
    %5234 = vmatprep.subr.mxu0 0.0
    %5235 = vmatpush1.msra.mxu0 0.0
    %5236 = vmatprep.subr.mxu0 0.0
    %5237 = vmatpush1.msra.mxu0 0.0
    %5238 = vmatprep.subr.mxu0 0.0
    %5239 = vmatpush1.msra.mxu0 0.0
    %5240 = vmatprep.subr.mxu0 0.0
    %5241 = vmatpush1.msra.mxu0 0.0
    %5242 = vmatprep.subr.mxu0 0.0
    %5243 = vmatpush1.msra.mxu0 0.0
    %5244 = vmatprep.subr.mxu0 0.0
    %5245 = vmatpush1.msra.mxu0 0.0
    %5246 = vmatprep.subr.mxu0 0.0
    %5247 = vmatpush1.msra.mxu0 0.0
    %5248 = vmatprep.subr.mxu0 0.0
    %5249 = vmatpush1.msra.mxu0 0.0
    %5250 = vmatprep.subr.mxu0 0.0
    %5251 = vmatpush1.msra.mxu0 0.0
    %5252 = vmatprep.subr.mxu0 0.0
    %5253 = vmatpush1.msra.mxu0 0.0
    %5254 = vmatprep.subr.mxu0 0.0
    %5255 = vmatpush1.msra.mxu0 0.0
    %5256 = vmatprep.subr.mxu0 0.0
    %5257 = vmatpush1.msra.mxu0 0.0
    %5258 = vmatprep.subr.mxu0 0.0
    %5259 = vmatpush1.msra.mxu0 0.0
    %5260 = vmatprep.subr.mxu0 0.0
    %5261 = vmatpush1.msra.mxu0 0.0
    %5262 = vmatprep.subr.mxu0 0.0
    %5263 = vmatpush1.msra.mxu0 0.0
    %5264 = vmatprep.subr.mxu0 0.0
    %5265 = vmatpush1.msra.mxu0 0.0
    %5266 = vmatprep.subr.mxu0 0.0
    %5267 = vmatpush1.msra.mxu0 0.0
    %5268 = vmatprep.subr.mxu0 0.0
    %5269 = vmatpush1.msra.mxu0 0.0
    %5270 = vmatprep.subr.mxu0 0.0
    %5271 = vmatpush1.msra.mxu0 0.0
    %5272 = vmatprep.subr.mxu0 0.0
    %5273 = vmatpush1.msra.mxu0 0.0
    %5274 = vmatprep.subr.mxu0 0.0
    %5275 = vmatpush1.msra.mxu0 0.0
    %5276 = vmatprep.subr.mxu0 0.0
    %5277 = vmatpush1.msra.mxu0 0.0
    %5278 = vmatprep.subr.mxu0 0.0
    %5279 = vmatpush1.msra.mxu0 0.0
    %5280 = vmatprep.subr.mxu0 0.0
    %5281 = vmatpush1.msra.mxu0 0.0
    %5282 = vmatprep.subr.mxu0 0.0
    %5283 = vmatpush1.msra.mxu0 0.0
    %5284 = vmatprep.subr.mxu0 0.0
    %5285 = vmatpush1.msra.mxu0 0.0
    %5286 = vmatprep.subr.mxu0 0.0
    %5287 = vmatpush1.msra.mxu0 0.0
    %5288 = vmatprep.subr.mxu0 0.0
    %5289 = vmatpush1.msra.mxu0 0.0
    %5290 = vmatprep.subr.mxu0 0.0
    %5291 = vmatpush1.msra.mxu0 0.0
    %5292 = vmatprep.subr.mxu0 0.0
    %5293 = vmatpush1.msra.mxu0 0.0
    %5294 = vmatprep.mubr.f32.mxu0 0.0
    %5295 = vmatmul.mubr.f32.gmra.mrb[0].mxu0 %v5225
    %v5296 = vpop.f32.mrb[0].mxu0
    %v5297 = vadd.f32 0.0, %v5296
    %v5298 = vpop.f32.mrb[0].mxu0
    %5299 = vmatprep.mubr.f32.mxu0 0.0
    %5300 = vmatmul.mubr.f32.gmra.mrb[0].mxu0 %v5228
    %v5301 = vpop.f32.mrb[0].mxu0
    %v5302 = vadd.f32 0.0, %v5301
    %v5303 = vpop.f32.mrb[0].mxu0
    %5304 = vdwg.mxu0
    %v5305 = vlaneseq
    %v5306 = vshrl.u32 %v5305, 7
    %v5307 = vsub.s32 0, %v5306
    %v5308 = vrot.slane %v3918, %v5307
    %5309 = vmatprep.subr.mxu0 0.0
    %5310 = vmatpush1.msra.mxu0 %v3854
    %5311 = vmatprep.subr.mxu0 0.0
    %5312 = vmatpush1.msra.mxu0 %v3855
    %5313 = vmatprep.subr.mxu0 0.0
    %5314 = vmatpush1.msra.mxu0 %v3856
    %5315 = vmatprep.subr.mxu0 0.0
    %5316 = vmatpush1.msra.mxu0 %v3857
    %5317 = vmatprep.subr.mxu0 0.0
    %5318 = vmatpush1.msra.mxu0 %v3858
    %5319 = vmatprep.subr.mxu0 0.0
    %5320 = vmatpush1.msra.mxu0 %v3859
    %5321 = vmatprep.subr.mxu0 0.0
    %5322 = vmatpush1.msra.mxu0 %v3860
    %5323 = vmatprep.subr.mxu0 0.0
    %5324 = vmatpush1.msra.mxu0 %v3861
    %5325 = vmatprep.subr.mxu0 0.0
    %5326 = vmatpush1.msra.mxu0 %v3862
    %5327 = vmatprep.subr.mxu0 0.0
    %5328 = vmatpush1.msra.mxu0 %v3863
    %5329 = vmatprep.subr.mxu0 0.0
    %5330 = vmatpush1.msra.mxu0 %v3864
    %5331 = vmatprep.subr.mxu0 0.0
    %5332 = vmatpush1.msra.mxu0 %v3865
    %5333 = vmatprep.subr.mxu0 0.0
    %5334 = vmatpush1.msra.mxu0 %v3866
    %5335 = vmatprep.subr.mxu0 0.0
    %5336 = vmatpush1.msra.mxu0 %v3867
    %5337 = vmatprep.subr.mxu0 0.0
    %5338 = vmatpush1.msra.mxu0 %v3868
    %5339 = vmatprep.subr.mxu0 0.0
    %5340 = vmatpush1.msra.mxu0 %v3869
    %5341 = vmatprep.subr.mxu0 0.0
    %5342 = vmatpush1.msra.mxu0 %v3870
    %5343 = vmatprep.subr.mxu0 0.0
    %5344 = vmatpush1.msra.mxu0 %v3871
    %5345 = vmatprep.subr.mxu0 0.0
    %5346 = vmatpush1.msra.mxu0 %v3872
    %5347 = vmatprep.subr.mxu0 0.0
    %5348 = vmatpush1.msra.mxu0 %v3873
    %5349 = vmatprep.subr.mxu0 0.0
    %5350 = vmatpush1.msra.mxu0 %v3874
    %5351 = vmatprep.subr.mxu0 0.0
    %5352 = vmatpush1.msra.mxu0 %v3875
    %5353 = vmatprep.subr.mxu0 0.0
    %5354 = vmatpush1.msra.mxu0 %v3876
    %5355 = vmatprep.subr.mxu0 0.0
    %5356 = vmatpush1.msra.mxu0 %v3877
    %5357 = vmatprep.subr.mxu0 0.0
    %5358 = vmatpush1.msra.mxu0 %v3878
    %5359 = vmatprep.subr.mxu0 0.0
    %5360 = vmatpush1.msra.mxu0 %v3879
    %5361 = vmatprep.subr.mxu0 0.0
    %5362 = vmatpush1.msra.mxu0 %v3880
    %5363 = vmatprep.subr.mxu0 0.0
    %5364 = vmatpush1.msra.mxu0 %v3881
    %5365 = vmatprep.subr.mxu0 0.0
    %5366 = vmatpush1.msra.mxu0 %v3882
    %5367 = vmatprep.subr.mxu0 0.0
    %5368 = vmatpush1.msra.mxu0 %v3883
    %5369 = vmatprep.subr.mxu0 0.0
    %5370 = vmatpush1.msra.mxu0 %v3884
    %5371 = vmatprep.subr.mxu0 0.0
    %5372 = vmatpush1.msra.mxu0 %v3885
    %5373 = vmatprep.mubr.f32.mxu0 %v4933
    %5374 = vmatmul.mubr.f32.gmra.mrb[0].mxu0 %v4751
    %v5375 = vpop.f32.mrb[0].mxu0
    %v5376 = vadd.f32 %v5308, %v5375
    %v5377 = vpop.f32.mrb[0].mxu0
    %5378 = vmatprep.mubr.f32.mxu0 %v4938
    %5379 = vmatmul.mubr.f32.gmra.mrb[0].mxu0 %v4756
    %v5380 = vpop.f32.mrb[0].mxu0
    %v5381 = vadd.f32 %v5308, %v5380
    %v5382 = vpop.f32.mrb[0].mxu0
    %5383 = vdwg.mxu0
    %5384 = vmatprep.subr.mxu0 0.0
    %5385 = vmatpush1.msra.mxu0 %v3886
    %5386 = vmatprep.subr.mxu0 0.0
    %5387 = vmatpush1.msra.mxu0 %v3887
    %5388 = vmatprep.subr.mxu0 0.0
    %5389 = vmatpush1.msra.mxu0 %v3888
    %5390 = vmatprep.subr.mxu0 0.0
    %5391 = vmatpush1.msra.mxu0 %v3889
    %5392 = vmatprep.subr.mxu0 0.0
    %5393 = vmatpush1.msra.mxu0 %v3890
    %5394 = vmatprep.subr.mxu0 0.0
    %5395 = vmatpush1.msra.mxu0 %v3891
    %5396 = vmatprep.subr.mxu0 0.0
    %5397 = vmatpush1.msra.mxu0 %v3892
    %5398 = vmatprep.subr.mxu0 0.0
    %5399 = vmatpush1.msra.mxu0 %v3893
    %5400 = vmatprep.subr.mxu0 0.0
    %5401 = vmatpush1.msra.mxu0 %v3894
    %5402 = vmatprep.subr.mxu0 0.0
    %5403 = vmatpush1.msra.mxu0 %v3895
    %5404 = vmatprep.subr.mxu0 0.0
    %5405 = vmatpush1.msra.mxu0 %v3896
    %5406 = vmatprep.subr.mxu0 0.0
    %5407 = vmatpush1.msra.mxu0 %v3897
    %5408 = vmatprep.subr.mxu0 0.0
    %5409 = vmatpush1.msra.mxu0 %v3898
    %5410 = vmatprep.subr.mxu0 0.0
    %5411 = vmatpush1.msra.mxu0 %v3899
    %5412 = vmatprep.subr.mxu0 0.0
    %5413 = vmatpush1.msra.mxu0 %v3900
    %5414 = vmatprep.subr.mxu0 0.0
    %5415 = vmatpush1.msra.mxu0 %v3901
    %5416 = vmatprep.subr.mxu0 0.0
    %5417 = vmatpush1.msra.mxu0 %v3902
    %5418 = vmatprep.subr.mxu0 0.0
    %5419 = vmatpush1.msra.mxu0 %v3903
    %5420 = vmatprep.subr.mxu0 0.0
    %5421 = vmatpush1.msra.mxu0 %v3904
    %5422 = vmatprep.subr.mxu0 0.0
    %5423 = vmatpush1.msra.mxu0 %v3905
    %5424 = vmatprep.subr.mxu0 0.0
    %5425 = vmatpush1.msra.mxu0 %v3906
    %5426 = vmatprep.subr.mxu0 0.0
    %5427 = vmatpush1.msra.mxu0 %v3907
    %5428 = vmatprep.subr.mxu0 0.0
    %5429 = vmatpush1.msra.mxu0 %v3908
    %5430 = vmatprep.subr.mxu0 0.0
    %5431 = vmatpush1.msra.mxu0 %v3909
    %5432 = vmatprep.subr.mxu0 0.0
    %5433 = vmatpush1.msra.mxu0 %v3910
    %5434 = vmatprep.subr.mxu0 0.0
    %5435 = vmatpush1.msra.mxu0 %v3911
    %5436 = vmatprep.subr.mxu0 0.0
    %5437 = vmatpush1.msra.mxu0 %v3912
    %5438 = vmatprep.subr.mxu0 0.0
    %5439 = vmatpush1.msra.mxu0 %v3913
    %5440 = vmatprep.subr.mxu0 0.0
    %5441 = vmatpush1.msra.mxu0 %v3914
    %5442 = vmatprep.subr.mxu0 0.0
    %5443 = vmatpush1.msra.mxu0 %v3915
    %5444 = vmatprep.subr.mxu0 0.0
    %5445 = vmatpush1.msra.mxu0 %v3916
    %5446 = vmatprep.subr.mxu0 0.0
    %5447 = vmatpush1.msra.mxu0 %v3917
    %5448 = vmatprep.mubr.f32.mxu0 %v5297
    %5449 = vmatmul.mubr.f32.gmra.mrb[0].mxu0 %v5115
    %v5450 = vpop.f32.mrb[0].mxu0
    %v5451 = vadd.f32 %v5376, %v5450
    %v5452 = vpop.f32.mrb[0].mxu0
    %5453 = vmatprep.mubr.f32.mxu0 %v5302
    %5454 = vmatmul.mubr.f32.gmra.mrb[0].mxu0 %v5120
    %v5455 = vpop.f32.mrb[0].mxu0
    %v5456 = vadd.f32 %v5381, %v5455
    %v5457 = vpop.f32.mrb[0].mxu0
    %5458 = vdwg.mxu0
    %v5459 = vadd.f32 %v5451, %v3852
    %v5460 = vadd.f32 %v5456, %v3853
    %v5461 = vld [vmem:[#allocation4 + $0x878] sm:$0x1]
    %v5462 = vld [vmem:[#allocation4 + $0x880] sm:$0x1]
    %5463 = vadd.xlane.f32.xlu0 %v5459
    %v5464 = vpop.xlane.xlu0 %5463
    %5465 = vadd.xlane.f32.xlu0 %v5460
    %v5466 = vpop.xlane.xlu0 %5465
    %v5467 = vmul.f32 %v5464, 0.03125
    %v5468 = vmul.f32 %v5466, 0.03125
    %v5469 = vsub.f32 %v5459, %v5467
    %v5470 = vsub.f32 %v5460, %v5468
    %v5471 = vsel %vm1682, %v5469, 0.0
    %v5472 = vsel %vm1682, %v5470, 0.0
    %v5473 = vmul.f32 %v5471, %v5471
    %v5474 = vmul.f32 %v5472, %v5472
    %5475 = vadd.xlane.f32.xlu0 %v5473
    %v5476 = vpop.xlane.xlu0 %5475
    %5477 = vadd.xlane.f32.xlu0 %v5474
    %v5478 = vpop.xlane.xlu0 %5477
    %v5479 = vmul.f32 %v5476, 0.03125
    %v5480 = vmul.f32 %v5478, 0.03125
    %v5481 = vadd.f32 %v5479, 1e-05
    %v5482 = vadd.f32 %v5480, 1e-05
    %v5483 = vrsqrt.pop %v5481
    %v5484 = vrsqrt.pop %v5482
    %v5485 = vmul.f32 %v5471, %v5483
    %v5486 = vmul.f32 %v5472, %v5484
    %v5487 = vlaneseq
    %v5488 = vshrl.u32 %v5487, 7
    %v5489 = vsub.s32 0, %v5488
    %v5490 = vrot.slane %v5461, %v5489
    %v5491 = vmul.f32 %v5485, %v5490
    %v5492 = vmul.f32 %v5486, %v5490
    %v5493 = vlaneseq
    %v5494 = vshrl.u32 %v5493, 7
    %v5495 = vsub.s32 0, %v5494
    %v5496 = vrot.slane %v5462, %v5495
    %v5497 = vadd.f32 %v5491, %v5496
    %v5498 = vadd.f32 %v5492, %v5496
    %v5499 = vld [vmem:[#allocation4 + $0x888] sm:$0xff]
    %v5500 = vld [vmem:[#allocation4 + $0x890] sm:$0xff]
    %v5501 = vld [vmem:[#allocation4 + $0x898] sm:$0xff]
    %v5502 = vld [vmem:[#allocation4 + $0x8a0] sm:$0xff]
    %v5503 = vld [vmem:[#allocation4 + $0x8a8] sm:$0xff]
    %v5504 = vld [vmem:[#allocation4 + $0x8b0] sm:$0xff]
    %v5505 = vld [vmem:[#allocation4 + $0x8b8] sm:$0xff]
    %v5506 = vld [vmem:[#allocation4 + $0x8c0] sm:$0xff]
    %v5507 = vld [vmem:[#allocation4 + $0x8c8] sm:$0xff]
    %v5508 = vld [vmem:[#allocation4 + $0x8d0] sm:$0xff]
    %v5509 = vld [vmem:[#allocation4 + $0x8d8] sm:$0xff]
    %v5510 = vld [vmem:[#allocation4 + $0x8e0] sm:$0xff]
    %v5511 = vld [vmem:[#allocation4 + $0x8e8] sm:$0xff]
    %v5512 = vld [vmem:[#allocation4 + $0x8f0] sm:$0xff]
    %v5513 = vld [vmem:[#allocation4 + $0x8f8] sm:$0xff]
    %v5514 = vld [vmem:[#allocation4 + $0x900] sm:$0xff]
    %v5515 = vld [vmem:[#allocation4 + $0x908] sm:$0xff]
    %v5516 = vld [vmem:[#allocation4 + $0x910] sm:$0xff]
    %v5517 = vld [vmem:[#allocation4 + $0x918] sm:$0xff]
    %v5518 = vld [vmem:[#allocation4 + $0x920] sm:$0xff]
    %v5519 = vld [vmem:[#allocation4 + $0x928] sm:$0xff]
    %v5520 = vld [vmem:[#allocation4 + $0x930] sm:$0xff]
    %v5521 = vld [vmem:[#allocation4 + $0x938] sm:$0xff]
    %v5522 = vld [vmem:[#allocation4 + $0x940] sm:$0xff]
    %v5523 = vld [vmem:[#allocation4 + $0x948] sm:$0xff]
    %v5524 = vld [vmem:[#allocation4 + $0x950] sm:$0xff]
    %v5525 = vld [vmem:[#allocation4 + $0x958] sm:$0xff]
    %v5526 = vld [vmem:[#allocation4 + $0x960] sm:$0xff]
    %v5527 = vld [vmem:[#allocation4 + $0x968] sm:$0xff]
    %v5528 = vld [vmem:[#allocation4 + $0x970] sm:$0xff]
    %v5529 = vld [vmem:[#allocation4 + $0x978] sm:$0xff]
    %v5530 = vld [vmem:[#allocation4 + $0x980] sm:$0xff]
    %v5531 = vld [vmem:[#allocation4 + $0x988] sm:$0xff]
    %v5532 = vld [vmem:[#allocation4 + $0x990] sm:$0xff]
    %v5533 = vld [vmem:[#allocation4 + $0x998] sm:$0xff]
    %v5534 = vld [vmem:[#allocation4 + $0x9a0] sm:$0xff]
    %v5535 = vld [vmem:[#allocation4 + $0x9a8] sm:$0xff]
    %v5536 = vld [vmem:[#allocation4 + $0x9b0] sm:$0xff]
    %v5537 = vld [vmem:[#allocation4 + $0x9b8] sm:$0xff]
    %v5538 = vld [vmem:[#allocation4 + $0x9c0] sm:$0xff]
    %v5539 = vld [vmem:[#allocation4 + $0x9c8] sm:$0xff]
    %v5540 = vld [vmem:[#allocation4 + $0x9d0] sm:$0xff]
    %v5541 = vld [vmem:[#allocation4 + $0x9d8] sm:$0xff]
    %v5542 = vld [vmem:[#allocation4 + $0x9e0] sm:$0xff]
    %v5543 = vld [vmem:[#allocation4 + $0x9e8] sm:$0xff]
    %v5544 = vld [vmem:[#allocation4 + $0x9f0] sm:$0xff]
    %v5545 = vld [vmem:[#allocation4 + $0x9f8] sm:$0xff]
    %v5546 = vld [vmem:[#allocation4 + $0xa00] sm:$0xff]
    %v5547 = vld [vmem:[#allocation4 + $0xa08] sm:$0xff]
    %v5548 = vld [vmem:[#allocation4 + $0xa10] sm:$0xff]
    %v5549 = vld [vmem:[#allocation4 + $0xa18] sm:$0xff]
    %v5550 = vld [vmem:[#allocation4 + $0xa20] sm:$0xff]
    %v5551 = vld [vmem:[#allocation4 + $0xa28] sm:$0xff]
    %v5552 = vld [vmem:[#allocation4 + $0xa30] sm:$0xff]
    %v5553 = vld [vmem:[#allocation4 + $0xa38] sm:$0xff]
    %v5554 = vld [vmem:[#allocation4 + $0xa40] sm:$0xff]
    %v5555 = vld [vmem:[#allocation4 + $0xa48] sm:$0xff]
    %v5556 = vld [vmem:[#allocation4 + $0xa50] sm:$0xff]
    %v5557 = vld [vmem:[#allocation4 + $0xa58] sm:$0xff]
    %v5558 = vld [vmem:[#allocation4 + $0xa60] sm:$0xff]
    %v5559 = vld [vmem:[#allocation4 + $0xa68] sm:$0xff]
    %v5560 = vld [vmem:[#allocation4 + $0xa70] sm:$0xff]
    %v5561 = vld [vmem:[#allocation4 + $0xa78] sm:$0xff]
    %v5562 = vld [vmem:[#allocation4 + $0xa80] sm:$0xff]
    %v5563 = vld [vmem:[#allocation4 + $0xb88] sm:$0x1]
    %v5564 = vld [vmem:[#allocation2 + $0x1200] sm:$0xff]
    %v5565 = vld [vmem:[#allocation2 + $0x1208] sm:$0xff]
    %v5566 = vld [vmem:[#allocation2 + $0x1210] sm:$0xff]
    %v5567 = vld [vmem:[#allocation2 + $0x1218] sm:$0xff]
    %v5568 = vld [vmem:[#allocation2 + $0x1260] sm:$0xff]
    %v5569 = vld [vmem:[#allocation2 + $0x1268] sm:$0xff]
    %v5570 = vld [vmem:[#allocation2 + $0x1270] sm:$0xff]
    %v5571 = vld [vmem:[#allocation2 + $0x1278] sm:$0xff]
    %v5572 = vld [vmem:[#allocation2 + $0x12c0] sm:$0xff]
    %v5573 = vld [vmem:[#allocation2 + $0x12c8] sm:$0xff]
    %v5574 = vld [vmem:[#allocation2 + $0x12d0] sm:$0xff]
    %v5575 = vld [vmem:[#allocation2 + $0x12d8] sm:$0xff]
    %v5576 = vld [vmem:[#allocation2 + $0x1320] sm:$0xff]
    %v5577 = vld [vmem:[#allocation2 + $0x1328] sm:$0xff]
    %v5578 = vld [vmem:[#allocation2 + $0x1330] sm:$0xff]
    %v5579 = vld [vmem:[#allocation2 + $0x1338] sm:$0xff]
    %v5580 = vld [vmem:[#allocation2 + $0x1380] sm:$0xff]
    %v5581 = vld [vmem:[#allocation2 + $0x1388] sm:$0xff]
    %v5582 = vld [vmem:[#allocation2 + $0x1390] sm:$0xff]
    %v5583 = vld [vmem:[#allocation2 + $0x1398] sm:$0xff]
    %v5584 = vld [vmem:[#allocation2 + $0x13e0] sm:$0xff]
    %v5585 = vld [vmem:[#allocation2 + $0x13e8] sm:$0xff]
    %v5586 = vld [vmem:[#allocation2 + $0x13f0] sm:$0xff]
    %v5587 = vld [vmem:[#allocation2 + $0x13f8] sm:$0xff]
    %v5588 = vld [vmem:[#allocation2 + $0x1440] sm:$0xff]
    %v5589 = vld [vmem:[#allocation2 + $0x1448] sm:$0xff]
    %v5590 = vld [vmem:[#allocation2 + $0x1450] sm:$0xff]
    %v5591 = vld [vmem:[#allocation2 + $0x1458] sm:$0xff]
    %v5592 = vld [vmem:[#allocation2 + $0x14a0] sm:$0xff]
    %v5593 = vld [vmem:[#allocation2 + $0x14a8] sm:$0xff]
    %v5594 = vld [vmem:[#allocation2 + $0x14b0] sm:$0xff]
    %v5595 = vld [vmem:[#allocation2 + $0x14b8] sm:$0xff]
    %v5596 = vld [vmem:[#allocation2 + $0x1500] sm:$0xff]
    %v5597 = vld [vmem:[#allocation2 + $0x1508] sm:$0xff]
    %v5598 = vld [vmem:[#allocation2 + $0x1510] sm:$0xff]
    %v5599 = vld [vmem:[#allocation2 + $0x1518] sm:$0xff]
    %v5600 = vld [vmem:[#allocation2 + $0x1560] sm:$0xff]
    %v5601 = vld [vmem:[#allocation2 + $0x1568] sm:$0xff]
    %v5602 = vld [vmem:[#allocation2 + $0x1570] sm:$0xff]
    %v5603 = vld [vmem:[#allocation2 + $0x1578] sm:$0xff]
    %v5604 = vld [vmem:[#allocation2 + $0x15c0] sm:$0xff]
    %v5605 = vld [vmem:[#allocation2 + $0x15c8] sm:$0xff]
    %v5606 = vld [vmem:[#allocation2 + $0x15d0] sm:$0xff]
    %v5607 = vld [vmem:[#allocation2 + $0x15d8] sm:$0xff]
    %v5608 = vld [vmem:[#allocation2 + $0x1620] sm:$0xff]
    %v5609 = vld [vmem:[#allocation2 + $0x1628] sm:$0xff]
    %v5610 = vld [vmem:[#allocation2 + $0x1630] sm:$0xff]
    %v5611 = vld [vmem:[#allocation2 + $0x1638] sm:$0xff]
    %v5612 = vld [vmem:[#allocation2 + $0x1680] sm:$0xff]
    %v5613 = vld [vmem:[#allocation2 + $0x1688] sm:$0xff]
    %v5614 = vld [vmem:[#allocation2 + $0x1690] sm:$0xff]
    %v5615 = vld [vmem:[#allocation2 + $0x1698] sm:$0xff]
    %v5616 = vld [vmem:[#allocation2 + $0x16e0] sm:$0xff]
    %v5617 = vld [vmem:[#allocation2 + $0x16e8] sm:$0xff]
    %v5618 = vld [vmem:[#allocation2 + $0x16f0] sm:$0xff]
    %v5619 = vld [vmem:[#allocation2 + $0x16f8] sm:$0xff]
    %v5620 = vld [vmem:[#allocation2 + $0x1740] sm:$0xff]
    %v5621 = vld [vmem:[#allocation2 + $0x1748] sm:$0xff]
    %v5622 = vld [vmem:[#allocation2 + $0x1750] sm:$0xff]
    %v5623 = vld [vmem:[#allocation2 + $0x1758] sm:$0xff]
    %v5624 = vld [vmem:[#allocation2 + $0x17a0] sm:$0xff]
    %v5625 = vld [vmem:[#allocation2 + $0x17a8] sm:$0xff]
    %v5626 = vld [vmem:[#allocation2 + $0x17b0] sm:$0xff]
    %v5627 = vld [vmem:[#allocation2 + $0x17b8] sm:$0xff]
    %v5628 = vld [vmem:[#allocation2 + $0x1220] sm:$0xff]
    %v5629 = vld [vmem:[#allocation2 + $0x1228] sm:$0xff]
    %v5630 = vld [vmem:[#allocation2 + $0x1230] sm:$0xff]
    %v5631 = vld [vmem:[#allocation2 + $0x1238] sm:$0xff]
    %v5632 = vld [vmem:[#allocation2 + $0x1240] sm:$0xff]
    %v5633 = vld [vmem:[#allocation2 + $0x1248] sm:$0xff]
    %v5634 = vld [vmem:[#allocation2 + $0x1250] sm:$0xff]
    %v5635 = vld [vmem:[#allocation2 + $0x1258] sm:$0xff]
    %v5636 = vld [vmem:[#allocation2 + $0x1280] sm:$0xff]
    %v5637 = vld [vmem:[#allocation2 + $0x1288] sm:$0xff]
    %v5638 = vld [vmem:[#allocation2 + $0x1290] sm:$0xff]
    %v5639 = vld [vmem:[#allocation2 + $0x1298] sm:$0xff]
    %v5640 = vld [vmem:[#allocation2 + $0x12a0] sm:$0xff]
    %v5641 = vld [vmem:[#allocation2 + $0x12a8] sm:$0xff]
    %v5642 = vld [vmem:[#allocation2 + $0x12b0] sm:$0xff]
    %v5643 = vld [vmem:[#allocation2 + $0x12b8] sm:$0xff]
    %v5644 = vld [vmem:[#allocation2 + $0x12e0] sm:$0xff]
    %v5645 = vld [vmem:[#allocation2 + $0x12e8] sm:$0xff]
    %v5646 = vld [vmem:[#allocation2 + $0x12f0] sm:$0xff]
    %v5647 = vld [vmem:[#allocation2 + $0x12f8] sm:$0xff]
    %v5648 = vld [vmem:[#allocation2 + $0x1300] sm:$0xff]
    %v5649 = vld [vmem:[#allocation2 + $0x1308] sm:$0xff]
    %v5650 = vld [vmem:[#allocation2 + $0x1310] sm:$0xff]
    %v5651 = vld [vmem:[#allocation2 + $0x1318] sm:$0xff]
    %v5652 = vld [vmem:[#allocation2 + $0x1340] sm:$0xff]
    %v5653 = vld [vmem:[#allocation2 + $0x1348] sm:$0xff]
    %v5654 = vld [vmem:[#allocation2 + $0x1350] sm:$0xff]
    %v5655 = vld [vmem:[#allocation2 + $0x1358] sm:$0xff]
    %v5656 = vld [vmem:[#allocation2 + $0x1360] sm:$0xff]
    %v5657 = vld [vmem:[#allocation2 + $0x1368] sm:$0xff]
    %v5658 = vld [vmem:[#allocation2 + $0x1370] sm:$0xff]
    %v5659 = vld [vmem:[#allocation2 + $0x1378] sm:$0xff]
    %v5660 = vld [vmem:[#allocation2 + $0x13a0] sm:$0xff]
    %v5661 = vld [vmem:[#allocation2 + $0x13a8] sm:$0xff]
    %v5662 = vld [vmem:[#allocation2 + $0x13b0] sm:$0xff]
    %v5663 = vld [vmem:[#allocation2 + $0x13b8] sm:$0xff]
    %v5664 = vld [vmem:[#allocation2 + $0x13c0] sm:$0xff]
    %v5665 = vld [vmem:[#allocation2 + $0x13c8] sm:$0xff]
    %v5666 = vld [vmem:[#allocation2 + $0x13d0] sm:$0xff]
    %v5667 = vld [vmem:[#allocation2 + $0x13d8] sm:$0xff]
    %v5668 = vld [vmem:[#allocation2 + $0x1400] sm:$0xff]
    %v5669 = vld [vmem:[#allocation2 + $0x1408] sm:$0xff]
    %v5670 = vld [vmem:[#allocation2 + $0x1410] sm:$0xff]
    %v5671 = vld [vmem:[#allocation2 + $0x1418] sm:$0xff]
    %v5672 = vld [vmem:[#allocation2 + $0x1420] sm:$0xff]
    %v5673 = vld [vmem:[#allocation2 + $0x1428] sm:$0xff]
    %v5674 = vld [vmem:[#allocation2 + $0x1430] sm:$0xff]
    %v5675 = vld [vmem:[#allocation2 + $0x1438] sm:$0xff]
    %v5676 = vld [vmem:[#allocation2 + $0x1460] sm:$0xff]
    %v5677 = vld [vmem:[#allocation2 + $0x1468] sm:$0xff]
    %v5678 = vld [vmem:[#allocation2 + $0x1470] sm:$0xff]
    %v5679 = vld [vmem:[#allocation2 + $0x1478] sm:$0xff]
    %v5680 = vld [vmem:[#allocation2 + $0x1480] sm:$0xff]
    %v5681 = vld [vmem:[#allocation2 + $0x1488] sm:$0xff]
    %v5682 = vld [vmem:[#allocation2 + $0x1490] sm:$0xff]
    %v5683 = vld [vmem:[#allocation2 + $0x1498] sm:$0xff]
    %v5684 = vld [vmem:[#allocation2 + $0x14c0] sm:$0xff]
    %v5685 = vld [vmem:[#allocation2 + $0x14c8] sm:$0xff]
    %v5686 = vld [vmem:[#allocation2 + $0x14d0] sm:$0xff]
    %v5687 = vld [vmem:[#allocation2 + $0x14d8] sm:$0xff]
    %v5688 = vld [vmem:[#allocation2 + $0x14e0] sm:$0xff]
    %v5689 = vld [vmem:[#allocation2 + $0x14e8] sm:$0xff]
    %v5690 = vld [vmem:[#allocation2 + $0x14f0] sm:$0xff]
    %v5691 = vld [vmem:[#allocation2 + $0x14f8] sm:$0xff]
    %v5692 = vld [vmem:[#allocation2 + $0x1520] sm:$0xff]
    %v5693 = vld [vmem:[#allocation2 + $0x1528] sm:$0xff]
    %v5694 = vld [vmem:[#allocation2 + $0x1530] sm:$0xff]
    %v5695 = vld [vmem:[#allocation2 + $0x1538] sm:$0xff]
    %v5696 = vld [vmem:[#allocation2 + $0x1540] sm:$0xff]
    %v5697 = vld [vmem:[#allocation2 + $0x1548] sm:$0xff]
    %v5698 = vld [vmem:[#allocation2 + $0x1550] sm:$0xff]
    %v5699 = vld [vmem:[#allocation2 + $0x1558] sm:$0xff]
    %v5700 = vld [vmem:[#allocation2 + $0x1580] sm:$0xff]
    %v5701 = vld [vmem:[#allocation2 + $0x1588] sm:$0xff]
    %v5702 = vld [vmem:[#allocation2 + $0x1590] sm:$0xff]
    %v5703 = vld [vmem:[#allocation2 + $0x1598] sm:$0xff]
    %v5704 = vld [vmem:[#allocation2 + $0x15a0] sm:$0xff]
    %v5705 = vld [vmem:[#allocation2 + $0x15a8] sm:$0xff]
    %v5706 = vld [vmem:[#allocation2 + $0x15b0] sm:$0xff]
    %v5707 = vld [vmem:[#allocation2 + $0x15b8] sm:$0xff]
    %v5708 = vld [vmem:[#allocation2 + $0x15e0] sm:$0xff]
    %v5709 = vld [vmem:[#allocation2 + $0x15e8] sm:$0xff]
    %v5710 = vld [vmem:[#allocation2 + $0x15f0] sm:$0xff]
    %v5711 = vld [vmem:[#allocation2 + $0x15f8] sm:$0xff]
    %v5712 = vld [vmem:[#allocation2 + $0x1600] sm:$0xff]
    %v5713 = vld [vmem:[#allocation2 + $0x1608] sm:$0xff]
    %v5714 = vld [vmem:[#allocation2 + $0x1610] sm:$0xff]
    %v5715 = vld [vmem:[#allocation2 + $0x1618] sm:$0xff]
    %v5716 = vld [vmem:[#allocation2 + $0x1640] sm:$0xff]
    %v5717 = vld [vmem:[#allocation2 + $0x1648] sm:$0xff]
    %v5718 = vld [vmem:[#allocation2 + $0x1650] sm:$0xff]
    %v5719 = vld [vmem:[#allocation2 + $0x1658] sm:$0xff]
    %v5720 = vld [vmem:[#allocation2 + $0x1660] sm:$0xff]
    %v5721 = vld [vmem:[#allocation2 + $0x1668] sm:$0xff]
    %v5722 = vld [vmem:[#allocation2 + $0x1670] sm:$0xff]
    %v5723 = vld [vmem:[#allocation2 + $0x1678] sm:$0xff]
    %v5724 = vld [vmem:[#allocation2 + $0x16a0] sm:$0xff]
    %v5725 = vld [vmem:[#allocation2 + $0x16a8] sm:$0xff]
    %v5726 = vld [vmem:[#allocation2 + $0x16b0] sm:$0xff]
    %v5727 = vld [vmem:[#allocation2 + $0x16b8] sm:$0xff]
    %v5728 = vld [vmem:[#allocation2 + $0x16c0] sm:$0xff]
    %v5729 = vld [vmem:[#allocation2 + $0x16c8] sm:$0xff]
    %v5730 = vld [vmem:[#allocation2 + $0x16d0] sm:$0xff]
    %v5731 = vld [vmem:[#allocation2 + $0x16d8] sm:$0xff]
    %v5732 = vld [vmem:[#allocation2 + $0x1700] sm:$0xff]
    %v5733 = vld [vmem:[#allocation2 + $0x1708] sm:$0xff]
    %v5734 = vld [vmem:[#allocation2 + $0x1710] sm:$0xff]
    %v5735 = vld [vmem:[#allocation2 + $0x1718] sm:$0xff]
    %v5736 = vld [vmem:[#allocation2 + $0x1720] sm:$0xff]
    %v5737 = vld [vmem:[#allocation2 + $0x1728] sm:$0xff]
    %v5738 = vld [vmem:[#allocation2 + $0x1730] sm:$0xff]
    %v5739 = vld [vmem:[#allocation2 + $0x1738] sm:$0xff]
    %v5740 = vld [vmem:[#allocation2 + $0x1760] sm:$0xff]
    %v5741 = vld [vmem:[#allocation2 + $0x1768] sm:$0xff]
    %v5742 = vld [vmem:[#allocation2 + $0x1770] sm:$0xff]
    %v5743 = vld [vmem:[#allocation2 + $0x1778] sm:$0xff]
    %v5744 = vld [vmem:[#allocation2 + $0x1780] sm:$0xff]
    %v5745 = vld [vmem:[#allocation2 + $0x1788] sm:$0xff]
    %v5746 = vld [vmem:[#allocation2 + $0x1790] sm:$0xff]
    %v5747 = vld [vmem:[#allocation2 + $0x1798] sm:$0xff]
    %v5748 = vld [vmem:[#allocation2 + $0x17c0] sm:$0xff]
    %v5749 = vld [vmem:[#allocation2 + $0x17c8] sm:$0xff]
    %v5750 = vld [vmem:[#allocation2 + $0x17d0] sm:$0xff]
    %v5751 = vld [vmem:[#allocation2 + $0x17d8] sm:$0xff]
    %v5752 = vld [vmem:[#allocation2 + $0x17e0] sm:$0xff]
    %v5753 = vld [vmem:[#allocation2 + $0x17e8] sm:$0xff]
    %v5754 = vld [vmem:[#allocation2 + $0x17f0] sm:$0xff]
    %v5755 = vld [vmem:[#allocation2 + $0x17f8] sm:$0xff]
    %5756 = vmatprep.subr.mxu0 %v5565
    %5757 = vmatpush1.msra.mxu0 %v5564
    %5758 = vmatprep.subr.mxu0 %v5569
    %5759 = vmatpush1.msra.mxu0 %v5568
    %5760 = vmatprep.subr.mxu0 %v5573
    %5761 = vmatpush1.msra.mxu0 %v5572
    %5762 = vmatprep.subr.mxu0 %v5577
    %5763 = vmatpush1.msra.mxu0 %v5576
    %5764 = vmatprep.subr.mxu0 %v5581
    %5765 = vmatpush1.msra.mxu0 %v5580
    %5766 = vmatprep.subr.mxu0 %v5585
    %5767 = vmatpush1.msra.mxu0 %v5584
    %5768 = vmatprep.subr.mxu0 %v5589
    %5769 = vmatpush1.msra.mxu0 %v5588
    %5770 = vmatprep.subr.mxu0 %v5593
    %5771 = vmatpush1.msra.mxu0 %v5592
    %5772 = vmatprep.subr.mxu0 %v5597
    %5773 = vmatpush1.msra.mxu0 %v5596
    %5774 = vmatprep.subr.mxu0 %v5601
    %5775 = vmatpush1.msra.mxu0 %v5600
    %5776 = vmatprep.subr.mxu0 %v5605
    %5777 = vmatpush1.msra.mxu0 %v5604
    %5778 = vmatprep.subr.mxu0 %v5609
    %5779 = vmatpush1.msra.mxu0 %v5608
    %5780 = vmatprep.subr.mxu0 %v5613
    %5781 = vmatpush1.msra.mxu0 %v5612
    %5782 = vmatprep.subr.mxu0 %v5617
    %5783 = vmatpush1.msra.mxu0 %v5616
    %5784 = vmatprep.subr.mxu0 %v5621
    %5785 = vmatpush1.msra.mxu0 %v5620
    %5786 = vmatprep.subr.mxu0 %v5625
    %5787 = vmatpush1.msra.mxu0 %v5624
    %5788 = vmatprep.subr.mxu0 0.0
    %5789 = vmatpush1.msra.mxu0 0.0
    %5790 = vmatprep.subr.mxu0 0.0
    %5791 = vmatpush1.msra.mxu0 0.0
    %5792 = vmatprep.subr.mxu0 0.0
    %5793 = vmatpush1.msra.mxu0 0.0
    %5794 = vmatprep.subr.mxu0 0.0
    %5795 = vmatpush1.msra.mxu0 0.0
    %5796 = vmatprep.subr.mxu0 0.0
    %5797 = vmatpush1.msra.mxu0 0.0
    %5798 = vmatprep.subr.mxu0 0.0
    %5799 = vmatpush1.msra.mxu0 0.0
    %5800 = vmatprep.subr.mxu0 0.0
    %5801 = vmatpush1.msra.mxu0 0.0
    %5802 = vmatprep.subr.mxu0 0.0
    %5803 = vmatpush1.msra.mxu0 0.0
    %5804 = vmatprep.subr.mxu0 0.0
    %5805 = vmatpush1.msra.mxu0 0.0
    %5806 = vmatprep.subr.mxu0 0.0
    %5807 = vmatpush1.msra.mxu0 0.0
    %5808 = vmatprep.subr.mxu0 0.0
    %5809 = vmatpush1.msra.mxu0 0.0
    %5810 = vmatprep.subr.mxu0 0.0
    %5811 = vmatpush1.msra.mxu0 0.0
    %5812 = vmatprep.subr.mxu0 0.0
    %5813 = vmatpush1.msra.mxu0 0.0
    %5814 = vmatprep.subr.mxu0 0.0
    %5815 = vmatpush1.msra.mxu0 0.0
    %5816 = vmatprep.subr.mxu0 0.0
    %5817 = vmatpush1.msra.mxu0 0.0
    %5818 = vmatprep.subr.mxu0 0.0
    %5819 = vmatpush1.msra.mxu0 0.0
    %5820 = vmatprep.mubr.f32.mxu0 0.0
    %5821 = vmatmul.mubr.f32.gmra.mrb[0].mxu0 %v5497
    %v5822 = vpop.f32.mrb[0].mxu0
    %v5823 = vadd.f32 0.0, %v5822
    %v5824 = vpop.f32.mrb[0].mxu0
    %v5825 = vadd.f32 0.0, %v5824
    %5826 = vmatprep.mubr.f32.mxu0 0.0
    %5827 = vmatmul.mubr.f32.gmra.mrb[0].mxu0 %v5498
    %v5828 = vpop.f32.mrb[0].mxu0
    %v5829 = vadd.f32 0.0, %v5828
    %v5830 = vpop.f32.mrb[0].mxu0
    %v5831 = vadd.f32 0.0, %v5830
    %5832 = vdwg.mxu0
    %5833 = vmatprep.subr.mxu0 %v5567
    %5834 = vmatpush1.msra.mxu0 %v5566
    %5835 = vmatprep.subr.mxu0 %v5571
    %5836 = vmatpush1.msra.mxu0 %v5570
    %5837 = vmatprep.subr.mxu0 %v5575
    %5838 = vmatpush1.msra.mxu0 %v5574
    %5839 = vmatprep.subr.mxu0 %v5579
    %5840 = vmatpush1.msra.mxu0 %v5578
    %5841 = vmatprep.subr.mxu0 %v5583
    %5842 = vmatpush1.msra.mxu0 %v5582
    %5843 = vmatprep.subr.mxu0 %v5587
    %5844 = vmatpush1.msra.mxu0 %v5586
    %5845 = vmatprep.subr.mxu0 %v5591
    %5846 = vmatpush1.msra.mxu0 %v5590
    %5847 = vmatprep.subr.mxu0 %v5595
    %5848 = vmatpush1.msra.mxu0 %v5594
    %5849 = vmatprep.subr.mxu0 %v5599
    %5850 = vmatpush1.msra.mxu0 %v5598
    %5851 = vmatprep.subr.mxu0 %v5603
    %5852 = vmatpush1.msra.mxu0 %v5602
    %5853 = vmatprep.subr.mxu0 %v5607
    %5854 = vmatpush1.msra.mxu0 %v5606
    %5855 = vmatprep.subr.mxu0 %v5611
    %5856 = vmatpush1.msra.mxu0 %v5610
    %5857 = vmatprep.subr.mxu0 %v5615
    %5858 = vmatpush1.msra.mxu0 %v5614
    %5859 = vmatprep.subr.mxu0 %v5619
    %5860 = vmatpush1.msra.mxu0 %v5618
    %5861 = vmatprep.subr.mxu0 %v5623
    %5862 = vmatpush1.msra.mxu0 %v5622
    %5863 = vmatprep.subr.mxu0 %v5627
    %5864 = vmatpush1.msra.mxu0 %v5626
    %5865 = vmatprep.subr.mxu0 0.0
    %5866 = vmatpush1.msra.mxu0 0.0
    %5867 = vmatprep.subr.mxu0 0.0
    %5868 = vmatpush1.msra.mxu0 0.0
    %5869 = vmatprep.subr.mxu0 0.0
    %5870 = vmatpush1.msra.mxu0 0.0
    %5871 = vmatprep.subr.mxu0 0.0
    %5872 = vmatpush1.msra.mxu0 0.0
    %5873 = vmatprep.subr.mxu0 0.0
    %5874 = vmatpush1.msra.mxu0 0.0
    %5875 = vmatprep.subr.mxu0 0.0
    %5876 = vmatpush1.msra.mxu0 0.0
    %5877 = vmatprep.subr.mxu0 0.0
    %5878 = vmatpush1.msra.mxu0 0.0
    %5879 = vmatprep.subr.mxu0 0.0
    %5880 = vmatpush1.msra.mxu0 0.0
    %5881 = vmatprep.subr.mxu0 0.0
    %5882 = vmatpush1.msra.mxu0 0.0
    %5883 = vmatprep.subr.mxu0 0.0
    %5884 = vmatpush1.msra.mxu0 0.0
    %5885 = vmatprep.subr.mxu0 0.0
    %5886 = vmatpush1.msra.mxu0 0.0
    %5887 = vmatprep.subr.mxu0 0.0
    %5888 = vmatpush1.msra.mxu0 0.0
    %5889 = vmatprep.subr.mxu0 0.0
    %5890 = vmatpush1.msra.mxu0 0.0
    %5891 = vmatprep.subr.mxu0 0.0
    %5892 = vmatpush1.msra.mxu0 0.0
    %5893 = vmatprep.subr.mxu0 0.0
    %5894 = vmatpush1.msra.mxu0 0.0
    %5895 = vmatprep.subr.mxu0 0.0
    %5896 = vmatpush1.msra.mxu0 0.0
    %5897 = vmatprep.mubr.f32.mxu0 0.0
    %5898 = vmatmul.mubr.f32.gmra.mrb[0].mxu0 %v5497
    %v5899 = vpop.f32.mrb[0].mxu0
    %v5900 = vadd.f32 0.0, %v5899
    %v5901 = vpop.f32.mrb[0].mxu0
    %v5902 = vadd.f32 0.0, %v5901
    %5903 = vmatprep.mubr.f32.mxu0 0.0
    %5904 = vmatmul.mubr.f32.gmra.mrb[0].mxu0 %v5498
    %v5905 = vpop.f32.mrb[0].mxu0
    %v5906 = vadd.f32 0.0, %v5905
    %v5907 = vpop.f32.mrb[0].mxu0
    %v5908 = vadd.f32 0.0, %v5907
    %5909 = vdwg.mxu0
    %5910 = vmatprep.subr.mxu0 %v5629
    %5911 = vmatpush1.msra.mxu0 %v5628
    %5912 = vmatprep.subr.mxu0 %v5637
    %5913 = vmatpush1.msra.mxu0 %v5636
    %5914 = vmatprep.subr.mxu0 %v5645
    %5915 = vmatpush1.msra.mxu0 %v5644
    %5916 = vmatprep.subr.mxu0 %v5653
    %5917 = vmatpush1.msra.mxu0 %v5652
    %5918 = vmatprep.subr.mxu0 %v5661
    %5919 = vmatpush1.msra.mxu0 %v5660
    %5920 = vmatprep.subr.mxu0 %v5669
    %5921 = vmatpush1.msra.mxu0 %v5668
    %5922 = vmatprep.subr.mxu0 %v5677
    %5923 = vmatpush1.msra.mxu0 %v5676
    %5924 = vmatprep.subr.mxu0 %v5685
    %5925 = vmatpush1.msra.mxu0 %v5684
    %5926 = vmatprep.subr.mxu0 %v5693
    %5927 = vmatpush1.msra.mxu0 %v5692
    %5928 = vmatprep.subr.mxu0 %v5701
    %5929 = vmatpush1.msra.mxu0 %v5700
    %5930 = vmatprep.subr.mxu0 %v5709
    %5931 = vmatpush1.msra.mxu0 %v5708
    %5932 = vmatprep.subr.mxu0 %v5717
    %5933 = vmatpush1.msra.mxu0 %v5716
    %5934 = vmatprep.subr.mxu0 %v5725
    %5935 = vmatpush1.msra.mxu0 %v5724
    %5936 = vmatprep.subr.mxu0 %v5733
    %5937 = vmatpush1.msra.mxu0 %v5732
    %5938 = vmatprep.subr.mxu0 %v5741
    %5939 = vmatpush1.msra.mxu0 %v5740
    %5940 = vmatprep.subr.mxu0 %v5749
    %5941 = vmatpush1.msra.mxu0 %v5748
    %5942 = vmatprep.subr.mxu0 0.0
    %5943 = vmatpush1.msra.mxu0 0.0
    %5944 = vmatprep.subr.mxu0 0.0
    %5945 = vmatpush1.msra.mxu0 0.0
    %5946 = vmatprep.subr.mxu0 0.0
    %5947 = vmatpush1.msra.mxu0 0.0
    %5948 = vmatprep.subr.mxu0 0.0
    %5949 = vmatpush1.msra.mxu0 0.0
    %5950 = vmatprep.subr.mxu0 0.0
    %5951 = vmatpush1.msra.mxu0 0.0
    %5952 = vmatprep.subr.mxu0 0.0
    %5953 = vmatpush1.msra.mxu0 0.0
    %5954 = vmatprep.subr.mxu0 0.0
    %5955 = vmatpush1.msra.mxu0 0.0
    %5956 = vmatprep.subr.mxu0 0.0
    %5957 = vmatpush1.msra.mxu0 0.0
    %5958 = vmatprep.subr.mxu0 0.0
    %5959 = vmatpush1.msra.mxu0 0.0
    %5960 = vmatprep.subr.mxu0 0.0
    %5961 = vmatpush1.msra.mxu0 0.0
    %5962 = vmatprep.subr.mxu0 0.0
    %5963 = vmatpush1.msra.mxu0 0.0
    %5964 = vmatprep.subr.mxu0 0.0
    %5965 = vmatpush1.msra.mxu0 0.0
    %5966 = vmatprep.subr.mxu0 0.0
    %5967 = vmatpush1.msra.mxu0 0.0
    %5968 = vmatprep.subr.mxu0 0.0
    %5969 = vmatpush1.msra.mxu0 0.0
    %5970 = vmatprep.subr.mxu0 0.0
    %5971 = vmatpush1.msra.mxu0 0.0
    %5972 = vmatprep.subr.mxu0 0.0
    %5973 = vmatpush1.msra.mxu0 0.0
    %5974 = vmatprep.mubr.f32.mxu0 0.0
    %5975 = vmatmul.mubr.f32.gmra.mrb[0].mxu0 %v3850
    %v5976 = vpop.f32.mrb[0].mxu0
    %v5977 = vadd.f32 0.0, %v5976
    %v5978 = vpop.f32.mrb[0].mxu0
    %v5979 = vadd.f32 0.0, %v5978
    %5980 = vmatprep.mubr.f32.mxu0 0.0
    %5981 = vmatmul.mubr.f32.gmra.mrb[0].mxu0 %v3851
    %v5982 = vpop.f32.mrb[0].mxu0
    %v5983 = vadd.f32 0.0, %v5982
    %v5984 = vpop.f32.mrb[0].mxu0
    %v5985 = vadd.f32 0.0, %v5984
    %5986 = vdwg.mxu0
    %5987 = vmatprep.subr.mxu0 %v5631
    %5988 = vmatpush1.msra.mxu0 %v5630
    %5989 = vmatprep.subr.mxu0 %v5639
    %5990 = vmatpush1.msra.mxu0 %v5638
    %5991 = vmatprep.subr.mxu0 %v5647
    %5992 = vmatpush1.msra.mxu0 %v5646
    %5993 = vmatprep.subr.mxu0 %v5655
    %5994 = vmatpush1.msra.mxu0 %v5654
    %5995 = vmatprep.subr.mxu0 %v5663
    %5996 = vmatpush1.msra.mxu0 %v5662
    %5997 = vmatprep.subr.mxu0 %v5671
    %5998 = vmatpush1.msra.mxu0 %v5670
    %5999 = vmatprep.subr.mxu0 %v5679
    %6000 = vmatpush1.msra.mxu0 %v5678
    %6001 = vmatprep.subr.mxu0 %v5687
    %6002 = vmatpush1.msra.mxu0 %v5686
    %6003 = vmatprep.subr.mxu0 %v5695
    %6004 = vmatpush1.msra.mxu0 %v5694
    %6005 = vmatprep.subr.mxu0 %v5703
    %6006 = vmatpush1.msra.mxu0 %v5702
    %6007 = vmatprep.subr.mxu0 %v5711
    %6008 = vmatpush1.msra.mxu0 %v5710
    %6009 = vmatprep.subr.mxu0 %v5719
    %6010 = vmatpush1.msra.mxu0 %v5718
    %6011 = vmatprep.subr.mxu0 %v5727
    %6012 = vmatpush1.msra.mxu0 %v5726
    %6013 = vmatprep.subr.mxu0 %v5735
    %6014 = vmatpush1.msra.mxu0 %v5734
    %6015 = vmatprep.subr.mxu0 %v5743
    %6016 = vmatpush1.msra.mxu0 %v5742
    %6017 = vmatprep.subr.mxu0 %v5751
    %6018 = vmatpush1.msra.mxu0 %v5750
    %6019 = vmatprep.subr.mxu0 0.0
    %6020 = vmatpush1.msra.mxu0 0.0
    %6021 = vmatprep.subr.mxu0 0.0
    %6022 = vmatpush1.msra.mxu0 0.0
    %6023 = vmatprep.subr.mxu0 0.0
    %6024 = vmatpush1.msra.mxu0 0.0
    %6025 = vmatprep.subr.mxu0 0.0
    %6026 = vmatpush1.msra.mxu0 0.0
    %6027 = vmatprep.subr.mxu0 0.0
    %6028 = vmatpush1.msra.mxu0 0.0
    %6029 = vmatprep.subr.mxu0 0.0
    %6030 = vmatpush1.msra.mxu0 0.0
    %6031 = vmatprep.subr.mxu0 0.0
    %6032 = vmatpush1.msra.mxu0 0.0
    %6033 = vmatprep.subr.mxu0 0.0
    %6034 = vmatpush1.msra.mxu0 0.0
    %6035 = vmatprep.subr.mxu0 0.0
    %6036 = vmatpush1.msra.mxu0 0.0
    %6037 = vmatprep.subr.mxu0 0.0
    %6038 = vmatpush1.msra.mxu0 0.0
    %6039 = vmatprep.subr.mxu0 0.0
    %6040 = vmatpush1.msra.mxu0 0.0
    %6041 = vmatprep.subr.mxu0 0.0
    %6042 = vmatpush1.msra.mxu0 0.0
    %6043 = vmatprep.subr.mxu0 0.0
    %6044 = vmatpush1.msra.mxu0 0.0
    %6045 = vmatprep.subr.mxu0 0.0
    %6046 = vmatpush1.msra.mxu0 0.0
    %6047 = vmatprep.subr.mxu0 0.0
    %6048 = vmatpush1.msra.mxu0 0.0
    %6049 = vmatprep.subr.mxu0 0.0
    %6050 = vmatpush1.msra.mxu0 0.0
    %6051 = vmatprep.mubr.f32.mxu0 0.0
    %6052 = vmatmul.mubr.f32.gmra.mrb[0].mxu0 %v3850
    %v6053 = vpop.f32.mrb[0].mxu0
    %v6054 = vadd.f32 0.0, %v6053
    %v6055 = vpop.f32.mrb[0].mxu0
    %v6056 = vadd.f32 0.0, %v6055
    %6057 = vmatprep.mubr.f32.mxu0 0.0
    %6058 = vmatmul.mubr.f32.gmra.mrb[0].mxu0 %v3851
    %v6059 = vpop.f32.mrb[0].mxu0
    %v6060 = vadd.f32 0.0, %v6059
    %v6061 = vpop.f32.mrb[0].mxu0
    %v6062 = vadd.f32 0.0, %v6061
    %6063 = vdwg.mxu0
    %6064 = vmatprep.subr.mxu0 %v5633
    %6065 = vmatpush1.msra.mxu0 %v5632
    %6066 = vmatprep.subr.mxu0 %v5641
    %6067 = vmatpush1.msra.mxu0 %v5640
    %6068 = vmatprep.subr.mxu0 %v5649
    %6069 = vmatpush1.msra.mxu0 %v5648
    %6070 = vmatprep.subr.mxu0 %v5657
    %6071 = vmatpush1.msra.mxu0 %v5656
    %6072 = vmatprep.subr.mxu0 %v5665
    %6073 = vmatpush1.msra.mxu0 %v5664
    %6074 = vmatprep.subr.mxu0 %v5673
    %6075 = vmatpush1.msra.mxu0 %v5672
    %6076 = vmatprep.subr.mxu0 %v5681
    %6077 = vmatpush1.msra.mxu0 %v5680
    %6078 = vmatprep.subr.mxu0 %v5689
    %6079 = vmatpush1.msra.mxu0 %v5688
    %6080 = vmatprep.subr.mxu0 %v5697
    %6081 = vmatpush1.msra.mxu0 %v5696
    %6082 = vmatprep.subr.mxu0 %v5705
    %6083 = vmatpush1.msra.mxu0 %v5704
    %6084 = vmatprep.subr.mxu0 %v5713
    %6085 = vmatpush1.msra.mxu0 %v5712
    %6086 = vmatprep.subr.mxu0 %v5721
    %6087 = vmatpush1.msra.mxu0 %v5720
    %6088 = vmatprep.subr.mxu0 %v5729
    %6089 = vmatpush1.msra.mxu0 %v5728
    %6090 = vmatprep.subr.mxu0 %v5737
    %6091 = vmatpush1.msra.mxu0 %v5736
    %6092 = vmatprep.subr.mxu0 %v5745
    %6093 = vmatpush1.msra.mxu0 %v5744
    %6094 = vmatprep.subr.mxu0 %v5753
    %6095 = vmatpush1.msra.mxu0 %v5752
    %6096 = vmatprep.subr.mxu0 0.0
    %6097 = vmatpush1.msra.mxu0 0.0
    %6098 = vmatprep.subr.mxu0 0.0
    %6099 = vmatpush1.msra.mxu0 0.0
    %6100 = vmatprep.subr.mxu0 0.0
    %6101 = vmatpush1.msra.mxu0 0.0
    %6102 = vmatprep.subr.mxu0 0.0
    %6103 = vmatpush1.msra.mxu0 0.0
    %6104 = vmatprep.subr.mxu0 0.0
    %6105 = vmatpush1.msra.mxu0 0.0
    %6106 = vmatprep.subr.mxu0 0.0
    %6107 = vmatpush1.msra.mxu0 0.0
    %6108 = vmatprep.subr.mxu0 0.0
    %6109 = vmatpush1.msra.mxu0 0.0
    %6110 = vmatprep.subr.mxu0 0.0
    %6111 = vmatpush1.msra.mxu0 0.0
    %6112 = vmatprep.subr.mxu0 0.0
    %6113 = vmatpush1.msra.mxu0 0.0
    %6114 = vmatprep.subr.mxu0 0.0
    %6115 = vmatpush1.msra.mxu0 0.0
    %6116 = vmatprep.subr.mxu0 0.0
    %6117 = vmatpush1.msra.mxu0 0.0
    %6118 = vmatprep.subr.mxu0 0.0
    %6119 = vmatpush1.msra.mxu0 0.0
    %6120 = vmatprep.subr.mxu0 0.0
    %6121 = vmatpush1.msra.mxu0 0.0
    %6122 = vmatprep.subr.mxu0 0.0
    %6123 = vmatpush1.msra.mxu0 0.0
    %6124 = vmatprep.subr.mxu0 0.0
    %6125 = vmatpush1.msra.mxu0 0.0
    %6126 = vmatprep.subr.mxu0 0.0
    %6127 = vmatpush1.msra.mxu0 0.0
    %6128 = vmatprep.mubr.f32.mxu0 0.0
    %6129 = vmatmul.mubr.f32.gmra.mrb[0].mxu0 %v3850
    %v6130 = vpop.f32.mrb[0].mxu0
    %v6131 = vadd.f32 0.0, %v6130
    %v6132 = vpop.f32.mrb[0].mxu0
    %v6133 = vadd.f32 0.0, %v6132
    %6134 = vmatprep.mubr.f32.mxu0 0.0
    %6135 = vmatmul.mubr.f32.gmra.mrb[0].mxu0 %v3851
    %v6136 = vpop.f32.mrb[0].mxu0
    %v6137 = vadd.f32 0.0, %v6136
    %v6138 = vpop.f32.mrb[0].mxu0
    %v6139 = vadd.f32 0.0, %v6138
    %6140 = vdwg.mxu0
    %6141 = vmatprep.subr.mxu0 %v5635
    %6142 = vmatpush1.msra.mxu0 %v5634
    %6143 = vmatprep.subr.mxu0 %v5643
    %6144 = vmatpush1.msra.mxu0 %v5642
    %6145 = vmatprep.subr.mxu0 %v5651
    %6146 = vmatpush1.msra.mxu0 %v5650
    %6147 = vmatprep.subr.mxu0 %v5659
    %6148 = vmatpush1.msra.mxu0 %v5658
    %6149 = vmatprep.subr.mxu0 %v5667
    %6150 = vmatpush1.msra.mxu0 %v5666
    %6151 = vmatprep.subr.mxu0 %v5675
    %6152 = vmatpush1.msra.mxu0 %v5674
    %6153 = vmatprep.subr.mxu0 %v5683
    %6154 = vmatpush1.msra.mxu0 %v5682
    %6155 = vmatprep.subr.mxu0 %v5691
    %6156 = vmatpush1.msra.mxu0 %v5690
    %6157 = vmatprep.subr.mxu0 %v5699
    %6158 = vmatpush1.msra.mxu0 %v5698
    %6159 = vmatprep.subr.mxu0 %v5707
    %6160 = vmatpush1.msra.mxu0 %v5706
    %6161 = vmatprep.subr.mxu0 %v5715
    %6162 = vmatpush1.msra.mxu0 %v5714
    %6163 = vmatprep.subr.mxu0 %v5723
    %6164 = vmatpush1.msra.mxu0 %v5722
    %6165 = vmatprep.subr.mxu0 %v5731
    %6166 = vmatpush1.msra.mxu0 %v5730
    %6167 = vmatprep.subr.mxu0 %v5739
    %6168 = vmatpush1.msra.mxu0 %v5738
    %6169 = vmatprep.subr.mxu0 %v5747
    %6170 = vmatpush1.msra.mxu0 %v5746
    %6171 = vmatprep.subr.mxu0 %v5755
    %6172 = vmatpush1.msra.mxu0 %v5754
    %6173 = vmatprep.subr.mxu0 0.0
    %6174 = vmatpush1.msra.mxu0 0.0
    %6175 = vmatprep.subr.mxu0 0.0
    %6176 = vmatpush1.msra.mxu0 0.0
    %6177 = vmatprep.subr.mxu0 0.0
    %6178 = vmatpush1.msra.mxu0 0.0
    %6179 = vmatprep.subr.mxu0 0.0
    %6180 = vmatpush1.msra.mxu0 0.0
    %6181 = vmatprep.subr.mxu0 0.0
    %6182 = vmatpush1.msra.mxu0 0.0
    %6183 = vmatprep.subr.mxu0 0.0
    %6184 = vmatpush1.msra.mxu0 0.0
    %6185 = vmatprep.subr.mxu0 0.0
    %6186 = vmatpush1.msra.mxu0 0.0
    %6187 = vmatprep.subr.mxu0 0.0
    %6188 = vmatpush1.msra.mxu0 0.0
    %6189 = vmatprep.subr.mxu0 0.0
    %6190 = vmatpush1.msra.mxu0 0.0
    %6191 = vmatprep.subr.mxu0 0.0
    %6192 = vmatpush1.msra.mxu0 0.0
    %6193 = vmatprep.subr.mxu0 0.0
    %6194 = vmatpush1.msra.mxu0 0.0
    %6195 = vmatprep.subr.mxu0 0.0
    %6196 = vmatpush1.msra.mxu0 0.0
    %6197 = vmatprep.subr.mxu0 0.0
    %6198 = vmatpush1.msra.mxu0 0.0
    %6199 = vmatprep.subr.mxu0 0.0
    %6200 = vmatpush1.msra.mxu0 0.0
    %6201 = vmatprep.subr.mxu0 0.0
    %6202 = vmatpush1.msra.mxu0 0.0
    %6203 = vmatprep.subr.mxu0 0.0
    %6204 = vmatpush1.msra.mxu0 0.0
    %6205 = vmatprep.mubr.f32.mxu0 0.0
    %6206 = vmatmul.mubr.f32.gmra.mrb[0].mxu0 %v3850
    %v6207 = vpop.f32.mrb[0].mxu0
    %v6208 = vadd.f32 0.0, %v6207
    %v6209 = vpop.f32.mrb[0].mxu0
    %v6210 = vadd.f32 0.0, %v6209
    %6211 = vmatprep.mubr.f32.mxu0 0.0
    %6212 = vmatmul.mubr.f32.gmra.mrb[0].mxu0 %v3851
    %v6213 = vpop.f32.mrb[0].mxu0
    %v6214 = vadd.f32 0.0, %v6213
    %v6215 = vpop.f32.mrb[0].mxu0
    %v6216 = vadd.f32 0.0, %v6215
    %6217 = vdwg.mxu0
    %6218 = vmatprep.subr.mxu0 0.0
    %6219 = vmatpush1.xpose.msra.mxu0 %v5977
    %6220 = vmatprep.subr.mxu0 0.0
    %6221 = vmatpush1.xpose.msra.mxu0 %v5983
    %6222 = vmatprep.subr.mxu0 0.0
    %6223 = vmatpush1.xpose.msra.mxu0 0.0
    %6224 = vmatprep.subr.mxu0 0.0
    %6225 = vmatpush1.xpose.msra.mxu0 0.0
    %6226 = vmatprep.subr.mxu0 0.0
    %6227 = vmatpush1.xpose.msra.mxu0 0.0
    %6228 = vmatprep.subr.mxu0 0.0
    %6229 = vmatpush1.xpose.msra.mxu0 0.0
    %6230 = vmatprep.subr.mxu0 0.0
    %6231 = vmatpush1.xpose.msra.mxu0 0.0
    %6232 = vmatprep.subr.mxu0 0.0
    %6233 = vmatpush1.xpose.msra.mxu0 0.0
    %6234 = vmatprep.subr.mxu0 0.0
    %6235 = vmatpush1.xpose.msra.mxu0 0.0
    %6236 = vmatprep.subr.mxu0 0.0
    %6237 = vmatpush1.xpose.msra.mxu0 0.0
    %6238 = vmatprep.subr.mxu0 0.0
    %6239 = vmatpush1.xpose.msra.mxu0 0.0
    %6240 = vmatprep.subr.mxu0 0.0
    %6241 = vmatpush1.xpose.msra.mxu0 0.0
    %6242 = vmatprep.subr.mxu0 0.0
    %6243 = vmatpush1.xpose.msra.mxu0 0.0
    %6244 = vmatprep.subr.mxu0 0.0
    %6245 = vmatpush1.xpose.msra.mxu0 0.0
    %6246 = vmatprep.subr.mxu0 0.0
    %6247 = vmatpush1.xpose.msra.mxu0 0.0
    %6248 = vmatprep.subr.mxu0 0.0
    %6249 = vmatpush1.xpose.msra.mxu0 0.0
    %6250 = vmatprep.subr.mxu0 0.0
    %6251 = vmatpush1.xpose.msra.mxu0 0.0
    %6252 = vmatprep.subr.mxu0 0.0
    %6253 = vmatpush1.xpose.msra.mxu0 0.0
    %6254 = vmatprep.subr.mxu0 0.0
    %6255 = vmatpush1.xpose.msra.mxu0 0.0
    %6256 = vmatprep.subr.mxu0 0.0
    %6257 = vmatpush1.xpose.msra.mxu0 0.0
    %6258 = vmatprep.subr.mxu0 0.0
    %6259 = vmatpush1.xpose.msra.mxu0 0.0
    %6260 = vmatprep.subr.mxu0 0.0
    %6261 = vmatpush1.xpose.msra.mxu0 0.0
    %6262 = vmatprep.subr.mxu0 0.0
    %6263 = vmatpush1.xpose.msra.mxu0 0.0
    %6264 = vmatprep.subr.mxu0 0.0
    %6265 = vmatpush1.xpose.msra.mxu0 0.0
    %6266 = vmatprep.subr.mxu0 0.0
    %6267 = vmatpush1.xpose.msra.mxu0 0.0
    %6268 = vmatprep.subr.mxu0 0.0
    %6269 = vmatpush1.xpose.msra.mxu0 0.0
    %6270 = vmatprep.subr.mxu0 0.0
    %6271 = vmatpush1.xpose.msra.mxu0 0.0
    %6272 = vmatprep.subr.mxu0 0.0
    %6273 = vmatpush1.xpose.msra.mxu0 0.0
    %6274 = vmatprep.subr.mxu0 0.0
    %6275 = vmatpush1.xpose.msra.mxu0 0.0
    %6276 = vmatprep.subr.mxu0 0.0
    %6277 = vmatpush1.xpose.msra.mxu0 0.0
    %6278 = vmatprep.subr.mxu0 0.0
    %6279 = vmatpush1.xpose.msra.mxu0 0.0
    %6280 = vmatprep.subr.mxu0 0.0
    %6281 = vmatpush1.xpose.msra.mxu0 0.0
    %6282 = vmatprep.mubr.f32.mxu0 0.0
    %6283 = vmatmul.mubr.f32.gmra.mrb[0].mxu0 %v5823
    %v6284 = vpop.f32.mrb[0].mxu0
    %v6285 = vadd.f32 0.0, %v6284
    %v6286 = vpop.f32.mrb[0].mxu0
    %6287 = vmatprep.mubr.f32.mxu0 0.0
    %6288 = vmatmul.mubr.f32.gmra.mrb[0].mxu0 %v5829
    %v6289 = vpop.f32.mrb[0].mxu0
    %v6290 = vadd.f32 0.0, %v6289
    %v6291 = vpop.f32.mrb[0].mxu0
    %6292 = vdwg.mxu0
    %v6293 = vsel %vm63, %v6285, -1e+10
    %v6294 = vsel %vm64, %v6290, -1e+10
    %v6295 = vmul.f32 %v6293, 0.35355338
    %v6296 = vmul.f32 %v6294, 0.35355338
    %v6297 = vsel %vm865, %v6295, -inf
    %6298 = vmax.xlane.f32.xlu0 %v6297
    %v6299 = vpop.xlane.xlu0 %6298
    %v6300 = vsel %vm865, %v6296, -inf
    %6301 = vmax.xlane.f32.xlu0 %v6300
    %v6302 = vpop.xlane.xlu0 %6301
    %v6303 = vsub.f32 %v6295, %v6299
    %v6304 = vsub.f32 %v6296, %v6302
    %v6305 = vmul.f32 %v6303, 1.442695
    %v6306 = vpow.pop %v6305
    %v6307 = vmul.f32 %v6304, 1.442695
    %v6308 = vpow.pop %v6307
    %v6309 = vsel %vm865, %v6306, 0.0
    %6310 = vadd.xlane.f32.xlu0 %v6309
    %v6311 = vpop.xlane.xlu0 %6310
    %v6312 = vsel %vm865, %v6308, 0.0
    %6313 = vadd.xlane.f32.xlu0 %v6312
    %v6314 = vpop.xlane.xlu0 %6313
    %v6315 = vrcp.pop %v6311
    %v6316 = vmul.f32 %v6306, %v6315
    %v6317 = vrcp.pop %v6314
    %v6318 = vmul.f32 %v6308, %v6317
    %v6320 = vsel %vm865, %v6316, 0
    %v6323 = vsel %vm865, %v6318, 0
    %6325 = vmatprep.subr.mxu0 0.0
    %6326 = vmatpush1.msra.mxu0 %v6131
    %6327 = vmatprep.subr.mxu0 0.0
    %6328 = vmatpush1.msra.mxu0 %v6137
    %6329 = vmatprep.subr.mxu0 0.0
    %6330 = vmatpush1.msra.mxu0 0.0
    %6331 = vmatprep.subr.mxu0 0.0
    %6332 = vmatpush1.msra.mxu0 0.0
    %6333 = vmatprep.subr.mxu0 0.0
    %6334 = vmatpush1.msra.mxu0 0.0
    %6335 = vmatprep.subr.mxu0 0.0
    %6336 = vmatpush1.msra.mxu0 0.0
    %6337 = vmatprep.subr.mxu0 0.0
    %6338 = vmatpush1.msra.mxu0 0.0
    %6339 = vmatprep.subr.mxu0 0.0
    %6340 = vmatpush1.msra.mxu0 0.0
    %6341 = vmatprep.subr.mxu0 0.0
    %6342 = vmatpush1.msra.mxu0 0.0
    %6343 = vmatprep.subr.mxu0 0.0
    %6344 = vmatpush1.msra.mxu0 0.0
    %6345 = vmatprep.subr.mxu0 0.0
    %6346 = vmatpush1.msra.mxu0 0.0
    %6347 = vmatprep.subr.mxu0 0.0
    %6348 = vmatpush1.msra.mxu0 0.0
    %6349 = vmatprep.subr.mxu0 0.0
    %6350 = vmatpush1.msra.mxu0 0.0
    %6351 = vmatprep.subr.mxu0 0.0
    %6352 = vmatpush1.msra.mxu0 0.0
    %6353 = vmatprep.subr.mxu0 0.0
    %6354 = vmatpush1.msra.mxu0 0.0
    %6355 = vmatprep.subr.mxu0 0.0
    %6356 = vmatpush1.msra.mxu0 0.0
    %6357 = vmatprep.subr.mxu0 0.0
    %6358 = vmatpush1.msra.mxu0 0.0
    %6359 = vmatprep.subr.mxu0 0.0
    %6360 = vmatpush1.msra.mxu0 0.0
    %6361 = vmatprep.subr.mxu0 0.0
    %6362 = vmatpush1.msra.mxu0 0.0
    %6363 = vmatprep.subr.mxu0 0.0
    %6364 = vmatpush1.msra.mxu0 0.0
    %6365 = vmatprep.subr.mxu0 0.0
    %6366 = vmatpush1.msra.mxu0 0.0
    %6367 = vmatprep.subr.mxu0 0.0
    %6368 = vmatpush1.msra.mxu0 0.0
    %6369 = vmatprep.subr.mxu0 0.0
    %6370 = vmatpush1.msra.mxu0 0.0
    %6371 = vmatprep.subr.mxu0 0.0
    %6372 = vmatpush1.msra.mxu0 0.0
    %6373 = vmatprep.subr.mxu0 0.0
    %6374 = vmatpush1.msra.mxu0 0.0
    %6375 = vmatprep.subr.mxu0 0.0
    %6376 = vmatpush1.msra.mxu0 0.0
    %6377 = vmatprep.subr.mxu0 0.0
    %6378 = vmatpush1.msra.mxu0 0.0
    %6379 = vmatprep.subr.mxu0 0.0
    %6380 = vmatpush1.msra.mxu0 0.0
    %6381 = vmatprep.subr.mxu0 0.0
    %6382 = vmatpush1.msra.mxu0 0.0
    %6383 = vmatprep.subr.mxu0 0.0
    %6384 = vmatpush1.msra.mxu0 0.0
    %6385 = vmatprep.subr.mxu0 0.0
    %6386 = vmatpush1.msra.mxu0 0.0
    %6387 = vmatprep.subr.mxu0 0.0
    %6388 = vmatpush1.msra.mxu0 0.0
    %6389 = vmatprep.mubr.f32.mxu0 0.0
    %6390 = vmatmul.mubr.f32.gmra.mrb[0].mxu0 %v6320
    %v6391 = vpop.f32.mrb[0].mxu0
    %v6392 = vadd.f32 0.0, %v6391
    %v6393 = vpop.f32.mrb[0].mxu0
    %6394 = vmatprep.mubr.f32.mxu0 0.0
    %6395 = vmatmul.mubr.f32.gmra.mrb[0].mxu0 %v6323
    %v6396 = vpop.f32.mrb[0].mxu0
    %v6397 = vadd.f32 0.0, %v6396
    %v6398 = vpop.f32.mrb[0].mxu0
    %6399 = vdwg.mxu0
    %6400 = vmatprep.subr.mxu0 0.0
    %6401 = vmatpush1.xpose.msra.mxu0 %v5979
    %6402 = vmatprep.subr.mxu0 0.0
    %6403 = vmatpush1.xpose.msra.mxu0 %v5985
    %6404 = vmatprep.subr.mxu0 0.0
    %6405 = vmatpush1.xpose.msra.mxu0 0.0
    %6406 = vmatprep.subr.mxu0 0.0
    %6407 = vmatpush1.xpose.msra.mxu0 0.0
    %6408 = vmatprep.subr.mxu0 0.0
    %6409 = vmatpush1.xpose.msra.mxu0 0.0
    %6410 = vmatprep.subr.mxu0 0.0
    %6411 = vmatpush1.xpose.msra.mxu0 0.0
    %6412 = vmatprep.subr.mxu0 0.0
    %6413 = vmatpush1.xpose.msra.mxu0 0.0
    %6414 = vmatprep.subr.mxu0 0.0
    %6415 = vmatpush1.xpose.msra.mxu0 0.0
    %6416 = vmatprep.subr.mxu0 0.0
    %6417 = vmatpush1.xpose.msra.mxu0 0.0
    %6418 = vmatprep.subr.mxu0 0.0
    %6419 = vmatpush1.xpose.msra.mxu0 0.0
    %6420 = vmatprep.subr.mxu0 0.0
    %6421 = vmatpush1.xpose.msra.mxu0 0.0
    %6422 = vmatprep.subr.mxu0 0.0
    %6423 = vmatpush1.xpose.msra.mxu0 0.0
    %6424 = vmatprep.subr.mxu0 0.0
    %6425 = vmatpush1.xpose.msra.mxu0 0.0
    %6426 = vmatprep.subr.mxu0 0.0
    %6427 = vmatpush1.xpose.msra.mxu0 0.0
    %6428 = vmatprep.subr.mxu0 0.0
    %6429 = vmatpush1.xpose.msra.mxu0 0.0
    %6430 = vmatprep.subr.mxu0 0.0
    %6431 = vmatpush1.xpose.msra.mxu0 0.0
    %6432 = vmatprep.subr.mxu0 0.0
    %6433 = vmatpush1.xpose.msra.mxu0 0.0
    %6434 = vmatprep.subr.mxu0 0.0
    %6435 = vmatpush1.xpose.msra.mxu0 0.0
    %6436 = vmatprep.subr.mxu0 0.0
    %6437 = vmatpush1.xpose.msra.mxu0 0.0
    %6438 = vmatprep.subr.mxu0 0.0
    %6439 = vmatpush1.xpose.msra.mxu0 0.0
    %6440 = vmatprep.subr.mxu0 0.0
    %6441 = vmatpush1.xpose.msra.mxu0 0.0
    %6442 = vmatprep.subr.mxu0 0.0
    %6443 = vmatpush1.xpose.msra.mxu0 0.0
    %6444 = vmatprep.subr.mxu0 0.0
    %6445 = vmatpush1.xpose.msra.mxu0 0.0
    %6446 = vmatprep.subr.mxu0 0.0
    %6447 = vmatpush1.xpose.msra.mxu0 0.0
    %6448 = vmatprep.subr.mxu0 0.0
    %6449 = vmatpush1.xpose.msra.mxu0 0.0
    %6450 = vmatprep.subr.mxu0 0.0
    %6451 = vmatpush1.xpose.msra.mxu0 0.0
    %6452 = vmatprep.subr.mxu0 0.0
    %6453 = vmatpush1.xpose.msra.mxu0 0.0
    %6454 = vmatprep.subr.mxu0 0.0
    %6455 = vmatpush1.xpose.msra.mxu0 0.0
    %6456 = vmatprep.subr.mxu0 0.0
    %6457 = vmatpush1.xpose.msra.mxu0 0.0
    %6458 = vmatprep.subr.mxu0 0.0
    %6459 = vmatpush1.xpose.msra.mxu0 0.0
    %6460 = vmatprep.subr.mxu0 0.0
    %6461 = vmatpush1.xpose.msra.mxu0 0.0
    %6462 = vmatprep.subr.mxu0 0.0
    %6463 = vmatpush1.xpose.msra.mxu0 0.0
    %6464 = vmatprep.mubr.f32.mxu0 0.0
    %6465 = vmatmul.mubr.f32.gmra.mrb[0].mxu0 %v5825
    %v6466 = vpop.f32.mrb[0].mxu0
    %v6467 = vadd.f32 0.0, %v6466
    %v6468 = vpop.f32.mrb[0].mxu0
    %6469 = vmatprep.mubr.f32.mxu0 0.0
    %6470 = vmatmul.mubr.f32.gmra.mrb[0].mxu0 %v5831
    %v6471 = vpop.f32.mrb[0].mxu0
    %v6472 = vadd.f32 0.0, %v6471
    %v6473 = vpop.f32.mrb[0].mxu0
    %6474 = vdwg.mxu0
    %v6475 = vsel %vm63, %v6467, -1e+10
    %v6476 = vsel %vm64, %v6472, -1e+10
    %v6477 = vmul.f32 %v6475, 0.35355338
    %v6478 = vmul.f32 %v6476, 0.35355338
    %v6479 = vsel %vm865, %v6477, -inf
    %6480 = vmax.xlane.f32.xlu0 %v6479
    %v6481 = vpop.xlane.xlu0 %6480
    %v6482 = vsel %vm865, %v6478, -inf
    %6483 = vmax.xlane.f32.xlu0 %v6482
    %v6484 = vpop.xlane.xlu0 %6483
    %v6485 = vsub.f32 %v6477, %v6481
    %v6486 = vsub.f32 %v6478, %v6484
    %v6487 = vmul.f32 %v6485, 1.442695
    %v6488 = vpow.pop %v6487
    %v6489 = vmul.f32 %v6486, 1.442695
    %v6490 = vpow.pop %v6489
    %v6491 = vsel %vm865, %v6488, 0.0
    %6492 = vadd.xlane.f32.xlu0 %v6491
    %v6493 = vpop.xlane.xlu0 %6492
    %v6494 = vsel %vm865, %v6490, 0.0
    %6495 = vadd.xlane.f32.xlu0 %v6494
    %v6496 = vpop.xlane.xlu0 %6495
    %v6497 = vrcp.pop %v6493
    %v6498 = vmul.f32 %v6488, %v6497
    %v6499 = vrcp.pop %v6496
    %v6500 = vmul.f32 %v6490, %v6499
    %v6502 = vsel %vm865, %v6498, 0
    %v6505 = vsel %vm865, %v6500, 0
    %6507 = vmatprep.subr.mxu0 0.0
    %6508 = vmatpush1.msra.mxu0 %v6133
    %6509 = vmatprep.subr.mxu0 0.0
    %6510 = vmatpush1.msra.mxu0 %v6139
    %6511 = vmatprep.subr.mxu0 0.0
    %6512 = vmatpush1.msra.mxu0 0.0
    %6513 = vmatprep.subr.mxu0 0.0
    %6514 = vmatpush1.msra.mxu0 0.0
    %6515 = vmatprep.subr.mxu0 0.0
    %6516 = vmatpush1.msra.mxu0 0.0
    %6517 = vmatprep.subr.mxu0 0.0
    %6518 = vmatpush1.msra.mxu0 0.0
    %6519 = vmatprep.subr.mxu0 0.0
    %6520 = vmatpush1.msra.mxu0 0.0
    %6521 = vmatprep.subr.mxu0 0.0
    %6522 = vmatpush1.msra.mxu0 0.0
    %6523 = vmatprep.subr.mxu0 0.0
    %6524 = vmatpush1.msra.mxu0 0.0
    %6525 = vmatprep.subr.mxu0 0.0
    %6526 = vmatpush1.msra.mxu0 0.0
    %6527 = vmatprep.subr.mxu0 0.0
    %6528 = vmatpush1.msra.mxu0 0.0
    %6529 = vmatprep.subr.mxu0 0.0
    %6530 = vmatpush1.msra.mxu0 0.0
    %6531 = vmatprep.subr.mxu0 0.0
    %6532 = vmatpush1.msra.mxu0 0.0
    %6533 = vmatprep.subr.mxu0 0.0
    %6534 = vmatpush1.msra.mxu0 0.0
    %6535 = vmatprep.subr.mxu0 0.0
    %6536 = vmatpush1.msra.mxu0 0.0
    %6537 = vmatprep.subr.mxu0 0.0
    %6538 = vmatpush1.msra.mxu0 0.0
    %6539 = vmatprep.subr.mxu0 0.0
    %6540 = vmatpush1.msra.mxu0 0.0
    %6541 = vmatprep.subr.mxu0 0.0
    %6542 = vmatpush1.msra.mxu0 0.0
    %6543 = vmatprep.subr.mxu0 0.0
    %6544 = vmatpush1.msra.mxu0 0.0
    %6545 = vmatprep.subr.mxu0 0.0
    %6546 = vmatpush1.msra.mxu0 0.0
    %6547 = vmatprep.subr.mxu0 0.0
    %6548 = vmatpush1.msra.mxu0 0.0
    %6549 = vmatprep.subr.mxu0 0.0
    %6550 = vmatpush1.msra.mxu0 0.0
    %6551 = vmatprep.subr.mxu0 0.0
    %6552 = vmatpush1.msra.mxu0 0.0
    %6553 = vmatprep.subr.mxu0 0.0
    %6554 = vmatpush1.msra.mxu0 0.0
    %6555 = vmatprep.subr.mxu0 0.0
    %6556 = vmatpush1.msra.mxu0 0.0
    %6557 = vmatprep.subr.mxu0 0.0
    %6558 = vmatpush1.msra.mxu0 0.0
    %6559 = vmatprep.subr.mxu0 0.0
    %6560 = vmatpush1.msra.mxu0 0.0
    %6561 = vmatprep.subr.mxu0 0.0
    %6562 = vmatpush1.msra.mxu0 0.0
    %6563 = vmatprep.subr.mxu0 0.0
    %6564 = vmatpush1.msra.mxu0 0.0
    %6565 = vmatprep.subr.mxu0 0.0
    %6566 = vmatpush1.msra.mxu0 0.0
    %6567 = vmatprep.subr.mxu0 0.0
    %6568 = vmatpush1.msra.mxu0 0.0
    %6569 = vmatprep.subr.mxu0 0.0
    %6570 = vmatpush1.msra.mxu0 0.0
    %6571 = vmatprep.mubr.f32.mxu0 0.0
    %6572 = vmatmul.mubr.f32.gmra.mrb[0].mxu0 %v6502
    %v6573 = vpop.f32.mrb[0].mxu0
    %v6574 = vadd.f32 0.0, %v6573
    %v6575 = vpop.f32.mrb[0].mxu0
    %6576 = vmatprep.mubr.f32.mxu0 0.0
    %6577 = vmatmul.mubr.f32.gmra.mrb[0].mxu0 %v6505
    %v6578 = vpop.f32.mrb[0].mxu0
    %v6579 = vadd.f32 0.0, %v6578
    %v6580 = vpop.f32.mrb[0].mxu0
    %6581 = vdwg.mxu0
    %6582 = vmatprep.subr.mxu0 0.0
    %6583 = vmatpush1.xpose.msra.mxu0 %v6054
    %6584 = vmatprep.subr.mxu0 0.0
    %6585 = vmatpush1.xpose.msra.mxu0 %v6060
    %6586 = vmatprep.subr.mxu0 0.0
    %6587 = vmatpush1.xpose.msra.mxu0 0.0
    %6588 = vmatprep.subr.mxu0 0.0
    %6589 = vmatpush1.xpose.msra.mxu0 0.0
    %6590 = vmatprep.subr.mxu0 0.0
    %6591 = vmatpush1.xpose.msra.mxu0 0.0
    %6592 = vmatprep.subr.mxu0 0.0
    %6593 = vmatpush1.xpose.msra.mxu0 0.0
    %6594 = vmatprep.subr.mxu0 0.0
    %6595 = vmatpush1.xpose.msra.mxu0 0.0
    %6596 = vmatprep.subr.mxu0 0.0
    %6597 = vmatpush1.xpose.msra.mxu0 0.0
    %6598 = vmatprep.subr.mxu0 0.0
    %6599 = vmatpush1.xpose.msra.mxu0 0.0
    %6600 = vmatprep.subr.mxu0 0.0
    %6601 = vmatpush1.xpose.msra.mxu0 0.0
    %6602 = vmatprep.subr.mxu0 0.0
    %6603 = vmatpush1.xpose.msra.mxu0 0.0
    %6604 = vmatprep.subr.mxu0 0.0
    %6605 = vmatpush1.xpose.msra.mxu0 0.0
    %6606 = vmatprep.subr.mxu0 0.0
    %6607 = vmatpush1.xpose.msra.mxu0 0.0
    %6608 = vmatprep.subr.mxu0 0.0
    %6609 = vmatpush1.xpose.msra.mxu0 0.0
    %6610 = vmatprep.subr.mxu0 0.0
    %6611 = vmatpush1.xpose.msra.mxu0 0.0
    %6612 = vmatprep.subr.mxu0 0.0
    %6613 = vmatpush1.xpose.msra.mxu0 0.0
    %6614 = vmatprep.subr.mxu0 0.0
    %6615 = vmatpush1.xpose.msra.mxu0 0.0
    %6616 = vmatprep.subr.mxu0 0.0
    %6617 = vmatpush1.xpose.msra.mxu0 0.0
    %6618 = vmatprep.subr.mxu0 0.0
    %6619 = vmatpush1.xpose.msra.mxu0 0.0
    %6620 = vmatprep.subr.mxu0 0.0
    %6621 = vmatpush1.xpose.msra.mxu0 0.0
    %6622 = vmatprep.subr.mxu0 0.0
    %6623 = vmatpush1.xpose.msra.mxu0 0.0
    %6624 = vmatprep.subr.mxu0 0.0
    %6625 = vmatpush1.xpose.msra.mxu0 0.0
    %6626 = vmatprep.subr.mxu0 0.0
    %6627 = vmatpush1.xpose.msra.mxu0 0.0
    %6628 = vmatprep.subr.mxu0 0.0
    %6629 = vmatpush1.xpose.msra.mxu0 0.0
    %6630 = vmatprep.subr.mxu0 0.0
    %6631 = vmatpush1.xpose.msra.mxu0 0.0
    %6632 = vmatprep.subr.mxu0 0.0
    %6633 = vmatpush1.xpose.msra.mxu0 0.0
    %6634 = vmatprep.subr.mxu0 0.0
    %6635 = vmatpush1.xpose.msra.mxu0 0.0
    %6636 = vmatprep.subr.mxu0 0.0
    %6637 = vmatpush1.xpose.msra.mxu0 0.0
    %6638 = vmatprep.subr.mxu0 0.0
    %6639 = vmatpush1.xpose.msra.mxu0 0.0
    %6640 = vmatprep.subr.mxu0 0.0
    %6641 = vmatpush1.xpose.msra.mxu0 0.0
    %6642 = vmatprep.subr.mxu0 0.0
    %6643 = vmatpush1.xpose.msra.mxu0 0.0
    %6644 = vmatprep.subr.mxu0 0.0
    %6645 = vmatpush1.xpose.msra.mxu0 0.0
    %6646 = vmatprep.mubr.f32.mxu0 0.0
    %6647 = vmatmul.mubr.f32.gmra.mrb[0].mxu0 %v5900
    %v6648 = vpop.f32.mrb[0].mxu0
    %v6649 = vadd.f32 0.0, %v6648
    %v6650 = vpop.f32.mrb[0].mxu0
    %6651 = vmatprep.mubr.f32.mxu0 0.0
    %6652 = vmatmul.mubr.f32.gmra.mrb[0].mxu0 %v5906
    %v6653 = vpop.f32.mrb[0].mxu0
    %v6654 = vadd.f32 0.0, %v6653
    %v6655 = vpop.f32.mrb[0].mxu0
    %6656 = vdwg.mxu0
    %v6657 = vsel %vm63, %v6649, -1e+10
    %v6658 = vsel %vm64, %v6654, -1e+10
    %v6659 = vmul.f32 %v6657, 0.35355338
    %v6660 = vmul.f32 %v6658, 0.35355338
    %v6661 = vsel %vm865, %v6659, -inf
    %6662 = vmax.xlane.f32.xlu0 %v6661
    %v6663 = vpop.xlane.xlu0 %6662
    %v6664 = vsel %vm865, %v6660, -inf
    %6665 = vmax.xlane.f32.xlu0 %v6664
    %v6666 = vpop.xlane.xlu0 %6665
    %v6667 = vsub.f32 %v6659, %v6663
    %v6668 = vsub.f32 %v6660, %v6666
    %v6669 = vmul.f32 %v6667, 1.442695
    %v6670 = vpow.pop %v6669
    %v6671 = vmul.f32 %v6668, 1.442695
    %v6672 = vpow.pop %v6671
    %v6673 = vsel %vm865, %v6670, 0.0
    %6674 = vadd.xlane.f32.xlu0 %v6673
    %v6675 = vpop.xlane.xlu0 %6674
    %v6676 = vsel %vm865, %v6672, 0.0
    %6677 = vadd.xlane.f32.xlu0 %v6676
    %v6678 = vpop.xlane.xlu0 %6677
    %v6679 = vrcp.pop %v6675
    %v6680 = vmul.f32 %v6670, %v6679
    %v6681 = vrcp.pop %v6678
    %v6682 = vmul.f32 %v6672, %v6681
    %v6684 = vsel %vm865, %v6680, 0
    %v6687 = vsel %vm865, %v6682, 0
    %6689 = vmatprep.subr.mxu0 0.0
    %6690 = vmatpush1.msra.mxu0 %v6208
    %6691 = vmatprep.subr.mxu0 0.0
    %6692 = vmatpush1.msra.mxu0 %v6214
    %6693 = vmatprep.subr.mxu0 0.0
    %6694 = vmatpush1.msra.mxu0 0.0
    %6695 = vmatprep.subr.mxu0 0.0
    %6696 = vmatpush1.msra.mxu0 0.0
    %6697 = vmatprep.subr.mxu0 0.0
    %6698 = vmatpush1.msra.mxu0 0.0
    %6699 = vmatprep.subr.mxu0 0.0
    %6700 = vmatpush1.msra.mxu0 0.0
    %6701 = vmatprep.subr.mxu0 0.0
    %6702 = vmatpush1.msra.mxu0 0.0
    %6703 = vmatprep.subr.mxu0 0.0
    %6704 = vmatpush1.msra.mxu0 0.0
    %6705 = vmatprep.subr.mxu0 0.0
    %6706 = vmatpush1.msra.mxu0 0.0
    %6707 = vmatprep.subr.mxu0 0.0
    %6708 = vmatpush1.msra.mxu0 0.0
    %6709 = vmatprep.subr.mxu0 0.0
    %6710 = vmatpush1.msra.mxu0 0.0
    %6711 = vmatprep.subr.mxu0 0.0
    %6712 = vmatpush1.msra.mxu0 0.0
    %6713 = vmatprep.subr.mxu0 0.0
    %6714 = vmatpush1.msra.mxu0 0.0
    %6715 = vmatprep.subr.mxu0 0.0
    %6716 = vmatpush1.msra.mxu0 0.0
    %6717 = vmatprep.subr.mxu0 0.0
    %6718 = vmatpush1.msra.mxu0 0.0
    %6719 = vmatprep.subr.mxu0 0.0
    %6720 = vmatpush1.msra.mxu0 0.0
    %6721 = vmatprep.subr.mxu0 0.0
    %6722 = vmatpush1.msra.mxu0 0.0
    %6723 = vmatprep.subr.mxu0 0.0
    %6724 = vmatpush1.msra.mxu0 0.0
    %6725 = vmatprep.subr.mxu0 0.0
    %6726 = vmatpush1.msra.mxu0 0.0
    %6727 = vmatprep.subr.mxu0 0.0
    %6728 = vmatpush1.msra.mxu0 0.0
    %6729 = vmatprep.subr.mxu0 0.0
    %6730 = vmatpush1.msra.mxu0 0.0
    %6731 = vmatprep.subr.mxu0 0.0
    %6732 = vmatpush1.msra.mxu0 0.0
    %6733 = vmatprep.subr.mxu0 0.0
    %6734 = vmatpush1.msra.mxu0 0.0
    %6735 = vmatprep.subr.mxu0 0.0
    %6736 = vmatpush1.msra.mxu0 0.0
    %6737 = vmatprep.subr.mxu0 0.0
    %6738 = vmatpush1.msra.mxu0 0.0
    %6739 = vmatprep.subr.mxu0 0.0
    %6740 = vmatpush1.msra.mxu0 0.0
    %6741 = vmatprep.subr.mxu0 0.0
    %6742 = vmatpush1.msra.mxu0 0.0
    %6743 = vmatprep.subr.mxu0 0.0
    %6744 = vmatpush1.msra.mxu0 0.0
    %6745 = vmatprep.subr.mxu0 0.0
    %6746 = vmatpush1.msra.mxu0 0.0
    %6747 = vmatprep.subr.mxu0 0.0
    %6748 = vmatpush1.msra.mxu0 0.0
    %6749 = vmatprep.subr.mxu0 0.0
    %6750 = vmatpush1.msra.mxu0 0.0
    %6751 = vmatprep.subr.mxu0 0.0
    %6752 = vmatpush1.msra.mxu0 0.0
    %6753 = vmatprep.mubr.f32.mxu0 0.0
    %6754 = vmatmul.mubr.f32.gmra.mrb[0].mxu0 %v6684
    %v6755 = vpop.f32.mrb[0].mxu0
    %v6756 = vadd.f32 0.0, %v6755
    %v6757 = vpop.f32.mrb[0].mxu0
    %6758 = vmatprep.mubr.f32.mxu0 0.0
    %6759 = vmatmul.mubr.f32.gmra.mrb[0].mxu0 %v6687
    %v6760 = vpop.f32.mrb[0].mxu0
    %v6761 = vadd.f32 0.0, %v6760
    %v6762 = vpop.f32.mrb[0].mxu0
    %6763 = vdwg.mxu0
    %6764 = vmatprep.subr.mxu0 0.0
    %6765 = vmatpush1.xpose.msra.mxu0 %v6056
    %6766 = vmatprep.subr.mxu0 0.0
    %6767 = vmatpush1.xpose.msra.mxu0 %v6062
    %6768 = vmatprep.subr.mxu0 0.0
    %6769 = vmatpush1.xpose.msra.mxu0 0.0
    %6770 = vmatprep.subr.mxu0 0.0
    %6771 = vmatpush1.xpose.msra.mxu0 0.0
    %6772 = vmatprep.subr.mxu0 0.0
    %6773 = vmatpush1.xpose.msra.mxu0 0.0
    %6774 = vmatprep.subr.mxu0 0.0
    %6775 = vmatpush1.xpose.msra.mxu0 0.0
    %6776 = vmatprep.subr.mxu0 0.0
    %6777 = vmatpush1.xpose.msra.mxu0 0.0
    %6778 = vmatprep.subr.mxu0 0.0
    %6779 = vmatpush1.xpose.msra.mxu0 0.0
    %6780 = vmatprep.subr.mxu0 0.0
    %6781 = vmatpush1.xpose.msra.mxu0 0.0
    %6782 = vmatprep.subr.mxu0 0.0
    %6783 = vmatpush1.xpose.msra.mxu0 0.0
    %6784 = vmatprep.subr.mxu0 0.0
    %6785 = vmatpush1.xpose.msra.mxu0 0.0
    %6786 = vmatprep.subr.mxu0 0.0
    %6787 = vmatpush1.xpose.msra.mxu0 0.0
    %6788 = vmatprep.subr.mxu0 0.0
    %6789 = vmatpush1.xpose.msra.mxu0 0.0
    %6790 = vmatprep.subr.mxu0 0.0
    %6791 = vmatpush1.xpose.msra.mxu0 0.0
    %6792 = vmatprep.subr.mxu0 0.0
    %6793 = vmatpush1.xpose.msra.mxu0 0.0
    %6794 = vmatprep.subr.mxu0 0.0
    %6795 = vmatpush1.xpose.msra.mxu0 0.0
    %6796 = vmatprep.subr.mxu0 0.0
    %6797 = vmatpush1.xpose.msra.mxu0 0.0
    %6798 = vmatprep.subr.mxu0 0.0
    %6799 = vmatpush1.xpose.msra.mxu0 0.0
    %6800 = vmatprep.subr.mxu0 0.0
    %6801 = vmatpush1.xpose.msra.mxu0 0.0
    %6802 = vmatprep.subr.mxu0 0.0
    %6803 = vmatpush1.xpose.msra.mxu0 0.0
    %6804 = vmatprep.subr.mxu0 0.0
    %6805 = vmatpush1.xpose.msra.mxu0 0.0
    %6806 = vmatprep.subr.mxu0 0.0
    %6807 = vmatpush1.xpose.msra.mxu0 0.0
    %6808 = vmatprep.subr.mxu0 0.0
    %6809 = vmatpush1.xpose.msra.mxu0 0.0
    %6810 = vmatprep.subr.mxu0 0.0
    %6811 = vmatpush1.xpose.msra.mxu0 0.0
    %6812 = vmatprep.subr.mxu0 0.0
    %6813 = vmatpush1.xpose.msra.mxu0 0.0
    %6814 = vmatprep.subr.mxu0 0.0
    %6815 = vmatpush1.xpose.msra.mxu0 0.0
    %6816 = vmatprep.subr.mxu0 0.0
    %6817 = vmatpush1.xpose.msra.mxu0 0.0
    %6818 = vmatprep.subr.mxu0 0.0
    %6819 = vmatpush1.xpose.msra.mxu0 0.0
    %6820 = vmatprep.subr.mxu0 0.0
    %6821 = vmatpush1.xpose.msra.mxu0 0.0
    %6822 = vmatprep.subr.mxu0 0.0
    %6823 = vmatpush1.xpose.msra.mxu0 0.0
    %6824 = vmatprep.subr.mxu0 0.0
    %6825 = vmatpush1.xpose.msra.mxu0 0.0
    %6826 = vmatprep.subr.mxu0 0.0
    %6827 = vmatpush1.xpose.msra.mxu0 0.0
    %6828 = vmatprep.mubr.f32.mxu0 0.0
    %6829 = vmatmul.mubr.f32.gmra.mrb[0].mxu0 %v5902
    %v6830 = vpop.f32.mrb[0].mxu0
    %v6831 = vadd.f32 0.0, %v6830
    %v6832 = vpop.f32.mrb[0].mxu0
    %6833 = vmatprep.mubr.f32.mxu0 0.0
    %6834 = vmatmul.mubr.f32.gmra.mrb[0].mxu0 %v5908
    %v6835 = vpop.f32.mrb[0].mxu0
    %v6836 = vadd.f32 0.0, %v6835
    %v6837 = vpop.f32.mrb[0].mxu0
    %6838 = vdwg.mxu0
    %v6839 = vsel %vm63, %v6831, -1e+10
    %v6840 = vsel %vm64, %v6836, -1e+10
    %v6841 = vmul.f32 %v6839, 0.35355338
    %v6842 = vmul.f32 %v6840, 0.35355338
    %v6843 = vsel %vm865, %v6841, -inf
    %6844 = vmax.xlane.f32.xlu0 %v6843
    %v6845 = vpop.xlane.xlu0 %6844
    %v6846 = vsel %vm865, %v6842, -inf
    %6847 = vmax.xlane.f32.xlu0 %v6846
    %v6848 = vpop.xlane.xlu0 %6847
    %v6849 = vsub.f32 %v6841, %v6845
    %v6850 = vsub.f32 %v6842, %v6848
    %v6851 = vmul.f32 %v6849, 1.442695
    %v6852 = vpow.pop %v6851
    %v6853 = vmul.f32 %v6850, 1.442695
    %v6854 = vpow.pop %v6853
    %v6855 = vsel %vm865, %v6852, 0.0
    %6856 = vadd.xlane.f32.xlu0 %v6855
    %v6857 = vpop.xlane.xlu0 %6856
    %v6858 = vsel %vm865, %v6854, 0.0
    %6859 = vadd.xlane.f32.xlu0 %v6858
    %v6860 = vpop.xlane.xlu0 %6859
    %v6861 = vrcp.pop %v6857
    %v6862 = vmul.f32 %v6852, %v6861
    %v6863 = vrcp.pop %v6860
    %v6864 = vmul.f32 %v6854, %v6863
    %v6866 = vsel %vm865, %v6862, 0
    %v6869 = vsel %vm865, %v6864, 0
    %6871 = vmatprep.subr.mxu0 0.0
    %6872 = vmatpush1.msra.mxu0 %v6210
    %6873 = vmatprep.subr.mxu0 0.0
    %6874 = vmatpush1.msra.mxu0 %v6216
    %6875 = vmatprep.subr.mxu0 0.0
    %6876 = vmatpush1.msra.mxu0 0.0
    %6877 = vmatprep.subr.mxu0 0.0
    %6878 = vmatpush1.msra.mxu0 0.0
    %6879 = vmatprep.subr.mxu0 0.0
    %6880 = vmatpush1.msra.mxu0 0.0
    %6881 = vmatprep.subr.mxu0 0.0
    %6882 = vmatpush1.msra.mxu0 0.0
    %6883 = vmatprep.subr.mxu0 0.0
    %6884 = vmatpush1.msra.mxu0 0.0
    %6885 = vmatprep.subr.mxu0 0.0
    %6886 = vmatpush1.msra.mxu0 0.0
    %6887 = vmatprep.subr.mxu0 0.0
    %6888 = vmatpush1.msra.mxu0 0.0
    %6889 = vmatprep.subr.mxu0 0.0
    %6890 = vmatpush1.msra.mxu0 0.0
    %6891 = vmatprep.subr.mxu0 0.0
    %6892 = vmatpush1.msra.mxu0 0.0
    %6893 = vmatprep.subr.mxu0 0.0
    %6894 = vmatpush1.msra.mxu0 0.0
    %6895 = vmatprep.subr.mxu0 0.0
    %6896 = vmatpush1.msra.mxu0 0.0
    %6897 = vmatprep.subr.mxu0 0.0
    %6898 = vmatpush1.msra.mxu0 0.0
    %6899 = vmatprep.subr.mxu0 0.0
    %6900 = vmatpush1.msra.mxu0 0.0
    %6901 = vmatprep.subr.mxu0 0.0
    %6902 = vmatpush1.msra.mxu0 0.0
    %6903 = vmatprep.subr.mxu0 0.0
    %6904 = vmatpush1.msra.mxu0 0.0
    %6905 = vmatprep.subr.mxu0 0.0
    %6906 = vmatpush1.msra.mxu0 0.0
    %6907 = vmatprep.subr.mxu0 0.0
    %6908 = vmatpush1.msra.mxu0 0.0
    %6909 = vmatprep.subr.mxu0 0.0
    %6910 = vmatpush1.msra.mxu0 0.0
    %6911 = vmatprep.subr.mxu0 0.0
    %6912 = vmatpush1.msra.mxu0 0.0
    %6913 = vmatprep.subr.mxu0 0.0
    %6914 = vmatpush1.msra.mxu0 0.0
    %6915 = vmatprep.subr.mxu0 0.0
    %6916 = vmatpush1.msra.mxu0 0.0
    %6917 = vmatprep.subr.mxu0 0.0
    %6918 = vmatpush1.msra.mxu0 0.0
    %6919 = vmatprep.subr.mxu0 0.0
    %6920 = vmatpush1.msra.mxu0 0.0
    %6921 = vmatprep.subr.mxu0 0.0
    %6922 = vmatpush1.msra.mxu0 0.0
    %6923 = vmatprep.subr.mxu0 0.0
    %6924 = vmatpush1.msra.mxu0 0.0
    %6925 = vmatprep.subr.mxu0 0.0
    %6926 = vmatpush1.msra.mxu0 0.0
    %6927 = vmatprep.subr.mxu0 0.0
    %6928 = vmatpush1.msra.mxu0 0.0
    %6929 = vmatprep.subr.mxu0 0.0
    %6930 = vmatpush1.msra.mxu0 0.0
    %6931 = vmatprep.subr.mxu0 0.0
    %6932 = vmatpush1.msra.mxu0 0.0
    %6933 = vmatprep.subr.mxu0 0.0
    %6934 = vmatpush1.msra.mxu0 0.0
    %6935 = vmatprep.mubr.f32.mxu0 0.0
    %6936 = vmatmul.mubr.f32.gmra.mrb[0].mxu0 %v6866
    %v6937 = vpop.f32.mrb[0].mxu0
    %v6938 = vadd.f32 0.0, %v6937
    %v6939 = vpop.f32.mrb[0].mxu0
    %6940 = vmatprep.mubr.f32.mxu0 0.0
    %6941 = vmatmul.mubr.f32.gmra.mrb[0].mxu0 %v6869
    %v6942 = vpop.f32.mrb[0].mxu0
    %v6943 = vadd.f32 0.0, %v6942
    %v6944 = vpop.f32.mrb[0].mxu0
    %6945 = vdwg.mxu0
    %v6946 = vlaneseq
    %v6947 = vshrl.u32 %v6946, 7
    %v6948 = vsub.s32 0, %v6947
    %v6949 = vrot.slane %v5563, %v6948
    %6950 = vmatprep.subr.mxu0 0.0
    %6951 = vmatpush1.msra.mxu0 %v5499
    %6952 = vmatprep.subr.mxu0 0.0
    %6953 = vmatpush1.msra.mxu0 %v5500
    %6954 = vmatprep.subr.mxu0 0.0
    %6955 = vmatpush1.msra.mxu0 %v5501
    %6956 = vmatprep.subr.mxu0 0.0
    %6957 = vmatpush1.msra.mxu0 %v5502
    %6958 = vmatprep.subr.mxu0 0.0
    %6959 = vmatpush1.msra.mxu0 %v5503
    %6960 = vmatprep.subr.mxu0 0.0
    %6961 = vmatpush1.msra.mxu0 %v5504
    %6962 = vmatprep.subr.mxu0 0.0
    %6963 = vmatpush1.msra.mxu0 %v5505
    %6964 = vmatprep.subr.mxu0 0.0
    %6965 = vmatpush1.msra.mxu0 %v5506
    %6966 = vmatprep.subr.mxu0 0.0
    %6967 = vmatpush1.msra.mxu0 %v5507
    %6968 = vmatprep.subr.mxu0 0.0
    %6969 = vmatpush1.msra.mxu0 %v5508
    %6970 = vmatprep.subr.mxu0 0.0
    %6971 = vmatpush1.msra.mxu0 %v5509
    %6972 = vmatprep.subr.mxu0 0.0
    %6973 = vmatpush1.msra.mxu0 %v5510
    %6974 = vmatprep.subr.mxu0 0.0
    %6975 = vmatpush1.msra.mxu0 %v5511
    %6976 = vmatprep.subr.mxu0 0.0
    %6977 = vmatpush1.msra.mxu0 %v5512
    %6978 = vmatprep.subr.mxu0 0.0
    %6979 = vmatpush1.msra.mxu0 %v5513
    %6980 = vmatprep.subr.mxu0 0.0
    %6981 = vmatpush1.msra.mxu0 %v5514
    %6982 = vmatprep.subr.mxu0 0.0
    %6983 = vmatpush1.msra.mxu0 %v5515
    %6984 = vmatprep.subr.mxu0 0.0
    %6985 = vmatpush1.msra.mxu0 %v5516
    %6986 = vmatprep.subr.mxu0 0.0
    %6987 = vmatpush1.msra.mxu0 %v5517
    %6988 = vmatprep.subr.mxu0 0.0
    %6989 = vmatpush1.msra.mxu0 %v5518
    %6990 = vmatprep.subr.mxu0 0.0
    %6991 = vmatpush1.msra.mxu0 %v5519
    %6992 = vmatprep.subr.mxu0 0.0
    %6993 = vmatpush1.msra.mxu0 %v5520
    %6994 = vmatprep.subr.mxu0 0.0
    %6995 = vmatpush1.msra.mxu0 %v5521
    %6996 = vmatprep.subr.mxu0 0.0
    %6997 = vmatpush1.msra.mxu0 %v5522
    %6998 = vmatprep.subr.mxu0 0.0
    %6999 = vmatpush1.msra.mxu0 %v5523
    %7000 = vmatprep.subr.mxu0 0.0
    %7001 = vmatpush1.msra.mxu0 %v5524
    %7002 = vmatprep.subr.mxu0 0.0
    %7003 = vmatpush1.msra.mxu0 %v5525
    %7004 = vmatprep.subr.mxu0 0.0
    %7005 = vmatpush1.msra.mxu0 %v5526
    %7006 = vmatprep.subr.mxu0 0.0
    %7007 = vmatpush1.msra.mxu0 %v5527
    %7008 = vmatprep.subr.mxu0 0.0
    %7009 = vmatpush1.msra.mxu0 %v5528
    %7010 = vmatprep.subr.mxu0 0.0
    %7011 = vmatpush1.msra.mxu0 %v5529
    %7012 = vmatprep.subr.mxu0 0.0
    %7013 = vmatpush1.msra.mxu0 %v5530
    %7014 = vmatprep.mubr.f32.mxu0 %v6574
    %7015 = vmatmul.mubr.f32.gmra.mrb[0].mxu0 %v6392
    %v7016 = vpop.f32.mrb[0].mxu0
    %v7017 = vadd.f32 %v6949, %v7016
    %v7018 = vpop.f32.mrb[0].mxu0
    %7019 = vmatprep.mubr.f32.mxu0 %v6579
    %7020 = vmatmul.mubr.f32.gmra.mrb[0].mxu0 %v6397
    %v7021 = vpop.f32.mrb[0].mxu0
    %v7022 = vadd.f32 %v6949, %v7021
    %v7023 = vpop.f32.mrb[0].mxu0
    %7024 = vdwg.mxu0
    %7025 = vmatprep.subr.mxu0 0.0
    %7026 = vmatpush1.msra.mxu0 %v5531
    %7027 = vmatprep.subr.mxu0 0.0
    %7028 = vmatpush1.msra.mxu0 %v5532
    %7029 = vmatprep.subr.mxu0 0.0
    %7030 = vmatpush1.msra.mxu0 %v5533
    %7031 = vmatprep.subr.mxu0 0.0
    %7032 = vmatpush1.msra.mxu0 %v5534
    %7033 = vmatprep.subr.mxu0 0.0
    %7034 = vmatpush1.msra.mxu0 %v5535
    %7035 = vmatprep.subr.mxu0 0.0
    %7036 = vmatpush1.msra.mxu0 %v5536
    %7037 = vmatprep.subr.mxu0 0.0
    %7038 = vmatpush1.msra.mxu0 %v5537
    %7039 = vmatprep.subr.mxu0 0.0
    %7040 = vmatpush1.msra.mxu0 %v5538
    %7041 = vmatprep.subr.mxu0 0.0
    %7042 = vmatpush1.msra.mxu0 %v5539
    %7043 = vmatprep.subr.mxu0 0.0
    %7044 = vmatpush1.msra.mxu0 %v5540
    %7045 = vmatprep.subr.mxu0 0.0
    %7046 = vmatpush1.msra.mxu0 %v5541
    %7047 = vmatprep.subr.mxu0 0.0
    %7048 = vmatpush1.msra.mxu0 %v5542
    %7049 = vmatprep.subr.mxu0 0.0
    %7050 = vmatpush1.msra.mxu0 %v5543
    %7051 = vmatprep.subr.mxu0 0.0
    %7052 = vmatpush1.msra.mxu0 %v5544
    %7053 = vmatprep.subr.mxu0 0.0
    %7054 = vmatpush1.msra.mxu0 %v5545
    %7055 = vmatprep.subr.mxu0 0.0
    %7056 = vmatpush1.msra.mxu0 %v5546
    %7057 = vmatprep.subr.mxu0 0.0
    %7058 = vmatpush1.msra.mxu0 %v5547
    %7059 = vmatprep.subr.mxu0 0.0
    %7060 = vmatpush1.msra.mxu0 %v5548
    %7061 = vmatprep.subr.mxu0 0.0
    %7062 = vmatpush1.msra.mxu0 %v5549
    %7063 = vmatprep.subr.mxu0 0.0
    %7064 = vmatpush1.msra.mxu0 %v5550
    %7065 = vmatprep.subr.mxu0 0.0
    %7066 = vmatpush1.msra.mxu0 %v5551
    %7067 = vmatprep.subr.mxu0 0.0
    %7068 = vmatpush1.msra.mxu0 %v5552
    %7069 = vmatprep.subr.mxu0 0.0
    %7070 = vmatpush1.msra.mxu0 %v5553
    %7071 = vmatprep.subr.mxu0 0.0
    %7072 = vmatpush1.msra.mxu0 %v5554
    %7073 = vmatprep.subr.mxu0 0.0
    %7074 = vmatpush1.msra.mxu0 %v5555
    %7075 = vmatprep.subr.mxu0 0.0
    %7076 = vmatpush1.msra.mxu0 %v5556
    %7077 = vmatprep.subr.mxu0 0.0
    %7078 = vmatpush1.msra.mxu0 %v5557
    %7079 = vmatprep.subr.mxu0 0.0
    %7080 = vmatpush1.msra.mxu0 %v5558
    %7081 = vmatprep.subr.mxu0 0.0
    %7082 = vmatpush1.msra.mxu0 %v5559
    %7083 = vmatprep.subr.mxu0 0.0
    %7084 = vmatpush1.msra.mxu0 %v5560
    %7085 = vmatprep.subr.mxu0 0.0
    %7086 = vmatpush1.msra.mxu0 %v5561
    %7087 = vmatprep.subr.mxu0 0.0
    %7088 = vmatpush1.msra.mxu0 %v5562
    %7089 = vmatprep.mubr.f32.mxu0 %v6938
    %7090 = vmatmul.mubr.f32.gmra.mrb[0].mxu0 %v6756
    %v7091 = vpop.f32.mrb[0].mxu0
    %v7092 = vadd.f32 %v7017, %v7091
    %v7093 = vpop.f32.mrb[0].mxu0
    %7094 = vmatprep.mubr.f32.mxu0 %v6943
    %7095 = vmatmul.mubr.f32.gmra.mrb[0].mxu0 %v6761
    %v7096 = vpop.f32.mrb[0].mxu0
    %v7097 = vadd.f32 %v7022, %v7096
    %v7098 = vpop.f32.mrb[0].mxu0
    %7099 = vdwg.mxu0
    %v7100 = vadd.f32 %v5497, %v7092
    %v7101 = vadd.f32 %v5498, %v7097
    %v7102 = vld [vmem:[#allocation4 + $0xb90] sm:$0x1]
    %v7103 = vld [vmem:[#allocation4 + $0xb98] sm:$0x1]
    %7104 = vadd.xlane.f32.xlu0 %v7100
    %v7105 = vpop.xlane.xlu0 %7104
    %7106 = vadd.xlane.f32.xlu0 %v7101
    %v7107 = vpop.xlane.xlu0 %7106
    %v7108 = vmul.f32 %v7105, 0.03125
    %v7109 = vmul.f32 %v7107, 0.03125
    %v7110 = vsub.f32 %v7100, %v7108
    %v7111 = vsub.f32 %v7101, %v7109
    %v7112 = vsel %vm1682, %v7110, 0.0
    %v7113 = vsel %vm1682, %v7111, 0.0
    %v7114 = vmul.f32 %v7112, %v7112
    %v7115 = vmul.f32 %v7113, %v7113
    %7116 = vadd.xlane.f32.xlu0 %v7114
    %v7117 = vpop.xlane.xlu0 %7116
    %7118 = vadd.xlane.f32.xlu0 %v7115
    %v7119 = vpop.xlane.xlu0 %7118
    %v7120 = vmul.f32 %v7117, 0.03125
    %v7121 = vmul.f32 %v7119, 0.03125
    %v7122 = vadd.f32 %v7120, 1e-05
    %v7123 = vadd.f32 %v7121, 1e-05
    %v7124 = vrsqrt.pop %v7122
    %v7125 = vrsqrt.pop %v7123
    %v7126 = vmul.f32 %v7112, %v7124
    %v7127 = vmul.f32 %v7113, %v7125
    %v7128 = vlaneseq
    %v7129 = vshrl.u32 %v7128, 7
    %v7130 = vsub.s32 0, %v7129
    %v7131 = vrot.slane %v7102, %v7130
    %v7132 = vmul.f32 %v7126, %v7131
    %v7133 = vmul.f32 %v7127, %v7131
    %v7134 = vlaneseq
    %v7135 = vshrl.u32 %v7134, 7
    %v7136 = vsub.s32 0, %v7135
    %v7137 = vrot.slane %v7103, %v7136
    %v7138 = vadd.f32 %v7132, %v7137
    %v7139 = vadd.f32 %v7133, %v7137
    %v7140 = vld [vmem:[#allocation4 + $0xa88] sm:$0xff]
    %v7141 = vld [vmem:[#allocation4 + $0xa90] sm:$0xff]
    %v7142 = vld [vmem:[#allocation4 + $0xa98] sm:$0xff]
    %v7143 = vld [vmem:[#allocation4 + $0xaa0] sm:$0xff]
    %v7144 = vld [vmem:[#allocation4 + $0xaa8] sm:$0xff]
    %v7145 = vld [vmem:[#allocation4 + $0xab0] sm:$0xff]
    %v7146 = vld [vmem:[#allocation4 + $0xab8] sm:$0xff]
    %v7147 = vld [vmem:[#allocation4 + $0xac0] sm:$0xff]
    %v7148 = vld [vmem:[#allocation4 + $0xac8] sm:$0xff]
    %v7149 = vld [vmem:[#allocation4 + $0xad0] sm:$0xff]
    %v7150 = vld [vmem:[#allocation4 + $0xad8] sm:$0xff]
    %v7151 = vld [vmem:[#allocation4 + $0xae0] sm:$0xff]
    %v7152 = vld [vmem:[#allocation4 + $0xae8] sm:$0xff]
    %v7153 = vld [vmem:[#allocation4 + $0xaf0] sm:$0xff]
    %v7154 = vld [vmem:[#allocation4 + $0xaf8] sm:$0xff]
    %v7155 = vld [vmem:[#allocation4 + $0xb00] sm:$0xff]
    %v7156 = vld [vmem:[#allocation4 + $0xba0] sm:$0x1]
    %v7157 = vlaneseq
    %v7158 = vshrl.u32 %v7157, 7
    %v7159 = vsub.s32 0, %v7158
    %v7160 = vrot.slane %v7156, %v7159
    %7161 = vmatprep.subr.mxu0 0.0
    %7162 = vmatpush1.msra.mxu0 %v7140
    %7163 = vmatprep.subr.mxu0 0.0
    %7164 = vmatpush1.msra.mxu0 %v7141
    %7165 = vmatprep.subr.mxu0 0.0
    %7166 = vmatpush1.msra.mxu0 %v7142
    %7167 = vmatprep.subr.mxu0 0.0
    %7168 = vmatpush1.msra.mxu0 %v7143
    %7169 = vmatprep.subr.mxu0 0.0
    %7170 = vmatpush1.msra.mxu0 %v7144
    %7171 = vmatprep.subr.mxu0 0.0
    %7172 = vmatpush1.msra.mxu0 %v7145
    %7173 = vmatprep.subr.mxu0 0.0
    %7174 = vmatpush1.msra.mxu0 %v7146
    %7175 = vmatprep.subr.mxu0 0.0
    %7176 = vmatpush1.msra.mxu0 %v7147
    %7177 = vmatprep.subr.mxu0 0.0
    %7178 = vmatpush1.msra.mxu0 %v7148
    %7179 = vmatprep.subr.mxu0 0.0
    %7180 = vmatpush1.msra.mxu0 %v7149
    %7181 = vmatprep.subr.mxu0 0.0
    %7182 = vmatpush1.msra.mxu0 %v7150
    %7183 = vmatprep.subr.mxu0 0.0
    %7184 = vmatpush1.msra.mxu0 %v7151
    %7185 = vmatprep.subr.mxu0 0.0
    %7186 = vmatpush1.msra.mxu0 %v7152
    %7187 = vmatprep.subr.mxu0 0.0
    %7188 = vmatpush1.msra.mxu0 %v7153
    %7189 = vmatprep.subr.mxu0 0.0
    %7190 = vmatpush1.msra.mxu0 %v7154
    %7191 = vmatprep.subr.mxu0 0.0
    %7192 = vmatpush1.msra.mxu0 %v7155
    %7193 = vmatprep.subr.mxu0 0.0
    %7194 = vmatpush1.msra.mxu0 0.0
    %7195 = vmatprep.subr.mxu0 0.0
    %7196 = vmatpush1.msra.mxu0 0.0
    %7197 = vmatprep.subr.mxu0 0.0
    %7198 = vmatpush1.msra.mxu0 0.0
    %7199 = vmatprep.subr.mxu0 0.0
    %7200 = vmatpush1.msra.mxu0 0.0
    %7201 = vmatprep.subr.mxu0 0.0
    %7202 = vmatpush1.msra.mxu0 0.0
    %7203 = vmatprep.subr.mxu0 0.0
    %7204 = vmatpush1.msra.mxu0 0.0
    %7205 = vmatprep.subr.mxu0 0.0
    %7206 = vmatpush1.msra.mxu0 0.0
    %7207 = vmatprep.subr.mxu0 0.0
    %7208 = vmatpush1.msra.mxu0 0.0
    %7209 = vmatprep.subr.mxu0 0.0
    %7210 = vmatpush1.msra.mxu0 0.0
    %7211 = vmatprep.subr.mxu0 0.0
    %7212 = vmatpush1.msra.mxu0 0.0
    %7213 = vmatprep.subr.mxu0 0.0
    %7214 = vmatpush1.msra.mxu0 0.0
    %7215 = vmatprep.subr.mxu0 0.0
    %7216 = vmatpush1.msra.mxu0 0.0
    %7217 = vmatprep.subr.mxu0 0.0
    %7218 = vmatpush1.msra.mxu0 0.0
    %7219 = vmatprep.subr.mxu0 0.0
    %7220 = vmatpush1.msra.mxu0 0.0
    %7221 = vmatprep.subr.mxu0 0.0
    %7222 = vmatpush1.msra.mxu0 0.0
    %7223 = vmatprep.subr.mxu0 0.0
    %7224 = vmatpush1.msra.mxu0 0.0
    %7225 = vmatprep.mubr.f32.mxu0 0.0
    %7226 = vmatmul.mubr.f32.gmra.mrb[0].mxu0 %v7138
    %v7227 = vpop.f32.mrb[0].mxu0
    %v7228 = vadd.f32 %v7160, %v7227
    %v7229 = vpop.f32.mrb[0].mxu0
    %7230 = vmatprep.mubr.f32.mxu0 0.0
    %7231 = vmatmul.mubr.f32.gmra.mrb[0].mxu0 %v7139
    %v7232 = vpop.f32.mrb[0].mxu0
    %v7233 = vadd.f32 %v7160, %v7232
    %v7234 = vpop.f32.mrb[0].mxu0
    %7235 = vdwg.mxu0
    %v7236 = vmul.f32 %v7228, 0.5
    %v7237 = vmul.f32 %v7233, 0.5
    %v7238 = vmul.f32 %v7228, 0.044715
    %v7239 = vmul.f32 %v7233, 0.044715
    %v7240 = vmul.f32 %v7238, %v7228
    %v7241 = vmul.f32 %v7239, %v7233
    %v7242 = vmul.f32 %v7240, %v7228
    %v7243 = vmul.f32 %v7241, %v7233
    %v7244 = vadd.f32 %v7228, %v7242
    %v7245 = vadd.f32 %v7233, %v7243
    %v7246 = vmul.f32 %v7244, 0.7978846
    %v7247 = vmul.f32 %v7245, 0.7978846
    %v7248 = vtanh.pop %v7246
    %v7249 = vtanh.pop %v7247
    %v7250 = vadd.f32 %v7248, 1.0
    %v7251 = vadd.f32 %v7249, 1.0
    %v7252 = vmul.f32 %v7236, %v7250
    %v7253 = vmul.f32 %v7237, %v7251
    %v7254 = vld [vmem:[#allocation4 + $0xb08] sm:$0xff]
    %v7255 = vld [vmem:[#allocation4 + $0xb10] sm:$0xff]
    %v7256 = vld [vmem:[#allocation4 + $0xb18] sm:$0xff]
    %v7257 = vld [vmem:[#allocation4 + $0xb20] sm:$0xff]
    %v7258 = vld [vmem:[#allocation4 + $0xb28] sm:$0xff]
    %v7259 = vld [vmem:[#allocation4 + $0xb30] sm:$0xff]
    %v7260 = vld [vmem:[#allocation4 + $0xb38] sm:$0xff]
    %v7261 = vld [vmem:[#allocation4 + $0xb40] sm:$0xff]
    %v7262 = vld [vmem:[#allocation4 + $0xb48] sm:$0xff]
    %v7263 = vld [vmem:[#allocation4 + $0xb50] sm:$0xff]
    %v7264 = vld [vmem:[#allocation4 + $0xb58] sm:$0xff]
    %v7265 = vld [vmem:[#allocation4 + $0xb60] sm:$0xff]
    %v7266 = vld [vmem:[#allocation4 + $0xb68] sm:$0xff]
    %v7267 = vld [vmem:[#allocation4 + $0xb70] sm:$0xff]
    %v7268 = vld [vmem:[#allocation4 + $0xb78] sm:$0xff]
    %v7269 = vld [vmem:[#allocation4 + $0xb80] sm:$0xff]
    %v7270 = vld [vmem:[#allocation4 + $0xba8] sm:$0x1]
    %v7271 = vlaneseq
    %v7272 = vshrl.u32 %v7271, 7
    %v7273 = vsub.s32 0, %v7272
    %v7274 = vrot.slane %v7270, %v7273
    %7275 = vmatprep.subr.mxu0 0.0
    %7276 = vmatpush1.msra.mxu0 %v7254
    %7277 = vmatprep.subr.mxu0 0.0
    %7278 = vmatpush1.msra.mxu0 %v7255
    %7279 = vmatprep.subr.mxu0 0.0
    %7280 = vmatpush1.msra.mxu0 %v7256
    %7281 = vmatprep.subr.mxu0 0.0
    %7282 = vmatpush1.msra.mxu0 %v7257
    %7283 = vmatprep.subr.mxu0 0.0
    %7284 = vmatpush1.msra.mxu0 %v7258
    %7285 = vmatprep.subr.mxu0 0.0
    %7286 = vmatpush1.msra.mxu0 %v7259
    %7287 = vmatprep.subr.mxu0 0.0
    %7288 = vmatpush1.msra.mxu0 %v7260
    %7289 = vmatprep.subr.mxu0 0.0
    %7290 = vmatpush1.msra.mxu0 %v7261
    %7291 = vmatprep.subr.mxu0 0.0
    %7292 = vmatpush1.msra.mxu0 %v7262
    %7293 = vmatprep.subr.mxu0 0.0
    %7294 = vmatpush1.msra.mxu0 %v7263
    %7295 = vmatprep.subr.mxu0 0.0
    %7296 = vmatpush1.msra.mxu0 %v7264
    %7297 = vmatprep.subr.mxu0 0.0
    %7298 = vmatpush1.msra.mxu0 %v7265
    %7299 = vmatprep.subr.mxu0 0.0
    %7300 = vmatpush1.msra.mxu0 %v7266
    %7301 = vmatprep.subr.mxu0 0.0
    %7302 = vmatpush1.msra.mxu0 %v7267
    %7303 = vmatprep.subr.mxu0 0.0
    %7304 = vmatpush1.msra.mxu0 %v7268
    %7305 = vmatprep.subr.mxu0 0.0
    %7306 = vmatpush1.msra.mxu0 %v7269
    %7307 = vmatprep.subr.mxu0 0.0
    %7308 = vmatpush1.msra.mxu0 0.0
    %7309 = vmatprep.subr.mxu0 0.0
    %7310 = vmatpush1.msra.mxu0 0.0
    %7311 = vmatprep.subr.mxu0 0.0
    %7312 = vmatpush1.msra.mxu0 0.0
    %7313 = vmatprep.subr.mxu0 0.0
    %7314 = vmatpush1.msra.mxu0 0.0
    %7315 = vmatprep.subr.mxu0 0.0
    %7316 = vmatpush1.msra.mxu0 0.0
    %7317 = vmatprep.subr.mxu0 0.0
    %7318 = vmatpush1.msra.mxu0 0.0
    %7319 = vmatprep.subr.mxu0 0.0
    %7320 = vmatpush1.msra.mxu0 0.0
    %7321 = vmatprep.subr.mxu0 0.0
    %7322 = vmatpush1.msra.mxu0 0.0
    %7323 = vmatprep.subr.mxu0 0.0
    %7324 = vmatpush1.msra.mxu0 0.0
    %7325 = vmatprep.subr.mxu0 0.0
    %7326 = vmatpush1.msra.mxu0 0.0
    %7327 = vmatprep.subr.mxu0 0.0
    %7328 = vmatpush1.msra.mxu0 0.0
    %7329 = vmatprep.subr.mxu0 0.0
    %7330 = vmatpush1.msra.mxu0 0.0
    %7331 = vmatprep.subr.mxu0 0.0
    %7332 = vmatpush1.msra.mxu0 0.0
    %7333 = vmatprep.subr.mxu0 0.0
    %7334 = vmatpush1.msra.mxu0 0.0
    %7335 = vmatprep.subr.mxu0 0.0
    %7336 = vmatpush1.msra.mxu0 0.0
    %7337 = vmatprep.subr.mxu0 0.0
    %7338 = vmatpush1.msra.mxu0 0.0
    %7339 = vmatprep.mubr.f32.mxu0 0.0
    %7340 = vmatmul.mubr.f32.gmra.mrb[0].mxu0 %v7252
    %v7341 = vpop.f32.mrb[0].mxu0
    %v7342 = vadd.f32 %v7274, %v7341
    %v7343 = vpop.f32.mrb[0].mxu0
    %7344 = vmatprep.mubr.f32.mxu0 0.0
    %7345 = vmatmul.mubr.f32.gmra.mrb[0].mxu0 %v7253
    %v7346 = vpop.f32.mrb[0].mxu0
    %v7347 = vadd.f32 %v7274, %v7346
    %v7348 = vpop.f32.mrb[0].mxu0
    %7349 = vdwg.mxu0
    %v7350 = vadd.f32 %v7138, %v7342
    %v7351 = vadd.f32 %v7139, %v7347
    %v7352 = vld [vmem:[#allocation4 + $0xbb0] sm:$0x1]
    %v7353 = vld [vmem:[#allocation4 + $0xbb8] sm:$0x1]
    %7354 = vadd.xlane.f32.xlu0 %v7350
    %v7355 = vpop.xlane.xlu0 %7354
    %7356 = vadd.xlane.f32.xlu0 %v7351
    %v7357 = vpop.xlane.xlu0 %7356
    %v7358 = vmul.f32 %v7355, 0.03125
    %v7359 = vmul.f32 %v7357, 0.03125
    %v7360 = vsub.f32 %v7350, %v7358
    %v7361 = vsub.f32 %v7351, %v7359
    %v7362 = vsel %vm1682, %v7360, 0.0
    %v7363 = vsel %vm1682, %v7361, 0.0
    %v7364 = vmul.f32 %v7362, %v7362
    %v7365 = vmul.f32 %v7363, %v7363
    %7366 = vadd.xlane.f32.xlu0 %v7364
    %v7367 = vpop.xlane.xlu0 %7366
    %7368 = vadd.xlane.f32.xlu0 %v7365
    %v7369 = vpop.xlane.xlu0 %7368
    %v7370 = vmul.f32 %v7367, 0.03125
    %v7371 = vmul.f32 %v7369, 0.03125
    %v7372 = vadd.f32 %v7370, 1e-05
    %v7373 = vadd.f32 %v7371, 1e-05
    %v7374 = vrsqrt.pop %v7372
    %v7375 = vrsqrt.pop %v7373
    %v7376 = vmul.f32 %v7362, %v7374
    %v7377 = vmul.f32 %v7363, %v7375
    %v7378 = vlaneseq
    %v7379 = vshrl.u32 %v7378, 7
    %v7380 = vsub.s32 0, %v7379
    %v7381 = vrot.slane %v7352, %v7380
    %v7382 = vmul.f32 %v7376, %v7381
    %v7383 = vmul.f32 %v7377, %v7381
    %v7384 = vlaneseq
    %v7385 = vshrl.u32 %v7384, 7
    %v7386 = vsub.s32 0, %v7385
    %v7387 = vrot.slane %v7353, %v7386
    %v7388 = vadd.f32 %v7382, %v7387
    %v7389 = vadd.f32 %v7383, %v7387
    %v7390 = vld [vmem:[#allocation4 + $0xbc0] sm:$0xff]
    %v7391 = vld [vmem:[#allocation4 + $0xbc8] sm:$0xff]
    %v7392 = vld [vmem:[#allocation4 + $0xbd0] sm:$0xff]
    %v7393 = vld [vmem:[#allocation4 + $0xbd8] sm:$0xff]
    %v7394 = vld [vmem:[#allocation4 + $0xbe0] sm:$0xff]
    %v7395 = vld [vmem:[#allocation4 + $0xbe8] sm:$0xff]
    %v7396 = vld [vmem:[#allocation4 + $0xbf0] sm:$0xff]
    %v7397 = vld [vmem:[#allocation4 + $0xbf8] sm:$0xff]
    %v7398 = vld [vmem:[#allocation4 + $0xc00] sm:$0xff]
    %v7399 = vld [vmem:[#allocation4 + $0xc08] sm:$0xff]
    %v7400 = vld [vmem:[#allocation4 + $0xc10] sm:$0xff]
    %v7401 = vld [vmem:[#allocation4 + $0xc18] sm:$0xff]
    %v7402 = vld [vmem:[#allocation4 + $0xc20] sm:$0xff]
    %v7403 = vld [vmem:[#allocation4 + $0xc28] sm:$0xff]
    %v7404 = vld [vmem:[#allocation4 + $0xc30] sm:$0xff]
    %v7405 = vld [vmem:[#allocation4 + $0xc38] sm:$0xff]
    %v7406 = vld [vmem:[#allocation4 + $0xc40] sm:$0x1]
    %v7407 = vlaneseq
    %v7408 = vshrl.u32 %v7407, 7
    %v7409 = vsub.s32 0, %v7408
    %v7410 = vrot.slane %v7406, %v7409
    %7411 = vmatprep.subr.mxu0 0.0
    %7412 = vmatpush1.msra.mxu0 %v7390
    %7413 = vmatprep.subr.mxu0 0.0
    %7414 = vmatpush1.msra.mxu0 %v7391
    %7415 = vmatprep.subr.mxu0 0.0
    %7416 = vmatpush1.msra.mxu0 %v7392
    %7417 = vmatprep.subr.mxu0 0.0
    %7418 = vmatpush1.msra.mxu0 %v7393
    %7419 = vmatprep.subr.mxu0 0.0
    %7420 = vmatpush1.msra.mxu0 %v7394
    %7421 = vmatprep.subr.mxu0 0.0
    %7422 = vmatpush1.msra.mxu0 %v7395
    %7423 = vmatprep.subr.mxu0 0.0
    %7424 = vmatpush1.msra.mxu0 %v7396
    %7425 = vmatprep.subr.mxu0 0.0
    %7426 = vmatpush1.msra.mxu0 %v7397
    %7427 = vmatprep.subr.mxu0 0.0
    %7428 = vmatpush1.msra.mxu0 %v7398
    %7429 = vmatprep.subr.mxu0 0.0
    %7430 = vmatpush1.msra.mxu0 %v7399
    %7431 = vmatprep.subr.mxu0 0.0
    %7432 = vmatpush1.msra.mxu0 %v7400
    %7433 = vmatprep.subr.mxu0 0.0
    %7434 = vmatpush1.msra.mxu0 %v7401
    %7435 = vmatprep.subr.mxu0 0.0
    %7436 = vmatpush1.msra.mxu0 %v7402
    %7437 = vmatprep.subr.mxu0 0.0
    %7438 = vmatpush1.msra.mxu0 %v7403
    %7439 = vmatprep.subr.mxu0 0.0
    %7440 = vmatpush1.msra.mxu0 %v7404
    %7441 = vmatprep.subr.mxu0 0.0
    %7442 = vmatpush1.msra.mxu0 %v7405
    %7443 = vmatprep.subr.mxu0 0.0
    %7444 = vmatpush1.msra.mxu0 0.0
    %7445 = vmatprep.subr.mxu0 0.0
    %7446 = vmatpush1.msra.mxu0 0.0
    %7447 = vmatprep.subr.mxu0 0.0
    %7448 = vmatpush1.msra.mxu0 0.0
    %7449 = vmatprep.subr.mxu0 0.0
    %7450 = vmatpush1.msra.mxu0 0.0
    %7451 = vmatprep.subr.mxu0 0.0
    %7452 = vmatpush1.msra.mxu0 0.0
    %7453 = vmatprep.subr.mxu0 0.0
    %7454 = vmatpush1.msra.mxu0 0.0
    %7455 = vmatprep.subr.mxu0 0.0
    %7456 = vmatpush1.msra.mxu0 0.0
    %7457 = vmatprep.subr.mxu0 0.0
    %7458 = vmatpush1.msra.mxu0 0.0
    %7459 = vmatprep.subr.mxu0 0.0
    %7460 = vmatpush1.msra.mxu0 0.0
    %7461 = vmatprep.subr.mxu0 0.0
    %7462 = vmatpush1.msra.mxu0 0.0
    %7463 = vmatprep.subr.mxu0 0.0
    %7464 = vmatpush1.msra.mxu0 0.0
    %7465 = vmatprep.subr.mxu0 0.0
    %7466 = vmatpush1.msra.mxu0 0.0
    %7467 = vmatprep.subr.mxu0 0.0
    %7468 = vmatpush1.msra.mxu0 0.0
    %7469 = vmatprep.subr.mxu0 0.0
    %7470 = vmatpush1.msra.mxu0 0.0
    %7471 = vmatprep.subr.mxu0 0.0
    %7472 = vmatpush1.msra.mxu0 0.0
    %7473 = vmatprep.subr.mxu0 0.0
    %7474 = vmatpush1.msra.mxu0 0.0
    %7475 = vmatprep.mubr.f32.mxu0 0.0
    %7476 = vmatmul.mubr.f32.gmra.mrb[0].mxu0 %v7388
    %v7477 = vpop.f32.mrb[0].mxu0
    %v7478 = vadd.f32 %v7410, %v7477
    %v7479 = vpop.f32.mrb[0].mxu0
    %7480 = vmatprep.mubr.f32.mxu0 0.0
    %7481 = vmatmul.mubr.f32.gmra.mrb[0].mxu0 %v7389
    %v7482 = vpop.f32.mrb[0].mxu0
    %v7483 = vadd.f32 %v7410, %v7482
    %v7484 = vpop.f32.mrb[0].mxu0
    %7485 = vdwg.mxu0
    %v7486 = vsel %vm1682, %v7478, -1e+30
    %v7487 = vsel %vm1682, %v7483, -1e+30
    %7488 = vmax.xlane.f32.xlu0 %v7486
    %v7489 = vpop.xlane.xlu0 %7488
    %7490 = vmax.xlane.f32.xlu0 %v7487
    %v7491 = vpop.xlane.xlu0 %7490
    %v7492 = vsub.f32 %v7486, %v7489
    %v7493 = vsub.f32 %v7487, %v7491
    %v7494 = vmul.f32 %v7492, 1.442695
    %v7495 = vpow.pop %v7494
    %v7496 = vmul.f32 %v7493, 1.442695
    %v7497 = vpow.pop %v7496
    %7498 = vadd.xlane.f32.xlu0 %v7495
    %v7499 = vpop.xlane.xlu0 %7498
    %7500 = vadd.xlane.f32.xlu0 %v7497
    %v7501 = vpop.xlane.xlu0 %7500
    %v7502 = vrcp.pop %v7499
    %v7503 = vmul.f32 %v7495, %v7502
    %v7504 = vrcp.pop %v7501
    %v7505 = vmul.f32 %v7497, %v7504
    %7506 = vst [vmem:[%s3] sm:$0xff] %v7503
    %7507 = vst [vmem:[%s3 + $0x8] sm:$0xff] %v7505
    // Predicated region
    $region22: #{transformer_forward.1} parent=1 // pred_check
      _
    $region23: #{transformer_forward.1} parent=1 // pred_check_branch
      %7509 = sbr.rel (0) target = $region25
    $region24: #{transformer_forward.1} parent=1 // pred_region
      _
    $region25: #{transformer_forward.1} parent=1 // pred_fallthru
      _
    // Predicated region
    $region26: #{transformer_forward.1} parent=1 // pred_check
      _
    $region27: #{transformer_forward.1} parent=1 // pred_check_branch
      %7511 = sbr.rel (0) target = $region29
    $region28: #{transformer_forward.1} parent=1 // pred_region
      _
    $region29: #{transformer_forward.1} parent=1 // pred_fallthru
      _
    %7512 = vsyncpa [#allocation3], 1
    %7513 = vsyncpa [#allocation5], 1

</llo_original>
